<compile_context>
chip_gen: v7x
topology: tpu7x:2x2x1
jax: 0.10.0
libtpu: 0.0.40
codegen_flags: <defaults>
</compile_context>

<pallas_src>
import functools

import jax
import jax.numpy as jnp
from jax.experimental import pallas as pl
from jax.experimental.pallas import tpu as pltpu

CP = 128   # lane-padded channel count (TPU vreg lane width)
C1 = 32    # conv1 / conv3 real output channels
C2 = 64    # conv2 real output channels


def _autoencoder_kernel(x_ref, w1_ref, b1_ref, w2_ref, b2_ref,
                        w3_ref, b3_ref, w4_ref, b4_ref, o_ref,
                        pad2_ref, pad3_ref, pad4_ref, *, H, W):
    """Entire ConvAutoencoder forward for one batch element, VMEM-resident.

    x_ref : (1, H+2, W+2, 1)   spatially zero-padded single-channel image
    w1    : (9, CP) f32        conv1 taps (Cin=1), Cout zero-padded to CP
    w2,w3 : (9, CP, CP) bf16   conv2/conv3 taps, Cin/Cout zero-padded to CP
    w4    : (9, CP) f32        conv4 taps (Cout=1), Cin zero-padded to CP
    b*    : (1, CP) / (1, 1) f32
    o_ref : (1, H*W, 1) f32    sigmoid output, flattened row-major (h*W + w)
    pad*  : zero-padded VMEM scratches for the conv2/conv3/conv4 inputs
    """
    f32 = jnp.float32
    bf16 = jnp.bfloat16
    Hh, Wh = H // 2, W // 2      # spatial size of conv2/conv3
    Hq, Wq = H // 4, W // 4      # bottleneck spatial size

    # ---------------- conv1 (1 -> 32, pad=1) + ReLU : VPU broadcast MADs ----
    # Cin == 1, so each tap is a rank-1 update; keep it off the MXU.
    acc1 = jnp.zeros((H, W, CP), f32)
    for ky in range(3):
        for kx in range(3):
            t = ky * 3 + kx
            patch = x_ref[0, ky:ky + H, kx:kx + W, :]       # (H, W, 1)
            acc1 = acc1 + patch * w1_ref[t:t + 1, :]        # lane-broadcast MAD
    h1 = jnp.maximum(acc1 + b1_ref[...], 0.0)               # (H, W, CP)

    # ---------------- maxpool 2x2 #1, written into padded conv2 input -------
    hp1 = jnp.max(h1.reshape(Hh, 2, W, CP), axis=1)         # pool along H
    pad2_ref[...] = jnp.zeros((Hh + 2, Wh + 2, CP), f32)
    for j in range(Wh):                                     # pool along W
        pair = hp1[:, 2 * j:2 * j + 2, :]                   # (Hh, 2, CP)
        pad2_ref[1:Hh + 1, 1 + j:2 + j, :] = jnp.max(pair, axis=1, keepdims=True)

    # ---------------- conv2 (32 -> 64, pad=1) + ReLU : MXU, bf16 operands ---
    acc2 = jnp.zeros((Hh * Wh, CP), f32)
    for ky in range(3):
        for kx in range(3):
            patch = pad2_ref[ky:ky + Hh, kx:kx + Wh, :]
            patch = patch.reshape(Hh * Wh, CP).astype(bf16)
            acc2 = acc2 + jnp.dot(patch, w2_ref[ky * 3 + kx],
                                  preferred_element_type=f32)
    h2 = jnp.maximum(acc2 + b2_ref[...], 0.0)               # (Hh*Wh, CP)

    # ------------- maxpool 2x2 #2 fused with nearest upsample x2 #1 ---------
    hp2 = jnp.max(h2.reshape(Hq, 2, Wh, CP), axis=1)        # (Hq, Wh, CP), H-pooled
    pad3_ref[...] = jnp.zeros((Hh + 2, Wh + 2, CP), f32)
    for c in range(Wq):
        enc_col = jnp.max(hp2[:, 2 * c:2 * c + 2, :], axis=1, keepdims=True)  # (Hq,1,CP)
        up_col = jnp.broadcast_to(enc_col[:, None, :, :],
                                  (Hq, 2, 1, CP)).reshape(Hh, 1, CP)          # repeat rows
        pad3_ref[1:Hh + 1, 1 + 2 * c:2 + 2 * c, :] = up_col
        pad3_ref[1:Hh + 1, 2 + 2 * c:3 + 2 * c, :] = up_col

    # ---------------- conv3 (64 -> 32, pad=1) + ReLU : MXU, bf16 operands ---
    acc3 = jnp.zeros((Hh * Wh, CP), f32)
    for ky in range(3):
        for kx in range(3):
            patch = pad3_ref[ky:ky + Hh, kx:kx + Wh, :]
            patch = patch.reshape(Hh * Wh, CP).astype(bf16)
            acc3 = acc3 + jnp.dot(patch, w3_ref[ky * 3 + kx],
                                  preferred_element_type=f32)
    h3 = jnp.maximum(acc3 + b3_ref[...], 0.0).reshape(Hh, Wh, CP)

    # ------------- nearest upsample x2 #2, written into padded conv4 input --
    pad4_ref[...] = jnp.zeros((H + 2, W + 2, CP), f32)
    for c in range(Wh):
        col = h3[:, c:c + 1, :]                                               # (Hh,1,CP)
        up_col = jnp.broadcast_to(col[:, None, :, :],
                                  (Hh, 2, 1, CP)).reshape(H, 1, CP)
        pad4_ref[1:H + 1, 1 + 2 * c:2 + 2 * c, :] = up_col
        pad4_ref[1:H + 1, 2 + 2 * c:3 + 2 * c, :] = up_col

    # -------- conv4 (32 -> 1, pad=1) + Sigmoid : VPU MADs + lane reduce -----
    acc4 = jnp.zeros((H * W, CP), f32)
    for ky in range(3):
        for kx in range(3):
            t = ky * 3 + kx
            patch = pad4_ref[ky:ky + H, kx:kx + W, :].reshape(H * W, CP)
            acc4 = acc4 + patch * w4_ref[t:t + 1, :]
    pre = jnp.sum(acc4, axis=1, keepdims=True) + b4_ref[...]                  # (H*W, 1)
    # EUP exp + approx reciprocal (free EUP slot); clamp keeps exact [0, 1].
    sig = pl.reciprocal(1.0 + jnp.exp(-pre), approx=True)
    o_ref[0] = jnp.clip(sig, 0.0, 1.0)


def _prepare_params(params):
    """Zero-pad channels to CP lanes, flatten 3x3 taps, cast MXU weights to bf16."""
    f32 = jnp.float32
    w1 = jnp.pad(params["w1"].astype(f32),
                 ((0, 0), (0, 0), (0, 0), (0, CP - C1))).reshape(9, CP)
    b1 = jnp.pad(params["b1"].astype(f32), (0, CP - C1)).reshape(1, CP)
    w2 = jnp.pad(params["w2"].astype(f32),
                 ((0, 0), (0, 0), (0, CP - C1), (0, CP - C2))
                 ).reshape(9, CP, CP).astype(jnp.bfloat16)
    b2 = jnp.pad(params["b2"].astype(f32), (0, CP - C2)).reshape(1, CP)
    w3 = jnp.pad(params["w3"].astype(f32),
                 ((0, 0), (0, 0), (0, CP - C2), (0, CP - C1))
                 ).reshape(9, CP, CP).astype(jnp.bfloat16)
    b3 = jnp.pad(params["b3"].astype(f32), (0, CP - C1)).reshape(1, CP)
    w4 = jnp.pad(params["w4"].astype(f32),
                 ((0, 0), (0, 0), (0, CP - C1), (0, 0))).reshape(9, CP)
    b4 = params["b4"].astype(f32).reshape(1, 1)
    return w1, b1, w2, b2, w3, b3, w4, b4


@jax.jit
def conv_autoencoder_forward(x_nchw, params):
    N, Cin, H, W = x_nchw.shape
    assert Cin == 1 and H % 4 == 0 and W % 4 == 0
    Hh, Wh = H // 2, W // 2
    w1, b1, w2, b2, w3, b3, w4, b4 = _prepare_params(params)

    # NCHW -> NHWC is a pure reshape for Cin == 1; tiny (~2.6 KB) spatial pad.
    x = x_nchw.astype(jnp.float32).reshape(N, H, W, 1)
    xp = jnp.pad(x, ((0, 0), (1, 1), (1, 1), (0, 0)))

    kernel = functools.partial(_autoencoder_kernel, H=H, W=W)
    out = pl.pallas_call(
        kernel,
        out_shape=jax.ShapeDtypeStruct((N, H * W, 1), jnp.float32),
        grid_spec=pltpu.PrefetchScalarGridSpec(
            num_scalar_prefetch=0,
            grid=(N,),
            in_specs=[
                pl.BlockSpec((1, H + 2, W + 2, 1), lambda n: (n, 0, 0, 0)),
                pl.BlockSpec((9, CP), lambda n: (0, 0)),          # w1
                pl.BlockSpec((1, CP), lambda n: (0, 0)),          # b1
                pl.BlockSpec((9, CP, CP), lambda n: (0, 0, 0)),   # w2 (bf16)
                pl.BlockSpec((1, CP), lambda n: (0, 0)),          # b2
                pl.BlockSpec((9, CP, CP), lambda n: (0, 0, 0)),   # w3 (bf16)
                pl.BlockSpec((1, CP), lambda n: (0, 0)),          # b3
                pl.BlockSpec((9, CP), lambda n: (0, 0)),          # w4
                pl.BlockSpec((1, 1), lambda n: (0, 0)),           # b4
            ],
            out_specs=pl.BlockSpec((1, H * W, 1), lambda n: (n, 0, 0)),
            scratch_shapes=[
                pltpu.VMEM((Hh + 2, Wh + 2, CP), jnp.float32),    # padded conv2 input
                pltpu.VMEM((Hh + 2, Wh + 2, CP), jnp.float32),    # padded conv3 input
                pltpu.VMEM((H + 2, W + 2, CP), jnp.float32),      # padded conv4 input
            ],
        ),
        compiler_params=pltpu.CompilerParams(
            dimension_semantics=("parallel",)),   # v7x: split batch over 2 TCs
    )(xp, w1, b1, w2, b2, w3, b3, w4, b4)

    # (N, H*W, 1) -> (N, 1, H, W)
    return out.reshape(N, 1, H, W)


def init_params(key):
    ks = jax.random.split(key, 8)
    scale = 0.1
    return {
        # stored directly in HWIO (3, 3, Cin, Cout)
        "w1": scale * jax.random.normal(ks[0], (3, 3, 1, 32), jnp.float32),
        "b1": scale * jax.random.normal(ks[1], (32,), jnp.float32),
        "w2": scale * jax.random.normal(ks[2], (3, 3, 32, 64), jnp.float32),
        "b2": scale * jax.random.normal(ks[3], (64,), jnp.float32),
        "w3": scale * jax.random.normal(ks[4], (3, 3, 64, 32), jnp.float32),
        "b3": scale * jax.random.normal(ks[5], (32,), jnp.float32),
        "w4": scale * jax.random.normal(ks[6], (3, 3, 32, 1), jnp.float32),
        "b4": scale * jax.random.normal(ks[7], (1,), jnp.float32),
    }


if __name__ == "__main__":
    key = jax.random.PRNGKey(0)
    k_param, k_x = jax.random.split(key)
    params = init_params(k_param)
    # Conv2d(1, ...) => single input channel; small 16x16 images, batch 2.
    x = jax.random.uniform(k_x, (2, 1, 16, 16), dtype=jnp.float32)

    out = conv_autoencoder_forward(x, params)
    out = jax.block_until_ready(out)

    assert out.shape == (2, 1, 16, 16), out.shape
    assert out.dtype == jnp.float32
    assert bool(jnp.all((out >= 0.0) & (out <= 1.0)))  # sigmoid output range
    print("KERNEL_OK")
</pallas_src>

<mosaic_0001>
module attributes {stable_mosaic.version = 11 : i64} {
  func.func @_autoencoder_kernel(%arg0: i32, %arg1: memref<1x18x18x1xf32, #tpu.memory_space<vmem>>, %arg2: memref<9x128xf32, #tpu.memory_space<vmem>>, %arg3: memref<1x128xf32, #tpu.memory_space<vmem>>, %arg4: memref<9x128x128xbf16, #tpu.memory_space<vmem>>, %arg5: memref<1x128xf32, #tpu.memory_space<vmem>>, %arg6: memref<9x128x128xbf16, #tpu.memory_space<vmem>>, %arg7: memref<1x128xf32, #tpu.memory_space<vmem>>, %arg8: memref<9x128xf32, #tpu.memory_space<vmem>>, %arg9: memref<1x1xf32, #tpu.memory_space<vmem>>, %arg10: memref<1x256x1xf32, #tpu.memory_space<vmem>>, %arg11: memref<10x10x128xf32, #tpu.memory_space<vmem>>, %arg12: memref<10x10x128xf32, #tpu.memory_space<vmem>>, %arg13: memref<18x18x128xf32, #tpu.memory_space<vmem>>) attributes {dimension_semantics = [#tpu.dimension_semantics<parallel>], iteration_bounds = array<i64: 2>, scalar_prefetch = 0 : i64, scratch_operands = 3 : i64, tpu.core_type = #tpu.core_type<tc>, window_params = [{transform_indices = @transform_0, window_bounds = array<i64: 1, 18, 18, 1>}, {pipeline_mode = #tpu.pipeline_mode<synchronous>, transform_indices = @transform_1, window_bounds = array<i64: 9, 128>}, {pipeline_mode = #tpu.pipeline_mode<synchronous>, transform_indices = @transform_2, window_bounds = array<i64: 1, 128>}, {pipeline_mode = #tpu.pipeline_mode<synchronous>, transform_indices = @transform_3, window_bounds = array<i64: 9, 128, 128>}, {pipeline_mode = #tpu.pipeline_mode<synchronous>, transform_indices = @transform_4, window_bounds = array<i64: 1, 128>}, {pipeline_mode = #tpu.pipeline_mode<synchronous>, transform_indices = @transform_5, window_bounds = array<i64: 9, 128, 128>}, {pipeline_mode = #tpu.pipeline_mode<synchronous>, transform_indices = @transform_6, window_bounds = array<i64: 1, 128>}, {pipeline_mode = #tpu.pipeline_mode<synchronous>, transform_indices = @transform_7, window_bounds = array<i64: 9, 128>}, {pipeline_mode = #tpu.pipeline_mode<synchronous>, transform_indices = @transform_8, window_bounds = array<i64: 1, 1>}, {transform_indices = @transform_9, window_bounds = array<i64: 1, 256, 1>}]} {
    %cst = arith.constant 0.000000e+00 : f32
    %0 = vector.broadcast %cst : f32 to vector<16x16x128xf32>
    %c0 = arith.constant 0 : index
    %c0_0 = arith.constant 0 : index
    %c0_1 = arith.constant 0 : index
    %c0_2 = arith.constant 0 : index
    %1 = vector.load %arg1[%c0, %c0_0, %c0_1, %c0_2] : memref<1x18x18x1xf32, #tpu.memory_space<vmem>>, vector<1x16x16x1xf32>
    %2 = vector.shape_cast %1 : vector<1x16x16x1xf32> to vector<16x16x1xf32>
    %c0_3 = arith.constant 0 : index
    %c0_4 = arith.constant 0 : index
    %3 = vector.load %arg2[%c0_3, %c0_4] : memref<9x128xf32, #tpu.memory_space<vmem>>, vector<1x128xf32>
    %4 = vector.shape_cast %3 : vector<1x128xf32> to vector<1x1x128xf32>
    %5 = vector.broadcast %2 : vector<16x16x1xf32> to vector<16x16x128xf32>
    %6 = vector.broadcast %4 : vector<1x1x128xf32> to vector<16x16x128xf32>
    %7 = arith.mulf %5, %6 : vector<16x16x128xf32>
    %8 = arith.addf %0, %7 : vector<16x16x128xf32>
    %c0_5 = arith.constant 0 : index
    %c0_6 = arith.constant 0 : index
    %c1 = arith.constant 1 : index
    %c0_7 = arith.constant 0 : index
    %9 = vector.load %arg1[%c0_5, %c0_6, %c1, %c0_7] : memref<1x18x18x1xf32, #tpu.memory_space<vmem>>, vector<1x16x16x1xf32>
    %10 = vector.shape_cast %9 : vector<1x16x16x1xf32> to vector<16x16x1xf32>
    %c1_8 = arith.constant 1 : index
    %c0_9 = arith.constant 0 : index
    %11 = vector.load %arg2[%c1_8, %c0_9] : memref<9x128xf32, #tpu.memory_space<vmem>>, vector<1x128xf32>
    %12 = vector.shape_cast %11 : vector<1x128xf32> to vector<1x1x128xf32>
    %13 = vector.broadcast %10 : vector<16x16x1xf32> to vector<16x16x128xf32>
    %14 = vector.broadcast %12 : vector<1x1x128xf32> to vector<16x16x128xf32>
    %15 = arith.mulf %13, %14 : vector<16x16x128xf32>
    %16 = arith.addf %8, %15 : vector<16x16x128xf32>
    %c0_10 = arith.constant 0 : index
    %c0_11 = arith.constant 0 : index
    %c2 = arith.constant 2 : index
    %c0_12 = arith.constant 0 : index
    %17 = vector.load %arg1[%c0_10, %c0_11, %c2, %c0_12] : memref<1x18x18x1xf32, #tpu.memory_space<vmem>>, vector<1x16x16x1xf32>
    %18 = vector.shape_cast %17 : vector<1x16x16x1xf32> to vector<16x16x1xf32>
    %c2_13 = arith.constant 2 : index
    %c0_14 = arith.constant 0 : index
    %19 = vector.load %arg2[%c2_13, %c0_14] : memref<9x128xf32, #tpu.memory_space<vmem>>, vector<1x128xf32>
    %20 = vector.shape_cast %19 : vector<1x128xf32> to vector<1x1x128xf32>
    %21 = vector.broadcast %18 : vector<16x16x1xf32> to vector<16x16x128xf32>
    %22 = vector.broadcast %20 : vector<1x1x128xf32> to vector<16x16x128xf32>
    %23 = arith.mulf %21, %22 : vector<16x16x128xf32>
    %24 = arith.addf %16, %23 : vector<16x16x128xf32>
    %c0_15 = arith.constant 0 : index
    %c1_16 = arith.constant 1 : index
    %c0_17 = arith.constant 0 : index
    %c0_18 = arith.constant 0 : index
    %25 = vector.load %arg1[%c0_15, %c1_16, %c0_17, %c0_18] : memref<1x18x18x1xf32, #tpu.memory_space<vmem>>, vector<1x16x16x1xf32>
    %26 = vector.shape_cast %25 : vector<1x16x16x1xf32> to vector<16x16x1xf32>
    %c3 = arith.constant 3 : index
    %c0_19 = arith.constant 0 : index
    %27 = vector.load %arg2[%c3, %c0_19] : memref<9x128xf32, #tpu.memory_space<vmem>>, vector<1x128xf32>
    %28 = vector.shape_cast %27 : vector<1x128xf32> to vector<1x1x128xf32>
    %29 = vector.broadcast %26 : vector<16x16x1xf32> to vector<16x16x128xf32>
    %30 = vector.broadcast %28 : vector<1x1x128xf32> to vector<16x16x128xf32>
    %31 = arith.mulf %29, %30 : vector<16x16x128xf32>
    %32 = arith.addf %24, %31 : vector<16x16x128xf32>
    %c0_20 = arith.constant 0 : index
    %c1_21 = arith.constant 1 : index
    %c1_22 = arith.constant 1 : index
    %c0_23 = arith.constant 0 : index
    %33 = vector.load %arg1[%c0_20, %c1_21, %c1_22, %c0_23] : memref<1x18x18x1xf32, #tpu.memory_space<vmem>>, vector<1x16x16x1xf32>
    %34 = vector.shape_cast %33 : vector<1x16x16x1xf32> to vector<16x16x1xf32>
    %c4 = arith.constant 4 : index
    %c0_24 = arith.constant 0 : index
    %35 = vector.load %arg2[%c4, %c0_24] : memref<9x128xf32, #tpu.memory_space<vmem>>, vector<1x128xf32>
    %36 = vector.shape_cast %35 : vector<1x128xf32> to vector<1x1x128xf32>
    %37 = vector.broadcast %34 : vector<16x16x1xf32> to vector<16x16x128xf32>
    %38 = vector.broadcast %36 : vector<1x1x128xf32> to vector<16x16x128xf32>
    %39 = arith.mulf %37, %38 : vector<16x16x128xf32>
    %40 = arith.addf %32, %39 : vector<16x16x128xf32>
    %c0_25 = arith.constant 0 : index
    %c1_26 = arith.constant 1 : index
    %c2_27 = arith.constant 2 : index
    %c0_28 = arith.constant 0 : index
    %41 = vector.load %arg1[%c0_25, %c1_26, %c2_27, %c0_28] : memref<1x18x18x1xf32, #tpu.memory_space<vmem>>, vector<1x16x16x1xf32>
    %42 = vector.shape_cast %41 : vector<1x16x16x1xf32> to vector<16x16x1xf32>
    %c5 = arith.constant 5 : index
    %c0_29 = arith.constant 0 : index
    %43 = vector.load %arg2[%c5, %c0_29] : memref<9x128xf32, #tpu.memory_space<vmem>>, vector<1x128xf32>
    %44 = vector.shape_cast %43 : vector<1x128xf32> to vector<1x1x128xf32>
    %45 = vector.broadcast %42 : vector<16x16x1xf32> to vector<16x16x128xf32>
    %46 = vector.broadcast %44 : vector<1x1x128xf32> to vector<16x16x128xf32>
    %47 = arith.mulf %45, %46 : vector<16x16x128xf32>
    %48 = arith.addf %40, %47 : vector<16x16x128xf32>
    %c0_30 = arith.constant 0 : index
    %c2_31 = arith.constant 2 : index
    %c0_32 = arith.constant 0 : index
    %c0_33 = arith.constant 0 : index
    %49 = vector.load %arg1[%c0_30, %c2_31, %c0_32, %c0_33] : memref<1x18x18x1xf32, #tpu.memory_space<vmem>>, vector<1x16x16x1xf32>
    %50 = vector.shape_cast %49 : vector<1x16x16x1xf32> to vector<16x16x1xf32>
    %c6 = arith.constant 6 : index
    %c0_34 = arith.constant 0 : index
    %51 = vector.load %arg2[%c6, %c0_34] : memref<9x128xf32, #tpu.memory_space<vmem>>, vector<1x128xf32>
    %52 = vector.shape_cast %51 : vector<1x128xf32> to vector<1x1x128xf32>
    %53 = vector.broadcast %50 : vector<16x16x1xf32> to vector<16x16x128xf32>
    %54 = vector.broadcast %52 : vector<1x1x128xf32> to vector<16x16x128xf32>
    %55 = arith.mulf %53, %54 : vector<16x16x128xf32>
    %56 = arith.addf %48, %55 : vector<16x16x128xf32>
    %c0_35 = arith.constant 0 : index
    %c2_36 = arith.constant 2 : index
    %c1_37 = arith.constant 1 : index
    %c0_38 = arith.constant 0 : index
    %57 = vector.load %arg1[%c0_35, %c2_36, %c1_37, %c0_38] : memref<1x18x18x1xf32, #tpu.memory_space<vmem>>, vector<1x16x16x1xf32>
    %58 = vector.shape_cast %57 : vector<1x16x16x1xf32> to vector<16x16x1xf32>
    %c7 = arith.constant 7 : index
    %c0_39 = arith.constant 0 : index
    %59 = vector.load %arg2[%c7, %c0_39] : memref<9x128xf32, #tpu.memory_space<vmem>>, vector<1x128xf32>
    %60 = vector.shape_cast %59 : vector<1x128xf32> to vector<1x1x128xf32>
    %61 = vector.broadcast %58 : vector<16x16x1xf32> to vector<16x16x128xf32>
    %62 = vector.broadcast %60 : vector<1x1x128xf32> to vector<16x16x128xf32>
    %63 = arith.mulf %61, %62 : vector<16x16x128xf32>
    %64 = arith.addf %56, %63 : vector<16x16x128xf32>
    %c0_40 = arith.constant 0 : index
    %c2_41 = arith.constant 2 : index
    %c2_42 = arith.constant 2 : index
    %c0_43 = arith.constant 0 : index
    %65 = vector.load %arg1[%c0_40, %c2_41, %c2_42, %c0_43] : memref<1x18x18x1xf32, #tpu.memory_space<vmem>>, vector<1x16x16x1xf32>
    %66 = vector.shape_cast %65 : vector<1x16x16x1xf32> to vector<16x16x1xf32>
    %c8 = arith.constant 8 : index
    %c0_44 = arith.constant 0 : index
    %67 = vector.load %arg2[%c8, %c0_44] : memref<9x128xf32, #tpu.memory_space<vmem>>, vector<1x128xf32>
    %68 = vector.shape_cast %67 : vector<1x128xf32> to vector<1x1x128xf32>
    %69 = vector.broadcast %66 : vector<16x16x1xf32> to vector<16x16x128xf32>
    %70 = vector.broadcast %68 : vector<1x1x128xf32> to vector<16x16x128xf32>
    %71 = arith.mulf %69, %70 : vector<16x16x128xf32>
    %72 = arith.addf %64, %71 : vector<16x16x128xf32>
    %c0_45 = arith.constant 0 : index
    %c0_46 = arith.constant 0 : index
    %73 = vector.load %arg3[%c0_45, %c0_46] : memref<1x128xf32, #tpu.memory_space<vmem>>, vector<1x128xf32>
    %74 = vector.shape_cast %73 : vector<1x128xf32> to vector<1x1x128xf32>
    %75 = vector.broadcast %74 : vector<1x1x128xf32> to vector<16x16x128xf32>
    %76 = arith.addf %72, %75 : vector<16x16x128xf32>
    %cst_47 = arith.constant 0.000000e+00 : f32
    %77 = vector.broadcast %cst_47 : f32 to vector<16x16x128xf32>
    %78 = arith.maximumf %76, %77 : vector<16x16x128xf32>
    %79 = vector.shape_cast %78 : vector<16x16x128xf32> to vector<8x2x16x128xf32>
    %cst_48 = arith.constant dense<0xFF800000> : vector<8x16x128xf32>
    %80 = vector.multi_reduction <maximumf>, %79, %cst_48 [1] : vector<8x2x16x128xf32> to vector<8x16x128xf32>
    %cst_49 = arith.constant 0.000000e+00 : f32
    %81 = vector.broadcast %cst_49 : f32 to vector<10x10x128xf32>
    %c0_50 = arith.constant 0 : index
    %c0_51 = arith.constant 0 : index
    %c0_52 = arith.constant 0 : index
    %82 = vector.load %arg11[%c0_50, %c0_51, %c0_52] : memref<10x10x128xf32, #tpu.memory_space<vmem>>, vector<10x10x128xf32>
    tpu.vector_store %arg11[%c0_50, %c0_51, %c0_52], %81 {strides = array<i32>} : memref<10x10x128xf32, #tpu.memory_space<vmem>>, vector<10x10x128xf32>,
    %83 = vector.extract_strided_slice %80 {offsets = [0, 0, 0], sizes = [8, 2, 128], strides = [1, 1, 1]} : vector<8x16x128xf32> to vector<8x2x128xf32>
    %cst_53 = arith.constant dense<0xFF800000> : vector<8x128xf32>
    %84 = vector.multi_reduction <maximumf>, %83, %cst_53 [1] : vector<8x2x128xf32> to vector<8x128xf32>
    %85 = vector.shape_cast %84 : vector<8x128xf32> to vector<8x1x128xf32>
    %c1_54 = arith.constant 1 : index
    %c1_55 = arith.constant 1 : index
    %c0_56 = arith.constant 0 : index
    %86 = vector.load %arg11[%c1_54, %c1_55, %c0_56] : memref<10x10x128xf32, #tpu.memory_space<vmem>>, vector<8x1x128xf32>
    tpu.vector_store %arg11[%c1_54, %c1_55, %c0_56], %85 {strides = array<i32>} : memref<10x10x128xf32, #tpu.memory_space<vmem>>, vector<8x1x128xf32>,
    %87 = vector.extract_strided_slice %80 {offsets = [0, 2, 0], sizes = [8, 2, 128], strides = [1, 1, 1]} : vector<8x16x128xf32> to vector<8x2x128xf32>
    %cst_57 = arith.constant dense<0xFF800000> : vector<8x128xf32>
    %88 = vector.multi_reduction <maximumf>, %87, %cst_57 [1] : vector<8x2x128xf32> to vector<8x128xf32>
    %89 = vector.shape_cast %88 : vector<8x128xf32> to vector<8x1x128xf32>
    %c1_58 = arith.constant 1 : index
    %c2_59 = arith.constant 2 : index
    %c0_60 = arith.constant 0 : index
    %90 = vector.load %arg11[%c1_58, %c2_59, %c0_60] : memref<10x10x128xf32, #tpu.memory_space<vmem>>, vector<8x1x128xf32>
    tpu.vector_store %arg11[%c1_58, %c2_59, %c0_60], %89 {strides = array<i32>} : memref<10x10x128xf32, #tpu.memory_space<vmem>>, vector<8x1x128xf32>,
    %91 = vector.extract_strided_slice %80 {offsets = [0, 4, 0], sizes = [8, 2, 128], strides = [1, 1, 1]} : vector<8x16x128xf32> to vector<8x2x128xf32>
    %cst_61 = arith.constant dense<0xFF800000> : vector<8x128xf32>
    %92 = vector.multi_reduction <maximumf>, %91, %cst_61 [1] : vector<8x2x128xf32> to vector<8x128xf32>
    %93 = vector.shape_cast %92 : vector<8x128xf32> to vector<8x1x128xf32>
    %c1_62 = arith.constant 1 : index
    %c3_63 = arith.constant 3 : index
    %c0_64 = arith.constant 0 : index
    %94 = vector.load %arg11[%c1_62, %c3_63, %c0_64] : memref<10x10x128xf32, #tpu.memory_space<vmem>>, vector<8x1x128xf32>
    tpu.vector_store %arg11[%c1_62, %c3_63, %c0_64], %93 {strides = array<i32>} : memref<10x10x128xf32, #tpu.memory_space<vmem>>, vector<8x1x128xf32>,
    %95 = vector.extract_strided_slice %80 {offsets = [0, 6, 0], sizes = [8, 2, 128], strides = [1, 1, 1]} : vector<8x16x128xf32> to vector<8x2x128xf32>
    %cst_65 = arith.constant dense<0xFF800000> : vector<8x128xf32>
    %96 = vector.multi_reduction <maximumf>, %95, %cst_65 [1] : vector<8x2x128xf32> to vector<8x128xf32>
    %97 = vector.shape_cast %96 : vector<8x128xf32> to vector<8x1x128xf32>
    %c1_66 = arith.constant 1 : index
    %c4_67 = arith.constant 4 : index
    %c0_68 = arith.constant 0 : index
    %98 = vector.load %arg11[%c1_66, %c4_67, %c0_68] : memref<10x10x128xf32, #tpu.memory_space<vmem>>, vector<8x1x128xf32>
    tpu.vector_store %arg11[%c1_66, %c4_67, %c0_68], %97 {strides = array<i32>} : memref<10x10x128xf32, #tpu.memory_space<vmem>>, vector<8x1x128xf32>,
    %99 = vector.extract_strided_slice %80 {offsets = [0, 8, 0], sizes = [8, 2, 128], strides = [1, 1, 1]} : vector<8x16x128xf32> to vector<8x2x128xf32>
    %cst_69 = arith.constant dense<0xFF800000> : vector<8x128xf32>
    %100 = vector.multi_reduction <maximumf>, %99, %cst_69 [1] : vector<8x2x128xf32> to vector<8x128xf32>
    %101 = vector.shape_cast %100 : vector<8x128xf32> to vector<8x1x128xf32>
    %c1_70 = arith.constant 1 : index
    %c5_71 = arith.constant 5 : index
    %c0_72 = arith.constant 0 : index
    %102 = vector.load %arg11[%c1_70, %c5_71, %c0_72] : memref<10x10x128xf32, #tpu.memory_space<vmem>>, vector<8x1x128xf32>
    tpu.vector_store %arg11[%c1_70, %c5_71, %c0_72], %101 {strides = array<i32>} : memref<10x10x128xf32, #tpu.memory_space<vmem>>, vector<8x1x128xf32>,
    %103 = vector.extract_strided_slice %80 {offsets = [0, 10, 0], sizes = [8, 2, 128], strides = [1, 1, 1]} : vector<8x16x128xf32> to vector<8x2x128xf32>
    %cst_73 = arith.constant dense<0xFF800000> : vector<8x128xf32>
    %104 = vector.multi_reduction <maximumf>, %103, %cst_73 [1] : vector<8x2x128xf32> to vector<8x128xf32>
    %105 = vector.shape_cast %104 : vector<8x128xf32> to vector<8x1x128xf32>
    %c1_74 = arith.constant 1 : index
    %c6_75 = arith.constant 6 : index
    %c0_76 = arith.constant 0 : index
    %106 = vector.load %arg11[%c1_74, %c6_75, %c0_76] : memref<10x10x128xf32, #tpu.memory_space<vmem>>, vector<8x1x128xf32>
    tpu.vector_store %arg11[%c1_74, %c6_75, %c0_76], %105 {strides = array<i32>} : memref<10x10x128xf32, #tpu.memory_space<vmem>>, vector<8x1x128xf32>,
    %107 = vector.extract_strided_slice %80 {offsets = [0, 12, 0], sizes = [8, 2, 128], strides = [1, 1, 1]} : vector<8x16x128xf32> to vector<8x2x128xf32>
    %cst_77 = arith.constant dense<0xFF800000> : vector<8x128xf32>
    %108 = vector.multi_reduction <maximumf>, %107, %cst_77 [1] : vector<8x2x128xf32> to vector<8x128xf32>
    %109 = vector.shape_cast %108 : vector<8x128xf32> to vector<8x1x128xf32>
    %c1_78 = arith.constant 1 : index
    %c7_79 = arith.constant 7 : index
    %c0_80 = arith.constant 0 : index
    %110 = vector.load %arg11[%c1_78, %c7_79, %c0_80] : memref<10x10x128xf32, #tpu.memory_space<vmem>>, vector<8x1x128xf32>
    tpu.vector_store %arg11[%c1_78, %c7_79, %c0_80], %109 {strides = array<i32>} : memref<10x10x128xf32, #tpu.memory_space<vmem>>, vector<8x1x128xf32>,
    %111 = vector.extract_strided_slice %80 {offsets = [0, 14, 0], sizes = [8, 2, 128], strides = [1, 1, 1]} : vector<8x16x128xf32> to vector<8x2x128xf32>
    %cst_81 = arith.constant dense<0xFF800000> : vector<8x128xf32>
    %112 = vector.multi_reduction <maximumf>, %111, %cst_81 [1] : vector<8x2x128xf32> to vector<8x128xf32>
    %113 = vector.shape_cast %112 : vector<8x128xf32> to vector<8x1x128xf32>
    %c1_82 = arith.constant 1 : index
    %c8_83 = arith.constant 8 : index
    %c0_84 = arith.constant 0 : index
    %114 = vector.load %arg11[%c1_82, %c8_83, %c0_84] : memref<10x10x128xf32, #tpu.memory_space<vmem>>, vector<8x1x128xf32>
    tpu.vector_store %arg11[%c1_82, %c8_83, %c0_84], %113 {strides = array<i32>} : memref<10x10x128xf32, #tpu.memory_space<vmem>>, vector<8x1x128xf32>,
    %cst_85 = arith.constant 0.000000e+00 : f32
    %115 = vector.broadcast %cst_85 : f32 to vector<64x128xf32>
    %c0_86 = arith.constant 0 : index
    %c0_87 = arith.constant 0 : index
    %c0_88 = arith.constant 0 : index
    %116 = vector.load %arg11[%c0_86, %c0_87, %c0_88] : memref<10x10x128xf32, #tpu.memory_space<vmem>>, vector<8x8x128xf32>
    %117 = vector.shape_cast %116 : vector<8x8x128xf32> to vector<64x128xf32>
    %118 = arith.truncf %117 : vector<64x128xf32> to vector<64x128xbf16>
    %c0_89 = arith.constant 0 : index
    %c0_90 = arith.constant 0 : index
    %c0_91 = arith.constant 0 : index
    %119 = vector.load %arg4[%c0_89, %c0_90, %c0_91] : memref<9x128x128xbf16, #tpu.memory_space<vmem>>, vector<1x128x128xbf16>
    %120 = vector.shape_cast %119 : vector<1x128x128xbf16> to vector<128x128xbf16>
    %cst_92 = arith.constant dense<0.000000e+00> : vector<64x128xf32>
    %121 = tpu.matmul %118, %120, %cst_92 {dimension_numbers = #tpu.dot_dimension_numbers<[1], [0], [0], [1], [0, 0, 1, 1], [], []>} : vector<64x128xbf16>, vector<128x128xbf16>, vector<64x128xf32> -> vector<64x128xf32>
    %122 = arith.addf %115, %121 : vector<64x128xf32>
    %c0_93 = arith.constant 0 : index
    %c1_94 = arith.constant 1 : index
    %c0_95 = arith.constant 0 : index
    %123 = vector.load %arg11[%c0_93, %c1_94, %c0_95] : memref<10x10x128xf32, #tpu.memory_space<vmem>>, vector<8x8x128xf32>
    %124 = vector.shape_cast %123 : vector<8x8x128xf32> to vector<64x128xf32>
    %125 = arith.truncf %124 : vector<64x128xf32> to vector<64x128xbf16>
    %c1_96 = arith.constant 1 : index
    %c0_97 = arith.constant 0 : index
    %c0_98 = arith.constant 0 : index
    %126 = vector.load %arg4[%c1_96, %c0_97, %c0_98] : memref<9x128x128xbf16, #tpu.memory_space<vmem>>, vector<1x128x128xbf16>
    %127 = vector.shape_cast %126 : vector<1x128x128xbf16> to vector<128x128xbf16>
    %cst_99 = arith.constant dense<0.000000e+00> : vector<64x128xf32>
    %128 = tpu.matmul %125, %127, %cst_99 {dimension_numbers = #tpu.dot_dimension_numbers<[1], [0], [0], [1], [0, 0, 1, 1], [], []>} : vector<64x128xbf16>, vector<128x128xbf16>, vector<64x128xf32> -> vector<64x128xf32>
    %129 = arith.addf %122, %128 : vector<64x128xf32>
    %c0_100 = arith.constant 0 : index
    %c2_101 = arith.constant 2 : index
    %c0_102 = arith.constant 0 : index
    %130 = vector.load %arg11[%c0_100, %c2_101, %c0_102] : memref<10x10x128xf32, #tpu.memory_space<vmem>>, vector<8x8x128xf32>
    %131 = vector.shape_cast %130 : vector<8x8x128xf32> to vector<64x128xf32>
    %132 = arith.truncf %131 : vector<64x128xf32> to vector<64x128xbf16>
    %c2_103 = arith.constant 2 : index
    %c0_104 = arith.constant 0 : index
    %c0_105 = arith.constant 0 : index
    %133 = vector.load %arg4[%c2_103, %c0_104, %c0_105] : memref<9x128x128xbf16, #tpu.memory_space<vmem>>, vector<1x128x128xbf16>
    %134 = vector.shape_cast %133 : vector<1x128x128xbf16> to vector<128x128xbf16>
    %cst_106 = arith.constant dense<0.000000e+00> : vector<64x128xf32>
    %135 = tpu.matmul %132, %134, %cst_106 {dimension_numbers = #tpu.dot_dimension_numbers<[1], [0], [0], [1], [0, 0, 1, 1], [], []>} : vector<64x128xbf16>, vector<128x128xbf16>, vector<64x128xf32> -> vector<64x128xf32>
    %136 = arith.addf %129, %135 : vector<64x128xf32>
    %c1_107 = arith.constant 1 : index
    %c0_108 = arith.constant 0 : index
    %c0_109 = arith.constant 0 : index
    %137 = vector.load %arg11[%c1_107, %c0_108, %c0_109] : memref<10x10x128xf32, #tpu.memory_space<vmem>>, vector<8x8x128xf32>
    %138 = vector.shape_cast %137 : vector<8x8x128xf32> to vector<64x128xf32>
    %139 = arith.truncf %138 : vector<64x128xf32> to vector<64x128xbf16>
    %c3_110 = arith.constant 3 : index
    %c0_111 = arith.constant 0 : index
    %c0_112 = arith.constant 0 : index
    %140 = vector.load %arg4[%c3_110, %c0_111, %c0_112] : memref<9x128x128xbf16, #tpu.memory_space<vmem>>, vector<1x128x128xbf16>
    %141 = vector.shape_cast %140 : vector<1x128x128xbf16> to vector<128x128xbf16>
    %cst_113 = arith.constant dense<0.000000e+00> : vector<64x128xf32>
    %142 = tpu.matmul %139, %141, %cst_113 {dimension_numbers = #tpu.dot_dimension_numbers<[1], [0], [0], [1], [0, 0, 1, 1], [], []>} : vector<64x128xbf16>, vector<128x128xbf16>, vector<64x128xf32> -> vector<64x128xf32>
    %143 = arith.addf %136, %142 : vector<64x128xf32>
    %c1_114 = arith.constant 1 : index
    %c1_115 = arith.constant 1 : index
    %c0_116 = arith.constant 0 : index
    %144 = vector.load %arg11[%c1_114, %c1_115, %c0_116] : memref<10x10x128xf32, #tpu.memory_space<vmem>>, vector<8x8x128xf32>
    %145 = vector.shape_cast %144 : vector<8x8x128xf32> to vector<64x128xf32>
    %146 = arith.truncf %145 : vector<64x128xf32> to vector<64x128xbf16>
    %c4_117 = arith.constant 4 : index
    %c0_118 = arith.constant 0 : index
    %c0_119 = arith.constant 0 : index
    %147 = vector.load %arg4[%c4_117, %c0_118, %c0_119] : memref<9x128x128xbf16, #tpu.memory_space<vmem>>, vector<1x128x128xbf16>
    %148 = vector.shape_cast %147 : vector<1x128x128xbf16> to vector<128x128xbf16>
    %cst_120 = arith.constant dense<0.000000e+00> : vector<64x128xf32>
    %149 = tpu.matmul %146, %148, %cst_120 {dimension_numbers = #tpu.dot_dimension_numbers<[1], [0], [0], [1], [0, 0, 1, 1], [], []>} : vector<64x128xbf16>, vector<128x128xbf16>, vector<64x128xf32> -> vector<64x128xf32>
    %150 = arith.addf %143, %149 : vector<64x128xf32>
    %c1_121 = arith.constant 1 : index
    %c2_122 = arith.constant 2 : index
    %c0_123 = arith.constant 0 : index
    %151 = vector.load %arg11[%c1_121, %c2_122, %c0_123] : memref<10x10x128xf32, #tpu.memory_space<vmem>>, vector<8x8x128xf32>
    %152 = vector.shape_cast %151 : vector<8x8x128xf32> to vector<64x128xf32>
    %153 = arith.truncf %152 : vector<64x128xf32> to vector<64x128xbf16>
    %c5_124 = arith.constant 5 : index
    %c0_125 = arith.constant 0 : index
    %c0_126 = arith.constant 0 : index
    %154 = vector.load %arg4[%c5_124, %c0_125, %c0_126] : memref<9x128x128xbf16, #tpu.memory_space<vmem>>, vector<1x128x128xbf16>
    %155 = vector.shape_cast %154 : vector<1x128x128xbf16> to vector<128x128xbf16>
    %cst_127 = arith.constant dense<0.000000e+00> : vector<64x128xf32>
    %156 = tpu.matmul %153, %155, %cst_127 {dimension_numbers = #tpu.dot_dimension_numbers<[1], [0], [0], [1], [0, 0, 1, 1], [], []>} : vector<64x128xbf16>, vector<128x128xbf16>, vector<64x128xf32> -> vector<64x128xf32>
    %157 = arith.addf %150, %156 : vector<64x128xf32>
    %c2_128 = arith.constant 2 : index
    %c0_129 = arith.constant 0 : index
    %c0_130 = arith.constant 0 : index
    %158 = vector.load %arg11[%c2_128, %c0_129, %c0_130] : memref<10x10x128xf32, #tpu.memory_space<vmem>>, vector<8x8x128xf32>
    %159 = vector.shape_cast %158 : vector<8x8x128xf32> to vector<64x128xf32>
    %160 = arith.truncf %159 : vector<64x128xf32> to vector<64x128xbf16>
    %c6_131 = arith.constant 6 : index
    %c0_132 = arith.constant 0 : index
    %c0_133 = arith.constant 0 : index
    %161 = vector.load %arg4[%c6_131, %c0_132, %c0_133] : memref<9x128x128xbf16, #tpu.memory_space<vmem>>, vector<1x128x128xbf16>
    %162 = vector.shape_cast %161 : vector<1x128x128xbf16> to vector<128x128xbf16>
    %cst_134 = arith.constant dense<0.000000e+00> : vector<64x128xf32>
    %163 = tpu.matmul %160, %162, %cst_134 {dimension_numbers = #tpu.dot_dimension_numbers<[1], [0], [0], [1], [0, 0, 1, 1], [], []>} : vector<64x128xbf16>, vector<128x128xbf16>, vector<64x128xf32> -> vector<64x128xf32>
    %164 = arith.addf %157, %163 : vector<64x128xf32>
    %c2_135 = arith.constant 2 : index
    %c1_136 = arith.constant 1 : index
    %c0_137 = arith.constant 0 : index
    %165 = vector.load %arg11[%c2_135, %c1_136, %c0_137] : memref<10x10x128xf32, #tpu.memory_space<vmem>>, vector<8x8x128xf32>
    %166 = vector.shape_cast %165 : vector<8x8x128xf32> to vector<64x128xf32>
    %167 = arith.truncf %166 : vector<64x128xf32> to vector<64x128xbf16>
    %c7_138 = arith.constant 7 : index
    %c0_139 = arith.constant 0 : index
    %c0_140 = arith.constant 0 : index
    %168 = vector.load %arg4[%c7_138, %c0_139, %c0_140] : memref<9x128x128xbf16, #tpu.memory_space<vmem>>, vector<1x128x128xbf16>
    %169 = vector.shape_cast %168 : vector<1x128x128xbf16> to vector<128x128xbf16>
    %cst_141 = arith.constant dense<0.000000e+00> : vector<64x128xf32>
    %170 = tpu.matmul %167, %169, %cst_141 {dimension_numbers = #tpu.dot_dimension_numbers<[1], [0], [0], [1], [0, 0, 1, 1], [], []>} : vector<64x128xbf16>, vector<128x128xbf16>, vector<64x128xf32> -> vector<64x128xf32>
    %171 = arith.addf %164, %170 : vector<64x128xf32>
    %c2_142 = arith.constant 2 : index
    %c2_143 = arith.constant 2 : index
    %c0_144 = arith.constant 0 : index
    %172 = vector.load %arg11[%c2_142, %c2_143, %c0_144] : memref<10x10x128xf32, #tpu.memory_space<vmem>>, vector<8x8x128xf32>
    %173 = vector.shape_cast %172 : vector<8x8x128xf32> to vector<64x128xf32>
    %174 = arith.truncf %173 : vector<64x128xf32> to vector<64x128xbf16>
    %c8_145 = arith.constant 8 : index
    %c0_146 = arith.constant 0 : index
    %c0_147 = arith.constant 0 : index
    %175 = vector.load %arg4[%c8_145, %c0_146, %c0_147] : memref<9x128x128xbf16, #tpu.memory_space<vmem>>, vector<1x128x128xbf16>
    %176 = vector.shape_cast %175 : vector<1x128x128xbf16> to vector<128x128xbf16>
    %cst_148 = arith.constant dense<0.000000e+00> : vector<64x128xf32>
    %177 = tpu.matmul %174, %176, %cst_148 {dimension_numbers = #tpu.dot_dimension_numbers<[1], [0], [0], [1], [0, 0, 1, 1], [], []>} : vector<64x128xbf16>, vector<128x128xbf16>, vector<64x128xf32> -> vector<64x128xf32>
    %178 = arith.addf %171, %177 : vector<64x128xf32>
    %c0_149 = arith.constant 0 : index
    %c0_150 = arith.constant 0 : index
    %179 = vector.load %arg5[%c0_149, %c0_150] : memref<1x128xf32, #tpu.memory_space<vmem>>, vector<1x128xf32>
    %180 = vector.broadcast %179 : vector<1x128xf32> to vector<64x128xf32>
    %181 = arith.addf %178, %180 : vector<64x128xf32>
    %cst_151 = arith.constant 0.000000e+00 : f32
    %182 = vector.broadcast %cst_151 : f32 to vector<64x128xf32>
    %183 = arith.maximumf %181, %182 : vector<64x128xf32>
    %184 = vector.shape_cast %183 : vector<64x128xf32> to vector<4x2x8x128xf32>
    %cst_152 = arith.constant dense<0xFF800000> : vector<4x8x128xf32>
    %185 = vector.multi_reduction <maximumf>, %184, %cst_152 [1] : vector<4x2x8x128xf32> to vector<4x8x128xf32>
    %cst_153 = arith.constant 0.000000e+00 : f32
    %186 = vector.broadcast %cst_153 : f32 to vector<10x10x128xf32>
    %c0_154 = arith.constant 0 : index
    %c0_155 = arith.constant 0 : index
    %c0_156 = arith.constant 0 : index
    %187 = vector.load %arg12[%c0_154, %c0_155, %c0_156] : memref<10x10x128xf32, #tpu.memory_space<vmem>>, vector<10x10x128xf32>
    tpu.vector_store %arg12[%c0_154, %c0_155, %c0_156], %186 {strides = array<i32>} : memref<10x10x128xf32, #tpu.memory_space<vmem>>, vector<10x10x128xf32>,
    %188 = vector.extract_strided_slice %185 {offsets = [0, 0, 0], sizes = [4, 2, 128], strides = [1, 1, 1]} : vector<4x8x128xf32> to vector<4x2x128xf32>
    %cst_157 = arith.constant dense<0xFF800000> : vector<4x128xf32>
    %189 = vector.multi_reduction <maximumf>, %188, %cst_157 [1] : vector<4x2x128xf32> to vector<4x128xf32>
    %190 = vector.shape_cast %189 : vector<4x128xf32> to vector<4x1x128xf32>
    %191 = vector.shape_cast %190 : vector<4x1x128xf32> to vector<4x1x1x128xf32>
    %192 = vector.shape_cast %191 : vector<4x1x1x128xf32> to vector<4x1x1x128xf32>
    %193 = vector.broadcast %192 : vector<4x1x1x128xf32> to vector<4x2x1x128xf32>
    %194 = vector.shape_cast %193 : vector<4x2x1x128xf32> to vector<8x1x128xf32>
    %c1_158 = arith.constant 1 : index
    %c1_159 = arith.constant 1 : index
    %c0_160 = arith.constant 0 : index
    %195 = vector.load %arg12[%c1_158, %c1_159, %c0_160] : memref<10x10x128xf32, #tpu.memory_space<vmem>>, vector<8x1x128xf32>
    tpu.vector_store %arg12[%c1_158, %c1_159, %c0_160], %194 {strides = array<i32>} : memref<10x10x128xf32, #tpu.memory_space<vmem>>, vector<8x1x128xf32>,
    %c1_161 = arith.constant 1 : index
    %c2_162 = arith.constant 2 : index
    %c0_163 = arith.constant 0 : index
    %196 = vector.load %arg12[%c1_161, %c2_162, %c0_163] : memref<10x10x128xf32, #tpu.memory_space<vmem>>, vector<8x1x128xf32>
    tpu.vector_store %arg12[%c1_161, %c2_162, %c0_163], %194 {strides = array<i32>} : memref<10x10x128xf32, #tpu.memory_space<vmem>>, vector<8x1x128xf32>,
    %197 = vector.extract_strided_slice %185 {offsets = [0, 2, 0], sizes = [4, 2, 128], strides = [1, 1, 1]} : vector<4x8x128xf32> to vector<4x2x128xf32>
    %cst_164 = arith.constant dense<0xFF800000> : vector<4x128xf32>
    %198 = vector.multi_reduction <maximumf>, %197, %cst_164 [1] : vector<4x2x128xf32> to vector<4x128xf32>
    %199 = vector.shape_cast %198 : vector<4x128xf32> to vector<4x1x128xf32>
    %200 = vector.shape_cast %199 : vector<4x1x128xf32> to vector<4x1x1x128xf32>
    %201 = vector.shape_cast %200 : vector<4x1x1x128xf32> to vector<4x1x1x128xf32>
    %202 = vector.broadcast %201 : vector<4x1x1x128xf32> to vector<4x2x1x128xf32>
    %203 = vector.shape_cast %202 : vector<4x2x1x128xf32> to vector<8x1x128xf32>
    %c1_165 = arith.constant 1 : index
    %c3_166 = arith.constant 3 : index
    %c0_167 = arith.constant 0 : index
    %204 = vector.load %arg12[%c1_165, %c3_166, %c0_167] : memref<10x10x128xf32, #tpu.memory_space<vmem>>, vector<8x1x128xf32>
    tpu.vector_store %arg12[%c1_165, %c3_166, %c0_167], %203 {strides = array<i32>} : memref<10x10x128xf32, #tpu.memory_space<vmem>>, vector<8x1x128xf32>,
    %c1_168 = arith.constant 1 : index
    %c4_169 = arith.constant 4 : index
    %c0_170 = arith.constant 0 : index
    %205 = vector.load %arg12[%c1_168, %c4_169, %c0_170] : memref<10x10x128xf32, #tpu.memory_space<vmem>>, vector<8x1x128xf32>
    tpu.vector_store %arg12[%c1_168, %c4_169, %c0_170], %203 {strides = array<i32>} : memref<10x10x128xf32, #tpu.memory_space<vmem>>, vector<8x1x128xf32>,
    %206 = vector.extract_strided_slice %185 {offsets = [0, 4, 0], sizes = [4, 2, 128], strides = [1, 1, 1]} : vector<4x8x128xf32> to vector<4x2x128xf32>
    %cst_171 = arith.constant dense<0xFF800000> : vector<4x128xf32>
    %207 = vector.multi_reduction <maximumf>, %206, %cst_171 [1] : vector<4x2x128xf32> to vector<4x128xf32>
    %208 = vector.shape_cast %207 : vector<4x128xf32> to vector<4x1x128xf32>
    %209 = vector.shape_cast %208 : vector<4x1x128xf32> to vector<4x1x1x128xf32>
    %210 = vector.shape_cast %209 : vector<4x1x1x128xf32> to vector<4x1x1x128xf32>
    %211 = vector.broadcast %210 : vector<4x1x1x128xf32> to vector<4x2x1x128xf32>
    %212 = vector.shape_cast %211 : vector<4x2x1x128xf32> to vector<8x1x128xf32>
    %c1_172 = arith.constant 1 : index
    %c5_173 = arith.constant 5 : index
    %c0_174 = arith.constant 0 : index
    %213 = vector.load %arg12[%c1_172, %c5_173, %c0_174] : memref<10x10x128xf32, #tpu.memory_space<vmem>>, vector<8x1x128xf32>
    tpu.vector_store %arg12[%c1_172, %c5_173, %c0_174], %212 {strides = array<i32>} : memref<10x10x128xf32, #tpu.memory_space<vmem>>, vector<8x1x128xf32>,
    %c1_175 = arith.constant 1 : index
    %c6_176 = arith.constant 6 : index
    %c0_177 = arith.constant 0 : index
    %214 = vector.load %arg12[%c1_175, %c6_176, %c0_177] : memref<10x10x128xf32, #tpu.memory_space<vmem>>, vector<8x1x128xf32>
    tpu.vector_store %arg12[%c1_175, %c6_176, %c0_177], %212 {strides = array<i32>} : memref<10x10x128xf32, #tpu.memory_space<vmem>>, vector<8x1x128xf32>,
    %215 = vector.extract_strided_slice %185 {offsets = [0, 6, 0], sizes = [4, 2, 128], strides = [1, 1, 1]} : vector<4x8x128xf32> to vector<4x2x128xf32>
    %cst_178 = arith.constant dense<0xFF800000> : vector<4x128xf32>
    %216 = vector.multi_reduction <maximumf>, %215, %cst_178 [1] : vector<4x2x128xf32> to vector<4x128xf32>
    %217 = vector.shape_cast %216 : vector<4x128xf32> to vector<4x1x128xf32>
    %218 = vector.shape_cast %217 : vector<4x1x128xf32> to vector<4x1x1x128xf32>
    %219 = vector.shape_cast %218 : vector<4x1x1x128xf32> to vector<4x1x1x128xf32>
    %220 = vector.broadcast %219 : vector<4x1x1x128xf32> to vector<4x2x1x128xf32>
    %221 = vector.shape_cast %220 : vector<4x2x1x128xf32> to vector<8x1x128xf32>
    %c1_179 = arith.constant 1 : index
    %c7_180 = arith.constant 7 : index
    %c0_181 = arith.constant 0 : index
    %222 = vector.load %arg12[%c1_179, %c7_180, %c0_181] : memref<10x10x128xf32, #tpu.memory_space<vmem>>, vector<8x1x128xf32>
    tpu.vector_store %arg12[%c1_179, %c7_180, %c0_181], %221 {strides = array<i32>} : memref<10x10x128xf32, #tpu.memory_space<vmem>>, vector<8x1x128xf32>,
    %c1_182 = arith.constant 1 : index
    %c8_183 = arith.constant 8 : index
    %c0_184 = arith.constant 0 : index
    %223 = vector.load %arg12[%c1_182, %c8_183, %c0_184] : memref<10x10x128xf32, #tpu.memory_space<vmem>>, vector<8x1x128xf32>
    tpu.vector_store %arg12[%c1_182, %c8_183, %c0_184], %221 {strides = array<i32>} : memref<10x10x128xf32, #tpu.memory_space<vmem>>, vector<8x1x128xf32>,
    %cst_185 = arith.constant 0.000000e+00 : f32
    %224 = vector.broadcast %cst_185 : f32 to vector<64x128xf32>
    %c0_186 = arith.constant 0 : index
    %c0_187 = arith.constant 0 : index
    %c0_188 = arith.constant 0 : index
    %225 = vector.load %arg12[%c0_186, %c0_187, %c0_188] : memref<10x10x128xf32, #tpu.memory_space<vmem>>, vector<8x8x128xf32>
    %226 = vector.shape_cast %225 : vector<8x8x128xf32> to vector<64x128xf32>
    %227 = arith.truncf %226 : vector<64x128xf32> to vector<64x128xbf16>
    %c0_189 = arith.constant 0 : index
    %c0_190 = arith.constant 0 : index
    %c0_191 = arith.constant 0 : index
    %228 = vector.load %arg6[%c0_189, %c0_190, %c0_191] : memref<9x128x128xbf16, #tpu.memory_space<vmem>>, vector<1x128x128xbf16>
    %229 = vector.shape_cast %228 : vector<1x128x128xbf16> to vector<128x128xbf16>
    %cst_192 = arith.constant dense<0.000000e+00> : vector<64x128xf32>
    %230 = tpu.matmul %227, %229, %cst_192 {dimension_numbers = #tpu.dot_dimension_numbers<[1], [0], [0], [1], [0, 0, 1, 1], [], []>} : vector<64x128xbf16>, vector<128x128xbf16>, vector<64x128xf32> -> vector<64x128xf32>
    %231 = arith.addf %224, %230 : vector<64x128xf32>
    %c0_193 = arith.constant 0 : index
    %c1_194 = arith.constant 1 : index
    %c0_195 = arith.constant 0 : index
    %232 = vector.load %arg12[%c0_193, %c1_194, %c0_195] : memref<10x10x128xf32, #tpu.memory_space<vmem>>, vector<8x8x128xf32>
    %233 = vector.shape_cast %232 : vector<8x8x128xf32> to vector<64x128xf32>
    %234 = arith.truncf %233 : vector<64x128xf32> to vector<64x128xbf16>
    %c1_196 = arith.constant 1 : index
    %c0_197 = arith.constant 0 : index
    %c0_198 = arith.constant 0 : index
    %235 = vector.load %arg6[%c1_196, %c0_197, %c0_198] : memref<9x128x128xbf16, #tpu.memory_space<vmem>>, vector<1x128x128xbf16>
    %236 = vector.shape_cast %235 : vector<1x128x128xbf16> to vector<128x128xbf16>
    %cst_199 = arith.constant dense<0.000000e+00> : vector<64x128xf32>
    %237 = tpu.matmul %234, %236, %cst_199 {dimension_numbers = #tpu.dot_dimension_numbers<[1], [0], [0], [1], [0, 0, 1, 1], [], []>} : vector<64x128xbf16>, vector<128x128xbf16>, vector<64x128xf32> -> vector<64x128xf32>
    %238 = arith.addf %231, %237 : vector<64x128xf32>
    %c0_200 = arith.constant 0 : index
    %c2_201 = arith.constant 2 : index
    %c0_202 = arith.constant 0 : index
    %239 = vector.load %arg12[%c0_200, %c2_201, %c0_202] : memref<10x10x128xf32, #tpu.memory_space<vmem>>, vector<8x8x128xf32>
    %240 = vector.shape_cast %239 : vector<8x8x128xf32> to vector<64x128xf32>
    %241 = arith.truncf %240 : vector<64x128xf32> to vector<64x128xbf16>
    %c2_203 = arith.constant 2 : index
    %c0_204 = arith.constant 0 : index
    %c0_205 = arith.constant 0 : index
    %242 = vector.load %arg6[%c2_203, %c0_204, %c0_205] : memref<9x128x128xbf16, #tpu.memory_space<vmem>>, vector<1x128x128xbf16>
    %243 = vector.shape_cast %242 : vector<1x128x128xbf16> to vector<128x128xbf16>
    %cst_206 = arith.constant dense<0.000000e+00> : vector<64x128xf32>
    %244 = tpu.matmul %241, %243, %cst_206 {dimension_numbers = #tpu.dot_dimension_numbers<[1], [0], [0], [1], [0, 0, 1, 1], [], []>} : vector<64x128xbf16>, vector<128x128xbf16>, vector<64x128xf32> -> vector<64x128xf32>
    %245 = arith.addf %238, %244 : vector<64x128xf32>
    %c1_207 = arith.constant 1 : index
    %c0_208 = arith.constant 0 : index
    %c0_209 = arith.constant 0 : index
    %246 = vector.load %arg12[%c1_207, %c0_208, %c0_209] : memref<10x10x128xf32, #tpu.memory_space<vmem>>, vector<8x8x128xf32>
    %247 = vector.shape_cast %246 : vector<8x8x128xf32> to vector<64x128xf32>
    %248 = arith.truncf %247 : vector<64x128xf32> to vector<64x128xbf16>
    %c3_210 = arith.constant 3 : index
    %c0_211 = arith.constant 0 : index
    %c0_212 = arith.constant 0 : index
    %249 = vector.load %arg6[%c3_210, %c0_211, %c0_212] : memref<9x128x128xbf16, #tpu.memory_space<vmem>>, vector<1x128x128xbf16>
    %250 = vector.shape_cast %249 : vector<1x128x128xbf16> to vector<128x128xbf16>
    %cst_213 = arith.constant dense<0.000000e+00> : vector<64x128xf32>
    %251 = tpu.matmul %248, %250, %cst_213 {dimension_numbers = #tpu.dot_dimension_numbers<[1], [0], [0], [1], [0, 0, 1, 1], [], []>} : vector<64x128xbf16>, vector<128x128xbf16>, vector<64x128xf32> -> vector<64x128xf32>
    %252 = arith.addf %245, %251 : vector<64x128xf32>
    %c1_214 = arith.constant 1 : index
    %c1_215 = arith.constant 1 : index
    %c0_216 = arith.constant 0 : index
    %253 = vector.load %arg12[%c1_214, %c1_215, %c0_216] : memref<10x10x128xf32, #tpu.memory_space<vmem>>, vector<8x8x128xf32>
    %254 = vector.shape_cast %253 : vector<8x8x128xf32> to vector<64x128xf32>
    %255 = arith.truncf %254 : vector<64x128xf32> to vector<64x128xbf16>
    %c4_217 = arith.constant 4 : index
    %c0_218 = arith.constant 0 : index
    %c0_219 = arith.constant 0 : index
    %256 = vector.load %arg6[%c4_217, %c0_218, %c0_219] : memref<9x128x128xbf16, #tpu.memory_space<vmem>>, vector<1x128x128xbf16>
    %257 = vector.shape_cast %256 : vector<1x128x128xbf16> to vector<128x128xbf16>
    %cst_220 = arith.constant dense<0.000000e+00> : vector<64x128xf32>
    %258 = tpu.matmul %255, %257, %cst_220 {dimension_numbers = #tpu.dot_dimension_numbers<[1], [0], [0], [1], [0, 0, 1, 1], [], []>} : vector<64x128xbf16>, vector<128x128xbf16>, vector<64x128xf32> -> vector<64x128xf32>
    %259 = arith.addf %252, %258 : vector<64x128xf32>
    %c1_221 = arith.constant 1 : index
    %c2_222 = arith.constant 2 : index
    %c0_223 = arith.constant 0 : index
    %260 = vector.load %arg12[%c1_221, %c2_222, %c0_223] : memref<10x10x128xf32, #tpu.memory_space<vmem>>, vector<8x8x128xf32>
    %261 = vector.shape_cast %260 : vector<8x8x128xf32> to vector<64x128xf32>
    %262 = arith.truncf %261 : vector<64x128xf32> to vector<64x128xbf16>
    %c5_224 = arith.constant 5 : index
    %c0_225 = arith.constant 0 : index
    %c0_226 = arith.constant 0 : index
    %263 = vector.load %arg6[%c5_224, %c0_225, %c0_226] : memref<9x128x128xbf16, #tpu.memory_space<vmem>>, vector<1x128x128xbf16>
    %264 = vector.shape_cast %263 : vector<1x128x128xbf16> to vector<128x128xbf16>
    %cst_227 = arith.constant dense<0.000000e+00> : vector<64x128xf32>
    %265 = tpu.matmul %262, %264, %cst_227 {dimension_numbers = #tpu.dot_dimension_numbers<[1], [0], [0], [1], [0, 0, 1, 1], [], []>} : vector<64x128xbf16>, vector<128x128xbf16>, vector<64x128xf32> -> vector<64x128xf32>
    %266 = arith.addf %259, %265 : vector<64x128xf32>
    %c2_228 = arith.constant 2 : index
    %c0_229 = arith.constant 0 : index
    %c0_230 = arith.constant 0 : index
    %267 = vector.load %arg12[%c2_228, %c0_229, %c0_230] : memref<10x10x128xf32, #tpu.memory_space<vmem>>, vector<8x8x128xf32>
    %268 = vector.shape_cast %267 : vector<8x8x128xf32> to vector<64x128xf32>
    %269 = arith.truncf %268 : vector<64x128xf32> to vector<64x128xbf16>
    %c6_231 = arith.constant 6 : index
    %c0_232 = arith.constant 0 : index
    %c0_233 = arith.constant 0 : index
    %270 = vector.load %arg6[%c6_231, %c0_232, %c0_233] : memref<9x128x128xbf16, #tpu.memory_space<vmem>>, vector<1x128x128xbf16>
    %271 = vector.shape_cast %270 : vector<1x128x128xbf16> to vector<128x128xbf16>
    %cst_234 = arith.constant dense<0.000000e+00> : vector<64x128xf32>
    %272 = tpu.matmul %269, %271, %cst_234 {dimension_numbers = #tpu.dot_dimension_numbers<[1], [0], [0], [1], [0, 0, 1, 1], [], []>} : vector<64x128xbf16>, vector<128x128xbf16>, vector<64x128xf32> -> vector<64x128xf32>
    %273 = arith.addf %266, %272 : vector<64x128xf32>
    %c2_235 = arith.constant 2 : index
    %c1_236 = arith.constant 1 : index
    %c0_237 = arith.constant 0 : index
    %274 = vector.load %arg12[%c2_235, %c1_236, %c0_237] : memref<10x10x128xf32, #tpu.memory_space<vmem>>, vector<8x8x128xf32>
    %275 = vector.shape_cast %274 : vector<8x8x128xf32> to vector<64x128xf32>
    %276 = arith.truncf %275 : vector<64x128xf32> to vector<64x128xbf16>
    %c7_238 = arith.constant 7 : index
    %c0_239 = arith.constant 0 : index
    %c0_240 = arith.constant 0 : index
    %277 = vector.load %arg6[%c7_238, %c0_239, %c0_240] : memref<9x128x128xbf16, #tpu.memory_space<vmem>>, vector<1x128x128xbf16>
    %278 = vector.shape_cast %277 : vector<1x128x128xbf16> to vector<128x128xbf16>
    %cst_241 = arith.constant dense<0.000000e+00> : vector<64x128xf32>
    %279 = tpu.matmul %276, %278, %cst_241 {dimension_numbers = #tpu.dot_dimension_numbers<[1], [0], [0], [1], [0, 0, 1, 1], [], []>} : vector<64x128xbf16>, vector<128x128xbf16>, vector<64x128xf32> -> vector<64x128xf32>
    %280 = arith.addf %273, %279 : vector<64x128xf32>
    %c2_242 = arith.constant 2 : index
    %c2_243 = arith.constant 2 : index
    %c0_244 = arith.constant 0 : index
    %281 = vector.load %arg12[%c2_242, %c2_243, %c0_244] : memref<10x10x128xf32, #tpu.memory_space<vmem>>, vector<8x8x128xf32>
    %282 = vector.shape_cast %281 : vector<8x8x128xf32> to vector<64x128xf32>
    %283 = arith.truncf %282 : vector<64x128xf32> to vector<64x128xbf16>
    %c8_245 = arith.constant 8 : index
    %c0_246 = arith.constant 0 : index
    %c0_247 = arith.constant 0 : index
    %284 = vector.load %arg6[%c8_245, %c0_246, %c0_247] : memref<9x128x128xbf16, #tpu.memory_space<vmem>>, vector<1x128x128xbf16>
    %285 = vector.shape_cast %284 : vector<1x128x128xbf16> to vector<128x128xbf16>
    %cst_248 = arith.constant dense<0.000000e+00> : vector<64x128xf32>
    %286 = tpu.matmul %283, %285, %cst_248 {dimension_numbers = #tpu.dot_dimension_numbers<[1], [0], [0], [1], [0, 0, 1, 1], [], []>} : vector<64x128xbf16>, vector<128x128xbf16>, vector<64x128xf32> -> vector<64x128xf32>
    %287 = arith.addf %280, %286 : vector<64x128xf32>
    %c0_249 = arith.constant 0 : index
    %c0_250 = arith.constant 0 : index
    %288 = vector.load %arg7[%c0_249, %c0_250] : memref<1x128xf32, #tpu.memory_space<vmem>>, vector<1x128xf32>
    %289 = vector.broadcast %288 : vector<1x128xf32> to vector<64x128xf32>
    %290 = arith.addf %287, %289 : vector<64x128xf32>
    %cst_251 = arith.constant 0.000000e+00 : f32
    %291 = vector.broadcast %cst_251 : f32 to vector<64x128xf32>
    %292 = arith.maximumf %290, %291 : vector<64x128xf32>
    %293 = vector.shape_cast %292 : vector<64x128xf32> to vector<8x8x128xf32>
    %cst_252 = arith.constant 0.000000e+00 : f32
    %294 = vector.broadcast %cst_252 : f32 to vector<18x18x128xf32>
    %c0_253 = arith.constant 0 : index
    %c0_254 = arith.constant 0 : index
    %c0_255 = arith.constant 0 : index
    %295 = vector.load %arg13[%c0_253, %c0_254, %c0_255] : memref<18x18x128xf32, #tpu.memory_space<vmem>>, vector<18x18x128xf32>
    tpu.vector_store %arg13[%c0_253, %c0_254, %c0_255], %294 {strides = array<i32>} : memref<18x18x128xf32, #tpu.memory_space<vmem>>, vector<18x18x128xf32>,
    %296 = vector.extract_strided_slice %293 {offsets = [0, 0, 0], sizes = [8, 1, 128], strides = [1, 1, 1]} : vector<8x8x128xf32> to vector<8x1x128xf32>
    %297 = vector.shape_cast %296 : vector<8x1x128xf32> to vector<8x1x1x128xf32>
    %298 = vector.shape_cast %297 : vector<8x1x1x128xf32> to vector<8x1x1x128xf32>
    %299 = vector.broadcast %298 : vector<8x1x1x128xf32> to vector<8x2x1x128xf32>
    %300 = vector.shape_cast %299 : vector<8x2x1x128xf32> to vector<16x1x128xf32>
    %c1_256 = arith.constant 1 : index
    %c1_257 = arith.constant 1 : index
    %c0_258 = arith.constant 0 : index
    %301 = vector.load %arg13[%c1_256, %c1_257, %c0_258] : memref<18x18x128xf32, #tpu.memory_space<vmem>>, vector<16x1x128xf32>
    tpu.vector_store %arg13[%c1_256, %c1_257, %c0_258], %300 {strides = array<i32>} : memref<18x18x128xf32, #tpu.memory_space<vmem>>, vector<16x1x128xf32>,
    %c1_259 = arith.constant 1 : index
    %c2_260 = arith.constant 2 : index
    %c0_261 = arith.constant 0 : index
    %302 = vector.load %arg13[%c1_259, %c2_260, %c0_261] : memref<18x18x128xf32, #tpu.memory_space<vmem>>, vector<16x1x128xf32>
    tpu.vector_store %arg13[%c1_259, %c2_260, %c0_261], %300 {strides = array<i32>} : memref<18x18x128xf32, #tpu.memory_space<vmem>>, vector<16x1x128xf32>,
    %303 = vector.extract_strided_slice %293 {offsets = [0, 1, 0], sizes = [8, 1, 128], strides = [1, 1, 1]} : vector<8x8x128xf32> to vector<8x1x128xf32>
    %304 = vector.shape_cast %303 : vector<8x1x128xf32> to vector<8x1x1x128xf32>
    %305 = vector.shape_cast %304 : vector<8x1x1x128xf32> to vector<8x1x1x128xf32>
    %306 = vector.broadcast %305 : vector<8x1x1x128xf32> to vector<8x2x1x128xf32>
    %307 = vector.shape_cast %306 : vector<8x2x1x128xf32> to vector<16x1x128xf32>
    %c1_262 = arith.constant 1 : index
    %c3_263 = arith.constant 3 : index
    %c0_264 = arith.constant 0 : index
    %308 = vector.load %arg13[%c1_262, %c3_263, %c0_264] : memref<18x18x128xf32, #tpu.memory_space<vmem>>, vector<16x1x128xf32>
    tpu.vector_store %arg13[%c1_262, %c3_263, %c0_264], %307 {strides = array<i32>} : memref<18x18x128xf32, #tpu.memory_space<vmem>>, vector<16x1x128xf32>,
    %c1_265 = arith.constant 1 : index
    %c4_266 = arith.constant 4 : index
    %c0_267 = arith.constant 0 : index
    %309 = vector.load %arg13[%c1_265, %c4_266, %c0_267] : memref<18x18x128xf32, #tpu.memory_space<vmem>>, vector<16x1x128xf32>
    tpu.vector_store %arg13[%c1_265, %c4_266, %c0_267], %307 {strides = array<i32>} : memref<18x18x128xf32, #tpu.memory_space<vmem>>, vector<16x1x128xf32>,
    %310 = vector.extract_strided_slice %293 {offsets = [0, 2, 0], sizes = [8, 1, 128], strides = [1, 1, 1]} : vector<8x8x128xf32> to vector<8x1x128xf32>
    %311 = vector.shape_cast %310 : vector<8x1x128xf32> to vector<8x1x1x128xf32>
    %312 = vector.shape_cast %311 : vector<8x1x1x128xf32> to vector<8x1x1x128xf32>
    %313 = vector.broadcast %312 : vector<8x1x1x128xf32> to vector<8x2x1x128xf32>
    %314 = vector.shape_cast %313 : vector<8x2x1x128xf32> to vector<16x1x128xf32>
    %c1_268 = arith.constant 1 : index
    %c5_269 = arith.constant 5 : index
    %c0_270 = arith.constant 0 : index
    %315 = vector.load %arg13[%c1_268, %c5_269, %c0_270] : memref<18x18x128xf32, #tpu.memory_space<vmem>>, vector<16x1x128xf32>
    tpu.vector_store %arg13[%c1_268, %c5_269, %c0_270], %314 {strides = array<i32>} : memref<18x18x128xf32, #tpu.memory_space<vmem>>, vector<16x1x128xf32>,
    %c1_271 = arith.constant 1 : index
    %c6_272 = arith.constant 6 : index
    %c0_273 = arith.constant 0 : index
    %316 = vector.load %arg13[%c1_271, %c6_272, %c0_273] : memref<18x18x128xf32, #tpu.memory_space<vmem>>, vector<16x1x128xf32>
    tpu.vector_store %arg13[%c1_271, %c6_272, %c0_273], %314 {strides = array<i32>} : memref<18x18x128xf32, #tpu.memory_space<vmem>>, vector<16x1x128xf32>,
    %317 = vector.extract_strided_slice %293 {offsets = [0, 3, 0], sizes = [8, 1, 128], strides = [1, 1, 1]} : vector<8x8x128xf32> to vector<8x1x128xf32>
    %318 = vector.shape_cast %317 : vector<8x1x128xf32> to vector<8x1x1x128xf32>
    %319 = vector.shape_cast %318 : vector<8x1x1x128xf32> to vector<8x1x1x128xf32>
    %320 = vector.broadcast %319 : vector<8x1x1x128xf32> to vector<8x2x1x128xf32>
    %321 = vector.shape_cast %320 : vector<8x2x1x128xf32> to vector<16x1x128xf32>
    %c1_274 = arith.constant 1 : index
    %c7_275 = arith.constant 7 : index
    %c0_276 = arith.constant 0 : index
    %322 = vector.load %arg13[%c1_274, %c7_275, %c0_276] : memref<18x18x128xf32, #tpu.memory_space<vmem>>, vector<16x1x128xf32>
    tpu.vector_store %arg13[%c1_274, %c7_275, %c0_276], %321 {strides = array<i32>} : memref<18x18x128xf32, #tpu.memory_space<vmem>>, vector<16x1x128xf32>,
    %c1_277 = arith.constant 1 : index
    %c8_278 = arith.constant 8 : index
    %c0_279 = arith.constant 0 : index
    %323 = vector.load %arg13[%c1_277, %c8_278, %c0_279] : memref<18x18x128xf32, #tpu.memory_space<vmem>>, vector<16x1x128xf32>
    tpu.vector_store %arg13[%c1_277, %c8_278, %c0_279], %321 {strides = array<i32>} : memref<18x18x128xf32, #tpu.memory_space<vmem>>, vector<16x1x128xf32>,
    %324 = vector.extract_strided_slice %293 {offsets = [0, 4, 0], sizes = [8, 1, 128], strides = [1, 1, 1]} : vector<8x8x128xf32> to vector<8x1x128xf32>
    %325 = vector.shape_cast %324 : vector<8x1x128xf32> to vector<8x1x1x128xf32>
    %326 = vector.shape_cast %325 : vector<8x1x1x128xf32> to vector<8x1x1x128xf32>
    %327 = vector.broadcast %326 : vector<8x1x1x128xf32> to vector<8x2x1x128xf32>
    %328 = vector.shape_cast %327 : vector<8x2x1x128xf32> to vector<16x1x128xf32>
    %c1_280 = arith.constant 1 : index
    %c9 = arith.constant 9 : index
    %c0_281 = arith.constant 0 : index
    %329 = vector.load %arg13[%c1_280, %c9, %c0_281] : memref<18x18x128xf32, #tpu.memory_space<vmem>>, vector<16x1x128xf32>
    tpu.vector_store %arg13[%c1_280, %c9, %c0_281], %328 {strides = array<i32>} : memref<18x18x128xf32, #tpu.memory_space<vmem>>, vector<16x1x128xf32>,
    %c1_282 = arith.constant 1 : index
    %c10 = arith.constant 10 : index
    %c0_283 = arith.constant 0 : index
    %330 = vector.load %arg13[%c1_282, %c10, %c0_283] : memref<18x18x128xf32, #tpu.memory_space<vmem>>, vector<16x1x128xf32>
    tpu.vector_store %arg13[%c1_282, %c10, %c0_283], %328 {strides = array<i32>} : memref<18x18x128xf32, #tpu.memory_space<vmem>>, vector<16x1x128xf32>,
    %331 = vector.extract_strided_slice %293 {offsets = [0, 5, 0], sizes = [8, 1, 128], strides = [1, 1, 1]} : vector<8x8x128xf32> to vector<8x1x128xf32>
    %332 = vector.shape_cast %331 : vector<8x1x128xf32> to vector<8x1x1x128xf32>
    %333 = vector.shape_cast %332 : vector<8x1x1x128xf32> to vector<8x1x1x128xf32>
    %334 = vector.broadcast %333 : vector<8x1x1x128xf32> to vector<8x2x1x128xf32>
    %335 = vector.shape_cast %334 : vector<8x2x1x128xf32> to vector<16x1x128xf32>
    %c1_284 = arith.constant 1 : index
    %c11 = arith.constant 11 : index
    %c0_285 = arith.constant 0 : index
    %336 = vector.load %arg13[%c1_284, %c11, %c0_285] : memref<18x18x128xf32, #tpu.memory_space<vmem>>, vector<16x1x128xf32>
    tpu.vector_store %arg13[%c1_284, %c11, %c0_285], %335 {strides = array<i32>} : memref<18x18x128xf32, #tpu.memory_space<vmem>>, vector<16x1x128xf32>,
    %c1_286 = arith.constant 1 : index
    %c12 = arith.constant 12 : index
    %c0_287 = arith.constant 0 : index
    %337 = vector.load %arg13[%c1_286, %c12, %c0_287] : memref<18x18x128xf32, #tpu.memory_space<vmem>>, vector<16x1x128xf32>
    tpu.vector_store %arg13[%c1_286, %c12, %c0_287], %335 {strides = array<i32>} : memref<18x18x128xf32, #tpu.memory_space<vmem>>, vector<16x1x128xf32>,
    %338 = vector.extract_strided_slice %293 {offsets = [0, 6, 0], sizes = [8, 1, 128], strides = [1, 1, 1]} : vector<8x8x128xf32> to vector<8x1x128xf32>
    %339 = vector.shape_cast %338 : vector<8x1x128xf32> to vector<8x1x1x128xf32>
    %340 = vector.shape_cast %339 : vector<8x1x1x128xf32> to vector<8x1x1x128xf32>
    %341 = vector.broadcast %340 : vector<8x1x1x128xf32> to vector<8x2x1x128xf32>
    %342 = vector.shape_cast %341 : vector<8x2x1x128xf32> to vector<16x1x128xf32>
    %c1_288 = arith.constant 1 : index
    %c13 = arith.constant 13 : index
    %c0_289 = arith.constant 0 : index
    %343 = vector.load %arg13[%c1_288, %c13, %c0_289] : memref<18x18x128xf32, #tpu.memory_space<vmem>>, vector<16x1x128xf32>
    tpu.vector_store %arg13[%c1_288, %c13, %c0_289], %342 {strides = array<i32>} : memref<18x18x128xf32, #tpu.memory_space<vmem>>, vector<16x1x128xf32>,
    %c1_290 = arith.constant 1 : index
    %c14 = arith.constant 14 : index
    %c0_291 = arith.constant 0 : index
    %344 = vector.load %arg13[%c1_290, %c14, %c0_291] : memref<18x18x128xf32, #tpu.memory_space<vmem>>, vector<16x1x128xf32>
    tpu.vector_store %arg13[%c1_290, %c14, %c0_291], %342 {strides = array<i32>} : memref<18x18x128xf32, #tpu.memory_space<vmem>>, vector<16x1x128xf32>,
    %345 = vector.extract_strided_slice %293 {offsets = [0, 7, 0], sizes = [8, 1, 128], strides = [1, 1, 1]} : vector<8x8x128xf32> to vector<8x1x128xf32>
    %346 = vector.shape_cast %345 : vector<8x1x128xf32> to vector<8x1x1x128xf32>
    %347 = vector.shape_cast %346 : vector<8x1x1x128xf32> to vector<8x1x1x128xf32>
    %348 = vector.broadcast %347 : vector<8x1x1x128xf32> to vector<8x2x1x128xf32>
    %349 = vector.shape_cast %348 : vector<8x2x1x128xf32> to vector<16x1x128xf32>
    %c1_292 = arith.constant 1 : index
    %c15 = arith.constant 15 : index
    %c0_293 = arith.constant 0 : index
    %350 = vector.load %arg13[%c1_292, %c15, %c0_293] : memref<18x18x128xf32, #tpu.memory_space<vmem>>, vector<16x1x128xf32>
    tpu.vector_store %arg13[%c1_292, %c15, %c0_293], %349 {strides = array<i32>} : memref<18x18x128xf32, #tpu.memory_space<vmem>>, vector<16x1x128xf32>,
    %c1_294 = arith.constant 1 : index
    %c16 = arith.constant 16 : index
    %c0_295 = arith.constant 0 : index
    %351 = vector.load %arg13[%c1_294, %c16, %c0_295] : memref<18x18x128xf32, #tpu.memory_space<vmem>>, vector<16x1x128xf32>
    tpu.vector_store %arg13[%c1_294, %c16, %c0_295], %349 {strides = array<i32>} : memref<18x18x128xf32, #tpu.memory_space<vmem>>, vector<16x1x128xf32>,
    %cst_296 = arith.constant 0.000000e+00 : f32
    %352 = vector.broadcast %cst_296 : f32 to vector<256x128xf32>
    %c0_297 = arith.constant 0 : index
    %c0_298 = arith.constant 0 : index
    %c0_299 = arith.constant 0 : index
    %353 = vector.load %arg13[%c0_297, %c0_298, %c0_299] : memref<18x18x128xf32, #tpu.memory_space<vmem>>, vector<16x16x128xf32>
    %354 = vector.shape_cast %353 : vector<16x16x128xf32> to vector<256x128xf32>
    %c0_300 = arith.constant 0 : index
    %c0_301 = arith.constant 0 : index
    %355 = vector.load %arg8[%c0_300, %c0_301] : memref<9x128xf32, #tpu.memory_space<vmem>>, vector<1x128xf32>
    %356 = vector.broadcast %355 : vector<1x128xf32> to vector<256x128xf32>
    %357 = arith.mulf %354, %356 : vector<256x128xf32>
    %358 = arith.addf %352, %357 : vector<256x128xf32>
    %c0_302 = arith.constant 0 : index
    %c1_303 = arith.constant 1 : index
    %c0_304 = arith.constant 0 : index
    %359 = vector.load %arg13[%c0_302, %c1_303, %c0_304] : memref<18x18x128xf32, #tpu.memory_space<vmem>>, vector<16x16x128xf32>
    %360 = vector.shape_cast %359 : vector<16x16x128xf32> to vector<256x128xf32>
    %c1_305 = arith.constant 1 : index
    %c0_306 = arith.constant 0 : index
    %361 = vector.load %arg8[%c1_305, %c0_306] : memref<9x128xf32, #tpu.memory_space<vmem>>, vector<1x128xf32>
    %362 = vector.broadcast %361 : vector<1x128xf32> to vector<256x128xf32>
    %363 = arith.mulf %360, %362 : vector<256x128xf32>
    %364 = arith.addf %358, %363 : vector<256x128xf32>
    %c0_307 = arith.constant 0 : index
    %c2_308 = arith.constant 2 : index
    %c0_309 = arith.constant 0 : index
    %365 = vector.load %arg13[%c0_307, %c2_308, %c0_309] : memref<18x18x128xf32, #tpu.memory_space<vmem>>, vector<16x16x128xf32>
    %366 = vector.shape_cast %365 : vector<16x16x128xf32> to vector<256x128xf32>
    %c2_310 = arith.constant 2 : index
    %c0_311 = arith.constant 0 : index
    %367 = vector.load %arg8[%c2_310, %c0_311] : memref<9x128xf32, #tpu.memory_space<vmem>>, vector<1x128xf32>
    %368 = vector.broadcast %367 : vector<1x128xf32> to vector<256x128xf32>
    %369 = arith.mulf %366, %368 : vector<256x128xf32>
    %370 = arith.addf %364, %369 : vector<256x128xf32>
    %c1_312 = arith.constant 1 : index
    %c0_313 = arith.constant 0 : index
    %c0_314 = arith.constant 0 : index
    %371 = vector.load %arg13[%c1_312, %c0_313, %c0_314] : memref<18x18x128xf32, #tpu.memory_space<vmem>>, vector<16x16x128xf32>
    %372 = vector.shape_cast %371 : vector<16x16x128xf32> to vector<256x128xf32>
    %c3_315 = arith.constant 3 : index
    %c0_316 = arith.constant 0 : index
    %373 = vector.load %arg8[%c3_315, %c0_316] : memref<9x128xf32, #tpu.memory_space<vmem>>, vector<1x128xf32>
    %374 = vector.broadcast %373 : vector<1x128xf32> to vector<256x128xf32>
    %375 = arith.mulf %372, %374 : vector<256x128xf32>
    %376 = arith.addf %370, %375 : vector<256x128xf32>
    %c1_317 = arith.constant 1 : index
    %c1_318 = arith.constant 1 : index
    %c0_319 = arith.constant 0 : index
    %377 = vector.load %arg13[%c1_317, %c1_318, %c0_319] : memref<18x18x128xf32, #tpu.memory_space<vmem>>, vector<16x16x128xf32>
    %378 = vector.shape_cast %377 : vector<16x16x128xf32> to vector<256x128xf32>
    %c4_320 = arith.constant 4 : index
    %c0_321 = arith.constant 0 : index
    %379 = vector.load %arg8[%c4_320, %c0_321] : memref<9x128xf32, #tpu.memory_space<vmem>>, vector<1x128xf32>
    %380 = vector.broadcast %379 : vector<1x128xf32> to vector<256x128xf32>
    %381 = arith.mulf %378, %380 : vector<256x128xf32>
    %382 = arith.addf %376, %381 : vector<256x128xf32>
    %c1_322 = arith.constant 1 : index
    %c2_323 = arith.constant 2 : index
    %c0_324 = arith.constant 0 : index
    %383 = vector.load %arg13[%c1_322, %c2_323, %c0_324] : memref<18x18x128xf32, #tpu.memory_space<vmem>>, vector<16x16x128xf32>
    %384 = vector.shape_cast %383 : vector<16x16x128xf32> to vector<256x128xf32>
    %c5_325 = arith.constant 5 : index
    %c0_326 = arith.constant 0 : index
    %385 = vector.load %arg8[%c5_325, %c0_326] : memref<9x128xf32, #tpu.memory_space<vmem>>, vector<1x128xf32>
    %386 = vector.broadcast %385 : vector<1x128xf32> to vector<256x128xf32>
    %387 = arith.mulf %384, %386 : vector<256x128xf32>
    %388 = arith.addf %382, %387 : vector<256x128xf32>
    %c2_327 = arith.constant 2 : index
    %c0_328 = arith.constant 0 : index
    %c0_329 = arith.constant 0 : index
    %389 = vector.load %arg13[%c2_327, %c0_328, %c0_329] : memref<18x18x128xf32, #tpu.memory_space<vmem>>, vector<16x16x128xf32>
    %390 = vector.shape_cast %389 : vector<16x16x128xf32> to vector<256x128xf32>
    %c6_330 = arith.constant 6 : index
    %c0_331 = arith.constant 0 : index
    %391 = vector.load %arg8[%c6_330, %c0_331] : memref<9x128xf32, #tpu.memory_space<vmem>>, vector<1x128xf32>
    %392 = vector.broadcast %391 : vector<1x128xf32> to vector<256x128xf32>
    %393 = arith.mulf %390, %392 : vector<256x128xf32>
    %394 = arith.addf %388, %393 : vector<256x128xf32>
    %c2_332 = arith.constant 2 : index
    %c1_333 = arith.constant 1 : index
    %c0_334 = arith.constant 0 : index
    %395 = vector.load %arg13[%c2_332, %c1_333, %c0_334] : memref<18x18x128xf32, #tpu.memory_space<vmem>>, vector<16x16x128xf32>
    %396 = vector.shape_cast %395 : vector<16x16x128xf32> to vector<256x128xf32>
    %c7_335 = arith.constant 7 : index
    %c0_336 = arith.constant 0 : index
    %397 = vector.load %arg8[%c7_335, %c0_336] : memref<9x128xf32, #tpu.memory_space<vmem>>, vector<1x128xf32>
    %398 = vector.broadcast %397 : vector<1x128xf32> to vector<256x128xf32>
    %399 = arith.mulf %396, %398 : vector<256x128xf32>
    %400 = arith.addf %394, %399 : vector<256x128xf32>
    %c2_337 = arith.constant 2 : index
    %c2_338 = arith.constant 2 : index
    %c0_339 = arith.constant 0 : index
    %401 = vector.load %arg13[%c2_337, %c2_338, %c0_339] : memref<18x18x128xf32, #tpu.memory_space<vmem>>, vector<16x16x128xf32>
    %402 = vector.shape_cast %401 : vector<16x16x128xf32> to vector<256x128xf32>
    %c8_340 = arith.constant 8 : index
    %c0_341 = arith.constant 0 : index
    %403 = vector.load %arg8[%c8_340, %c0_341] : memref<9x128xf32, #tpu.memory_space<vmem>>, vector<1x128xf32>
    %404 = vector.broadcast %403 : vector<1x128xf32> to vector<256x128xf32>
    %405 = arith.mulf %402, %404 : vector<256x128xf32>
    %406 = arith.addf %400, %405 : vector<256x128xf32>
    %cst_342 = arith.constant dense<0.000000e+00> : vector<256xf32>
    %407 = vector.multi_reduction <add>, %406, %cst_342 [1] : vector<256x128xf32> to vector<256xf32>
    %408 = vector.shape_cast %407 : vector<256xf32> to vector<256x1xf32>
    %c0_343 = arith.constant 0 : index
    %c0_344 = arith.constant 0 : index
    %409 = vector.load %arg9[%c0_343, %c0_344] : memref<1x1xf32, #tpu.memory_space<vmem>>, vector<1x1xf32>
    %410 = vector.broadcast %409 : vector<1x1xf32> to vector<256x1xf32>
    %411 = arith.addf %408, %410 : vector<256x1xf32>
    %cst_345 = arith.constant 0.000000e+00 : f32
    %412 = vector.broadcast %cst_345 : f32 to vector<256x1xf32>
    %413 = arith.subf %412, %411 : vector<256x1xf32>
    %414 = math.exp %413 : vector<256x1xf32>
    %cst_346 = arith.constant 1.000000e+00 : f32
    %415 = vector.broadcast %cst_346 : f32 to vector<256x1xf32>
    %416 = arith.addf %415, %414 : vector<256x1xf32>
    %417 = tpu.reciprocal %416 {approx = true} : vector<256x1xf32> -> vector<256x1xf32>
    %cst_347 = arith.constant 0.000000e+00 : f32
    %cst_348 = arith.constant 1.000000e+00 : f32
    %418 = vector.broadcast %cst_347 : f32 to vector<256x1xf32>
    %419 = arith.maximumf %418, %417 : vector<256x1xf32>
    %420 = vector.broadcast %cst_348 : f32 to vector<256x1xf32>
    %421 = arith.minimumf %420, %419 : vector<256x1xf32>
    %c0_349 = arith.constant 0 : index
    %c0_350 = arith.constant 0 : index
    %c0_351 = arith.constant 0 : index
    %422 = vector.load %arg10[%c0_349, %c0_350, %c0_351] : memref<1x256x1xf32, #tpu.memory_space<vmem>>, vector<1x256x1xf32>
    %423 = vector.shape_cast %422 : vector<1x256x1xf32> to vector<256x1xf32>
    %424 = vector.shape_cast %421 : vector<256x1xf32> to vector<1x256x1xf32>
    tpu.vector_store %arg10[%c0_349, %c0_350, %c0_351], %424 {strides = array<i32>} : memref<1x256x1xf32, #tpu.memory_space<vmem>>, vector<1x256x1xf32>,
    return
  }
  func.func @transform_0(%arg0: i32) -> (i32, i32, i32, i32) {
    %c0_i32 = arith.constant 0 : i32
    %c0_i32_0 = arith.constant 0 : i32
    %c0_i32_1 = arith.constant 0 : i32
    %c0_i32_2 = arith.constant 0 : i32
    return %arg0, %c0_i32, %c0_i32_0, %c0_i32_1 : i32, i32, i32, i32
  }
  func.func @transform_1(%arg0: i32) -> (i32, i32) {
    %c0_i32 = arith.constant 0 : i32
    %c0_i32_0 = arith.constant 0 : i32
    %c0_i32_1 = arith.constant 0 : i32
    return %c0_i32, %c0_i32_0 : i32, i32
  }
  func.func @transform_2(%arg0: i32) -> (i32, i32) {
    %c0_i32 = arith.constant 0 : i32
    %c0_i32_0 = arith.constant 0 : i32
    %c0_i32_1 = arith.constant 0 : i32
    return %c0_i32, %c0_i32_0 : i32, i32
  }
  func.func @transform_3(%arg0: i32) -> (i32, i32, i32) {
    %c0_i32 = arith.constant 0 : i32
    %c0_i32_0 = arith.constant 0 : i32
    %c0_i32_1 = arith.constant 0 : i32
    %c0_i32_2 = arith.constant 0 : i32
    return %c0_i32, %c0_i32_0, %c0_i32_1 : i32, i32, i32
  }
  func.func @transform_4(%arg0: i32) -> (i32, i32) {
    %c0_i32 = arith.constant 0 : i32
    %c0_i32_0 = arith.constant 0 : i32
    %c0_i32_1 = arith.constant 0 : i32
    return %c0_i32, %c0_i32_0 : i32, i32
  }
  func.func @transform_5(%arg0: i32) -> (i32, i32, i32) {
    %c0_i32 = arith.constant 0 : i32
    %c0_i32_0 = arith.constant 0 : i32
    %c0_i32_1 = arith.constant 0 : i32
    %c0_i32_2 = arith.constant 0 : i32
    return %c0_i32, %c0_i32_0, %c0_i32_1 : i32, i32, i32
  }
  func.func @transform_6(%arg0: i32) -> (i32, i32) {
    %c0_i32 = arith.constant 0 : i32
    %c0_i32_0 = arith.constant 0 : i32
    %c0_i32_1 = arith.constant 0 : i32
    return %c0_i32, %c0_i32_0 : i32, i32
  }
  func.func @transform_7(%arg0: i32) -> (i32, i32) {
    %c0_i32 = arith.constant 0 : i32
    %c0_i32_0 = arith.constant 0 : i32
    %c0_i32_1 = arith.constant 0 : i32
    return %c0_i32, %c0_i32_0 : i32, i32
  }
  func.func @transform_8(%arg0: i32) -> (i32, i32) {
    %c0_i32 = arith.constant 0 : i32
    %c0_i32_0 = arith.constant 0 : i32
    %c0_i32_1 = arith.constant 0 : i32
    return %c0_i32, %c0_i32_0 : i32, i32
  }
  func.func @transform_9(%arg0: i32) -> (i32, i32, i32) {
    %c0_i32 = arith.constant 0 : i32
    %c0_i32_0 = arith.constant 0 : i32
    %c0_i32_1 = arith.constant 0 : i32
    return %arg0, %c0_i32, %c0_i32_0 : i32, i32, i32
  }
}

</mosaic_0001>

<llo_original>
// kernel: conv_autoencoder_forward.1
$region0: #{conv_autoencoder_forward.1}
  #allocation0 [shape = 'u32[]', space=smem, size = 0x4, offset = 0x4, fixed_abs, tag = 'smem constant byte address 0x4 - core index']
  #allocation1 [shape = 'u32[144,128]{1,0:T(1,128)}', space=vmem, size = 0x12000, scoped, tag = 'internal scratch']
  #allocation2 [shape = 'f32[10,10,128]{2,1,0:T(8,128)}', space=vmem, size = 0x14000, scoped, tag = 'scratch operand']
  #allocation3 [shape = 'f32[10,10,128]{2,1,0:T(8,128)}', space=vmem, size = 0x14000, scoped, tag = 'scratch operand']
  #allocation4 [shape = 'f32[18,18,128]{2,1,0:T(8,128)}', space=vmem, size = 0x36000, scoped, tag = 'scratch operand']
  #allocation5 [shape = 'f32[1,1]{1,0:T(1,128)S(1)}', space=vmem, size = 0x200, scoped, tag = 'scoped memory for conv_autoencoder_forward.1']
  %s0 = inlined_call_operand.vmem [shape: f32[2,18,18,1], index: 0, kind: input, shape index: {}]
  %s1 = inlined_call_operand.vmem [shape: f32[9,128], index: 1, kind: input, shape index: {}]
  %s2 = inlined_call_operand.vmem [shape: f32[1,128], index: 2, kind: input, shape index: {}]
  %s3 = inlined_call_operand.vmem [shape: bf16[9,128,128], index: 3, kind: input, shape index: {}]
  %s4 = inlined_call_operand.vmem [shape: f32[1,128], index: 4, kind: input, shape index: {}]
  %s5 = inlined_call_operand.vmem [shape: bf16[9,128,128], index: 5, kind: input, shape index: {}]
  %s6 = inlined_call_operand.vmem [shape: f32[1,128], index: 6, kind: input, shape index: {}]
  %s7 = inlined_call_operand.vmem [shape: f32[9,128], index: 7, kind: input, shape index: {}]
  %s8 = inlined_call_operand.<no memory space> [shape: f32[1,1], index: 8, kind: input, shape index: {}]
  %s9 = inlined_call_operand.vmem [shape: f32[2,256,1], index: 9, kind: output, shape index: {}]
  %s10 = sld [smem:[#allocation0]]
  $region69: #{conv_autoencoder_forward.1} parent=0
    _
  %s12 = ssub.s32 1, %s10
  %s13 = scalar_select 0, %s12, %s10
  %v14 = vstv %s8
  %15 = vst [vmem:[#allocation5] sm:$0x1] %v14
  loop: start=0, step=1, limit=4
  $region2: #{conv_autoencoder_forward.1} parent=0 // loop_pre_header
    _
  $region3: #{conv_autoencoder_forward.1} parent=0 // loop_header
    %s17 = sphi 0, %s21
    %p18 = scmp.ge.s32.totalorder %s17, 4
    %s27 = sphi 0, %s29
    %s30 = sphi 0, %s27
    %s31 = sphi 0, %s30
    %s47 = sphi 0, %s31
    %s51 = sphi 0, %s51
    %s53 = sphi 0, %s51
    %s54 = sphi 0, %s53
    %s68 = sphi 0, %s54
    %s72 = sphi 0, %s72
    %s74 = sphi 0, %s72
    %s75 = sphi 0, %s74
    %s89 = sphi 0, %s75
    %s93 = sphi 0, %s93
    %s95 = sphi 0, %s93
    %s96 = sphi 0, %s95
    %s110 = sphi 0, %s96
    %s114 = sphi 0, %s114
    %s116 = sphi 0, %s114
    %s117 = sphi 0, %s116
    %s131 = sphi 0, %s117
    %s135 = sphi 0, %s135
    %s137 = sphi 0, %s135
    %s138 = sphi 0, %s137
    %s152 = sphi 0, %s138
    %s156 = sphi 0, %s156
    %s158 = sphi 0, %s156
    %s159 = sphi 0, %s158
    %s173 = sphi 0, %s159
    %s177 = sphi 0, %s177
    %s179 = sphi 0, %s177
    %s180 = sphi 0, %s179
    %s194 = sphi 0, %s180
    %s198 = sphi 0, %s198
    %s200 = sphi 0, %s198
    %s201 = sphi 0, %s200
    %s215 = sphi 0, %s201
    %s221 = sphi 0, %s223
    %s224 = sphi 0, %s221
    %s225 = sphi 0, %s224
    %s241 = sphi 0, %s225
  $region4: #{conv_autoencoder_forward.1} parent=0 // loop_header_branch
    %20 = sbr.rel (%p18) target = $region8
  $region5: #{conv_autoencoder_forward.1} parent=0 // loop_body
    %s22 = ssub.s32 %s17, 1
    %s23 = ssub.s32 %s17, 2
    %s24 = sadd.s32 %s17, 1
    %s25 = ssub.s32 %s17, %s24
    %p26 = scmp.eq.s32.totalorder %s25, 0
    %s28 = sadd.s32 %s27, 1
    %s29 = scalar_select %p26, %s27, %s28
    %p32 = pneg %p26
    %p33 = scmp.eq.s32.totalorder %s17, 1
    %p34 = por %p32, %p33
    %p35 = scmp.ne.s32.totalorder %s27, %s30
    %p36 = scmp.eq.s32.totalorder %s17, 0
    %p37 = por %p35, %p36
    %p38 = scmp.ne.s32.totalorder %s27, %s30
    %p39 = scmp.eq.s32.totalorder %s22, 1
    %p40 = por %p38, %p39
    %p41 = scmp.ne.s32.totalorder %s30, %s31
    %p42 = scmp.eq.s32.totalorder %s22, 0
    %p43 = por %p41, %p42
    %p44 = scmp.ne.s32.totalorder %s30, %s31
    %p45 = scmp.eq.s32.totalorder %s23, 1
    %p46 = por %p44, %p45
    %p48 = scmp.ne.s32.totalorder %s31, %s47
    %p49 = scmp.eq.s32.totalorder %s23, 0
    %p50 = por %p48, %p49
    %s52 = sadd.s32 %s51, 1
    %p55 = scmp.eq.s32.totalorder %s17, 1
    %p56 = scmp.ne.s32.totalorder %s51, %s53
    %p57 = scmp.eq.s32.totalorder %s17, 0
    %p58 = por %p56, %p57
    %p59 = scmp.ne.s32.totalorder %s51, %s53
    %p60 = scmp.eq.s32.totalorder %s22, 1
    %p61 = por %p59, %p60
    %p62 = scmp.ne.s32.totalorder %s53, %s54
    %p63 = scmp.eq.s32.totalorder %s22, 0
    %p64 = por %p62, %p63
    %p65 = scmp.ne.s32.totalorder %s53, %s54
    %p66 = scmp.eq.s32.totalorder %s23, 1
    %p67 = por %p65, %p66
    %p69 = scmp.ne.s32.totalorder %s54, %s68
    %p70 = scmp.eq.s32.totalorder %s23, 0
    %p71 = por %p69, %p70
    %s73 = sadd.s32 %s72, 1
    %p76 = scmp.eq.s32.totalorder %s17, 1
    %p77 = scmp.ne.s32.totalorder %s72, %s74
    %p78 = scmp.eq.s32.totalorder %s17, 0
    %p79 = por %p77, %p78
    %p80 = scmp.ne.s32.totalorder %s72, %s74
    %p81 = scmp.eq.s32.totalorder %s22, 1
    %p82 = por %p80, %p81
    %p83 = scmp.ne.s32.totalorder %s74, %s75
    %p84 = scmp.eq.s32.totalorder %s22, 0
    %p85 = por %p83, %p84
    %p86 = scmp.ne.s32.totalorder %s74, %s75
    %p87 = scmp.eq.s32.totalorder %s23, 1
    %p88 = por %p86, %p87
    %p90 = scmp.ne.s32.totalorder %s75, %s89
    %p91 = scmp.eq.s32.totalorder %s23, 0
    %p92 = por %p90, %p91
    %s94 = sadd.s32 %s93, 1
    %p97 = scmp.eq.s32.totalorder %s17, 1
    %p98 = scmp.ne.s32.totalorder %s93, %s95
    %p99 = scmp.eq.s32.totalorder %s17, 0
    %p100 = por %p98, %p99
    %p101 = scmp.ne.s32.totalorder %s93, %s95
    %p102 = scmp.eq.s32.totalorder %s22, 1
    %p103 = por %p101, %p102
    %p104 = scmp.ne.s32.totalorder %s95, %s96
    %p105 = scmp.eq.s32.totalorder %s22, 0
    %p106 = por %p104, %p105
    %p107 = scmp.ne.s32.totalorder %s95, %s96
    %p108 = scmp.eq.s32.totalorder %s23, 1
    %p109 = por %p107, %p108
    %p111 = scmp.ne.s32.totalorder %s96, %s110
    %p112 = scmp.eq.s32.totalorder %s23, 0
    %p113 = por %p111, %p112
    %s115 = sadd.s32 %s114, 1
    %p118 = scmp.eq.s32.totalorder %s17, 1
    %p119 = scmp.ne.s32.totalorder %s114, %s116
    %p120 = scmp.eq.s32.totalorder %s17, 0
    %p121 = por %p119, %p120
    %p122 = scmp.ne.s32.totalorder %s114, %s116
    %p123 = scmp.eq.s32.totalorder %s22, 1
    %p124 = por %p122, %p123
    %p125 = scmp.ne.s32.totalorder %s116, %s117
    %p126 = scmp.eq.s32.totalorder %s22, 0
    %p127 = por %p125, %p126
    %p128 = scmp.ne.s32.totalorder %s116, %s117
    %p129 = scmp.eq.s32.totalorder %s23, 1
    %p130 = por %p128, %p129
    %p132 = scmp.ne.s32.totalorder %s117, %s131
    %p133 = scmp.eq.s32.totalorder %s23, 0
    %p134 = por %p132, %p133
    %s136 = sadd.s32 %s135, 1
    %p139 = scmp.eq.s32.totalorder %s17, 1
    %p140 = scmp.ne.s32.totalorder %s135, %s137
    %p141 = scmp.eq.s32.totalorder %s17, 0
    %p142 = por %p140, %p141
    %p143 = scmp.ne.s32.totalorder %s135, %s137
    %p144 = scmp.eq.s32.totalorder %s22, 1
    %p145 = por %p143, %p144
    %p146 = scmp.ne.s32.totalorder %s137, %s138
    %p147 = scmp.eq.s32.totalorder %s22, 0
    %p148 = por %p146, %p147
    %p149 = scmp.ne.s32.totalorder %s137, %s138
    %p150 = scmp.eq.s32.totalorder %s23, 1
    %p151 = por %p149, %p150
    %p153 = scmp.ne.s32.totalorder %s138, %s152
    %p154 = scmp.eq.s32.totalorder %s23, 0
    %p155 = por %p153, %p154
    %s157 = sadd.s32 %s156, 1
    %p160 = scmp.eq.s32.totalorder %s17, 1
    %p161 = scmp.ne.s32.totalorder %s156, %s158
    %p162 = scmp.eq.s32.totalorder %s17, 0
    %p163 = por %p161, %p162
    %p164 = scmp.ne.s32.totalorder %s156, %s158
    %p165 = scmp.eq.s32.totalorder %s22, 1
    %p166 = por %p164, %p165
    %p167 = scmp.ne.s32.totalorder %s158, %s159
    %p168 = scmp.eq.s32.totalorder %s22, 0
    %p169 = por %p167, %p168
    %p170 = scmp.ne.s32.totalorder %s158, %s159
    %p171 = scmp.eq.s32.totalorder %s23, 1
    %p172 = por %p170, %p171
    %p174 = scmp.ne.s32.totalorder %s159, %s173
    %p175 = scmp.eq.s32.totalorder %s23, 0
    %p176 = por %p174, %p175
    %s178 = sadd.s32 %s177, 1
    %p181 = scmp.eq.s32.totalorder %s17, 1
    %p182 = scmp.ne.s32.totalorder %s177, %s179
    %p183 = scmp.eq.s32.totalorder %s17, 0
    %p184 = por %p182, %p183
    %p185 = scmp.ne.s32.totalorder %s177, %s179
    %p186 = scmp.eq.s32.totalorder %s22, 1
    %p187 = por %p185, %p186
    %p188 = scmp.ne.s32.totalorder %s179, %s180
    %p189 = scmp.eq.s32.totalorder %s22, 0
    %p190 = por %p188, %p189
    %p191 = scmp.ne.s32.totalorder %s179, %s180
    %p192 = scmp.eq.s32.totalorder %s23, 1
    %p193 = por %p191, %p192
    %p195 = scmp.ne.s32.totalorder %s180, %s194
    %p196 = scmp.eq.s32.totalorder %s23, 0
    %p197 = por %p195, %p196
    %s199 = sadd.s32 %s198, 1
    %p202 = scmp.eq.s32.totalorder %s17, 1
    %p203 = scmp.ne.s32.totalorder %s198, %s200
    %p204 = scmp.eq.s32.totalorder %s17, 0
    %p205 = por %p203, %p204
    %p206 = scmp.ne.s32.totalorder %s198, %s200
    %p207 = scmp.eq.s32.totalorder %s22, 1
    %p208 = por %p206, %p207
    %p209 = scmp.ne.s32.totalorder %s200, %s201
    %p210 = scmp.eq.s32.totalorder %s22, 0
    %p211 = por %p209, %p210
    %p212 = scmp.ne.s32.totalorder %s200, %s201
    %p213 = scmp.eq.s32.totalorder %s23, 1
    %p214 = por %p212, %p213
    %p216 = scmp.ne.s32.totalorder %s201, %s215
    %p217 = scmp.eq.s32.totalorder %s23, 0
    %p218 = por %p216, %p217
    %s219 = ssub.s32 %s17, %s24
    %p220 = scmp.eq.s32.totalorder %s219, 0
    %s222 = sadd.s32 %s221, 1
    %s223 = scalar_select %p220, %s221, %s222
    %p226 = pneg %p220
    %p227 = scmp.eq.s32.totalorder %s17, 1
    %p228 = por %p226, %p227
    %p229 = scmp.ne.s32.totalorder %s221, %s224
    %p230 = scmp.eq.s32.totalorder %s17, 0
    %p231 = por %p229, %p230
    %p232 = scmp.ne.s32.totalorder %s221, %s224
    %p233 = scmp.eq.s32.totalorder %s22, 1
    %p234 = por %p232, %p233
    %p235 = scmp.ne.s32.totalorder %s224, %s225
    %p236 = scmp.eq.s32.totalorder %s22, 0
    %p237 = por %p235, %p236
    %p238 = scmp.ne.s32.totalorder %s224, %s225
    %p239 = scmp.eq.s32.totalorder %s23, 1
    %p240 = por %p238, %p239
    %p242 = scmp.ne.s32.totalorder %s225, %s241
    %p243 = scmp.eq.s32.totalorder %s23, 0
    %p244 = por %p242, %p243
    %p245 = scmp.le.s32.totalorder 1, %s17
    %p246 = scmp.lt.s32.totalorder %s17, 3
    %p247 = pnand %p245, %p246
    %p248 = pneg %p247
    // Predicated region
    $region9: #{conv_autoencoder_forward.1} parent=5 // pred_check
      _
    $region10: #{conv_autoencoder_forward.1} parent=5 // pred_check_branch
      %250 = sbr.rel (%p247) target = $region12
    $region11: #{conv_autoencoder_forward.1} parent=5 // pred_region
      %s251 = ssub.s32 %s17, 1
      // Predicated region
      $region13: #{conv_autoencoder_forward.1} parent=11 // pred_check
        %p252 = pneg %p64
      $region14: #{conv_autoencoder_forward.1} parent=11 // pred_check_branch
        %254 = sbr.rel (%p252) target = $region16
      $region15: #{conv_autoencoder_forward.1} parent=11 // pred_region
        _
      $region16: #{conv_autoencoder_forward.1} parent=11 // pred_fallthru
        _
      // Predicated region
      $region17: #{conv_autoencoder_forward.1} parent=11 // pred_check
        %p255 = pneg %p85
      $region18: #{conv_autoencoder_forward.1} parent=11 // pred_check_branch
        %257 = sbr.rel (%p255) target = $region20
      $region19: #{conv_autoencoder_forward.1} parent=11 // pred_region
        _
      $region20: #{conv_autoencoder_forward.1} parent=11 // pred_fallthru
        _
      // Predicated region
      $region21: #{conv_autoencoder_forward.1} parent=11 // pred_check
        %p258 = pneg %p106
      $region22: #{conv_autoencoder_forward.1} parent=11 // pred_check_branch
        %260 = sbr.rel (%p258) target = $region24
      $region23: #{conv_autoencoder_forward.1} parent=11 // pred_region
        _
      $region24: #{conv_autoencoder_forward.1} parent=11 // pred_fallthru
        _
      // Predicated region
      $region25: #{conv_autoencoder_forward.1} parent=11 // pred_check
        %p261 = pneg %p127
      $region26: #{conv_autoencoder_forward.1} parent=11 // pred_check_branch
        %263 = sbr.rel (%p261) target = $region28
      $region27: #{conv_autoencoder_forward.1} parent=11 // pred_region
        _
      $region28: #{conv_autoencoder_forward.1} parent=11 // pred_fallthru
        _
      // Predicated region
      $region29: #{conv_autoencoder_forward.1} parent=11 // pred_check
        %p264 = pneg %p148
      $region30: #{conv_autoencoder_forward.1} parent=11 // pred_check_branch
        %266 = sbr.rel (%p264) target = $region32
      $region31: #{conv_autoencoder_forward.1} parent=11 // pred_region
        _
      $region32: #{conv_autoencoder_forward.1} parent=11 // pred_fallthru
        _
      // Predicated region
      $region33: #{conv_autoencoder_forward.1} parent=11 // pred_check
        %p267 = pneg %p169
      $region34: #{conv_autoencoder_forward.1} parent=11 // pred_check_branch
        %269 = sbr.rel (%p267) target = $region36
      $region35: #{conv_autoencoder_forward.1} parent=11 // pred_region
        _
      $region36: #{conv_autoencoder_forward.1} parent=11 // pred_fallthru
        _
      // Predicated region
      $region37: #{conv_autoencoder_forward.1} parent=11 // pred_check
        %p270 = pneg %p190
      $region38: #{conv_autoencoder_forward.1} parent=11 // pred_check_branch
        %272 = sbr.rel (%p270) target = $region40
      $region39: #{conv_autoencoder_forward.1} parent=11 // pred_region
        _
      $region40: #{conv_autoencoder_forward.1} parent=11 // pred_fallthru
        _
      // Predicated region
      $region41: #{conv_autoencoder_forward.1} parent=11 // pred_check
        %p273 = pneg %p211
      $region42: #{conv_autoencoder_forward.1} parent=11 // pred_check_branch
        %275 = sbr.rel (%p273) target = $region44
      $region43: #{conv_autoencoder_forward.1} parent=11 // pred_region
        _
      $region44: #{conv_autoencoder_forward.1} parent=11 // pred_fallthru
        _
    $region12: #{conv_autoencoder_forward.1} parent=5 // pred_fallthru
      _
    %p276 = scmp.lt.s32.totalorder %s17, 2
    // Predicated region
    $region45: #{conv_autoencoder_forward.1} parent=5 // pred_check
      %p277 = pneg %p276
    $region46: #{conv_autoencoder_forward.1} parent=5 // pred_check_branch
      %279 = sbr.rel (%p277) target = $region48
    $region47: #{conv_autoencoder_forward.1} parent=5 // pred_region
      // Predicated region
      $region49: #{conv_autoencoder_forward.1} parent=47 // pred_check
        %p280 = pneg %p37
      $region50: #{conv_autoencoder_forward.1} parent=47 // pred_check_branch
        %282 = sbr.rel (%p280) target = $region52
      $region51: #{conv_autoencoder_forward.1} parent=47 // pred_region
        %p283 = scmp.lt.s32.totalorder %s17, 1
        %s284 = scalar_select %p283, %s17, 1
        %s285 = smul.addr %s284, 54
        %s286 = smul.addr %s285, 8
        %s287 = scalar_lea.vmem %s0, %s286
      $region52: #{conv_autoencoder_forward.1} parent=47 // pred_fallthru
        _
    $region48: #{conv_autoencoder_forward.1} parent=5 // pred_fallthru
      _
    %p288 = scmp.le.s32.totalorder 1, %s17
    %p289 = scmp.lt.s32.totalorder %s17, 3
    %p290 = pnand %p288, %p289
    %p291 = pneg %p290
    // Predicated region
    $region53: #{conv_autoencoder_forward.1} parent=5 // pred_check
      _
    $region54: #{conv_autoencoder_forward.1} parent=5 // pred_check_branch
      %293 = sbr.rel (%p290) target = $region56
    $region55: #{conv_autoencoder_forward.1} parent=5 // pred_region
      %s294 = ssub.s32 %s17, 1
      %p295 = scmp.lt.s32.totalorder %s22, 1
      %s296 = scalar_select %p295, %s22, 1
      %s297 = smul.addr %s296, 54
      %s298 = smul.addr %s297, 8
      %s299 = scalar_lea.vmem %s0, %s298
      %p300 = pneg %p43
      %p301 = pneg %p40
      %p302 = pneg %p64
      %p303 = pneg %p61
      %p304 = pneg %p85
      %p305 = pneg %p82
      %p306 = pneg %p106
      %p307 = pneg %p103
      %p308 = pneg %p127
      %p309 = pneg %p124
      %p310 = pneg %p148
      %p311 = pneg %p145
      %p312 = pneg %p169
      %p313 = pneg %p166
      %p314 = pneg %p190
      %p315 = pneg %p187
      %p316 = pneg %p211
      %p317 = pneg %p208
      %p318 = pneg %p237
      %p319 = pneg %p234
      %p320 = scmp.lt.s32.totalorder %s22, 1
      %s321 = scalar_select %p320, %s22, 1
      %s322 = smul.addr %s321, 32
      %s323 = smul.addr %s322, 8
      %s324 = scalar_lea.vmem %s9, %s323
      %p325 = scmp.lt.s32.totalorder %s22, 1
      %s326 = scalar_select %p325, %s22, 1
      %s327 = smul.addr %s326, 54
      %s328 = smul.addr %s327, 8
      %s329 = scalar_lea.vmem %s0, %s328
      %p330 = scmp.lt.s32.totalorder %s22, 1
      %s331 = scalar_select %p330, %s22, 1
      %s332 = smul.addr %s331, 32
      %s333 = smul.addr %s332, 8
      %s334 = scalar_lea.vmem %s9, %s333
      %v336 = vld [vmem:[%s329] sm:$0xff]
      %v337 = vld [vmem:[%s329 + $0x8] sm:$0xff]
      %v338 = vld [vmem:[%s329 + $0x18] sm:$0xff]
      %v339 = vld [vmem:[%s329 + $0x20] sm:$0xff]
      %v340 = vld [vmem:[%s329 + $0x30] sm:$0xff]
      %v341 = vld [vmem:[%s329 + $0x38] sm:$0xff]
      %v342 = vld [vmem:[%s329 + $0x48] sm:$0xff]
      %v343 = vld [vmem:[%s329 + $0x50] sm:$0xff]
      %v344 = vld [vmem:[%s329 + $0x60] sm:$0xff]
      %v345 = vld [vmem:[%s329 + $0x68] sm:$0xff]
      %v346 = vld [vmem:[%s329 + $0x78] sm:$0xff]
      %v347 = vld [vmem:[%s329 + $0x80] sm:$0xff]
      %v348 = vld [vmem:[%s329 + $0x90] sm:$0xff]
      %v349 = vld [vmem:[%s329 + $0x98] sm:$0xff]
      %v350 = vld [vmem:[%s329 + $0xa8] sm:$0xff]
      %v351 = vld [vmem:[%s329 + $0xb0] sm:$0xff]
      %v352 = vld [vmem:[%s329 + $0xc0] sm:$0xff]
      %v353 = vld [vmem:[%s329 + $0xc8] sm:$0xff]
      %v354 = vld [vmem:[%s329 + $0xd8] sm:$0xff]
      %v355 = vld [vmem:[%s329 + $0xe0] sm:$0xff]
      %v356 = vld [vmem:[%s329 + $0xf0] sm:$0xff]
      %v357 = vld [vmem:[%s329 + $0xf8] sm:$0xff]
      %v358 = vld [vmem:[%s329 + $0x108] sm:$0xff]
      %v359 = vld [vmem:[%s329 + $0x110] sm:$0xff]
      %v360 = vld [vmem:[%s329 + $0x120] sm:$0xff]
      %v361 = vld [vmem:[%s329 + $0x128] sm:$0xff]
      %v362 = vld [vmem:[%s329 + $0x138] sm:$0xff]
      %v363 = vld [vmem:[%s329 + $0x140] sm:$0xff]
      %v364 = vld [vmem:[%s329 + $0x150] sm:$0xff]
      %v365 = vld [vmem:[%s329 + $0x158] sm:$0xff]
      %v366 = vld [vmem:[%s329 + $0x168] sm:$0xff]
      %v367 = vld [vmem:[%s329 + $0x170] sm:$0xff]
      %v368 = vld [vmem:[%s1] sm:$0x1]
      %370 = vset.pattern.permute.xlu0 0
      %371 = vperm.xlu0 %370, %v336
      %v372 = vpop.permute.xlu0 %371
      %375 = vset.pattern.permute.xlu0 0
      %376 = vperm.xlu0 %375, %v337
      %v377 = vpop.permute.xlu0 %376
      %380 = vset.pattern.permute.xlu0 0
      %381 = vperm.xlu0 %380, %v338
      %v382 = vpop.permute.xlu0 %381
      %385 = vset.pattern.permute.xlu0 0
      %386 = vperm.xlu0 %385, %v339
      %v387 = vpop.permute.xlu0 %386
      %390 = vset.pattern.permute.xlu0 0
      %391 = vperm.xlu0 %390, %v340
      %v392 = vpop.permute.xlu0 %391
      %395 = vset.pattern.permute.xlu0 0
      %396 = vperm.xlu0 %395, %v341
      %v397 = vpop.permute.xlu0 %396
      %400 = vset.pattern.permute.xlu0 0
      %401 = vperm.xlu0 %400, %v342
      %v402 = vpop.permute.xlu0 %401
      %405 = vset.pattern.permute.xlu0 0
      %406 = vperm.xlu0 %405, %v343
      %v407 = vpop.permute.xlu0 %406
      %410 = vset.pattern.permute.xlu0 0
      %411 = vperm.xlu0 %410, %v344
      %v412 = vpop.permute.xlu0 %411
      %415 = vset.pattern.permute.xlu0 0
      %416 = vperm.xlu0 %415, %v345
      %v417 = vpop.permute.xlu0 %416
      %420 = vset.pattern.permute.xlu0 0
      %421 = vperm.xlu0 %420, %v346
      %v422 = vpop.permute.xlu0 %421
      %425 = vset.pattern.permute.xlu0 0
      %426 = vperm.xlu0 %425, %v347
      %v427 = vpop.permute.xlu0 %426
      %430 = vset.pattern.permute.xlu0 0
      %431 = vperm.xlu0 %430, %v348
      %v432 = vpop.permute.xlu0 %431
      %435 = vset.pattern.permute.xlu0 0
      %436 = vperm.xlu0 %435, %v349
      %v437 = vpop.permute.xlu0 %436
      %440 = vset.pattern.permute.xlu0 0
      %441 = vperm.xlu0 %440, %v350
      %v442 = vpop.permute.xlu0 %441
      %445 = vset.pattern.permute.xlu0 0
      %446 = vperm.xlu0 %445, %v351
      %v447 = vpop.permute.xlu0 %446
      %450 = vset.pattern.permute.xlu0 0
      %451 = vperm.xlu0 %450, %v352
      %v452 = vpop.permute.xlu0 %451
      %455 = vset.pattern.permute.xlu0 0
      %456 = vperm.xlu0 %455, %v353
      %v457 = vpop.permute.xlu0 %456
      %460 = vset.pattern.permute.xlu0 0
      %461 = vperm.xlu0 %460, %v354
      %v462 = vpop.permute.xlu0 %461
      %465 = vset.pattern.permute.xlu0 0
      %466 = vperm.xlu0 %465, %v355
      %v467 = vpop.permute.xlu0 %466
      %470 = vset.pattern.permute.xlu0 0
      %471 = vperm.xlu0 %470, %v356
      %v472 = vpop.permute.xlu0 %471
      %475 = vset.pattern.permute.xlu0 0
      %476 = vperm.xlu0 %475, %v357
      %v477 = vpop.permute.xlu0 %476
      %480 = vset.pattern.permute.xlu0 0
      %481 = vperm.xlu0 %480, %v358
      %v482 = vpop.permute.xlu0 %481
      %485 = vset.pattern.permute.xlu0 0
      %486 = vperm.xlu0 %485, %v359
      %v487 = vpop.permute.xlu0 %486
      %490 = vset.pattern.permute.xlu0 0
      %491 = vperm.xlu0 %490, %v360
      %v492 = vpop.permute.xlu0 %491
      %495 = vset.pattern.permute.xlu0 0
      %496 = vperm.xlu0 %495, %v361
      %v497 = vpop.permute.xlu0 %496
      %500 = vset.pattern.permute.xlu0 0
      %501 = vperm.xlu0 %500, %v362
      %v502 = vpop.permute.xlu0 %501
      %505 = vset.pattern.permute.xlu0 0
      %506 = vperm.xlu0 %505, %v363
      %v507 = vpop.permute.xlu0 %506
      %510 = vset.pattern.permute.xlu0 0
      %511 = vperm.xlu0 %510, %v364
      %v512 = vpop.permute.xlu0 %511
      %515 = vset.pattern.permute.xlu0 0
      %516 = vperm.xlu0 %515, %v365
      %v517 = vpop.permute.xlu0 %516
      %520 = vset.pattern.permute.xlu0 0
      %521 = vperm.xlu0 %520, %v366
      %v522 = vpop.permute.xlu0 %521
      %525 = vset.pattern.permute.xlu0 0
      %526 = vperm.xlu0 %525, %v367
      %v527 = vpop.permute.xlu0 %526
      %v529 = vlaneseq
      %v530 = vshrl.u32 %v529, 7
      %v531 = vsub.s32 0, %v530
      %v532 = vrot.slane %v368, %v531
      %v533 = vmul.f32 %v372, %v532
      %v534 = vmul.f32 %v377, %v532
      %v535 = vmul.f32 %v382, %v532
      %v536 = vmul.f32 %v387, %v532
      %v537 = vmul.f32 %v392, %v532
      %v538 = vmul.f32 %v397, %v532
      %v539 = vmul.f32 %v402, %v532
      %v540 = vmul.f32 %v407, %v532
      %v541 = vmul.f32 %v412, %v532
      %v542 = vmul.f32 %v417, %v532
      %v543 = vmul.f32 %v422, %v532
      %v544 = vmul.f32 %v427, %v532
      %v545 = vmul.f32 %v432, %v532
      %v546 = vmul.f32 %v437, %v532
      %v547 = vmul.f32 %v442, %v532
      %v548 = vmul.f32 %v447, %v532
      %v549 = vmul.f32 %v452, %v532
      %v550 = vmul.f32 %v457, %v532
      %v551 = vmul.f32 %v462, %v532
      %v552 = vmul.f32 %v467, %v532
      %v553 = vmul.f32 %v472, %v532
      %v554 = vmul.f32 %v477, %v532
      %v555 = vmul.f32 %v482, %v532
      %v556 = vmul.f32 %v487, %v532
      %v557 = vmul.f32 %v492, %v532
      %v558 = vmul.f32 %v497, %v532
      %v559 = vmul.f32 %v502, %v532
      %v560 = vmul.f32 %v507, %v532
      %v561 = vmul.f32 %v512, %v532
      %v562 = vmul.f32 %v517, %v532
      %v563 = vmul.f32 %v522, %v532
      %v564 = vmul.f32 %v527, %v532
      %v565 = vadd.f32 %v533, 0.0
      %v566 = vadd.f32 %v534, 0.0
      %v567 = vadd.f32 %v535, 0.0
      %v568 = vadd.f32 %v536, 0.0
      %v569 = vadd.f32 %v537, 0.0
      %v570 = vadd.f32 %v538, 0.0
      %v571 = vadd.f32 %v539, 0.0
      %v572 = vadd.f32 %v540, 0.0
      %v573 = vadd.f32 %v541, 0.0
      %v574 = vadd.f32 %v542, 0.0
      %v575 = vadd.f32 %v543, 0.0
      %v576 = vadd.f32 %v544, 0.0
      %v577 = vadd.f32 %v545, 0.0
      %v578 = vadd.f32 %v546, 0.0
      %v579 = vadd.f32 %v547, 0.0
      %v580 = vadd.f32 %v548, 0.0
      %v581 = vadd.f32 %v549, 0.0
      %v582 = vadd.f32 %v550, 0.0
      %v583 = vadd.f32 %v551, 0.0
      %v584 = vadd.f32 %v552, 0.0
      %v585 = vadd.f32 %v553, 0.0
      %v586 = vadd.f32 %v554, 0.0
      %v587 = vadd.f32 %v555, 0.0
      %v588 = vadd.f32 %v556, 0.0
      %v589 = vadd.f32 %v557, 0.0
      %v590 = vadd.f32 %v558, 0.0
      %v591 = vadd.f32 %v559, 0.0
      %v592 = vadd.f32 %v560, 0.0
      %v593 = vadd.f32 %v561, 0.0
      %v594 = vadd.f32 %v562, 0.0
      %v595 = vadd.f32 %v563, 0.0
      %v596 = vadd.f32 %v564, 0.0
      %v597 = vld [vmem:[%s329 + $0x1] sm:$0xff]
      %v598 = vld [vmem:[%s329 + $0x9] sm:$0xff]
      %v599 = vld [vmem:[%s329 + $0x19] sm:$0xff]
      %v600 = vld [vmem:[%s329 + $0x21] sm:$0xff]
      %v601 = vld [vmem:[%s329 + $0x31] sm:$0xff]
      %v602 = vld [vmem:[%s329 + $0x39] sm:$0xff]
      %v603 = vld [vmem:[%s329 + $0x49] sm:$0xff]
      %v604 = vld [vmem:[%s329 + $0x51] sm:$0xff]
      %v605 = vld [vmem:[%s329 + $0x61] sm:$0xff]
      %v606 = vld [vmem:[%s329 + $0x69] sm:$0xff]
      %v607 = vld [vmem:[%s329 + $0x79] sm:$0xff]
      %v608 = vld [vmem:[%s329 + $0x81] sm:$0xff]
      %v609 = vld [vmem:[%s329 + $0x91] sm:$0xff]
      %v610 = vld [vmem:[%s329 + $0x99] sm:$0xff]
      %v611 = vld [vmem:[%s329 + $0xa9] sm:$0xff]
      %v612 = vld [vmem:[%s329 + $0xb1] sm:$0xff]
      %v613 = vld [vmem:[%s329 + $0xc1] sm:$0xff]
      %v614 = vld [vmem:[%s329 + $0xc9] sm:$0xff]
      %v615 = vld [vmem:[%s329 + $0xd9] sm:$0xff]
      %v616 = vld [vmem:[%s329 + $0xe1] sm:$0xff]
      %v617 = vld [vmem:[%s329 + $0xf1] sm:$0xff]
      %v618 = vld [vmem:[%s329 + $0xf9] sm:$0xff]
      %v619 = vld [vmem:[%s329 + $0x109] sm:$0xff]
      %v620 = vld [vmem:[%s329 + $0x111] sm:$0xff]
      %v621 = vld [vmem:[%s329 + $0x121] sm:$0xff]
      %v622 = vld [vmem:[%s329 + $0x129] sm:$0xff]
      %v623 = vld [vmem:[%s329 + $0x139] sm:$0xff]
      %v624 = vld [vmem:[%s329 + $0x141] sm:$0xff]
      %v625 = vld [vmem:[%s329 + $0x151] sm:$0xff]
      %v626 = vld [vmem:[%s329 + $0x159] sm:$0xff]
      %v627 = vld [vmem:[%s329 + $0x169] sm:$0xff]
      %v628 = vld [vmem:[%s329 + $0x171] sm:$0xff]
      %v629 = vld [vmem:[%s1 + $0x1] sm:$0x1]
      %631 = vset.pattern.permute.xlu0 0
      %632 = vperm.xlu0 %631, %v597
      %v633 = vpop.permute.xlu0 %632
      %636 = vset.pattern.permute.xlu0 0
      %637 = vperm.xlu0 %636, %v598
      %v638 = vpop.permute.xlu0 %637
      %641 = vset.pattern.permute.xlu0 0
      %642 = vperm.xlu0 %641, %v599
      %v643 = vpop.permute.xlu0 %642
      %646 = vset.pattern.permute.xlu0 0
      %647 = vperm.xlu0 %646, %v600
      %v648 = vpop.permute.xlu0 %647
      %651 = vset.pattern.permute.xlu0 0
      %652 = vperm.xlu0 %651, %v601
      %v653 = vpop.permute.xlu0 %652
      %656 = vset.pattern.permute.xlu0 0
      %657 = vperm.xlu0 %656, %v602
      %v658 = vpop.permute.xlu0 %657
      %661 = vset.pattern.permute.xlu0 0
      %662 = vperm.xlu0 %661, %v603
      %v663 = vpop.permute.xlu0 %662
      %666 = vset.pattern.permute.xlu0 0
      %667 = vperm.xlu0 %666, %v604
      %v668 = vpop.permute.xlu0 %667
      %671 = vset.pattern.permute.xlu0 0
      %672 = vperm.xlu0 %671, %v605
      %v673 = vpop.permute.xlu0 %672
      %676 = vset.pattern.permute.xlu0 0
      %677 = vperm.xlu0 %676, %v606
      %v678 = vpop.permute.xlu0 %677
      %681 = vset.pattern.permute.xlu0 0
      %682 = vperm.xlu0 %681, %v607
      %v683 = vpop.permute.xlu0 %682
      %686 = vset.pattern.permute.xlu0 0
      %687 = vperm.xlu0 %686, %v608
      %v688 = vpop.permute.xlu0 %687
      %691 = vset.pattern.permute.xlu0 0
      %692 = vperm.xlu0 %691, %v609
      %v693 = vpop.permute.xlu0 %692
      %696 = vset.pattern.permute.xlu0 0
      %697 = vperm.xlu0 %696, %v610
      %v698 = vpop.permute.xlu0 %697
      %701 = vset.pattern.permute.xlu0 0
      %702 = vperm.xlu0 %701, %v611
      %v703 = vpop.permute.xlu0 %702
      %706 = vset.pattern.permute.xlu0 0
      %707 = vperm.xlu0 %706, %v612
      %v708 = vpop.permute.xlu0 %707
      %711 = vset.pattern.permute.xlu0 0
      %712 = vperm.xlu0 %711, %v613
      %v713 = vpop.permute.xlu0 %712
      %716 = vset.pattern.permute.xlu0 0
      %717 = vperm.xlu0 %716, %v614
      %v718 = vpop.permute.xlu0 %717
      %721 = vset.pattern.permute.xlu0 0
      %722 = vperm.xlu0 %721, %v615
      %v723 = vpop.permute.xlu0 %722
      %726 = vset.pattern.permute.xlu0 0
      %727 = vperm.xlu0 %726, %v616
      %v728 = vpop.permute.xlu0 %727
      %731 = vset.pattern.permute.xlu0 0
      %732 = vperm.xlu0 %731, %v617
      %v733 = vpop.permute.xlu0 %732
      %736 = vset.pattern.permute.xlu0 0
      %737 = vperm.xlu0 %736, %v618
      %v738 = vpop.permute.xlu0 %737
      %741 = vset.pattern.permute.xlu0 0
      %742 = vperm.xlu0 %741, %v619
      %v743 = vpop.permute.xlu0 %742
      %746 = vset.pattern.permute.xlu0 0
      %747 = vperm.xlu0 %746, %v620
      %v748 = vpop.permute.xlu0 %747
      %751 = vset.pattern.permute.xlu0 0
      %752 = vperm.xlu0 %751, %v621
      %v753 = vpop.permute.xlu0 %752
      %756 = vset.pattern.permute.xlu0 0
      %757 = vperm.xlu0 %756, %v622
      %v758 = vpop.permute.xlu0 %757
      %761 = vset.pattern.permute.xlu0 0
      %762 = vperm.xlu0 %761, %v623
      %v763 = vpop.permute.xlu0 %762
      %766 = vset.pattern.permute.xlu0 0
      %767 = vperm.xlu0 %766, %v624
      %v768 = vpop.permute.xlu0 %767
      %771 = vset.pattern.permute.xlu0 0
      %772 = vperm.xlu0 %771, %v625
      %v773 = vpop.permute.xlu0 %772
      %776 = vset.pattern.permute.xlu0 0
      %777 = vperm.xlu0 %776, %v626
      %v778 = vpop.permute.xlu0 %777
      %781 = vset.pattern.permute.xlu0 0
      %782 = vperm.xlu0 %781, %v627
      %v783 = vpop.permute.xlu0 %782
      %786 = vset.pattern.permute.xlu0 0
      %787 = vperm.xlu0 %786, %v628
      %v788 = vpop.permute.xlu0 %787
      %v790 = vlaneseq
      %v791 = vshrl.u32 %v790, 7
      %v792 = vsub.s32 0, %v791
      %v793 = vrot.slane %v629, %v792
      %v794 = vmul.f32 %v633, %v793
      %v795 = vmul.f32 %v638, %v793
      %v796 = vmul.f32 %v643, %v793
      %v797 = vmul.f32 %v648, %v793
      %v798 = vmul.f32 %v653, %v793
      %v799 = vmul.f32 %v658, %v793
      %v800 = vmul.f32 %v663, %v793
      %v801 = vmul.f32 %v668, %v793
      %v802 = vmul.f32 %v673, %v793
      %v803 = vmul.f32 %v678, %v793
      %v804 = vmul.f32 %v683, %v793
      %v805 = vmul.f32 %v688, %v793
      %v806 = vmul.f32 %v693, %v793
      %v807 = vmul.f32 %v698, %v793
      %v808 = vmul.f32 %v703, %v793
      %v809 = vmul.f32 %v708, %v793
      %v810 = vmul.f32 %v713, %v793
      %v811 = vmul.f32 %v718, %v793
      %v812 = vmul.f32 %v723, %v793
      %v813 = vmul.f32 %v728, %v793
      %v814 = vmul.f32 %v733, %v793
      %v815 = vmul.f32 %v738, %v793
      %v816 = vmul.f32 %v743, %v793
      %v817 = vmul.f32 %v748, %v793
      %v818 = vmul.f32 %v753, %v793
      %v819 = vmul.f32 %v758, %v793
      %v820 = vmul.f32 %v763, %v793
      %v821 = vmul.f32 %v768, %v793
      %v822 = vmul.f32 %v773, %v793
      %v823 = vmul.f32 %v778, %v793
      %v824 = vmul.f32 %v783, %v793
      %v825 = vmul.f32 %v788, %v793
      %v826 = vadd.f32 %v565, %v794
      %v827 = vadd.f32 %v566, %v795
      %v828 = vadd.f32 %v567, %v796
      %v829 = vadd.f32 %v568, %v797
      %v830 = vadd.f32 %v569, %v798
      %v831 = vadd.f32 %v570, %v799
      %v832 = vadd.f32 %v571, %v800
      %v833 = vadd.f32 %v572, %v801
      %v834 = vadd.f32 %v573, %v802
      %v835 = vadd.f32 %v574, %v803
      %v836 = vadd.f32 %v575, %v804
      %v837 = vadd.f32 %v576, %v805
      %v838 = vadd.f32 %v577, %v806
      %v839 = vadd.f32 %v578, %v807
      %v840 = vadd.f32 %v579, %v808
      %v841 = vadd.f32 %v580, %v809
      %v842 = vadd.f32 %v581, %v810
      %v843 = vadd.f32 %v582, %v811
      %v844 = vadd.f32 %v583, %v812
      %v845 = vadd.f32 %v584, %v813
      %v846 = vadd.f32 %v585, %v814
      %v847 = vadd.f32 %v586, %v815
      %v848 = vadd.f32 %v587, %v816
      %v849 = vadd.f32 %v588, %v817
      %v850 = vadd.f32 %v589, %v818
      %v851 = vadd.f32 %v590, %v819
      %v852 = vadd.f32 %v591, %v820
      %v853 = vadd.f32 %v592, %v821
      %v854 = vadd.f32 %v593, %v822
      %v855 = vadd.f32 %v594, %v823
      %v856 = vadd.f32 %v595, %v824
      %v857 = vadd.f32 %v596, %v825
      %v858 = vld [vmem:[%s329 + $0x2] sm:$0xff]
      %v859 = vld [vmem:[%s329 + $0xa] sm:$0xff]
      %v860 = vld [vmem:[%s329 + $0x1a] sm:$0xff]
      %v861 = vld [vmem:[%s329 + $0x22] sm:$0xff]
      %v862 = vld [vmem:[%s329 + $0x32] sm:$0xff]
      %v863 = vld [vmem:[%s329 + $0x3a] sm:$0xff]
      %v864 = vld [vmem:[%s329 + $0x4a] sm:$0xff]
      %v865 = vld [vmem:[%s329 + $0x52] sm:$0xff]
      %v866 = vld [vmem:[%s329 + $0x62] sm:$0xff]
      %v867 = vld [vmem:[%s329 + $0x6a] sm:$0xff]
      %v868 = vld [vmem:[%s329 + $0x7a] sm:$0xff]
      %v869 = vld [vmem:[%s329 + $0x82] sm:$0xff]
      %v870 = vld [vmem:[%s329 + $0x92] sm:$0xff]
      %v871 = vld [vmem:[%s329 + $0x9a] sm:$0xff]
      %v872 = vld [vmem:[%s329 + $0xaa] sm:$0xff]
      %v873 = vld [vmem:[%s329 + $0xb2] sm:$0xff]
      %v874 = vld [vmem:[%s329 + $0xc2] sm:$0xff]
      %v875 = vld [vmem:[%s329 + $0xca] sm:$0xff]
      %v876 = vld [vmem:[%s329 + $0xda] sm:$0xff]
      %v877 = vld [vmem:[%s329 + $0xe2] sm:$0xff]
      %v878 = vld [vmem:[%s329 + $0xf2] sm:$0xff]
      %v879 = vld [vmem:[%s329 + $0xfa] sm:$0xff]
      %v880 = vld [vmem:[%s329 + $0x10a] sm:$0xff]
      %v881 = vld [vmem:[%s329 + $0x112] sm:$0xff]
      %v882 = vld [vmem:[%s329 + $0x122] sm:$0xff]
      %v883 = vld [vmem:[%s329 + $0x12a] sm:$0xff]
      %v884 = vld [vmem:[%s329 + $0x13a] sm:$0xff]
      %v885 = vld [vmem:[%s329 + $0x142] sm:$0xff]
      %v886 = vld [vmem:[%s329 + $0x152] sm:$0xff]
      %v887 = vld [vmem:[%s329 + $0x15a] sm:$0xff]
      %v888 = vld [vmem:[%s329 + $0x16a] sm:$0xff]
      %v889 = vld [vmem:[%s329 + $0x172] sm:$0xff]
      %v890 = vld [vmem:[%s1 + $0x2] sm:$0x1]
      %892 = vset.pattern.permute.xlu0 0
      %893 = vperm.xlu0 %892, %v858
      %v894 = vpop.permute.xlu0 %893
      %897 = vset.pattern.permute.xlu0 0
      %898 = vperm.xlu0 %897, %v859
      %v899 = vpop.permute.xlu0 %898
      %902 = vset.pattern.permute.xlu0 0
      %903 = vperm.xlu0 %902, %v860
      %v904 = vpop.permute.xlu0 %903
      %907 = vset.pattern.permute.xlu0 0
      %908 = vperm.xlu0 %907, %v861
      %v909 = vpop.permute.xlu0 %908
      %912 = vset.pattern.permute.xlu0 0
      %913 = vperm.xlu0 %912, %v862
      %v914 = vpop.permute.xlu0 %913
      %917 = vset.pattern.permute.xlu0 0
      %918 = vperm.xlu0 %917, %v863
      %v919 = vpop.permute.xlu0 %918
      %922 = vset.pattern.permute.xlu0 0
      %923 = vperm.xlu0 %922, %v864
      %v924 = vpop.permute.xlu0 %923
      %927 = vset.pattern.permute.xlu0 0
      %928 = vperm.xlu0 %927, %v865
      %v929 = vpop.permute.xlu0 %928
      %932 = vset.pattern.permute.xlu0 0
      %933 = vperm.xlu0 %932, %v866
      %v934 = vpop.permute.xlu0 %933
      %937 = vset.pattern.permute.xlu0 0
      %938 = vperm.xlu0 %937, %v867
      %v939 = vpop.permute.xlu0 %938
      %942 = vset.pattern.permute.xlu0 0
      %943 = vperm.xlu0 %942, %v868
      %v944 = vpop.permute.xlu0 %943
      %947 = vset.pattern.permute.xlu0 0
      %948 = vperm.xlu0 %947, %v869
      %v949 = vpop.permute.xlu0 %948
      %952 = vset.pattern.permute.xlu0 0
      %953 = vperm.xlu0 %952, %v870
      %v954 = vpop.permute.xlu0 %953
      %957 = vset.pattern.permute.xlu0 0
      %958 = vperm.xlu0 %957, %v871
      %v959 = vpop.permute.xlu0 %958
      %962 = vset.pattern.permute.xlu0 0
      %963 = vperm.xlu0 %962, %v872
      %v964 = vpop.permute.xlu0 %963
      %967 = vset.pattern.permute.xlu0 0
      %968 = vperm.xlu0 %967, %v873
      %v969 = vpop.permute.xlu0 %968
      %972 = vset.pattern.permute.xlu0 0
      %973 = vperm.xlu0 %972, %v874
      %v974 = vpop.permute.xlu0 %973
      %977 = vset.pattern.permute.xlu0 0
      %978 = vperm.xlu0 %977, %v875
      %v979 = vpop.permute.xlu0 %978
      %982 = vset.pattern.permute.xlu0 0
      %983 = vperm.xlu0 %982, %v876
      %v984 = vpop.permute.xlu0 %983
      %987 = vset.pattern.permute.xlu0 0
      %988 = vperm.xlu0 %987, %v877
      %v989 = vpop.permute.xlu0 %988
      %992 = vset.pattern.permute.xlu0 0
      %993 = vperm.xlu0 %992, %v878
      %v994 = vpop.permute.xlu0 %993
      %997 = vset.pattern.permute.xlu0 0
      %998 = vperm.xlu0 %997, %v879
      %v999 = vpop.permute.xlu0 %998
      %1002 = vset.pattern.permute.xlu0 0
      %1003 = vperm.xlu0 %1002, %v880
      %v1004 = vpop.permute.xlu0 %1003
      %1007 = vset.pattern.permute.xlu0 0
      %1008 = vperm.xlu0 %1007, %v881
      %v1009 = vpop.permute.xlu0 %1008
      %1012 = vset.pattern.permute.xlu0 0
      %1013 = vperm.xlu0 %1012, %v882
      %v1014 = vpop.permute.xlu0 %1013
      %1017 = vset.pattern.permute.xlu0 0
      %1018 = vperm.xlu0 %1017, %v883
      %v1019 = vpop.permute.xlu0 %1018
      %1022 = vset.pattern.permute.xlu0 0
      %1023 = vperm.xlu0 %1022, %v884
      %v1024 = vpop.permute.xlu0 %1023
      %1027 = vset.pattern.permute.xlu0 0
      %1028 = vperm.xlu0 %1027, %v885
      %v1029 = vpop.permute.xlu0 %1028
      %1032 = vset.pattern.permute.xlu0 0
      %1033 = vperm.xlu0 %1032, %v886
      %v1034 = vpop.permute.xlu0 %1033
      %1037 = vset.pattern.permute.xlu0 0
      %1038 = vperm.xlu0 %1037, %v887
      %v1039 = vpop.permute.xlu0 %1038
      %1042 = vset.pattern.permute.xlu0 0
      %1043 = vperm.xlu0 %1042, %v888
      %v1044 = vpop.permute.xlu0 %1043
      %1047 = vset.pattern.permute.xlu0 0
      %1048 = vperm.xlu0 %1047, %v889
      %v1049 = vpop.permute.xlu0 %1048
      %v1051 = vlaneseq
      %v1052 = vshrl.u32 %v1051, 7
      %v1053 = vsub.s32 0, %v1052
      %v1054 = vrot.slane %v890, %v1053
      %v1055 = vmul.f32 %v894, %v1054
      %v1056 = vmul.f32 %v899, %v1054
      %v1057 = vmul.f32 %v904, %v1054
      %v1058 = vmul.f32 %v909, %v1054
      %v1059 = vmul.f32 %v914, %v1054
      %v1060 = vmul.f32 %v919, %v1054
      %v1061 = vmul.f32 %v924, %v1054
      %v1062 = vmul.f32 %v929, %v1054
      %v1063 = vmul.f32 %v934, %v1054
      %v1064 = vmul.f32 %v939, %v1054
      %v1065 = vmul.f32 %v944, %v1054
      %v1066 = vmul.f32 %v949, %v1054
      %v1067 = vmul.f32 %v954, %v1054
      %v1068 = vmul.f32 %v959, %v1054
      %v1069 = vmul.f32 %v964, %v1054
      %v1070 = vmul.f32 %v969, %v1054
      %v1071 = vmul.f32 %v974, %v1054
      %v1072 = vmul.f32 %v979, %v1054
      %v1073 = vmul.f32 %v984, %v1054
      %v1074 = vmul.f32 %v989, %v1054
      %v1075 = vmul.f32 %v994, %v1054
      %v1076 = vmul.f32 %v999, %v1054
      %v1077 = vmul.f32 %v1004, %v1054
      %v1078 = vmul.f32 %v1009, %v1054
      %v1079 = vmul.f32 %v1014, %v1054
      %v1080 = vmul.f32 %v1019, %v1054
      %v1081 = vmul.f32 %v1024, %v1054
      %v1082 = vmul.f32 %v1029, %v1054
      %v1083 = vmul.f32 %v1034, %v1054
      %v1084 = vmul.f32 %v1039, %v1054
      %v1085 = vmul.f32 %v1044, %v1054
      %v1086 = vmul.f32 %v1049, %v1054
      %v1087 = vadd.f32 %v826, %v1055
      %v1088 = vadd.f32 %v827, %v1056
      %v1089 = vadd.f32 %v828, %v1057
      %v1090 = vadd.f32 %v829, %v1058
      %v1091 = vadd.f32 %v830, %v1059
      %v1092 = vadd.f32 %v831, %v1060
      %v1093 = vadd.f32 %v832, %v1061
      %v1094 = vadd.f32 %v833, %v1062
      %v1095 = vadd.f32 %v834, %v1063
      %v1096 = vadd.f32 %v835, %v1064
      %v1097 = vadd.f32 %v836, %v1065
      %v1098 = vadd.f32 %v837, %v1066
      %v1099 = vadd.f32 %v838, %v1067
      %v1100 = vadd.f32 %v839, %v1068
      %v1101 = vadd.f32 %v840, %v1069
      %v1102 = vadd.f32 %v841, %v1070
      %v1103 = vadd.f32 %v842, %v1071
      %v1104 = vadd.f32 %v843, %v1072
      %v1105 = vadd.f32 %v844, %v1073
      %v1106 = vadd.f32 %v845, %v1074
      %v1107 = vadd.f32 %v846, %v1075
      %v1108 = vadd.f32 %v847, %v1076
      %v1109 = vadd.f32 %v848, %v1077
      %v1110 = vadd.f32 %v849, %v1078
      %v1111 = vadd.f32 %v850, %v1079
      %v1112 = vadd.f32 %v851, %v1080
      %v1113 = vadd.f32 %v852, %v1081
      %v1114 = vadd.f32 %v853, %v1082
      %v1115 = vadd.f32 %v854, %v1083
      %v1116 = vadd.f32 %v855, %v1084
      %v1117 = vadd.f32 %v856, %v1085
      %v1118 = vadd.f32 %v857, %v1086
      %s1119 = scalar_lea.vmem %s329, 24
      %v1120 = vld [vmem:[%s1119] sm:$0xff]
      %v1121 = vld [vmem:[%s1119 + $0x8] sm:$0xff]
      %v1122 = vld [vmem:[%s1119 + $0x18] sm:$0xff]
      %v1123 = vld [vmem:[%s1119 + $0x20] sm:$0xff]
      %v1124 = vld [vmem:[%s1119 + $0x30] sm:$0xff]
      %v1125 = vld [vmem:[%s1119 + $0x38] sm:$0xff]
      %v1126 = vld [vmem:[%s1119 + $0x48] sm:$0xff]
      %v1127 = vld [vmem:[%s1119 + $0x50] sm:$0xff]
      %v1128 = vld [vmem:[%s1119 + $0x60] sm:$0xff]
      %v1129 = vld [vmem:[%s1119 + $0x68] sm:$0xff]
      %v1130 = vld [vmem:[%s1119 + $0x78] sm:$0xff]
      %v1131 = vld [vmem:[%s1119 + $0x80] sm:$0xff]
      %v1132 = vld [vmem:[%s1119 + $0x90] sm:$0xff]
      %v1133 = vld [vmem:[%s1119 + $0x98] sm:$0xff]
      %v1134 = vld [vmem:[%s1119 + $0xa8] sm:$0xff]
      %v1135 = vld [vmem:[%s1119 + $0xb0] sm:$0xff]
      %v1136 = vld [vmem:[%s1119 + $0xc0] sm:$0xff]
      %v1137 = vld [vmem:[%s1119 + $0xc8] sm:$0xff]
      %v1138 = vld [vmem:[%s1119 + $0xd8] sm:$0xff]
      %v1139 = vld [vmem:[%s1119 + $0xe0] sm:$0xff]
      %v1140 = vld [vmem:[%s1119 + $0xf0] sm:$0xff]
      %v1141 = vld [vmem:[%s1119 + $0xf8] sm:$0xff]
      %v1142 = vld [vmem:[%s1119 + $0x108] sm:$0xff]
      %v1143 = vld [vmem:[%s1119 + $0x110] sm:$0xff]
      %v1144 = vld [vmem:[%s1119 + $0x120] sm:$0xff]
      %v1145 = vld [vmem:[%s1119 + $0x128] sm:$0xff]
      %v1146 = vld [vmem:[%s1119 + $0x138] sm:$0xff]
      %v1147 = vld [vmem:[%s1119 + $0x140] sm:$0xff]
      %v1148 = vld [vmem:[%s1119 + $0x150] sm:$0xff]
      %v1149 = vld [vmem:[%s1119 + $0x158] sm:$0xff]
      %v1150 = vld [vmem:[%s1119 + $0x168] sm:$0xff]
      %v1151 = vld [vmem:[%s1119 + $0x170] sm:$0xff]
      %v1152 = vld [vmem:[%s1 + $0x3] sm:$0x1]
      %1154 = vset.pattern.permute.xlu0 0
      %1155 = vperm.xlu0 %1154, %v1120
      %v1156 = vpop.permute.xlu0 %1155
      %1159 = vset.pattern.permute.xlu0 0
      %1160 = vperm.xlu0 %1159, %v1121
      %v1161 = vpop.permute.xlu0 %1160
      %1164 = vset.pattern.permute.xlu0 0
      %1165 = vperm.xlu0 %1164, %v1122
      %v1166 = vpop.permute.xlu0 %1165
      %1169 = vset.pattern.permute.xlu0 0
      %1170 = vperm.xlu0 %1169, %v1123
      %v1171 = vpop.permute.xlu0 %1170
      %1174 = vset.pattern.permute.xlu0 0
      %1175 = vperm.xlu0 %1174, %v1124
      %v1176 = vpop.permute.xlu0 %1175
      %1179 = vset.pattern.permute.xlu0 0
      %1180 = vperm.xlu0 %1179, %v1125
      %v1181 = vpop.permute.xlu0 %1180
      %1184 = vset.pattern.permute.xlu0 0
      %1185 = vperm.xlu0 %1184, %v1126
      %v1186 = vpop.permute.xlu0 %1185
      %1189 = vset.pattern.permute.xlu0 0
      %1190 = vperm.xlu0 %1189, %v1127
      %v1191 = vpop.permute.xlu0 %1190
      %1194 = vset.pattern.permute.xlu0 0
      %1195 = vperm.xlu0 %1194, %v1128
      %v1196 = vpop.permute.xlu0 %1195
      %1199 = vset.pattern.permute.xlu0 0
      %1200 = vperm.xlu0 %1199, %v1129
      %v1201 = vpop.permute.xlu0 %1200
      %1204 = vset.pattern.permute.xlu0 0
      %1205 = vperm.xlu0 %1204, %v1130
      %v1206 = vpop.permute.xlu0 %1205
      %1209 = vset.pattern.permute.xlu0 0
      %1210 = vperm.xlu0 %1209, %v1131
      %v1211 = vpop.permute.xlu0 %1210
      %1214 = vset.pattern.permute.xlu0 0
      %1215 = vperm.xlu0 %1214, %v1132
      %v1216 = vpop.permute.xlu0 %1215
      %1219 = vset.pattern.permute.xlu0 0
      %1220 = vperm.xlu0 %1219, %v1133
      %v1221 = vpop.permute.xlu0 %1220
      %1224 = vset.pattern.permute.xlu0 0
      %1225 = vperm.xlu0 %1224, %v1134
      %v1226 = vpop.permute.xlu0 %1225
      %1229 = vset.pattern.permute.xlu0 0
      %1230 = vperm.xlu0 %1229, %v1135
      %v1231 = vpop.permute.xlu0 %1230
      %1234 = vset.pattern.permute.xlu0 0
      %1235 = vperm.xlu0 %1234, %v1136
      %v1236 = vpop.permute.xlu0 %1235
      %1239 = vset.pattern.permute.xlu0 0
      %1240 = vperm.xlu0 %1239, %v1137
      %v1241 = vpop.permute.xlu0 %1240
      %1244 = vset.pattern.permute.xlu0 0
      %1245 = vperm.xlu0 %1244, %v1138
      %v1246 = vpop.permute.xlu0 %1245
      %1249 = vset.pattern.permute.xlu0 0
      %1250 = vperm.xlu0 %1249, %v1139
      %v1251 = vpop.permute.xlu0 %1250
      %1254 = vset.pattern.permute.xlu0 0
      %1255 = vperm.xlu0 %1254, %v1140
      %v1256 = vpop.permute.xlu0 %1255
      %1259 = vset.pattern.permute.xlu0 0
      %1260 = vperm.xlu0 %1259, %v1141
      %v1261 = vpop.permute.xlu0 %1260
      %1264 = vset.pattern.permute.xlu0 0
      %1265 = vperm.xlu0 %1264, %v1142
      %v1266 = vpop.permute.xlu0 %1265
      %1269 = vset.pattern.permute.xlu0 0
      %1270 = vperm.xlu0 %1269, %v1143
      %v1271 = vpop.permute.xlu0 %1270
      %1274 = vset.pattern.permute.xlu0 0
      %1275 = vperm.xlu0 %1274, %v1144
      %v1276 = vpop.permute.xlu0 %1275
      %1279 = vset.pattern.permute.xlu0 0
      %1280 = vperm.xlu0 %1279, %v1145
      %v1281 = vpop.permute.xlu0 %1280
      %1284 = vset.pattern.permute.xlu0 0
      %1285 = vperm.xlu0 %1284, %v1146
      %v1286 = vpop.permute.xlu0 %1285
      %1289 = vset.pattern.permute.xlu0 0
      %1290 = vperm.xlu0 %1289, %v1147
      %v1291 = vpop.permute.xlu0 %1290
      %1294 = vset.pattern.permute.xlu0 0
      %1295 = vperm.xlu0 %1294, %v1148
      %v1296 = vpop.permute.xlu0 %1295
      %1299 = vset.pattern.permute.xlu0 0
      %1300 = vperm.xlu0 %1299, %v1149
      %v1301 = vpop.permute.xlu0 %1300
      %1304 = vset.pattern.permute.xlu0 0
      %1305 = vperm.xlu0 %1304, %v1150
      %v1306 = vpop.permute.xlu0 %1305
      %1309 = vset.pattern.permute.xlu0 0
      %1310 = vperm.xlu0 %1309, %v1151
      %v1311 = vpop.permute.xlu0 %1310
      %v1313 = vlaneseq
      %v1314 = vshrl.u32 %v1313, 7
      %v1315 = vsub.s32 0, %v1314
      %v1316 = vrot.slane %v1152, %v1315
      %v1317 = vmul.f32 %v1156, %v1316
      %v1318 = vmul.f32 %v1161, %v1316
      %v1319 = vmul.f32 %v1166, %v1316
      %v1320 = vmul.f32 %v1171, %v1316
      %v1321 = vmul.f32 %v1176, %v1316
      %v1322 = vmul.f32 %v1181, %v1316
      %v1323 = vmul.f32 %v1186, %v1316
      %v1324 = vmul.f32 %v1191, %v1316
      %v1325 = vmul.f32 %v1196, %v1316
      %v1326 = vmul.f32 %v1201, %v1316
      %v1327 = vmul.f32 %v1206, %v1316
      %v1328 = vmul.f32 %v1211, %v1316
      %v1329 = vmul.f32 %v1216, %v1316
      %v1330 = vmul.f32 %v1221, %v1316
      %v1331 = vmul.f32 %v1226, %v1316
      %v1332 = vmul.f32 %v1231, %v1316
      %v1333 = vmul.f32 %v1236, %v1316
      %v1334 = vmul.f32 %v1241, %v1316
      %v1335 = vmul.f32 %v1246, %v1316
      %v1336 = vmul.f32 %v1251, %v1316
      %v1337 = vmul.f32 %v1256, %v1316
      %v1338 = vmul.f32 %v1261, %v1316
      %v1339 = vmul.f32 %v1266, %v1316
      %v1340 = vmul.f32 %v1271, %v1316
      %v1341 = vmul.f32 %v1276, %v1316
      %v1342 = vmul.f32 %v1281, %v1316
      %v1343 = vmul.f32 %v1286, %v1316
      %v1344 = vmul.f32 %v1291, %v1316
      %v1345 = vmul.f32 %v1296, %v1316
      %v1346 = vmul.f32 %v1301, %v1316
      %v1347 = vmul.f32 %v1306, %v1316
      %v1348 = vmul.f32 %v1311, %v1316
      %v1349 = vadd.f32 %v1087, %v1317
      %v1350 = vadd.f32 %v1088, %v1318
      %v1351 = vadd.f32 %v1089, %v1319
      %v1352 = vadd.f32 %v1090, %v1320
      %v1353 = vadd.f32 %v1091, %v1321
      %v1354 = vadd.f32 %v1092, %v1322
      %v1355 = vadd.f32 %v1093, %v1323
      %v1356 = vadd.f32 %v1094, %v1324
      %v1357 = vadd.f32 %v1095, %v1325
      %v1358 = vadd.f32 %v1096, %v1326
      %v1359 = vadd.f32 %v1097, %v1327
      %v1360 = vadd.f32 %v1098, %v1328
      %v1361 = vadd.f32 %v1099, %v1329
      %v1362 = vadd.f32 %v1100, %v1330
      %v1363 = vadd.f32 %v1101, %v1331
      %v1364 = vadd.f32 %v1102, %v1332
      %v1365 = vadd.f32 %v1103, %v1333
      %v1366 = vadd.f32 %v1104, %v1334
      %v1367 = vadd.f32 %v1105, %v1335
      %v1368 = vadd.f32 %v1106, %v1336
      %v1369 = vadd.f32 %v1107, %v1337
      %v1370 = vadd.f32 %v1108, %v1338
      %v1371 = vadd.f32 %v1109, %v1339
      %v1372 = vadd.f32 %v1110, %v1340
      %v1373 = vadd.f32 %v1111, %v1341
      %v1374 = vadd.f32 %v1112, %v1342
      %v1375 = vadd.f32 %v1113, %v1343
      %v1376 = vadd.f32 %v1114, %v1344
      %v1377 = vadd.f32 %v1115, %v1345
      %v1378 = vadd.f32 %v1116, %v1346
      %v1379 = vadd.f32 %v1117, %v1347
      %v1380 = vadd.f32 %v1118, %v1348
      %v1381 = vld [vmem:[%s1119 + $0x1] sm:$0xff]
      %v1382 = vld [vmem:[%s1119 + $0x9] sm:$0xff]
      %v1383 = vld [vmem:[%s1119 + $0x19] sm:$0xff]
      %v1384 = vld [vmem:[%s1119 + $0x21] sm:$0xff]
      %v1385 = vld [vmem:[%s1119 + $0x31] sm:$0xff]
      %v1386 = vld [vmem:[%s1119 + $0x39] sm:$0xff]
      %v1387 = vld [vmem:[%s1119 + $0x49] sm:$0xff]
      %v1388 = vld [vmem:[%s1119 + $0x51] sm:$0xff]
      %v1389 = vld [vmem:[%s1119 + $0x61] sm:$0xff]
      %v1390 = vld [vmem:[%s1119 + $0x69] sm:$0xff]
      %v1391 = vld [vmem:[%s1119 + $0x79] sm:$0xff]
      %v1392 = vld [vmem:[%s1119 + $0x81] sm:$0xff]
      %v1393 = vld [vmem:[%s1119 + $0x91] sm:$0xff]
      %v1394 = vld [vmem:[%s1119 + $0x99] sm:$0xff]
      %v1395 = vld [vmem:[%s1119 + $0xa9] sm:$0xff]
      %v1396 = vld [vmem:[%s1119 + $0xb1] sm:$0xff]
      %v1397 = vld [vmem:[%s1119 + $0xc1] sm:$0xff]
      %v1398 = vld [vmem:[%s1119 + $0xc9] sm:$0xff]
      %v1399 = vld [vmem:[%s1119 + $0xd9] sm:$0xff]
      %v1400 = vld [vmem:[%s1119 + $0xe1] sm:$0xff]
      %v1401 = vld [vmem:[%s1119 + $0xf1] sm:$0xff]
      %v1402 = vld [vmem:[%s1119 + $0xf9] sm:$0xff]
      %v1403 = vld [vmem:[%s1119 + $0x109] sm:$0xff]
      %v1404 = vld [vmem:[%s1119 + $0x111] sm:$0xff]
      %v1405 = vld [vmem:[%s1119 + $0x121] sm:$0xff]
      %v1406 = vld [vmem:[%s1119 + $0x129] sm:$0xff]
      %v1407 = vld [vmem:[%s1119 + $0x139] sm:$0xff]
      %v1408 = vld [vmem:[%s1119 + $0x141] sm:$0xff]
      %v1409 = vld [vmem:[%s1119 + $0x151] sm:$0xff]
      %v1410 = vld [vmem:[%s1119 + $0x159] sm:$0xff]
      %v1411 = vld [vmem:[%s1119 + $0x169] sm:$0xff]
      %v1412 = vld [vmem:[%s1119 + $0x171] sm:$0xff]
      %v1413 = vld [vmem:[%s1 + $0x4] sm:$0x1]
      %1415 = vset.pattern.permute.xlu0 0
      %1416 = vperm.xlu0 %1415, %v1381
      %v1417 = vpop.permute.xlu0 %1416
      %1420 = vset.pattern.permute.xlu0 0
      %1421 = vperm.xlu0 %1420, %v1382
      %v1422 = vpop.permute.xlu0 %1421
      %1425 = vset.pattern.permute.xlu0 0
      %1426 = vperm.xlu0 %1425, %v1383
      %v1427 = vpop.permute.xlu0 %1426
      %1430 = vset.pattern.permute.xlu0 0
      %1431 = vperm.xlu0 %1430, %v1384
      %v1432 = vpop.permute.xlu0 %1431
      %1435 = vset.pattern.permute.xlu0 0
      %1436 = vperm.xlu0 %1435, %v1385
      %v1437 = vpop.permute.xlu0 %1436
      %1440 = vset.pattern.permute.xlu0 0
      %1441 = vperm.xlu0 %1440, %v1386
      %v1442 = vpop.permute.xlu0 %1441
      %1445 = vset.pattern.permute.xlu0 0
      %1446 = vperm.xlu0 %1445, %v1387
      %v1447 = vpop.permute.xlu0 %1446
      %1450 = vset.pattern.permute.xlu0 0
      %1451 = vperm.xlu0 %1450, %v1388
      %v1452 = vpop.permute.xlu0 %1451
      %1455 = vset.pattern.permute.xlu0 0
      %1456 = vperm.xlu0 %1455, %v1389
      %v1457 = vpop.permute.xlu0 %1456
      %1460 = vset.pattern.permute.xlu0 0
      %1461 = vperm.xlu0 %1460, %v1390
      %v1462 = vpop.permute.xlu0 %1461
      %1465 = vset.pattern.permute.xlu0 0
      %1466 = vperm.xlu0 %1465, %v1391
      %v1467 = vpop.permute.xlu0 %1466
      %1470 = vset.pattern.permute.xlu0 0
      %1471 = vperm.xlu0 %1470, %v1392
      %v1472 = vpop.permute.xlu0 %1471
      %1475 = vset.pattern.permute.xlu0 0
      %1476 = vperm.xlu0 %1475, %v1393
      %v1477 = vpop.permute.xlu0 %1476
      %1480 = vset.pattern.permute.xlu0 0
      %1481 = vperm.xlu0 %1480, %v1394
      %v1482 = vpop.permute.xlu0 %1481
      %1485 = vset.pattern.permute.xlu0 0
      %1486 = vperm.xlu0 %1485, %v1395
      %v1487 = vpop.permute.xlu0 %1486
      %1490 = vset.pattern.permute.xlu0 0
      %1491 = vperm.xlu0 %1490, %v1396
      %v1492 = vpop.permute.xlu0 %1491
      %1495 = vset.pattern.permute.xlu0 0
      %1496 = vperm.xlu0 %1495, %v1397
      %v1497 = vpop.permute.xlu0 %1496
      %1500 = vset.pattern.permute.xlu0 0
      %1501 = vperm.xlu0 %1500, %v1398
      %v1502 = vpop.permute.xlu0 %1501
      %1505 = vset.pattern.permute.xlu0 0
      %1506 = vperm.xlu0 %1505, %v1399
      %v1507 = vpop.permute.xlu0 %1506
      %1510 = vset.pattern.permute.xlu0 0
      %1511 = vperm.xlu0 %1510, %v1400
      %v1512 = vpop.permute.xlu0 %1511
      %1515 = vset.pattern.permute.xlu0 0
      %1516 = vperm.xlu0 %1515, %v1401
      %v1517 = vpop.permute.xlu0 %1516
      %1520 = vset.pattern.permute.xlu0 0
      %1521 = vperm.xlu0 %1520, %v1402
      %v1522 = vpop.permute.xlu0 %1521
      %1525 = vset.pattern.permute.xlu0 0
      %1526 = vperm.xlu0 %1525, %v1403
      %v1527 = vpop.permute.xlu0 %1526
      %1530 = vset.pattern.permute.xlu0 0
      %1531 = vperm.xlu0 %1530, %v1404
      %v1532 = vpop.permute.xlu0 %1531
      %1535 = vset.pattern.permute.xlu0 0
      %1536 = vperm.xlu0 %1535, %v1405
      %v1537 = vpop.permute.xlu0 %1536
      %1540 = vset.pattern.permute.xlu0 0
      %1541 = vperm.xlu0 %1540, %v1406
      %v1542 = vpop.permute.xlu0 %1541
      %1545 = vset.pattern.permute.xlu0 0
      %1546 = vperm.xlu0 %1545, %v1407
      %v1547 = vpop.permute.xlu0 %1546
      %1550 = vset.pattern.permute.xlu0 0
      %1551 = vperm.xlu0 %1550, %v1408
      %v1552 = vpop.permute.xlu0 %1551
      %1555 = vset.pattern.permute.xlu0 0
      %1556 = vperm.xlu0 %1555, %v1409
      %v1557 = vpop.permute.xlu0 %1556
      %1560 = vset.pattern.permute.xlu0 0
      %1561 = vperm.xlu0 %1560, %v1410
      %v1562 = vpop.permute.xlu0 %1561
      %1565 = vset.pattern.permute.xlu0 0
      %1566 = vperm.xlu0 %1565, %v1411
      %v1567 = vpop.permute.xlu0 %1566
      %1570 = vset.pattern.permute.xlu0 0
      %1571 = vperm.xlu0 %1570, %v1412
      %v1572 = vpop.permute.xlu0 %1571
      %v1574 = vlaneseq
      %v1575 = vshrl.u32 %v1574, 7
      %v1576 = vsub.s32 0, %v1575
      %v1577 = vrot.slane %v1413, %v1576
      %v1578 = vmul.f32 %v1417, %v1577
      %v1579 = vmul.f32 %v1422, %v1577
      %v1580 = vmul.f32 %v1427, %v1577
      %v1581 = vmul.f32 %v1432, %v1577
      %v1582 = vmul.f32 %v1437, %v1577
      %v1583 = vmul.f32 %v1442, %v1577
      %v1584 = vmul.f32 %v1447, %v1577
      %v1585 = vmul.f32 %v1452, %v1577
      %v1586 = vmul.f32 %v1457, %v1577
      %v1587 = vmul.f32 %v1462, %v1577
      %v1588 = vmul.f32 %v1467, %v1577
      %v1589 = vmul.f32 %v1472, %v1577
      %v1590 = vmul.f32 %v1477, %v1577
      %v1591 = vmul.f32 %v1482, %v1577
      %v1592 = vmul.f32 %v1487, %v1577
      %v1593 = vmul.f32 %v1492, %v1577
      %v1594 = vmul.f32 %v1497, %v1577
      %v1595 = vmul.f32 %v1502, %v1577
      %v1596 = vmul.f32 %v1507, %v1577
      %v1597 = vmul.f32 %v1512, %v1577
      %v1598 = vmul.f32 %v1517, %v1577
      %v1599 = vmul.f32 %v1522, %v1577
      %v1600 = vmul.f32 %v1527, %v1577
      %v1601 = vmul.f32 %v1532, %v1577
      %v1602 = vmul.f32 %v1537, %v1577
      %v1603 = vmul.f32 %v1542, %v1577
      %v1604 = vmul.f32 %v1547, %v1577
      %v1605 = vmul.f32 %v1552, %v1577
      %v1606 = vmul.f32 %v1557, %v1577
      %v1607 = vmul.f32 %v1562, %v1577
      %v1608 = vmul.f32 %v1567, %v1577
      %v1609 = vmul.f32 %v1572, %v1577
      %v1610 = vadd.f32 %v1349, %v1578
      %v1611 = vadd.f32 %v1350, %v1579
      %v1612 = vadd.f32 %v1351, %v1580
      %v1613 = vadd.f32 %v1352, %v1581
      %v1614 = vadd.f32 %v1353, %v1582
      %v1615 = vadd.f32 %v1354, %v1583
      %v1616 = vadd.f32 %v1355, %v1584
      %v1617 = vadd.f32 %v1356, %v1585
      %v1618 = vadd.f32 %v1357, %v1586
      %v1619 = vadd.f32 %v1358, %v1587
      %v1620 = vadd.f32 %v1359, %v1588
      %v1621 = vadd.f32 %v1360, %v1589
      %v1622 = vadd.f32 %v1361, %v1590
      %v1623 = vadd.f32 %v1362, %v1591
      %v1624 = vadd.f32 %v1363, %v1592
      %v1625 = vadd.f32 %v1364, %v1593
      %v1626 = vadd.f32 %v1365, %v1594
      %v1627 = vadd.f32 %v1366, %v1595
      %v1628 = vadd.f32 %v1367, %v1596
      %v1629 = vadd.f32 %v1368, %v1597
      %v1630 = vadd.f32 %v1369, %v1598
      %v1631 = vadd.f32 %v1370, %v1599
      %v1632 = vadd.f32 %v1371, %v1600
      %v1633 = vadd.f32 %v1372, %v1601
      %v1634 = vadd.f32 %v1373, %v1602
      %v1635 = vadd.f32 %v1374, %v1603
      %v1636 = vadd.f32 %v1375, %v1604
      %v1637 = vadd.f32 %v1376, %v1605
      %v1638 = vadd.f32 %v1377, %v1606
      %v1639 = vadd.f32 %v1378, %v1607
      %v1640 = vadd.f32 %v1379, %v1608
      %v1641 = vadd.f32 %v1380, %v1609
      %v1642 = vld [vmem:[%s1119 + $0x2] sm:$0xff]
      %v1643 = vld [vmem:[%s1119 + $0xa] sm:$0xff]
      %v1644 = vld [vmem:[%s1119 + $0x1a] sm:$0xff]
      %v1645 = vld [vmem:[%s1119 + $0x22] sm:$0xff]
      %v1646 = vld [vmem:[%s1119 + $0x32] sm:$0xff]
      %v1647 = vld [vmem:[%s1119 + $0x3a] sm:$0xff]
      %v1648 = vld [vmem:[%s1119 + $0x4a] sm:$0xff]
      %v1649 = vld [vmem:[%s1119 + $0x52] sm:$0xff]
      %v1650 = vld [vmem:[%s1119 + $0x62] sm:$0xff]
      %v1651 = vld [vmem:[%s1119 + $0x6a] sm:$0xff]
      %v1652 = vld [vmem:[%s1119 + $0x7a] sm:$0xff]
      %v1653 = vld [vmem:[%s1119 + $0x82] sm:$0xff]
      %v1654 = vld [vmem:[%s1119 + $0x92] sm:$0xff]
      %v1655 = vld [vmem:[%s1119 + $0x9a] sm:$0xff]
      %v1656 = vld [vmem:[%s1119 + $0xaa] sm:$0xff]
      %v1657 = vld [vmem:[%s1119 + $0xb2] sm:$0xff]
      %v1658 = vld [vmem:[%s1119 + $0xc2] sm:$0xff]
      %v1659 = vld [vmem:[%s1119 + $0xca] sm:$0xff]
      %v1660 = vld [vmem:[%s1119 + $0xda] sm:$0xff]
      %v1661 = vld [vmem:[%s1119 + $0xe2] sm:$0xff]
      %v1662 = vld [vmem:[%s1119 + $0xf2] sm:$0xff]
      %v1663 = vld [vmem:[%s1119 + $0xfa] sm:$0xff]
      %v1664 = vld [vmem:[%s1119 + $0x10a] sm:$0xff]
      %v1665 = vld [vmem:[%s1119 + $0x112] sm:$0xff]
      %v1666 = vld [vmem:[%s1119 + $0x122] sm:$0xff]
      %v1667 = vld [vmem:[%s1119 + $0x12a] sm:$0xff]
      %v1668 = vld [vmem:[%s1119 + $0x13a] sm:$0xff]
      %v1669 = vld [vmem:[%s1119 + $0x142] sm:$0xff]
      %v1670 = vld [vmem:[%s1119 + $0x152] sm:$0xff]
      %v1671 = vld [vmem:[%s1119 + $0x15a] sm:$0xff]
      %v1672 = vld [vmem:[%s1119 + $0x16a] sm:$0xff]
      %v1673 = vld [vmem:[%s1119 + $0x172] sm:$0xff]
      %v1674 = vld [vmem:[%s1 + $0x5] sm:$0x1]
      %1676 = vset.pattern.permute.xlu0 0
      %1677 = vperm.xlu0 %1676, %v1642
      %v1678 = vpop.permute.xlu0 %1677
      %1681 = vset.pattern.permute.xlu0 0
      %1682 = vperm.xlu0 %1681, %v1643
      %v1683 = vpop.permute.xlu0 %1682
      %1686 = vset.pattern.permute.xlu0 0
      %1687 = vperm.xlu0 %1686, %v1644
      %v1688 = vpop.permute.xlu0 %1687
      %1691 = vset.pattern.permute.xlu0 0
      %1692 = vperm.xlu0 %1691, %v1645
      %v1693 = vpop.permute.xlu0 %1692
      %1696 = vset.pattern.permute.xlu0 0
      %1697 = vperm.xlu0 %1696, %v1646
      %v1698 = vpop.permute.xlu0 %1697
      %1701 = vset.pattern.permute.xlu0 0
      %1702 = vperm.xlu0 %1701, %v1647
      %v1703 = vpop.permute.xlu0 %1702
      %1706 = vset.pattern.permute.xlu0 0
      %1707 = vperm.xlu0 %1706, %v1648
      %v1708 = vpop.permute.xlu0 %1707
      %1711 = vset.pattern.permute.xlu0 0
      %1712 = vperm.xlu0 %1711, %v1649
      %v1713 = vpop.permute.xlu0 %1712
      %1716 = vset.pattern.permute.xlu0 0
      %1717 = vperm.xlu0 %1716, %v1650
      %v1718 = vpop.permute.xlu0 %1717
      %1721 = vset.pattern.permute.xlu0 0
      %1722 = vperm.xlu0 %1721, %v1651
      %v1723 = vpop.permute.xlu0 %1722
      %1726 = vset.pattern.permute.xlu0 0
      %1727 = vperm.xlu0 %1726, %v1652
      %v1728 = vpop.permute.xlu0 %1727
      %1731 = vset.pattern.permute.xlu0 0
      %1732 = vperm.xlu0 %1731, %v1653
      %v1733 = vpop.permute.xlu0 %1732
      %1736 = vset.pattern.permute.xlu0 0
      %1737 = vperm.xlu0 %1736, %v1654
      %v1738 = vpop.permute.xlu0 %1737
      %1741 = vset.pattern.permute.xlu0 0
      %1742 = vperm.xlu0 %1741, %v1655
      %v1743 = vpop.permute.xlu0 %1742
      %1746 = vset.pattern.permute.xlu0 0
      %1747 = vperm.xlu0 %1746, %v1656
      %v1748 = vpop.permute.xlu0 %1747
      %1751 = vset.pattern.permute.xlu0 0
      %1752 = vperm.xlu0 %1751, %v1657
      %v1753 = vpop.permute.xlu0 %1752
      %1756 = vset.pattern.permute.xlu0 0
      %1757 = vperm.xlu0 %1756, %v1658
      %v1758 = vpop.permute.xlu0 %1757
      %1761 = vset.pattern.permute.xlu0 0
      %1762 = vperm.xlu0 %1761, %v1659
      %v1763 = vpop.permute.xlu0 %1762
      %1766 = vset.pattern.permute.xlu0 0
      %1767 = vperm.xlu0 %1766, %v1660
      %v1768 = vpop.permute.xlu0 %1767
      %1771 = vset.pattern.permute.xlu0 0
      %1772 = vperm.xlu0 %1771, %v1661
      %v1773 = vpop.permute.xlu0 %1772
      %1776 = vset.pattern.permute.xlu0 0
      %1777 = vperm.xlu0 %1776, %v1662
      %v1778 = vpop.permute.xlu0 %1777
      %1781 = vset.pattern.permute.xlu0 0
      %1782 = vperm.xlu0 %1781, %v1663
      %v1783 = vpop.permute.xlu0 %1782
      %1786 = vset.pattern.permute.xlu0 0
      %1787 = vperm.xlu0 %1786, %v1664
      %v1788 = vpop.permute.xlu0 %1787
      %1791 = vset.pattern.permute.xlu0 0
      %1792 = vperm.xlu0 %1791, %v1665
      %v1793 = vpop.permute.xlu0 %1792
      %1796 = vset.pattern.permute.xlu0 0
      %1797 = vperm.xlu0 %1796, %v1666
      %v1798 = vpop.permute.xlu0 %1797
      %1801 = vset.pattern.permute.xlu0 0
      %1802 = vperm.xlu0 %1801, %v1667
      %v1803 = vpop.permute.xlu0 %1802
      %1806 = vset.pattern.permute.xlu0 0
      %1807 = vperm.xlu0 %1806, %v1668
      %v1808 = vpop.permute.xlu0 %1807
      %1811 = vset.pattern.permute.xlu0 0
      %1812 = vperm.xlu0 %1811, %v1669
      %v1813 = vpop.permute.xlu0 %1812
      %1816 = vset.pattern.permute.xlu0 0
      %1817 = vperm.xlu0 %1816, %v1670
      %v1818 = vpop.permute.xlu0 %1817
      %1821 = vset.pattern.permute.xlu0 0
      %1822 = vperm.xlu0 %1821, %v1671
      %v1823 = vpop.permute.xlu0 %1822
      %1826 = vset.pattern.permute.xlu0 0
      %1827 = vperm.xlu0 %1826, %v1672
      %v1828 = vpop.permute.xlu0 %1827
      %1831 = vset.pattern.permute.xlu0 0
      %1832 = vperm.xlu0 %1831, %v1673
      %v1833 = vpop.permute.xlu0 %1832
      %v1835 = vlaneseq
      %v1836 = vshrl.u32 %v1835, 7
      %v1837 = vsub.s32 0, %v1836
      %v1838 = vrot.slane %v1674, %v1837
      %v1839 = vmul.f32 %v1678, %v1838
      %v1840 = vmul.f32 %v1683, %v1838
      %v1841 = vmul.f32 %v1688, %v1838
      %v1842 = vmul.f32 %v1693, %v1838
      %v1843 = vmul.f32 %v1698, %v1838
      %v1844 = vmul.f32 %v1703, %v1838
      %v1845 = vmul.f32 %v1708, %v1838
      %v1846 = vmul.f32 %v1713, %v1838
      %v1847 = vmul.f32 %v1718, %v1838
      %v1848 = vmul.f32 %v1723, %v1838
      %v1849 = vmul.f32 %v1728, %v1838
      %v1850 = vmul.f32 %v1733, %v1838
      %v1851 = vmul.f32 %v1738, %v1838
      %v1852 = vmul.f32 %v1743, %v1838
      %v1853 = vmul.f32 %v1748, %v1838
      %v1854 = vmul.f32 %v1753, %v1838
      %v1855 = vmul.f32 %v1758, %v1838
      %v1856 = vmul.f32 %v1763, %v1838
      %v1857 = vmul.f32 %v1768, %v1838
      %v1858 = vmul.f32 %v1773, %v1838
      %v1859 = vmul.f32 %v1778, %v1838
      %v1860 = vmul.f32 %v1783, %v1838
      %v1861 = vmul.f32 %v1788, %v1838
      %v1862 = vmul.f32 %v1793, %v1838
      %v1863 = vmul.f32 %v1798, %v1838
      %v1864 = vmul.f32 %v1803, %v1838
      %v1865 = vmul.f32 %v1808, %v1838
      %v1866 = vmul.f32 %v1813, %v1838
      %v1867 = vmul.f32 %v1818, %v1838
      %v1868 = vmul.f32 %v1823, %v1838
      %v1869 = vmul.f32 %v1828, %v1838
      %v1870 = vmul.f32 %v1833, %v1838
      %v1871 = vadd.f32 %v1610, %v1839
      %v1872 = vadd.f32 %v1611, %v1840
      %v1873 = vadd.f32 %v1612, %v1841
      %v1874 = vadd.f32 %v1613, %v1842
      %v1875 = vadd.f32 %v1614, %v1843
      %v1876 = vadd.f32 %v1615, %v1844
      %v1877 = vadd.f32 %v1616, %v1845
      %v1878 = vadd.f32 %v1617, %v1846
      %v1879 = vadd.f32 %v1618, %v1847
      %v1880 = vadd.f32 %v1619, %v1848
      %v1881 = vadd.f32 %v1620, %v1849
      %v1882 = vadd.f32 %v1621, %v1850
      %v1883 = vadd.f32 %v1622, %v1851
      %v1884 = vadd.f32 %v1623, %v1852
      %v1885 = vadd.f32 %v1624, %v1853
      %v1886 = vadd.f32 %v1625, %v1854
      %v1887 = vadd.f32 %v1626, %v1855
      %v1888 = vadd.f32 %v1627, %v1856
      %v1889 = vadd.f32 %v1628, %v1857
      %v1890 = vadd.f32 %v1629, %v1858
      %v1891 = vadd.f32 %v1630, %v1859
      %v1892 = vadd.f32 %v1631, %v1860
      %v1893 = vadd.f32 %v1632, %v1861
      %v1894 = vadd.f32 %v1633, %v1862
      %v1895 = vadd.f32 %v1634, %v1863
      %v1896 = vadd.f32 %v1635, %v1864
      %v1897 = vadd.f32 %v1636, %v1865
      %v1898 = vadd.f32 %v1637, %v1866
      %v1899 = vadd.f32 %v1638, %v1867
      %v1900 = vadd.f32 %v1639, %v1868
      %v1901 = vadd.f32 %v1640, %v1869
      %v1902 = vadd.f32 %v1641, %v1870
      %s1903 = scalar_lea.vmem %s329, 48
      %v1904 = vld [vmem:[%s1903] sm:$0xff]
      %v1905 = vld [vmem:[%s1903 + $0x8] sm:$0xff]
      %v1906 = vld [vmem:[%s1903 + $0x18] sm:$0xff]
      %v1907 = vld [vmem:[%s1903 + $0x20] sm:$0xff]
      %v1908 = vld [vmem:[%s1903 + $0x30] sm:$0xff]
      %v1909 = vld [vmem:[%s1903 + $0x38] sm:$0xff]
      %v1910 = vld [vmem:[%s1903 + $0x48] sm:$0xff]
      %v1911 = vld [vmem:[%s1903 + $0x50] sm:$0xff]
      %v1912 = vld [vmem:[%s1903 + $0x60] sm:$0xff]
      %v1913 = vld [vmem:[%s1903 + $0x68] sm:$0xff]
      %v1914 = vld [vmem:[%s1903 + $0x78] sm:$0xff]
      %v1915 = vld [vmem:[%s1903 + $0x80] sm:$0xff]
      %v1916 = vld [vmem:[%s1903 + $0x90] sm:$0xff]
      %v1917 = vld [vmem:[%s1903 + $0x98] sm:$0xff]
      %v1918 = vld [vmem:[%s1903 + $0xa8] sm:$0xff]
      %v1919 = vld [vmem:[%s1903 + $0xb0] sm:$0xff]
      %v1920 = vld [vmem:[%s1903 + $0xc0] sm:$0xff]
      %v1921 = vld [vmem:[%s1903 + $0xc8] sm:$0xff]
      %v1922 = vld [vmem:[%s1903 + $0xd8] sm:$0xff]
      %v1923 = vld [vmem:[%s1903 + $0xe0] sm:$0xff]
      %v1924 = vld [vmem:[%s1903 + $0xf0] sm:$0xff]
      %v1925 = vld [vmem:[%s1903 + $0xf8] sm:$0xff]
      %v1926 = vld [vmem:[%s1903 + $0x108] sm:$0xff]
      %v1927 = vld [vmem:[%s1903 + $0x110] sm:$0xff]
      %v1928 = vld [vmem:[%s1903 + $0x120] sm:$0xff]
      %v1929 = vld [vmem:[%s1903 + $0x128] sm:$0xff]
      %v1930 = vld [vmem:[%s1903 + $0x138] sm:$0xff]
      %v1931 = vld [vmem:[%s1903 + $0x140] sm:$0xff]
      %v1932 = vld [vmem:[%s1903 + $0x150] sm:$0xff]
      %v1933 = vld [vmem:[%s1903 + $0x158] sm:$0xff]
      %v1934 = vld [vmem:[%s1903 + $0x168] sm:$0xff]
      %v1935 = vld [vmem:[%s1903 + $0x170] sm:$0xff]
      %v1936 = vld [vmem:[%s1 + $0x6] sm:$0x1]
      %1938 = vset.pattern.permute.xlu0 0
      %1939 = vperm.xlu0 %1938, %v1904
      %v1940 = vpop.permute.xlu0 %1939
      %1943 = vset.pattern.permute.xlu0 0
      %1944 = vperm.xlu0 %1943, %v1905
      %v1945 = vpop.permute.xlu0 %1944
      %1948 = vset.pattern.permute.xlu0 0
      %1949 = vperm.xlu0 %1948, %v1906
      %v1950 = vpop.permute.xlu0 %1949
      %1953 = vset.pattern.permute.xlu0 0
      %1954 = vperm.xlu0 %1953, %v1907
      %v1955 = vpop.permute.xlu0 %1954
      %1958 = vset.pattern.permute.xlu0 0
      %1959 = vperm.xlu0 %1958, %v1908
      %v1960 = vpop.permute.xlu0 %1959
      %1963 = vset.pattern.permute.xlu0 0
      %1964 = vperm.xlu0 %1963, %v1909
      %v1965 = vpop.permute.xlu0 %1964
      %1968 = vset.pattern.permute.xlu0 0
      %1969 = vperm.xlu0 %1968, %v1910
      %v1970 = vpop.permute.xlu0 %1969
      %1973 = vset.pattern.permute.xlu0 0
      %1974 = vperm.xlu0 %1973, %v1911
      %v1975 = vpop.permute.xlu0 %1974
      %1978 = vset.pattern.permute.xlu0 0
      %1979 = vperm.xlu0 %1978, %v1912
      %v1980 = vpop.permute.xlu0 %1979
      %1983 = vset.pattern.permute.xlu0 0
      %1984 = vperm.xlu0 %1983, %v1913
      %v1985 = vpop.permute.xlu0 %1984
      %1988 = vset.pattern.permute.xlu0 0
      %1989 = vperm.xlu0 %1988, %v1914
      %v1990 = vpop.permute.xlu0 %1989
      %1993 = vset.pattern.permute.xlu0 0
      %1994 = vperm.xlu0 %1993, %v1915
      %v1995 = vpop.permute.xlu0 %1994
      %1998 = vset.pattern.permute.xlu0 0
      %1999 = vperm.xlu0 %1998, %v1916
      %v2000 = vpop.permute.xlu0 %1999
      %2003 = vset.pattern.permute.xlu0 0
      %2004 = vperm.xlu0 %2003, %v1917
      %v2005 = vpop.permute.xlu0 %2004
      %2008 = vset.pattern.permute.xlu0 0
      %2009 = vperm.xlu0 %2008, %v1918
      %v2010 = vpop.permute.xlu0 %2009
      %2013 = vset.pattern.permute.xlu0 0
      %2014 = vperm.xlu0 %2013, %v1919
      %v2015 = vpop.permute.xlu0 %2014
      %2018 = vset.pattern.permute.xlu0 0
      %2019 = vperm.xlu0 %2018, %v1920
      %v2020 = vpop.permute.xlu0 %2019
      %2023 = vset.pattern.permute.xlu0 0
      %2024 = vperm.xlu0 %2023, %v1921
      %v2025 = vpop.permute.xlu0 %2024
      %2028 = vset.pattern.permute.xlu0 0
      %2029 = vperm.xlu0 %2028, %v1922
      %v2030 = vpop.permute.xlu0 %2029
      %2033 = vset.pattern.permute.xlu0 0
      %2034 = vperm.xlu0 %2033, %v1923
      %v2035 = vpop.permute.xlu0 %2034
      %2038 = vset.pattern.permute.xlu0 0
      %2039 = vperm.xlu0 %2038, %v1924
      %v2040 = vpop.permute.xlu0 %2039
      %2043 = vset.pattern.permute.xlu0 0
      %2044 = vperm.xlu0 %2043, %v1925
      %v2045 = vpop.permute.xlu0 %2044
      %2048 = vset.pattern.permute.xlu0 0
      %2049 = vperm.xlu0 %2048, %v1926
      %v2050 = vpop.permute.xlu0 %2049
      %2053 = vset.pattern.permute.xlu0 0
      %2054 = vperm.xlu0 %2053, %v1927
      %v2055 = vpop.permute.xlu0 %2054
      %2058 = vset.pattern.permute.xlu0 0
      %2059 = vperm.xlu0 %2058, %v1928
      %v2060 = vpop.permute.xlu0 %2059
      %2063 = vset.pattern.permute.xlu0 0
      %2064 = vperm.xlu0 %2063, %v1929
      %v2065 = vpop.permute.xlu0 %2064
      %2068 = vset.pattern.permute.xlu0 0
      %2069 = vperm.xlu0 %2068, %v1930
      %v2070 = vpop.permute.xlu0 %2069
      %2073 = vset.pattern.permute.xlu0 0
      %2074 = vperm.xlu0 %2073, %v1931
      %v2075 = vpop.permute.xlu0 %2074
      %2078 = vset.pattern.permute.xlu0 0
      %2079 = vperm.xlu0 %2078, %v1932
      %v2080 = vpop.permute.xlu0 %2079
      %2083 = vset.pattern.permute.xlu0 0
      %2084 = vperm.xlu0 %2083, %v1933
      %v2085 = vpop.permute.xlu0 %2084
      %2088 = vset.pattern.permute.xlu0 0
      %2089 = vperm.xlu0 %2088, %v1934
      %v2090 = vpop.permute.xlu0 %2089
      %2093 = vset.pattern.permute.xlu0 0
      %2094 = vperm.xlu0 %2093, %v1935
      %v2095 = vpop.permute.xlu0 %2094
      %v2097 = vlaneseq
      %v2098 = vshrl.u32 %v2097, 7
      %v2099 = vsub.s32 0, %v2098
      %v2100 = vrot.slane %v1936, %v2099
      %v2101 = vmul.f32 %v1940, %v2100
      %v2102 = vmul.f32 %v1945, %v2100
      %v2103 = vmul.f32 %v1950, %v2100
      %v2104 = vmul.f32 %v1955, %v2100
      %v2105 = vmul.f32 %v1960, %v2100
      %v2106 = vmul.f32 %v1965, %v2100
      %v2107 = vmul.f32 %v1970, %v2100
      %v2108 = vmul.f32 %v1975, %v2100
      %v2109 = vmul.f32 %v1980, %v2100
      %v2110 = vmul.f32 %v1985, %v2100
      %v2111 = vmul.f32 %v1990, %v2100
      %v2112 = vmul.f32 %v1995, %v2100
      %v2113 = vmul.f32 %v2000, %v2100
      %v2114 = vmul.f32 %v2005, %v2100
      %v2115 = vmul.f32 %v2010, %v2100
      %v2116 = vmul.f32 %v2015, %v2100
      %v2117 = vmul.f32 %v2020, %v2100
      %v2118 = vmul.f32 %v2025, %v2100
      %v2119 = vmul.f32 %v2030, %v2100
      %v2120 = vmul.f32 %v2035, %v2100
      %v2121 = vmul.f32 %v2040, %v2100
      %v2122 = vmul.f32 %v2045, %v2100
      %v2123 = vmul.f32 %v2050, %v2100
      %v2124 = vmul.f32 %v2055, %v2100
      %v2125 = vmul.f32 %v2060, %v2100
      %v2126 = vmul.f32 %v2065, %v2100
      %v2127 = vmul.f32 %v2070, %v2100
      %v2128 = vmul.f32 %v2075, %v2100
      %v2129 = vmul.f32 %v2080, %v2100
      %v2130 = vmul.f32 %v2085, %v2100
      %v2131 = vmul.f32 %v2090, %v2100
      %v2132 = vmul.f32 %v2095, %v2100
      %v2133 = vadd.f32 %v1871, %v2101
      %v2134 = vadd.f32 %v1872, %v2102
      %v2135 = vadd.f32 %v1873, %v2103
      %v2136 = vadd.f32 %v1874, %v2104
      %v2137 = vadd.f32 %v1875, %v2105
      %v2138 = vadd.f32 %v1876, %v2106
      %v2139 = vadd.f32 %v1877, %v2107
      %v2140 = vadd.f32 %v1878, %v2108
      %v2141 = vadd.f32 %v1879, %v2109
      %v2142 = vadd.f32 %v1880, %v2110
      %v2143 = vadd.f32 %v1881, %v2111
      %v2144 = vadd.f32 %v1882, %v2112
      %v2145 = vadd.f32 %v1883, %v2113
      %v2146 = vadd.f32 %v1884, %v2114
      %v2147 = vadd.f32 %v1885, %v2115
      %v2148 = vadd.f32 %v1886, %v2116
      %v2149 = vadd.f32 %v1887, %v2117
      %v2150 = vadd.f32 %v1888, %v2118
      %v2151 = vadd.f32 %v1889, %v2119
      %v2152 = vadd.f32 %v1890, %v2120
      %v2153 = vadd.f32 %v1891, %v2121
      %v2154 = vadd.f32 %v1892, %v2122
      %v2155 = vadd.f32 %v1893, %v2123
      %v2156 = vadd.f32 %v1894, %v2124
      %v2157 = vadd.f32 %v1895, %v2125
      %v2158 = vadd.f32 %v1896, %v2126
      %v2159 = vadd.f32 %v1897, %v2127
      %v2160 = vadd.f32 %v1898, %v2128
      %v2161 = vadd.f32 %v1899, %v2129
      %v2162 = vadd.f32 %v1900, %v2130
      %v2163 = vadd.f32 %v1901, %v2131
      %v2164 = vadd.f32 %v1902, %v2132
      %v2165 = vld [vmem:[%s1903 + $0x1] sm:$0xff]
      %v2166 = vld [vmem:[%s1903 + $0x9] sm:$0xff]
      %v2167 = vld [vmem:[%s1903 + $0x19] sm:$0xff]
      %v2168 = vld [vmem:[%s1903 + $0x21] sm:$0xff]
      %v2169 = vld [vmem:[%s1903 + $0x31] sm:$0xff]
      %v2170 = vld [vmem:[%s1903 + $0x39] sm:$0xff]
      %v2171 = vld [vmem:[%s1903 + $0x49] sm:$0xff]
      %v2172 = vld [vmem:[%s1903 + $0x51] sm:$0xff]
      %v2173 = vld [vmem:[%s1903 + $0x61] sm:$0xff]
      %v2174 = vld [vmem:[%s1903 + $0x69] sm:$0xff]
      %v2175 = vld [vmem:[%s1903 + $0x79] sm:$0xff]
      %v2176 = vld [vmem:[%s1903 + $0x81] sm:$0xff]
      %v2177 = vld [vmem:[%s1903 + $0x91] sm:$0xff]
      %v2178 = vld [vmem:[%s1903 + $0x99] sm:$0xff]
      %v2179 = vld [vmem:[%s1903 + $0xa9] sm:$0xff]
      %v2180 = vld [vmem:[%s1903 + $0xb1] sm:$0xff]
      %v2181 = vld [vmem:[%s1903 + $0xc1] sm:$0xff]
      %v2182 = vld [vmem:[%s1903 + $0xc9] sm:$0xff]
      %v2183 = vld [vmem:[%s1903 + $0xd9] sm:$0xff]
      %v2184 = vld [vmem:[%s1903 + $0xe1] sm:$0xff]
      %v2185 = vld [vmem:[%s1903 + $0xf1] sm:$0xff]
      %v2186 = vld [vmem:[%s1903 + $0xf9] sm:$0xff]
      %v2187 = vld [vmem:[%s1903 + $0x109] sm:$0xff]
      %v2188 = vld [vmem:[%s1903 + $0x111] sm:$0xff]
      %v2189 = vld [vmem:[%s1903 + $0x121] sm:$0xff]
      %v2190 = vld [vmem:[%s1903 + $0x129] sm:$0xff]
      %v2191 = vld [vmem:[%s1903 + $0x139] sm:$0xff]
      %v2192 = vld [vmem:[%s1903 + $0x141] sm:$0xff]
      %v2193 = vld [vmem:[%s1903 + $0x151] sm:$0xff]
      %v2194 = vld [vmem:[%s1903 + $0x159] sm:$0xff]
      %v2195 = vld [vmem:[%s1903 + $0x169] sm:$0xff]
      %v2196 = vld [vmem:[%s1903 + $0x171] sm:$0xff]
      %v2197 = vld [vmem:[%s1 + $0x7] sm:$0x1]
      %2199 = vset.pattern.permute.xlu0 0
      %2200 = vperm.xlu0 %2199, %v2165
      %v2201 = vpop.permute.xlu0 %2200
      %2204 = vset.pattern.permute.xlu0 0
      %2205 = vperm.xlu0 %2204, %v2166
      %v2206 = vpop.permute.xlu0 %2205
      %2209 = vset.pattern.permute.xlu0 0
      %2210 = vperm.xlu0 %2209, %v2167
      %v2211 = vpop.permute.xlu0 %2210
      %2214 = vset.pattern.permute.xlu0 0
      %2215 = vperm.xlu0 %2214, %v2168
      %v2216 = vpop.permute.xlu0 %2215
      %2219 = vset.pattern.permute.xlu0 0
      %2220 = vperm.xlu0 %2219, %v2169
      %v2221 = vpop.permute.xlu0 %2220
      %2224 = vset.pattern.permute.xlu0 0
      %2225 = vperm.xlu0 %2224, %v2170
      %v2226 = vpop.permute.xlu0 %2225
      %2229 = vset.pattern.permute.xlu0 0
      %2230 = vperm.xlu0 %2229, %v2171
      %v2231 = vpop.permute.xlu0 %2230
      %2234 = vset.pattern.permute.xlu0 0
      %2235 = vperm.xlu0 %2234, %v2172
      %v2236 = vpop.permute.xlu0 %2235
      %2239 = vset.pattern.permute.xlu0 0
      %2240 = vperm.xlu0 %2239, %v2173
      %v2241 = vpop.permute.xlu0 %2240
      %2244 = vset.pattern.permute.xlu0 0
      %2245 = vperm.xlu0 %2244, %v2174
      %v2246 = vpop.permute.xlu0 %2245
      %2249 = vset.pattern.permute.xlu0 0
      %2250 = vperm.xlu0 %2249, %v2175
      %v2251 = vpop.permute.xlu0 %2250
      %2254 = vset.pattern.permute.xlu0 0
      %2255 = vperm.xlu0 %2254, %v2176
      %v2256 = vpop.permute.xlu0 %2255
      %2259 = vset.pattern.permute.xlu0 0
      %2260 = vperm.xlu0 %2259, %v2177
      %v2261 = vpop.permute.xlu0 %2260
      %2264 = vset.pattern.permute.xlu0 0
      %2265 = vperm.xlu0 %2264, %v2178
      %v2266 = vpop.permute.xlu0 %2265
      %2269 = vset.pattern.permute.xlu0 0
      %2270 = vperm.xlu0 %2269, %v2179
      %v2271 = vpop.permute.xlu0 %2270
      %2274 = vset.pattern.permute.xlu0 0
      %2275 = vperm.xlu0 %2274, %v2180
      %v2276 = vpop.permute.xlu0 %2275
      %2279 = vset.pattern.permute.xlu0 0
      %2280 = vperm.xlu0 %2279, %v2181
      %v2281 = vpop.permute.xlu0 %2280
      %2284 = vset.pattern.permute.xlu0 0
      %2285 = vperm.xlu0 %2284, %v2182
      %v2286 = vpop.permute.xlu0 %2285
      %2289 = vset.pattern.permute.xlu0 0
      %2290 = vperm.xlu0 %2289, %v2183
      %v2291 = vpop.permute.xlu0 %2290
      %2294 = vset.pattern.permute.xlu0 0
      %2295 = vperm.xlu0 %2294, %v2184
      %v2296 = vpop.permute.xlu0 %2295
      %2299 = vset.pattern.permute.xlu0 0
      %2300 = vperm.xlu0 %2299, %v2185
      %v2301 = vpop.permute.xlu0 %2300
      %2304 = vset.pattern.permute.xlu0 0
      %2305 = vperm.xlu0 %2304, %v2186
      %v2306 = vpop.permute.xlu0 %2305
      %2309 = vset.pattern.permute.xlu0 0
      %2310 = vperm.xlu0 %2309, %v2187
      %v2311 = vpop.permute.xlu0 %2310
      %2314 = vset.pattern.permute.xlu0 0
      %2315 = vperm.xlu0 %2314, %v2188
      %v2316 = vpop.permute.xlu0 %2315
      %2319 = vset.pattern.permute.xlu0 0
      %2320 = vperm.xlu0 %2319, %v2189
      %v2321 = vpop.permute.xlu0 %2320
      %2324 = vset.pattern.permute.xlu0 0
      %2325 = vperm.xlu0 %2324, %v2190
      %v2326 = vpop.permute.xlu0 %2325
      %2329 = vset.pattern.permute.xlu0 0
      %2330 = vperm.xlu0 %2329, %v2191
      %v2331 = vpop.permute.xlu0 %2330
      %2334 = vset.pattern.permute.xlu0 0
      %2335 = vperm.xlu0 %2334, %v2192
      %v2336 = vpop.permute.xlu0 %2335
      %2339 = vset.pattern.permute.xlu0 0
      %2340 = vperm.xlu0 %2339, %v2193
      %v2341 = vpop.permute.xlu0 %2340
      %2344 = vset.pattern.permute.xlu0 0
      %2345 = vperm.xlu0 %2344, %v2194
      %v2346 = vpop.permute.xlu0 %2345
      %2349 = vset.pattern.permute.xlu0 0
      %2350 = vperm.xlu0 %2349, %v2195
      %v2351 = vpop.permute.xlu0 %2350
      %2354 = vset.pattern.permute.xlu0 0
      %2355 = vperm.xlu0 %2354, %v2196
      %v2356 = vpop.permute.xlu0 %2355
      %v2358 = vlaneseq
      %v2359 = vshrl.u32 %v2358, 7
      %v2360 = vsub.s32 0, %v2359
      %v2361 = vrot.slane %v2197, %v2360
      %v2362 = vmul.f32 %v2201, %v2361
      %v2363 = vmul.f32 %v2206, %v2361
      %v2364 = vmul.f32 %v2211, %v2361
      %v2365 = vmul.f32 %v2216, %v2361
      %v2366 = vmul.f32 %v2221, %v2361
      %v2367 = vmul.f32 %v2226, %v2361
      %v2368 = vmul.f32 %v2231, %v2361
      %v2369 = vmul.f32 %v2236, %v2361
      %v2370 = vmul.f32 %v2241, %v2361
      %v2371 = vmul.f32 %v2246, %v2361
      %v2372 = vmul.f32 %v2251, %v2361
      %v2373 = vmul.f32 %v2256, %v2361
      %v2374 = vmul.f32 %v2261, %v2361
      %v2375 = vmul.f32 %v2266, %v2361
      %v2376 = vmul.f32 %v2271, %v2361
      %v2377 = vmul.f32 %v2276, %v2361
      %v2378 = vmul.f32 %v2281, %v2361
      %v2379 = vmul.f32 %v2286, %v2361
      %v2380 = vmul.f32 %v2291, %v2361
      %v2381 = vmul.f32 %v2296, %v2361
      %v2382 = vmul.f32 %v2301, %v2361
      %v2383 = vmul.f32 %v2306, %v2361
      %v2384 = vmul.f32 %v2311, %v2361
      %v2385 = vmul.f32 %v2316, %v2361
      %v2386 = vmul.f32 %v2321, %v2361
      %v2387 = vmul.f32 %v2326, %v2361
      %v2388 = vmul.f32 %v2331, %v2361
      %v2389 = vmul.f32 %v2336, %v2361
      %v2390 = vmul.f32 %v2341, %v2361
      %v2391 = vmul.f32 %v2346, %v2361
      %v2392 = vmul.f32 %v2351, %v2361
      %v2393 = vmul.f32 %v2356, %v2361
      %v2394 = vadd.f32 %v2133, %v2362
      %v2395 = vadd.f32 %v2134, %v2363
      %v2396 = vadd.f32 %v2135, %v2364
      %v2397 = vadd.f32 %v2136, %v2365
      %v2398 = vadd.f32 %v2137, %v2366
      %v2399 = vadd.f32 %v2138, %v2367
      %v2400 = vadd.f32 %v2139, %v2368
      %v2401 = vadd.f32 %v2140, %v2369
      %v2402 = vadd.f32 %v2141, %v2370
      %v2403 = vadd.f32 %v2142, %v2371
      %v2404 = vadd.f32 %v2143, %v2372
      %v2405 = vadd.f32 %v2144, %v2373
      %v2406 = vadd.f32 %v2145, %v2374
      %v2407 = vadd.f32 %v2146, %v2375
      %v2408 = vadd.f32 %v2147, %v2376
      %v2409 = vadd.f32 %v2148, %v2377
      %v2410 = vadd.f32 %v2149, %v2378
      %v2411 = vadd.f32 %v2150, %v2379
      %v2412 = vadd.f32 %v2151, %v2380
      %v2413 = vadd.f32 %v2152, %v2381
      %v2414 = vadd.f32 %v2153, %v2382
      %v2415 = vadd.f32 %v2154, %v2383
      %v2416 = vadd.f32 %v2155, %v2384
      %v2417 = vadd.f32 %v2156, %v2385
      %v2418 = vadd.f32 %v2157, %v2386
      %v2419 = vadd.f32 %v2158, %v2387
      %v2420 = vadd.f32 %v2159, %v2388
      %v2421 = vadd.f32 %v2160, %v2389
      %v2422 = vadd.f32 %v2161, %v2390
      %v2423 = vadd.f32 %v2162, %v2391
      %v2424 = vadd.f32 %v2163, %v2392
      %v2425 = vadd.f32 %v2164, %v2393
      %v2426 = vld [vmem:[%s1903 + $0x2] sm:$0xff]
      %v2427 = vld [vmem:[%s1903 + $0xa] sm:$0xff]
      %v2428 = vld [vmem:[%s1903 + $0x1a] sm:$0xff]
      %v2429 = vld [vmem:[%s1903 + $0x22] sm:$0xff]
      %v2430 = vld [vmem:[%s1903 + $0x32] sm:$0xff]
      %v2431 = vld [vmem:[%s1903 + $0x3a] sm:$0xff]
      %v2432 = vld [vmem:[%s1903 + $0x4a] sm:$0xff]
      %v2433 = vld [vmem:[%s1903 + $0x52] sm:$0xff]
      %v2434 = vld [vmem:[%s1903 + $0x62] sm:$0xff]
      %v2435 = vld [vmem:[%s1903 + $0x6a] sm:$0xff]
      %v2436 = vld [vmem:[%s1903 + $0x7a] sm:$0xff]
      %v2437 = vld [vmem:[%s1903 + $0x82] sm:$0xff]
      %v2438 = vld [vmem:[%s1903 + $0x92] sm:$0xff]
      %v2439 = vld [vmem:[%s1903 + $0x9a] sm:$0xff]
      %v2440 = vld [vmem:[%s1903 + $0xaa] sm:$0xff]
      %v2441 = vld [vmem:[%s1903 + $0xb2] sm:$0xff]
      %v2442 = vld [vmem:[%s1903 + $0xc2] sm:$0xff]
      %v2443 = vld [vmem:[%s1903 + $0xca] sm:$0xff]
      %v2444 = vld [vmem:[%s1903 + $0xda] sm:$0xff]
      %v2445 = vld [vmem:[%s1903 + $0xe2] sm:$0xff]
      %v2446 = vld [vmem:[%s1903 + $0xf2] sm:$0xff]
      %v2447 = vld [vmem:[%s1903 + $0xfa] sm:$0xff]
      %v2448 = vld [vmem:[%s1903 + $0x10a] sm:$0xff]
      %v2449 = vld [vmem:[%s1903 + $0x112] sm:$0xff]
      %v2450 = vld [vmem:[%s1903 + $0x122] sm:$0xff]
      %v2451 = vld [vmem:[%s1903 + $0x12a] sm:$0xff]
      %v2452 = vld [vmem:[%s1903 + $0x13a] sm:$0xff]
      %v2453 = vld [vmem:[%s1903 + $0x142] sm:$0xff]
      %v2454 = vld [vmem:[%s1903 + $0x152] sm:$0xff]
      %v2455 = vld [vmem:[%s1903 + $0x15a] sm:$0xff]
      %v2456 = vld [vmem:[%s1903 + $0x16a] sm:$0xff]
      %v2457 = vld [vmem:[%s1903 + $0x172] sm:$0xff]
      %v2458 = vld [vmem:[%s1 + $0x8] sm:$0x1]
      %2460 = vset.pattern.permute.xlu0 0
      %2461 = vperm.xlu0 %2460, %v2426
      %v2462 = vpop.permute.xlu0 %2461
      %2465 = vset.pattern.permute.xlu0 0
      %2466 = vperm.xlu0 %2465, %v2427
      %v2467 = vpop.permute.xlu0 %2466
      %2470 = vset.pattern.permute.xlu0 0
      %2471 = vperm.xlu0 %2470, %v2428
      %v2472 = vpop.permute.xlu0 %2471
      %2475 = vset.pattern.permute.xlu0 0
      %2476 = vperm.xlu0 %2475, %v2429
      %v2477 = vpop.permute.xlu0 %2476
      %2480 = vset.pattern.permute.xlu0 0
      %2481 = vperm.xlu0 %2480, %v2430
      %v2482 = vpop.permute.xlu0 %2481
      %2485 = vset.pattern.permute.xlu0 0
      %2486 = vperm.xlu0 %2485, %v2431
      %v2487 = vpop.permute.xlu0 %2486
      %2490 = vset.pattern.permute.xlu0 0
      %2491 = vperm.xlu0 %2490, %v2432
      %v2492 = vpop.permute.xlu0 %2491
      %2495 = vset.pattern.permute.xlu0 0
      %2496 = vperm.xlu0 %2495, %v2433
      %v2497 = vpop.permute.xlu0 %2496
      %2500 = vset.pattern.permute.xlu0 0
      %2501 = vperm.xlu0 %2500, %v2434
      %v2502 = vpop.permute.xlu0 %2501
      %2505 = vset.pattern.permute.xlu0 0
      %2506 = vperm.xlu0 %2505, %v2435
      %v2507 = vpop.permute.xlu0 %2506
      %2510 = vset.pattern.permute.xlu0 0
      %2511 = vperm.xlu0 %2510, %v2436
      %v2512 = vpop.permute.xlu0 %2511
      %2515 = vset.pattern.permute.xlu0 0
      %2516 = vperm.xlu0 %2515, %v2437
      %v2517 = vpop.permute.xlu0 %2516
      %2520 = vset.pattern.permute.xlu0 0
      %2521 = vperm.xlu0 %2520, %v2438
      %v2522 = vpop.permute.xlu0 %2521
      %2525 = vset.pattern.permute.xlu0 0
      %2526 = vperm.xlu0 %2525, %v2439
      %v2527 = vpop.permute.xlu0 %2526
      %2530 = vset.pattern.permute.xlu0 0
      %2531 = vperm.xlu0 %2530, %v2440
      %v2532 = vpop.permute.xlu0 %2531
      %2535 = vset.pattern.permute.xlu0 0
      %2536 = vperm.xlu0 %2535, %v2441
      %v2537 = vpop.permute.xlu0 %2536
      %2540 = vset.pattern.permute.xlu0 0
      %2541 = vperm.xlu0 %2540, %v2442
      %v2542 = vpop.permute.xlu0 %2541
      %2545 = vset.pattern.permute.xlu0 0
      %2546 = vperm.xlu0 %2545, %v2443
      %v2547 = vpop.permute.xlu0 %2546
      %2550 = vset.pattern.permute.xlu0 0
      %2551 = vperm.xlu0 %2550, %v2444
      %v2552 = vpop.permute.xlu0 %2551
      %2555 = vset.pattern.permute.xlu0 0
      %2556 = vperm.xlu0 %2555, %v2445
      %v2557 = vpop.permute.xlu0 %2556
      %2560 = vset.pattern.permute.xlu0 0
      %2561 = vperm.xlu0 %2560, %v2446
      %v2562 = vpop.permute.xlu0 %2561
      %2565 = vset.pattern.permute.xlu0 0
      %2566 = vperm.xlu0 %2565, %v2447
      %v2567 = vpop.permute.xlu0 %2566
      %2570 = vset.pattern.permute.xlu0 0
      %2571 = vperm.xlu0 %2570, %v2448
      %v2572 = vpop.permute.xlu0 %2571
      %2575 = vset.pattern.permute.xlu0 0
      %2576 = vperm.xlu0 %2575, %v2449
      %v2577 = vpop.permute.xlu0 %2576
      %2580 = vset.pattern.permute.xlu0 0
      %2581 = vperm.xlu0 %2580, %v2450
      %v2582 = vpop.permute.xlu0 %2581
      %2585 = vset.pattern.permute.xlu0 0
      %2586 = vperm.xlu0 %2585, %v2451
      %v2587 = vpop.permute.xlu0 %2586
      %2590 = vset.pattern.permute.xlu0 0
      %2591 = vperm.xlu0 %2590, %v2452
      %v2592 = vpop.permute.xlu0 %2591
      %2595 = vset.pattern.permute.xlu0 0
      %2596 = vperm.xlu0 %2595, %v2453
      %v2597 = vpop.permute.xlu0 %2596
      %2600 = vset.pattern.permute.xlu0 0
      %2601 = vperm.xlu0 %2600, %v2454
      %v2602 = vpop.permute.xlu0 %2601
      %2605 = vset.pattern.permute.xlu0 0
      %2606 = vperm.xlu0 %2605, %v2455
      %v2607 = vpop.permute.xlu0 %2606
      %2610 = vset.pattern.permute.xlu0 0
      %2611 = vperm.xlu0 %2610, %v2456
      %v2612 = vpop.permute.xlu0 %2611
      %2615 = vset.pattern.permute.xlu0 0
      %2616 = vperm.xlu0 %2615, %v2457
      %v2617 = vpop.permute.xlu0 %2616
      %v2619 = vlaneseq
      %v2620 = vshrl.u32 %v2619, 7
      %v2621 = vsub.s32 0, %v2620
      %v2622 = vrot.slane %v2458, %v2621
      %v2623 = vmul.f32 %v2462, %v2622
      %v2624 = vmul.f32 %v2467, %v2622
      %v2625 = vmul.f32 %v2472, %v2622
      %v2626 = vmul.f32 %v2477, %v2622
      %v2627 = vmul.f32 %v2482, %v2622
      %v2628 = vmul.f32 %v2487, %v2622
      %v2629 = vmul.f32 %v2492, %v2622
      %v2630 = vmul.f32 %v2497, %v2622
      %v2631 = vmul.f32 %v2502, %v2622
      %v2632 = vmul.f32 %v2507, %v2622
      %v2633 = vmul.f32 %v2512, %v2622
      %v2634 = vmul.f32 %v2517, %v2622
      %v2635 = vmul.f32 %v2522, %v2622
      %v2636 = vmul.f32 %v2527, %v2622
      %v2637 = vmul.f32 %v2532, %v2622
      %v2638 = vmul.f32 %v2537, %v2622
      %v2639 = vmul.f32 %v2542, %v2622
      %v2640 = vmul.f32 %v2547, %v2622
      %v2641 = vmul.f32 %v2552, %v2622
      %v2642 = vmul.f32 %v2557, %v2622
      %v2643 = vmul.f32 %v2562, %v2622
      %v2644 = vmul.f32 %v2567, %v2622
      %v2645 = vmul.f32 %v2572, %v2622
      %v2646 = vmul.f32 %v2577, %v2622
      %v2647 = vmul.f32 %v2582, %v2622
      %v2648 = vmul.f32 %v2587, %v2622
      %v2649 = vmul.f32 %v2592, %v2622
      %v2650 = vmul.f32 %v2597, %v2622
      %v2651 = vmul.f32 %v2602, %v2622
      %v2652 = vmul.f32 %v2607, %v2622
      %v2653 = vmul.f32 %v2612, %v2622
      %v2654 = vmul.f32 %v2617, %v2622
      %v2655 = vadd.f32 %v2394, %v2623
      %v2656 = vadd.f32 %v2395, %v2624
      %v2657 = vadd.f32 %v2396, %v2625
      %v2658 = vadd.f32 %v2397, %v2626
      %v2659 = vadd.f32 %v2398, %v2627
      %v2660 = vadd.f32 %v2399, %v2628
      %v2661 = vadd.f32 %v2400, %v2629
      %v2662 = vadd.f32 %v2401, %v2630
      %v2663 = vadd.f32 %v2402, %v2631
      %v2664 = vadd.f32 %v2403, %v2632
      %v2665 = vadd.f32 %v2404, %v2633
      %v2666 = vadd.f32 %v2405, %v2634
      %v2667 = vadd.f32 %v2406, %v2635
      %v2668 = vadd.f32 %v2407, %v2636
      %v2669 = vadd.f32 %v2408, %v2637
      %v2670 = vadd.f32 %v2409, %v2638
      %v2671 = vadd.f32 %v2410, %v2639
      %v2672 = vadd.f32 %v2411, %v2640
      %v2673 = vadd.f32 %v2412, %v2641
      %v2674 = vadd.f32 %v2413, %v2642
      %v2675 = vadd.f32 %v2414, %v2643
      %v2676 = vadd.f32 %v2415, %v2644
      %v2677 = vadd.f32 %v2416, %v2645
      %v2678 = vadd.f32 %v2417, %v2646
      %v2679 = vadd.f32 %v2418, %v2647
      %v2680 = vadd.f32 %v2419, %v2648
      %v2681 = vadd.f32 %v2420, %v2649
      %v2682 = vadd.f32 %v2421, %v2650
      %v2683 = vadd.f32 %v2422, %v2651
      %v2684 = vadd.f32 %v2423, %v2652
      %v2685 = vadd.f32 %v2424, %v2653
      %v2686 = vadd.f32 %v2425, %v2654
      %v2687 = vld [vmem:[%s2] sm:$0x1]
      %v2689 = vlaneseq
      %v2690 = vshrl.u32 %v2689, 7
      %v2691 = vsub.s32 0, %v2690
      %v2692 = vrot.slane %v2687, %v2691
      %v2694 = vadd.f32 %v2655, %v2692
      %v2695 = vadd.f32 %v2656, %v2692
      %v2696 = vadd.f32 %v2657, %v2692
      %v2697 = vadd.f32 %v2658, %v2692
      %v2698 = vadd.f32 %v2659, %v2692
      %v2699 = vadd.f32 %v2660, %v2692
      %v2700 = vadd.f32 %v2661, %v2692
      %v2701 = vadd.f32 %v2662, %v2692
      %v2702 = vadd.f32 %v2663, %v2692
      %v2703 = vadd.f32 %v2664, %v2692
      %v2704 = vadd.f32 %v2665, %v2692
      %v2705 = vadd.f32 %v2666, %v2692
      %v2706 = vadd.f32 %v2667, %v2692
      %v2707 = vadd.f32 %v2668, %v2692
      %v2708 = vadd.f32 %v2669, %v2692
      %v2709 = vadd.f32 %v2670, %v2692
      %v2710 = vadd.f32 %v2671, %v2692
      %v2711 = vadd.f32 %v2672, %v2692
      %v2712 = vadd.f32 %v2673, %v2692
      %v2713 = vadd.f32 %v2674, %v2692
      %v2714 = vadd.f32 %v2675, %v2692
      %v2715 = vadd.f32 %v2676, %v2692
      %v2716 = vadd.f32 %v2677, %v2692
      %v2717 = vadd.f32 %v2678, %v2692
      %v2718 = vadd.f32 %v2679, %v2692
      %v2719 = vadd.f32 %v2680, %v2692
      %v2720 = vadd.f32 %v2681, %v2692
      %v2721 = vadd.f32 %v2682, %v2692
      %v2722 = vadd.f32 %v2683, %v2692
      %v2723 = vadd.f32 %v2684, %v2692
      %v2724 = vadd.f32 %v2685, %v2692
      %v2725 = vadd.f32 %v2686, %v2692
      %v2726 = vmax.f32 %v2694, 0.0
      %v2727 = vmax.f32 %v2695, 0.0
      %v2728 = vmax.f32 %v2696, 0.0
      %v2729 = vmax.f32 %v2697, 0.0
      %v2730 = vmax.f32 %v2698, 0.0
      %v2731 = vmax.f32 %v2699, 0.0
      %v2732 = vmax.f32 %v2700, 0.0
      %v2733 = vmax.f32 %v2701, 0.0
      %v2734 = vmax.f32 %v2702, 0.0
      %v2735 = vmax.f32 %v2703, 0.0
      %v2736 = vmax.f32 %v2704, 0.0
      %v2737 = vmax.f32 %v2705, 0.0
      %v2738 = vmax.f32 %v2706, 0.0
      %v2739 = vmax.f32 %v2707, 0.0
      %v2740 = vmax.f32 %v2708, 0.0
      %v2741 = vmax.f32 %v2709, 0.0
      %v2742 = vmax.f32 %v2710, 0.0
      %v2743 = vmax.f32 %v2711, 0.0
      %v2744 = vmax.f32 %v2712, 0.0
      %v2745 = vmax.f32 %v2713, 0.0
      %v2746 = vmax.f32 %v2714, 0.0
      %v2747 = vmax.f32 %v2715, 0.0
      %v2748 = vmax.f32 %v2716, 0.0
      %v2749 = vmax.f32 %v2717, 0.0
      %v2750 = vmax.f32 %v2718, 0.0
      %v2751 = vmax.f32 %v2719, 0.0
      %v2752 = vmax.f32 %v2720, 0.0
      %v2753 = vmax.f32 %v2721, 0.0
      %v2754 = vmax.f32 %v2722, 0.0
      %v2755 = vmax.f32 %v2723, 0.0
      %v2756 = vmax.f32 %v2724, 0.0
      %v2757 = vmax.f32 %v2725, 0.0
      %v2758 = vmax.f32 %v2726, %v2728
      %v2759 = vmax.f32 %v2727, %v2729
      %v2760 = vmax.f32 %v2730, %v2732
      %v2761 = vmax.f32 %v2731, %v2733
      %v2762 = vmax.f32 %v2734, %v2736
      %v2763 = vmax.f32 %v2735, %v2737
      %v2764 = vmax.f32 %v2738, %v2740
      %v2765 = vmax.f32 %v2739, %v2741
      %v2766 = vmax.f32 %v2742, %v2744
      %v2767 = vmax.f32 %v2743, %v2745
      %v2768 = vmax.f32 %v2746, %v2748
      %v2769 = vmax.f32 %v2747, %v2749
      %v2770 = vmax.f32 %v2750, %v2752
      %v2771 = vmax.f32 %v2751, %v2753
      %v2772 = vmax.f32 %v2754, %v2756
      %v2773 = vmax.f32 %v2755, %v2757
      %2774 = vst [vmem:[#allocation2] sm:$0xff] 0.0
      %2775 = vst [vmem:[#allocation2 + $0x8] sm:$0x3] 0.0
      %2776 = vst [vmem:[#allocation2 + $0x10] sm:$0xff] 0.0
      %2777 = vst [vmem:[#allocation2 + $0x18] sm:$0x3] 0.0
      %2778 = vst [vmem:[#allocation2 + $0x20] sm:$0xff] 0.0
      %2779 = vst [vmem:[#allocation2 + $0x28] sm:$0x3] 0.0
      %2780 = vst [vmem:[#allocation2 + $0x30] sm:$0xff] 0.0
      %2781 = vst [vmem:[#allocation2 + $0x38] sm:$0x3] 0.0
      %2782 = vst [vmem:[#allocation2 + $0x40] sm:$0xff] 0.0
      %2783 = vst [vmem:[#allocation2 + $0x48] sm:$0x3] 0.0
      %2784 = vst [vmem:[#allocation2 + $0x50] sm:$0xff] 0.0
      %2785 = vst [vmem:[#allocation2 + $0x58] sm:$0x3] 0.0
      %2786 = vst [vmem:[#allocation2 + $0x60] sm:$0xff] 0.0
      %2787 = vst [vmem:[#allocation2 + $0x68] sm:$0x3] 0.0
      %2788 = vst [vmem:[#allocation2 + $0x70] sm:$0xff] 0.0
      %2789 = vst [vmem:[#allocation2 + $0x78] sm:$0x3] 0.0
      %2790 = vst [vmem:[#allocation2 + $0x80] sm:$0xff] 0.0
      %2791 = vst [vmem:[#allocation2 + $0x88] sm:$0x3] 0.0
      %2792 = vst [vmem:[#allocation2 + $0x90] sm:$0xff] 0.0
      %2793 = vst [vmem:[#allocation2 + $0x98] sm:$0x3] 0.0
      %vm2794 = vcmask 1041408
      %v2795 = vsel %vm2794, %v2758, -inf
      %v2796 = vrot.slane %v2795, 4
      %v2797 = vmax.f32 %v2795, %v2796
      %v2798 = vrot.slane %v2797, 2
      %v2799 = vmax.f32 %v2797, %v2798
      %v2800 = vrot.slane %v2799, 1
      %v2801 = vmax.f32 %v2799, %v2800
      %v2802 = vsel %vm2794, %v2760, -inf
      %v2803 = vrot.slane %v2802, 4
      %v2804 = vmax.f32 %v2802, %v2803
      %v2805 = vrot.slane %v2804, 2
      %v2806 = vmax.f32 %v2804, %v2805
      %v2807 = vrot.slane %v2806, 1
      %v2808 = vmax.f32 %v2806, %v2807
      %v2809 = vsel %vm2794, %v2762, -inf
      %v2810 = vrot.slane %v2809, 4
      %v2811 = vmax.f32 %v2809, %v2810
      %v2812 = vrot.slane %v2811, 2
      %v2813 = vmax.f32 %v2811, %v2812
      %v2814 = vrot.slane %v2813, 1
      %v2815 = vmax.f32 %v2813, %v2814
      %v2816 = vsel %vm2794, %v2764, -inf
      %v2817 = vrot.slane %v2816, 4
      %v2818 = vmax.f32 %v2816, %v2817
      %v2819 = vrot.slane %v2818, 2
      %v2820 = vmax.f32 %v2818, %v2819
      %v2821 = vrot.slane %v2820, 1
      %v2822 = vmax.f32 %v2820, %v2821
      %v2823 = vsel %vm2794, %v2766, -inf
      %v2824 = vrot.slane %v2823, 4
      %v2825 = vmax.f32 %v2823, %v2824
      %v2826 = vrot.slane %v2825, 2
      %v2827 = vmax.f32 %v2825, %v2826
      %v2828 = vrot.slane %v2827, 1
      %v2829 = vmax.f32 %v2827, %v2828
      %v2830 = vsel %vm2794, %v2768, -inf
      %v2831 = vrot.slane %v2830, 4
      %v2832 = vmax.f32 %v2830, %v2831
      %v2833 = vrot.slane %v2832, 2
      %v2834 = vmax.f32 %v2832, %v2833
      %v2835 = vrot.slane %v2834, 1
      %v2836 = vmax.f32 %v2834, %v2835
      %v2837 = vsel %vm2794, %v2770, -inf
      %v2838 = vrot.slane %v2837, 4
      %v2839 = vmax.f32 %v2837, %v2838
      %v2840 = vrot.slane %v2839, 2
      %v2841 = vmax.f32 %v2839, %v2840
      %v2842 = vrot.slane %v2841, 1
      %v2843 = vmax.f32 %v2841, %v2842
      %v2844 = vsel %vm2794, %v2772, -inf
      %v2845 = vrot.slane %v2844, 4
      %v2846 = vmax.f32 %v2844, %v2845
      %v2847 = vrot.slane %v2846, 2
      %v2848 = vmax.f32 %v2846, %v2847
      %v2849 = vrot.slane %v2848, 1
      %v2850 = vmax.f32 %v2848, %v2849
      %s2851 = scalar_lea.vmem [#allocation2], 16
      %2852 = vst [vmem:[%s2851 + $0x1] sm:$0x1] %v2801
      %2853 = vst [vmem:[%s2851 + $0x11] sm:$0x1] %v2808
      %2854 = vst [vmem:[%s2851 + $0x21] sm:$0x1] %v2815
      %2855 = vst [vmem:[%s2851 + $0x31] sm:$0x1] %v2822
      %2856 = vst [vmem:[%s2851 + $0x41] sm:$0x1] %v2829
      %2857 = vst [vmem:[%s2851 + $0x51] sm:$0x1] %v2836
      %2858 = vst [vmem:[%s2851 + $0x61] sm:$0x1] %v2843
      %2859 = vst [vmem:[%s2851 + $0x71] sm:$0x1] %v2850
      %vm2860 = vcmask 1043458
      %v2861 = vsel %vm2860, %v2758, -inf
      %v2862 = vrot.slane %v2861, 4
      %v2863 = vmax.f32 %v2861, %v2862
      %v2864 = vrot.slane %v2863, 2
      %v2865 = vmax.f32 %v2863, %v2864
      %v2866 = vrot.slane %v2865, 1
      %v2867 = vmax.f32 %v2865, %v2866
      %v2868 = vsel %vm2860, %v2760, -inf
      %v2869 = vrot.slane %v2868, 4
      %v2870 = vmax.f32 %v2868, %v2869
      %v2871 = vrot.slane %v2870, 2
      %v2872 = vmax.f32 %v2870, %v2871
      %v2873 = vrot.slane %v2872, 1
      %v2874 = vmax.f32 %v2872, %v2873
      %v2875 = vsel %vm2860, %v2762, -inf
      %v2876 = vrot.slane %v2875, 4
      %v2877 = vmax.f32 %v2875, %v2876
      %v2878 = vrot.slane %v2877, 2
      %v2879 = vmax.f32 %v2877, %v2878
      %v2880 = vrot.slane %v2879, 1
      %v2881 = vmax.f32 %v2879, %v2880
      %v2882 = vsel %vm2860, %v2764, -inf
      %v2883 = vrot.slane %v2882, 4
      %v2884 = vmax.f32 %v2882, %v2883
      %v2885 = vrot.slane %v2884, 2
      %v2886 = vmax.f32 %v2884, %v2885
      %v2887 = vrot.slane %v2886, 1
      %v2888 = vmax.f32 %v2886, %v2887
      %v2889 = vsel %vm2860, %v2766, -inf
      %v2890 = vrot.slane %v2889, 4
      %v2891 = vmax.f32 %v2889, %v2890
      %v2892 = vrot.slane %v2891, 2
      %v2893 = vmax.f32 %v2891, %v2892
      %v2894 = vrot.slane %v2893, 1
      %v2895 = vmax.f32 %v2893, %v2894
      %v2896 = vsel %vm2860, %v2768, -inf
      %v2897 = vrot.slane %v2896, 4
      %v2898 = vmax.f32 %v2896, %v2897
      %v2899 = vrot.slane %v2898, 2
      %v2900 = vmax.f32 %v2898, %v2899
      %v2901 = vrot.slane %v2900, 1
      %v2902 = vmax.f32 %v2900, %v2901
      %v2903 = vsel %vm2860, %v2770, -inf
      %v2904 = vrot.slane %v2903, 4
      %v2905 = vmax.f32 %v2903, %v2904
      %v2906 = vrot.slane %v2905, 2
      %v2907 = vmax.f32 %v2905, %v2906
      %v2908 = vrot.slane %v2907, 1
      %v2909 = vmax.f32 %v2907, %v2908
      %v2910 = vsel %vm2860, %v2772, -inf
      %v2911 = vrot.slane %v2910, 4
      %v2912 = vmax.f32 %v2910, %v2911
      %v2913 = vrot.slane %v2912, 2
      %v2914 = vmax.f32 %v2912, %v2913
      %v2915 = vrot.slane %v2914, 1
      %v2916 = vmax.f32 %v2914, %v2915
      %2917 = vst [vmem:[%s2851 + $0x2] sm:$0x1] %v2867
      %2918 = vst [vmem:[%s2851 + $0x12] sm:$0x1] %v2874
      %2919 = vst [vmem:[%s2851 + $0x22] sm:$0x1] %v2881
      %2920 = vst [vmem:[%s2851 + $0x32] sm:$0x1] %v2888
      %2921 = vst [vmem:[%s2851 + $0x42] sm:$0x1] %v2895
      %2922 = vst [vmem:[%s2851 + $0x52] sm:$0x1] %v2902
      %2923 = vst [vmem:[%s2851 + $0x62] sm:$0x1] %v2909
      %2924 = vst [vmem:[%s2851 + $0x72] sm:$0x1] %v2916
      %vm2925 = vcmask 1045508
      %v2926 = vsel %vm2925, %v2758, -inf
      %v2927 = vrot.slane %v2926, 4
      %v2928 = vmax.f32 %v2926, %v2927
      %v2929 = vrot.slane %v2928, 2
      %v2930 = vmax.f32 %v2928, %v2929
      %v2931 = vrot.slane %v2930, 1
      %v2932 = vmax.f32 %v2930, %v2931
      %v2933 = vsel %vm2925, %v2760, -inf
      %v2934 = vrot.slane %v2933, 4
      %v2935 = vmax.f32 %v2933, %v2934
      %v2936 = vrot.slane %v2935, 2
      %v2937 = vmax.f32 %v2935, %v2936
      %v2938 = vrot.slane %v2937, 1
      %v2939 = vmax.f32 %v2937, %v2938
      %v2940 = vsel %vm2925, %v2762, -inf
      %v2941 = vrot.slane %v2940, 4
      %v2942 = vmax.f32 %v2940, %v2941
      %v2943 = vrot.slane %v2942, 2
      %v2944 = vmax.f32 %v2942, %v2943
      %v2945 = vrot.slane %v2944, 1
      %v2946 = vmax.f32 %v2944, %v2945
      %v2947 = vsel %vm2925, %v2764, -inf
      %v2948 = vrot.slane %v2947, 4
      %v2949 = vmax.f32 %v2947, %v2948
      %v2950 = vrot.slane %v2949, 2
      %v2951 = vmax.f32 %v2949, %v2950
      %v2952 = vrot.slane %v2951, 1
      %v2953 = vmax.f32 %v2951, %v2952
      %v2954 = vsel %vm2925, %v2766, -inf
      %v2955 = vrot.slane %v2954, 4
      %v2956 = vmax.f32 %v2954, %v2955
      %v2957 = vrot.slane %v2956, 2
      %v2958 = vmax.f32 %v2956, %v2957
      %v2959 = vrot.slane %v2958, 1
      %v2960 = vmax.f32 %v2958, %v2959
      %v2961 = vsel %vm2925, %v2768, -inf
      %v2962 = vrot.slane %v2961, 4
      %v2963 = vmax.f32 %v2961, %v2962
      %v2964 = vrot.slane %v2963, 2
      %v2965 = vmax.f32 %v2963, %v2964
      %v2966 = vrot.slane %v2965, 1
      %v2967 = vmax.f32 %v2965, %v2966
      %v2968 = vsel %vm2925, %v2770, -inf
      %v2969 = vrot.slane %v2968, 4
      %v2970 = vmax.f32 %v2968, %v2969
      %v2971 = vrot.slane %v2970, 2
      %v2972 = vmax.f32 %v2970, %v2971
      %v2973 = vrot.slane %v2972, 1
      %v2974 = vmax.f32 %v2972, %v2973
      %v2975 = vsel %vm2925, %v2772, -inf
      %v2976 = vrot.slane %v2975, 4
      %v2977 = vmax.f32 %v2975, %v2976
      %v2978 = vrot.slane %v2977, 2
      %v2979 = vmax.f32 %v2977, %v2978
      %v2980 = vrot.slane %v2979, 1
      %v2981 = vmax.f32 %v2979, %v2980
      %2982 = vst [vmem:[%s2851 + $0x3] sm:$0x1] %v2932
      %2983 = vst [vmem:[%s2851 + $0x13] sm:$0x1] %v2939
      %2984 = vst [vmem:[%s2851 + $0x23] sm:$0x1] %v2946
      %2985 = vst [vmem:[%s2851 + $0x33] sm:$0x1] %v2953
      %2986 = vst [vmem:[%s2851 + $0x43] sm:$0x1] %v2960
      %2987 = vst [vmem:[%s2851 + $0x53] sm:$0x1] %v2967
      %2988 = vst [vmem:[%s2851 + $0x63] sm:$0x1] %v2974
      %2989 = vst [vmem:[%s2851 + $0x73] sm:$0x1] %v2981
      %vm2990 = vcmask 1047558
      %v2991 = vsel %vm2990, %v2758, -inf
      %v2992 = vrot.slane %v2991, 4
      %v2993 = vmax.f32 %v2991, %v2992
      %v2994 = vrot.slane %v2993, 2
      %v2995 = vmax.f32 %v2993, %v2994
      %v2996 = vrot.slane %v2995, 1
      %v2997 = vmax.f32 %v2995, %v2996
      %v2998 = vsel %vm2990, %v2760, -inf
      %v2999 = vrot.slane %v2998, 4
      %v3000 = vmax.f32 %v2998, %v2999
      %v3001 = vrot.slane %v3000, 2
      %v3002 = vmax.f32 %v3000, %v3001
      %v3003 = vrot.slane %v3002, 1
      %v3004 = vmax.f32 %v3002, %v3003
      %v3005 = vsel %vm2990, %v2762, -inf
      %v3006 = vrot.slane %v3005, 4
      %v3007 = vmax.f32 %v3005, %v3006
      %v3008 = vrot.slane %v3007, 2
      %v3009 = vmax.f32 %v3007, %v3008
      %v3010 = vrot.slane %v3009, 1
      %v3011 = vmax.f32 %v3009, %v3010
      %v3012 = vsel %vm2990, %v2764, -inf
      %v3013 = vrot.slane %v3012, 4
      %v3014 = vmax.f32 %v3012, %v3013
      %v3015 = vrot.slane %v3014, 2
      %v3016 = vmax.f32 %v3014, %v3015
      %v3017 = vrot.slane %v3016, 1
      %v3018 = vmax.f32 %v3016, %v3017
      %v3019 = vsel %vm2990, %v2766, -inf
      %v3020 = vrot.slane %v3019, 4
      %v3021 = vmax.f32 %v3019, %v3020
      %v3022 = vrot.slane %v3021, 2
      %v3023 = vmax.f32 %v3021, %v3022
      %v3024 = vrot.slane %v3023, 1
      %v3025 = vmax.f32 %v3023, %v3024
      %v3026 = vsel %vm2990, %v2768, -inf
      %v3027 = vrot.slane %v3026, 4
      %v3028 = vmax.f32 %v3026, %v3027
      %v3029 = vrot.slane %v3028, 2
      %v3030 = vmax.f32 %v3028, %v3029
      %v3031 = vrot.slane %v3030, 1
      %v3032 = vmax.f32 %v3030, %v3031
      %v3033 = vsel %vm2990, %v2770, -inf
      %v3034 = vrot.slane %v3033, 4
      %v3035 = vmax.f32 %v3033, %v3034
      %v3036 = vrot.slane %v3035, 2
      %v3037 = vmax.f32 %v3035, %v3036
      %v3038 = vrot.slane %v3037, 1
      %v3039 = vmax.f32 %v3037, %v3038
      %v3040 = vsel %vm2990, %v2772, -inf
      %v3041 = vrot.slane %v3040, 4
      %v3042 = vmax.f32 %v3040, %v3041
      %v3043 = vrot.slane %v3042, 2
      %v3044 = vmax.f32 %v3042, %v3043
      %v3045 = vrot.slane %v3044, 1
      %v3046 = vmax.f32 %v3044, %v3045
      %3047 = vst [vmem:[%s2851 + $0x4] sm:$0x1] %v2997
      %3048 = vst [vmem:[%s2851 + $0x14] sm:$0x1] %v3004
      %3049 = vst [vmem:[%s2851 + $0x24] sm:$0x1] %v3011
      %3050 = vst [vmem:[%s2851 + $0x34] sm:$0x1] %v3018
      %3051 = vst [vmem:[%s2851 + $0x44] sm:$0x1] %v3025
      %3052 = vst [vmem:[%s2851 + $0x54] sm:$0x1] %v3032
      %3053 = vst [vmem:[%s2851 + $0x64] sm:$0x1] %v3039
      %3054 = vst [vmem:[%s2851 + $0x74] sm:$0x1] %v3046
      %v3055 = vsel %vm2794, %v2759, -inf
      %v3056 = vrot.slane %v3055, 4
      %v3057 = vmax.f32 %v3055, %v3056
      %v3058 = vrot.slane %v3057, 2
      %v3059 = vmax.f32 %v3057, %v3058
      %v3060 = vrot.slane %v3059, 1
      %v3061 = vmax.f32 %v3059, %v3060
      %v3062 = vsel %vm2794, %v2761, -inf
      %v3063 = vrot.slane %v3062, 4
      %v3064 = vmax.f32 %v3062, %v3063
      %v3065 = vrot.slane %v3064, 2
      %v3066 = vmax.f32 %v3064, %v3065
      %v3067 = vrot.slane %v3066, 1
      %v3068 = vmax.f32 %v3066, %v3067
      %v3069 = vsel %vm2794, %v2763, -inf
      %v3070 = vrot.slane %v3069, 4
      %v3071 = vmax.f32 %v3069, %v3070
      %v3072 = vrot.slane %v3071, 2
      %v3073 = vmax.f32 %v3071, %v3072
      %v3074 = vrot.slane %v3073, 1
      %v3075 = vmax.f32 %v3073, %v3074
      %v3076 = vsel %vm2794, %v2765, -inf
      %v3077 = vrot.slane %v3076, 4
      %v3078 = vmax.f32 %v3076, %v3077
      %v3079 = vrot.slane %v3078, 2
      %v3080 = vmax.f32 %v3078, %v3079
      %v3081 = vrot.slane %v3080, 1
      %v3082 = vmax.f32 %v3080, %v3081
      %v3083 = vsel %vm2794, %v2767, -inf
      %v3084 = vrot.slane %v3083, 4
      %v3085 = vmax.f32 %v3083, %v3084
      %v3086 = vrot.slane %v3085, 2
      %v3087 = vmax.f32 %v3085, %v3086
      %v3088 = vrot.slane %v3087, 1
      %v3089 = vmax.f32 %v3087, %v3088
      %v3090 = vsel %vm2794, %v2769, -inf
      %v3091 = vrot.slane %v3090, 4
      %v3092 = vmax.f32 %v3090, %v3091
      %v3093 = vrot.slane %v3092, 2
      %v3094 = vmax.f32 %v3092, %v3093
      %v3095 = vrot.slane %v3094, 1
      %v3096 = vmax.f32 %v3094, %v3095
      %v3097 = vsel %vm2794, %v2771, -inf
      %v3098 = vrot.slane %v3097, 4
      %v3099 = vmax.f32 %v3097, %v3098
      %v3100 = vrot.slane %v3099, 2
      %v3101 = vmax.f32 %v3099, %v3100
      %v3102 = vrot.slane %v3101, 1
      %v3103 = vmax.f32 %v3101, %v3102
      %v3104 = vsel %vm2794, %v2773, -inf
      %v3105 = vrot.slane %v3104, 4
      %v3106 = vmax.f32 %v3104, %v3105
      %v3107 = vrot.slane %v3106, 2
      %v3108 = vmax.f32 %v3106, %v3107
      %v3109 = vrot.slane %v3108, 1
      %v3110 = vmax.f32 %v3108, %v3109
      %3111 = vst [vmem:[%s2851 + $0x5] sm:$0x1] %v3061
      %3112 = vst [vmem:[%s2851 + $0x15] sm:$0x1] %v3068
      %3113 = vst [vmem:[%s2851 + $0x25] sm:$0x1] %v3075
      %3114 = vst [vmem:[%s2851 + $0x35] sm:$0x1] %v3082
      %3115 = vst [vmem:[%s2851 + $0x45] sm:$0x1] %v3089
      %3116 = vst [vmem:[%s2851 + $0x55] sm:$0x1] %v3096
      %3117 = vst [vmem:[%s2851 + $0x65] sm:$0x1] %v3103
      %3118 = vst [vmem:[%s2851 + $0x75] sm:$0x1] %v3110
      %v3119 = vsel %vm2860, %v2759, -inf
      %v3120 = vrot.slane %v3119, 4
      %v3121 = vmax.f32 %v3119, %v3120
      %v3122 = vrot.slane %v3121, 2
      %v3123 = vmax.f32 %v3121, %v3122
      %v3124 = vrot.slane %v3123, 1
      %v3125 = vmax.f32 %v3123, %v3124
      %v3126 = vsel %vm2860, %v2761, -inf
      %v3127 = vrot.slane %v3126, 4
      %v3128 = vmax.f32 %v3126, %v3127
      %v3129 = vrot.slane %v3128, 2
      %v3130 = vmax.f32 %v3128, %v3129
      %v3131 = vrot.slane %v3130, 1
      %v3132 = vmax.f32 %v3130, %v3131
      %v3133 = vsel %vm2860, %v2763, -inf
      %v3134 = vrot.slane %v3133, 4
      %v3135 = vmax.f32 %v3133, %v3134
      %v3136 = vrot.slane %v3135, 2
      %v3137 = vmax.f32 %v3135, %v3136
      %v3138 = vrot.slane %v3137, 1
      %v3139 = vmax.f32 %v3137, %v3138
      %v3140 = vsel %vm2860, %v2765, -inf
      %v3141 = vrot.slane %v3140, 4
      %v3142 = vmax.f32 %v3140, %v3141
      %v3143 = vrot.slane %v3142, 2
      %v3144 = vmax.f32 %v3142, %v3143
      %v3145 = vrot.slane %v3144, 1
      %v3146 = vmax.f32 %v3144, %v3145
      %v3147 = vsel %vm2860, %v2767, -inf
      %v3148 = vrot.slane %v3147, 4
      %v3149 = vmax.f32 %v3147, %v3148
      %v3150 = vrot.slane %v3149, 2
      %v3151 = vmax.f32 %v3149, %v3150
      %v3152 = vrot.slane %v3151, 1
      %v3153 = vmax.f32 %v3151, %v3152
      %v3154 = vsel %vm2860, %v2769, -inf
      %v3155 = vrot.slane %v3154, 4
      %v3156 = vmax.f32 %v3154, %v3155
      %v3157 = vrot.slane %v3156, 2
      %v3158 = vmax.f32 %v3156, %v3157
      %v3159 = vrot.slane %v3158, 1
      %v3160 = vmax.f32 %v3158, %v3159
      %v3161 = vsel %vm2860, %v2771, -inf
      %v3162 = vrot.slane %v3161, 4
      %v3163 = vmax.f32 %v3161, %v3162
      %v3164 = vrot.slane %v3163, 2
      %v3165 = vmax.f32 %v3163, %v3164
      %v3166 = vrot.slane %v3165, 1
      %v3167 = vmax.f32 %v3165, %v3166
      %v3168 = vsel %vm2860, %v2773, -inf
      %v3169 = vrot.slane %v3168, 4
      %v3170 = vmax.f32 %v3168, %v3169
      %v3171 = vrot.slane %v3170, 2
      %v3172 = vmax.f32 %v3170, %v3171
      %v3173 = vrot.slane %v3172, 1
      %v3174 = vmax.f32 %v3172, %v3173
      %3175 = vst [vmem:[%s2851 + $0x6] sm:$0x1] %v3125
      %3176 = vst [vmem:[%s2851 + $0x16] sm:$0x1] %v3132
      %3177 = vst [vmem:[%s2851 + $0x26] sm:$0x1] %v3139
      %3178 = vst [vmem:[%s2851 + $0x36] sm:$0x1] %v3146
      %3179 = vst [vmem:[%s2851 + $0x46] sm:$0x1] %v3153
      %3180 = vst [vmem:[%s2851 + $0x56] sm:$0x1] %v3160
      %3181 = vst [vmem:[%s2851 + $0x66] sm:$0x1] %v3167
      %3182 = vst [vmem:[%s2851 + $0x76] sm:$0x1] %v3174
      %v3183 = vsel %vm2925, %v2759, -inf
      %v3184 = vrot.slane %v3183, 4
      %v3185 = vmax.f32 %v3183, %v3184
      %v3186 = vrot.slane %v3185, 2
      %v3187 = vmax.f32 %v3185, %v3186
      %v3188 = vrot.slane %v3187, 1
      %v3189 = vmax.f32 %v3187, %v3188
      %v3190 = vsel %vm2925, %v2761, -inf
      %v3191 = vrot.slane %v3190, 4
      %v3192 = vmax.f32 %v3190, %v3191
      %v3193 = vrot.slane %v3192, 2
      %v3194 = vmax.f32 %v3192, %v3193
      %v3195 = vrot.slane %v3194, 1
      %v3196 = vmax.f32 %v3194, %v3195
      %v3197 = vsel %vm2925, %v2763, -inf
      %v3198 = vrot.slane %v3197, 4
      %v3199 = vmax.f32 %v3197, %v3198
      %v3200 = vrot.slane %v3199, 2
      %v3201 = vmax.f32 %v3199, %v3200
      %v3202 = vrot.slane %v3201, 1
      %v3203 = vmax.f32 %v3201, %v3202
      %v3204 = vsel %vm2925, %v2765, -inf
      %v3205 = vrot.slane %v3204, 4
      %v3206 = vmax.f32 %v3204, %v3205
      %v3207 = vrot.slane %v3206, 2
      %v3208 = vmax.f32 %v3206, %v3207
      %v3209 = vrot.slane %v3208, 1
      %v3210 = vmax.f32 %v3208, %v3209
      %v3211 = vsel %vm2925, %v2767, -inf
      %v3212 = vrot.slane %v3211, 4
      %v3213 = vmax.f32 %v3211, %v3212
      %v3214 = vrot.slane %v3213, 2
      %v3215 = vmax.f32 %v3213, %v3214
      %v3216 = vrot.slane %v3215, 1
      %v3217 = vmax.f32 %v3215, %v3216
      %v3218 = vsel %vm2925, %v2769, -inf
      %v3219 = vrot.slane %v3218, 4
      %v3220 = vmax.f32 %v3218, %v3219
      %v3221 = vrot.slane %v3220, 2
      %v3222 = vmax.f32 %v3220, %v3221
      %v3223 = vrot.slane %v3222, 1
      %v3224 = vmax.f32 %v3222, %v3223
      %v3225 = vsel %vm2925, %v2771, -inf
      %v3226 = vrot.slane %v3225, 4
      %v3227 = vmax.f32 %v3225, %v3226
      %v3228 = vrot.slane %v3227, 2
      %v3229 = vmax.f32 %v3227, %v3228
      %v3230 = vrot.slane %v3229, 1
      %v3231 = vmax.f32 %v3229, %v3230
      %v3232 = vsel %vm2925, %v2773, -inf
      %v3233 = vrot.slane %v3232, 4
      %v3234 = vmax.f32 %v3232, %v3233
      %v3235 = vrot.slane %v3234, 2
      %v3236 = vmax.f32 %v3234, %v3235
      %v3237 = vrot.slane %v3236, 1
      %v3238 = vmax.f32 %v3236, %v3237
      %3239 = vst [vmem:[%s2851 + $0x7] sm:$0x1] %v3189
      %3240 = vst [vmem:[%s2851 + $0x17] sm:$0x1] %v3196
      %3241 = vst [vmem:[%s2851 + $0x27] sm:$0x1] %v3203
      %3242 = vst [vmem:[%s2851 + $0x37] sm:$0x1] %v3210
      %3243 = vst [vmem:[%s2851 + $0x47] sm:$0x1] %v3217
      %3244 = vst [vmem:[%s2851 + $0x57] sm:$0x1] %v3224
      %3245 = vst [vmem:[%s2851 + $0x67] sm:$0x1] %v3231
      %3246 = vst [vmem:[%s2851 + $0x77] sm:$0x1] %v3238
      %v3247 = vsel %vm2990, %v2759, -inf
      %v3248 = vrot.slane %v3247, 4
      %v3249 = vmax.f32 %v3247, %v3248
      %v3250 = vrot.slane %v3249, 2
      %v3251 = vmax.f32 %v3249, %v3250
      %v3252 = vrot.slane %v3251, 1
      %v3253 = vmax.f32 %v3251, %v3252
      %v3254 = vsel %vm2990, %v2761, -inf
      %v3255 = vrot.slane %v3254, 4
      %v3256 = vmax.f32 %v3254, %v3255
      %v3257 = vrot.slane %v3256, 2
      %v3258 = vmax.f32 %v3256, %v3257
      %v3259 = vrot.slane %v3258, 1
      %v3260 = vmax.f32 %v3258, %v3259
      %v3261 = vsel %vm2990, %v2763, -inf
      %v3262 = vrot.slane %v3261, 4
      %v3263 = vmax.f32 %v3261, %v3262
      %v3264 = vrot.slane %v3263, 2
      %v3265 = vmax.f32 %v3263, %v3264
      %v3266 = vrot.slane %v3265, 1
      %v3267 = vmax.f32 %v3265, %v3266
      %v3268 = vsel %vm2990, %v2765, -inf
      %v3269 = vrot.slane %v3268, 4
      %v3270 = vmax.f32 %v3268, %v3269
      %v3271 = vrot.slane %v3270, 2
      %v3272 = vmax.f32 %v3270, %v3271
      %v3273 = vrot.slane %v3272, 1
      %v3274 = vmax.f32 %v3272, %v3273
      %v3275 = vsel %vm2990, %v2767, -inf
      %v3276 = vrot.slane %v3275, 4
      %v3277 = vmax.f32 %v3275, %v3276
      %v3278 = vrot.slane %v3277, 2
      %v3279 = vmax.f32 %v3277, %v3278
      %v3280 = vrot.slane %v3279, 1
      %v3281 = vmax.f32 %v3279, %v3280
      %v3282 = vsel %vm2990, %v2769, -inf
      %v3283 = vrot.slane %v3282, 4
      %v3284 = vmax.f32 %v3282, %v3283
      %v3285 = vrot.slane %v3284, 2
      %v3286 = vmax.f32 %v3284, %v3285
      %v3287 = vrot.slane %v3286, 1
      %v3288 = vmax.f32 %v3286, %v3287
      %v3289 = vsel %vm2990, %v2771, -inf
      %v3290 = vrot.slane %v3289, 4
      %v3291 = vmax.f32 %v3289, %v3290
      %v3292 = vrot.slane %v3291, 2
      %v3293 = vmax.f32 %v3291, %v3292
      %v3294 = vrot.slane %v3293, 1
      %v3295 = vmax.f32 %v3293, %v3294
      %v3296 = vsel %vm2990, %v2773, -inf
      %v3297 = vrot.slane %v3296, 4
      %v3298 = vmax.f32 %v3296, %v3297
      %v3299 = vrot.slane %v3298, 2
      %v3300 = vmax.f32 %v3298, %v3299
      %v3301 = vrot.slane %v3300, 1
      %v3302 = vmax.f32 %v3300, %v3301
      %3303 = vst [vmem:[%s2851 + $0x8] sm:$0x1] %v3253
      %3304 = vst [vmem:[%s2851 + $0x18] sm:$0x1] %v3260
      %3305 = vst [vmem:[%s2851 + $0x28] sm:$0x1] %v3267
      %3306 = vst [vmem:[%s2851 + $0x38] sm:$0x1] %v3274
      %3307 = vst [vmem:[%s2851 + $0x48] sm:$0x1] %v3281
      %3308 = vst [vmem:[%s2851 + $0x58] sm:$0x1] %v3288
      %3309 = vst [vmem:[%s2851 + $0x68] sm:$0x1] %v3295
      %3310 = vst [vmem:[%s2851 + $0x78] sm:$0x1] %v3302
      %v3311 = vld [vmem:[#allocation2] sm:$0xff]
      %v3312 = vld [vmem:[#allocation2 + $0x10] sm:$0xff]
      %v3313 = vld [vmem:[#allocation2 + $0x20] sm:$0xff]
      %v3314 = vld [vmem:[#allocation2 + $0x30] sm:$0xff]
      %v3315 = vld [vmem:[#allocation2 + $0x40] sm:$0xff]
      %v3316 = vld [vmem:[#allocation2 + $0x50] sm:$0xff]
      %v3317 = vld [vmem:[#allocation2 + $0x60] sm:$0xff]
      %v3318 = vld [vmem:[#allocation2 + $0x70] sm:$0xff]
      %v3319 = vpack.c.bf16 %v3312, %v3311
      %v3320 = vpack.c.bf16 %v3314, %v3313
      %v3321 = vpack.c.bf16 %v3316, %v3315
      %v3322 = vpack.c.bf16 %v3318, %v3317
      %v3323 = vld [vmem:[%s3] sm:$0xf]
      %v3324 = vld [vmem:[%s3 + $0x4] sm:$0xf]
      %v3325 = vld [vmem:[%s3 + $0x8] sm:$0xf]
      %v3326 = vld [vmem:[%s3 + $0xc] sm:$0xf]
      %v3327 = vld [vmem:[%s3 + $0x10] sm:$0xf]
      %v3328 = vld [vmem:[%s3 + $0x14] sm:$0xf]
      %v3329 = vld [vmem:[%s3 + $0x18] sm:$0xf]
      %v3330 = vld [vmem:[%s3 + $0x1c] sm:$0xf]
      %v3331 = vld [vmem:[%s3 + $0x20] sm:$0xf]
      %v3332 = vld [vmem:[%s3 + $0x24] sm:$0xf]
      %v3333 = vld [vmem:[%s3 + $0x28] sm:$0xf]
      %v3334 = vld [vmem:[%s3 + $0x2c] sm:$0xf]
      %v3335 = vld [vmem:[%s3 + $0x30] sm:$0xf]
      %v3336 = vld [vmem:[%s3 + $0x34] sm:$0xf]
      %v3337 = vld [vmem:[%s3 + $0x38] sm:$0xf]
      %v3338 = vld [vmem:[%s3 + $0x3c] sm:$0xf]
      %v3339 = vld [vmem:[#allocation2 + $0x1] sm:$0xff]
      %v3340 = vld [vmem:[#allocation2 + $0x11] sm:$0xff]
      %v3341 = vld [vmem:[#allocation2 + $0x21] sm:$0xff]
      %v3342 = vld [vmem:[#allocation2 + $0x31] sm:$0xff]
      %v3343 = vld [vmem:[#allocation2 + $0x41] sm:$0xff]
      %v3344 = vld [vmem:[#allocation2 + $0x51] sm:$0xff]
      %v3345 = vld [vmem:[#allocation2 + $0x61] sm:$0xff]
      %v3346 = vld [vmem:[#allocation2 + $0x71] sm:$0xff]
      %v3347 = vpack.c.bf16 %v3340, %v3339
      %v3348 = vpack.c.bf16 %v3342, %v3341
      %v3349 = vpack.c.bf16 %v3344, %v3343
      %v3350 = vpack.c.bf16 %v3346, %v3345
      %s3351 = scalar_lea.vmem %s3, 64
      %v3352 = vld [vmem:[%s3351] sm:$0xf]
      %v3353 = vld [vmem:[%s3351 + $0x4] sm:$0xf]
      %v3354 = vld [vmem:[%s3351 + $0x8] sm:$0xf]
      %v3355 = vld [vmem:[%s3351 + $0xc] sm:$0xf]
      %v3356 = vld [vmem:[%s3351 + $0x10] sm:$0xf]
      %v3357 = vld [vmem:[%s3351 + $0x14] sm:$0xf]
      %v3358 = vld [vmem:[%s3351 + $0x18] sm:$0xf]
      %v3359 = vld [vmem:[%s3351 + $0x1c] sm:$0xf]
      %v3360 = vld [vmem:[%s3351 + $0x20] sm:$0xf]
      %v3361 = vld [vmem:[%s3351 + $0x24] sm:$0xf]
      %v3362 = vld [vmem:[%s3351 + $0x28] sm:$0xf]
      %v3363 = vld [vmem:[%s3351 + $0x2c] sm:$0xf]
      %v3364 = vld [vmem:[%s3351 + $0x30] sm:$0xf]
      %v3365 = vld [vmem:[%s3351 + $0x34] sm:$0xf]
      %v3366 = vld [vmem:[%s3351 + $0x38] sm:$0xf]
      %v3367 = vld [vmem:[%s3351 + $0x3c] sm:$0xf]
      %v3384 = vunpack.c.l.b16 %v3352
      %v3385 = vunpack.c.l.b16 %v3353
      %v3386 = vunpack.c.l.b16 %v3354
      %v3387 = vunpack.c.l.b16 %v3355
      %v3388 = vunpack.c.l.b16 %v3356
      %v3389 = vunpack.c.l.b16 %v3357
      %v3390 = vunpack.c.l.b16 %v3358
      %v3391 = vunpack.c.l.b16 %v3359
      %v3392 = vunpack.c.l.b16 %v3360
      %v3393 = vunpack.c.l.b16 %v3361
      %v3394 = vunpack.c.l.b16 %v3362
      %v3395 = vunpack.c.l.b16 %v3363
      %v3396 = vunpack.c.l.b16 %v3364
      %v3397 = vunpack.c.l.b16 %v3365
      %v3398 = vunpack.c.l.b16 %v3366
      %v3399 = vunpack.c.l.b16 %v3367
      %v3400 = vpack.c.b16 %v3385, %v3384
      %v3401 = vpack.c.b16 %v3387, %v3386
      %v3402 = vpack.c.b16 %v3389, %v3388
      %v3403 = vpack.c.b16 %v3391, %v3390
      %v3404 = vpack.c.b16 %v3393, %v3392
      %v3405 = vpack.c.b16 %v3395, %v3394
      %v3406 = vpack.c.b16 %v3397, %v3396
      %v3407 = vpack.c.b16 %v3399, %v3398
      %3416 = vmatprep.subr.bf16.mxu0 0
      %3417 = vmatpush1.bf16.msra.mxu0 %v3400
      %3418 = vmatprep.subr.bf16.mxu0 0
      %3419 = vmatpush1.bf16.msra.mxu0 %v3401
      %3420 = vmatprep.subr.bf16.mxu0 0
      %3421 = vmatpush1.bf16.msra.mxu0 %v3402
      %3422 = vmatprep.subr.bf16.mxu0 0
      %3423 = vmatpush1.bf16.msra.mxu0 %v3403
      %3424 = vmatprep.subr.bf16.mxu0 0
      %3425 = vmatpush1.bf16.msra.mxu0 %v3404
      %3426 = vmatprep.subr.bf16.mxu0 0
      %3427 = vmatpush1.bf16.msra.mxu0 %v3405
      %3428 = vmatprep.subr.bf16.mxu0 0
      %3429 = vmatpush1.bf16.msra.mxu0 %v3406
      %3430 = vmatprep.subr.bf16.mxu0 0
      %3431 = vmatpush1.bf16.msra.mxu0 %v3407
      %3432 = vmatprep.subr.bf16.mxu0 0
      %3433 = vmatpush1.bf16.msra.mxu0 0
      %3434 = vmatprep.subr.bf16.mxu0 0
      %3435 = vmatpush1.bf16.msra.mxu0 0
      %3436 = vmatprep.subr.bf16.mxu0 0
      %3437 = vmatpush1.bf16.msra.mxu0 0
      %3438 = vmatprep.subr.bf16.mxu0 0
      %3439 = vmatpush1.bf16.msra.mxu0 0
      %3440 = vmatprep.subr.bf16.mxu0 0
      %3441 = vmatpush1.bf16.msra.mxu0 0
      %3442 = vmatprep.subr.bf16.mxu0 0
      %3443 = vmatpush1.bf16.msra.mxu0 0
      %3444 = vmatprep.subr.bf16.mxu0 0
      %3445 = vmatpush1.bf16.msra.mxu0 0
      %3446 = vmatprep.subr.bf16.mxu0 0
      %3447 = vmatpush1.bf16.msra.mxu0 0
      %3448 = vmatprep.mubr.bf16.mxu0 0
      %3449 = vmatmul.mubr.bf16.gmra.mrb[0].mxu0 %v3347
      %v3450 = vpop.f32.mrb[0].mxu0
      %v3451 = vadd.f32 0.0, %v3450
      %v3452 = vpop.f32.mrb[0].mxu0
      %v3453 = vpop.f32.mrb[0].mxu0
      %v3454 = vadd.f32 0.0, %v3453
      %v3455 = vpop.f32.mrb[0].mxu0
      %3456 = vmatprep.mubr.bf16.mxu0 0
      %3457 = vmatmul.mubr.bf16.gmra.mrb[0].mxu0 %v3348
      %v3458 = vpop.f32.mrb[0].mxu0
      %v3459 = vadd.f32 0.0, %v3458
      %v3460 = vpop.f32.mrb[0].mxu0
      %v3461 = vpop.f32.mrb[0].mxu0
      %v3462 = vadd.f32 0.0, %v3461
      %v3463 = vpop.f32.mrb[0].mxu0
      %3464 = vmatprep.mubr.bf16.mxu0 0
      %3465 = vmatmul.mubr.bf16.gmra.mrb[0].mxu0 %v3349
      %v3466 = vpop.f32.mrb[0].mxu0
      %v3467 = vadd.f32 0.0, %v3466
      %v3468 = vpop.f32.mrb[0].mxu0
      %v3469 = vpop.f32.mrb[0].mxu0
      %v3470 = vadd.f32 0.0, %v3469
      %v3471 = vpop.f32.mrb[0].mxu0
      %3472 = vmatprep.mubr.bf16.mxu0 0
      %3473 = vmatmul.mubr.bf16.gmra.mrb[0].mxu0 %v3350
      %v3474 = vpop.f32.mrb[0].mxu0
      %v3475 = vadd.f32 0.0, %v3474
      %v3476 = vpop.f32.mrb[0].mxu0
      %v3477 = vpop.f32.mrb[0].mxu0
      %v3478 = vadd.f32 0.0, %v3477
      %v3479 = vpop.f32.mrb[0].mxu0
      %3480 = vdwg.mxu0
      %v3497 = vunpack.c.l.b16 %v3323
      %v3498 = vunpack.c.l.b16 %v3324
      %v3499 = vunpack.c.l.b16 %v3325
      %v3500 = vunpack.c.l.b16 %v3326
      %v3501 = vunpack.c.l.b16 %v3327
      %v3502 = vunpack.c.l.b16 %v3328
      %v3503 = vunpack.c.l.b16 %v3329
      %v3504 = vunpack.c.l.b16 %v3330
      %v3505 = vunpack.c.l.b16 %v3331
      %v3506 = vunpack.c.l.b16 %v3332
      %v3507 = vunpack.c.l.b16 %v3333
      %v3508 = vunpack.c.l.b16 %v3334
      %v3509 = vunpack.c.l.b16 %v3335
      %v3510 = vunpack.c.l.b16 %v3336
      %v3511 = vunpack.c.l.b16 %v3337
      %v3512 = vunpack.c.l.b16 %v3338
      %v3513 = vpack.c.b16 %v3498, %v3497
      %v3514 = vpack.c.b16 %v3500, %v3499
      %v3515 = vpack.c.b16 %v3502, %v3501
      %v3516 = vpack.c.b16 %v3504, %v3503
      %v3517 = vpack.c.b16 %v3506, %v3505
      %v3518 = vpack.c.b16 %v3508, %v3507
      %v3519 = vpack.c.b16 %v3510, %v3509
      %v3520 = vpack.c.b16 %v3512, %v3511
      %3529 = vmatprep.subr.bf16.mxu0 0
      %3530 = vmatpush1.bf16.msra.mxu0 %v3513
      %3531 = vmatprep.subr.bf16.mxu0 0
      %3532 = vmatpush1.bf16.msra.mxu0 %v3514
      %3533 = vmatprep.subr.bf16.mxu0 0
      %3534 = vmatpush1.bf16.msra.mxu0 %v3515
      %3535 = vmatprep.subr.bf16.mxu0 0
      %3536 = vmatpush1.bf16.msra.mxu0 %v3516
      %3537 = vmatprep.subr.bf16.mxu0 0
      %3538 = vmatpush1.bf16.msra.mxu0 %v3517
      %3539 = vmatprep.subr.bf16.mxu0 0
      %3540 = vmatpush1.bf16.msra.mxu0 %v3518
      %3541 = vmatprep.subr.bf16.mxu0 0
      %3542 = vmatpush1.bf16.msra.mxu0 %v3519
      %3543 = vmatprep.subr.bf16.mxu0 0
      %3544 = vmatpush1.bf16.msra.mxu0 %v3520
      %3545 = vmatprep.subr.bf16.mxu0 0
      %3546 = vmatpush1.bf16.msra.mxu0 0
      %3547 = vmatprep.subr.bf16.mxu0 0
      %3548 = vmatpush1.bf16.msra.mxu0 0
      %3549 = vmatprep.subr.bf16.mxu0 0
      %3550 = vmatpush1.bf16.msra.mxu0 0
      %3551 = vmatprep.subr.bf16.mxu0 0
      %3552 = vmatpush1.bf16.msra.mxu0 0
      %3553 = vmatprep.subr.bf16.mxu0 0
      %3554 = vmatpush1.bf16.msra.mxu0 0
      %3555 = vmatprep.subr.bf16.mxu0 0
      %3556 = vmatpush1.bf16.msra.mxu0 0
      %3557 = vmatprep.subr.bf16.mxu0 0
      %3558 = vmatpush1.bf16.msra.mxu0 0
      %3559 = vmatprep.subr.bf16.mxu0 0
      %3560 = vmatpush1.bf16.msra.mxu0 0
      %3561 = vmatprep.mubr.bf16.mxu0 0
      %3562 = vmatmul.mubr.bf16.gmra.mrb[0].mxu0 %v3319
      %v3563 = vpop.f32.mrb[0].mxu0
      %v3564 = vadd.f32 %v3451, %v3563
      %v3565 = vpop.f32.mrb[0].mxu0
      %v3566 = vpop.f32.mrb[0].mxu0
      %v3567 = vadd.f32 %v3454, %v3566
      %v3568 = vpop.f32.mrb[0].mxu0
      %3569 = vmatprep.mubr.bf16.mxu0 0
      %3570 = vmatmul.mubr.bf16.gmra.mrb[0].mxu0 %v3320
      %v3571 = vpop.f32.mrb[0].mxu0
      %v3572 = vadd.f32 %v3459, %v3571
      %v3573 = vpop.f32.mrb[0].mxu0
      %v3574 = vpop.f32.mrb[0].mxu0
      %v3575 = vadd.f32 %v3462, %v3574
      %v3576 = vpop.f32.mrb[0].mxu0
      %3577 = vmatprep.mubr.bf16.mxu0 0
      %3578 = vmatmul.mubr.bf16.gmra.mrb[0].mxu0 %v3321
      %v3579 = vpop.f32.mrb[0].mxu0
      %v3580 = vadd.f32 %v3467, %v3579
      %v3581 = vpop.f32.mrb[0].mxu0
      %v3582 = vpop.f32.mrb[0].mxu0
      %v3583 = vadd.f32 %v3470, %v3582
      %v3584 = vpop.f32.mrb[0].mxu0
      %3585 = vmatprep.mubr.bf16.mxu0 0
      %3586 = vmatmul.mubr.bf16.gmra.mrb[0].mxu0 %v3322
      %v3587 = vpop.f32.mrb[0].mxu0
      %v3588 = vadd.f32 %v3475, %v3587
      %v3589 = vpop.f32.mrb[0].mxu0
      %v3590 = vpop.f32.mrb[0].mxu0
      %v3591 = vadd.f32 %v3478, %v3590
      %v3592 = vpop.f32.mrb[0].mxu0
      %3593 = vdwg.mxu0
      %v3594 = vld [vmem:[#allocation2 + $0x2] sm:$0xff]
      %v3595 = vld [vmem:[#allocation2 + $0x12] sm:$0xff]
      %v3596 = vld [vmem:[#allocation2 + $0x22] sm:$0xff]
      %v3597 = vld [vmem:[#allocation2 + $0x32] sm:$0xff]
      %v3598 = vld [vmem:[#allocation2 + $0x42] sm:$0xff]
      %v3599 = vld [vmem:[#allocation2 + $0x52] sm:$0xff]
      %v3600 = vld [vmem:[#allocation2 + $0x62] sm:$0xff]
      %v3601 = vld [vmem:[#allocation2 + $0x72] sm:$0xff]
      %v3602 = vpack.c.bf16 %v3595, %v3594
      %v3603 = vpack.c.bf16 %v3597, %v3596
      %v3604 = vpack.c.bf16 %v3599, %v3598
      %v3605 = vpack.c.bf16 %v3601, %v3600
      %s3606 = scalar_lea.vmem %s3, 128
      %v3607 = vld [vmem:[%s3606] sm:$0xf]
      %v3608 = vld [vmem:[%s3606 + $0x4] sm:$0xf]
      %v3609 = vld [vmem:[%s3606 + $0x8] sm:$0xf]
      %v3610 = vld [vmem:[%s3606 + $0xc] sm:$0xf]
      %v3611 = vld [vmem:[%s3606 + $0x10] sm:$0xf]
      %v3612 = vld [vmem:[%s3606 + $0x14] sm:$0xf]
      %v3613 = vld [vmem:[%s3606 + $0x18] sm:$0xf]
      %v3614 = vld [vmem:[%s3606 + $0x1c] sm:$0xf]
      %v3615 = vld [vmem:[%s3606 + $0x20] sm:$0xf]
      %v3616 = vld [vmem:[%s3606 + $0x24] sm:$0xf]
      %v3617 = vld [vmem:[%s3606 + $0x28] sm:$0xf]
      %v3618 = vld [vmem:[%s3606 + $0x2c] sm:$0xf]
      %v3619 = vld [vmem:[%s3606 + $0x30] sm:$0xf]
      %v3620 = vld [vmem:[%s3606 + $0x34] sm:$0xf]
      %v3621 = vld [vmem:[%s3606 + $0x38] sm:$0xf]
      %v3622 = vld [vmem:[%s3606 + $0x3c] sm:$0xf]
      %v3639 = vunpack.c.l.b16 %v3607
      %v3640 = vunpack.c.l.b16 %v3608
      %v3641 = vunpack.c.l.b16 %v3609
      %v3642 = vunpack.c.l.b16 %v3610
      %v3643 = vunpack.c.l.b16 %v3611
      %v3644 = vunpack.c.l.b16 %v3612
      %v3645 = vunpack.c.l.b16 %v3613
      %v3646 = vunpack.c.l.b16 %v3614
      %v3647 = vunpack.c.l.b16 %v3615
      %v3648 = vunpack.c.l.b16 %v3616
      %v3649 = vunpack.c.l.b16 %v3617
      %v3650 = vunpack.c.l.b16 %v3618
      %v3651 = vunpack.c.l.b16 %v3619
      %v3652 = vunpack.c.l.b16 %v3620
      %v3653 = vunpack.c.l.b16 %v3621
      %v3654 = vunpack.c.l.b16 %v3622
      %v3655 = vpack.c.b16 %v3640, %v3639
      %v3656 = vpack.c.b16 %v3642, %v3641
      %v3657 = vpack.c.b16 %v3644, %v3643
      %v3658 = vpack.c.b16 %v3646, %v3645
      %v3659 = vpack.c.b16 %v3648, %v3647
      %v3660 = vpack.c.b16 %v3650, %v3649
      %v3661 = vpack.c.b16 %v3652, %v3651
      %v3662 = vpack.c.b16 %v3654, %v3653
      %3671 = vmatprep.subr.bf16.mxu0 0
      %3672 = vmatpush1.bf16.msra.mxu0 %v3655
      %3673 = vmatprep.subr.bf16.mxu0 0
      %3674 = vmatpush1.bf16.msra.mxu0 %v3656
      %3675 = vmatprep.subr.bf16.mxu0 0
      %3676 = vmatpush1.bf16.msra.mxu0 %v3657
      %3677 = vmatprep.subr.bf16.mxu0 0
      %3678 = vmatpush1.bf16.msra.mxu0 %v3658
      %3679 = vmatprep.subr.bf16.mxu0 0
      %3680 = vmatpush1.bf16.msra.mxu0 %v3659
      %3681 = vmatprep.subr.bf16.mxu0 0
      %3682 = vmatpush1.bf16.msra.mxu0 %v3660
      %3683 = vmatprep.subr.bf16.mxu0 0
      %3684 = vmatpush1.bf16.msra.mxu0 %v3661
      %3685 = vmatprep.subr.bf16.mxu0 0
      %3686 = vmatpush1.bf16.msra.mxu0 %v3662
      %3687 = vmatprep.subr.bf16.mxu0 0
      %3688 = vmatpush1.bf16.msra.mxu0 0
      %3689 = vmatprep.subr.bf16.mxu0 0
      %3690 = vmatpush1.bf16.msra.mxu0 0
      %3691 = vmatprep.subr.bf16.mxu0 0
      %3692 = vmatpush1.bf16.msra.mxu0 0
      %3693 = vmatprep.subr.bf16.mxu0 0
      %3694 = vmatpush1.bf16.msra.mxu0 0
      %3695 = vmatprep.subr.bf16.mxu0 0
      %3696 = vmatpush1.bf16.msra.mxu0 0
      %3697 = vmatprep.subr.bf16.mxu0 0
      %3698 = vmatpush1.bf16.msra.mxu0 0
      %3699 = vmatprep.subr.bf16.mxu0 0
      %3700 = vmatpush1.bf16.msra.mxu0 0
      %3701 = vmatprep.subr.bf16.mxu0 0
      %3702 = vmatpush1.bf16.msra.mxu0 0
      %3703 = vmatprep.mubr.bf16.mxu0 0
      %3704 = vmatmul.mubr.bf16.gmra.mrb[0].mxu0 %v3602
      %v3705 = vpop.f32.mrb[0].mxu0
      %v3706 = vadd.f32 0.0, %v3705
      %v3707 = vpop.f32.mrb[0].mxu0
      %v3708 = vpop.f32.mrb[0].mxu0
      %v3709 = vadd.f32 0.0, %v3708
      %v3710 = vpop.f32.mrb[0].mxu0
      %3711 = vmatprep.mubr.bf16.mxu0 0
      %3712 = vmatmul.mubr.bf16.gmra.mrb[0].mxu0 %v3603
      %v3713 = vpop.f32.mrb[0].mxu0
      %v3714 = vadd.f32 0.0, %v3713
      %v3715 = vpop.f32.mrb[0].mxu0
      %v3716 = vpop.f32.mrb[0].mxu0
      %v3717 = vadd.f32 0.0, %v3716
      %v3718 = vpop.f32.mrb[0].mxu0
      %3719 = vmatprep.mubr.bf16.mxu0 0
      %3720 = vmatmul.mubr.bf16.gmra.mrb[0].mxu0 %v3604
      %v3721 = vpop.f32.mrb[0].mxu0
      %v3722 = vadd.f32 0.0, %v3721
      %v3723 = vpop.f32.mrb[0].mxu0
      %v3724 = vpop.f32.mrb[0].mxu0
      %v3725 = vadd.f32 0.0, %v3724
      %v3726 = vpop.f32.mrb[0].mxu0
      %3727 = vmatprep.mubr.bf16.mxu0 0
      %3728 = vmatmul.mubr.bf16.gmra.mrb[0].mxu0 %v3605
      %v3729 = vpop.f32.mrb[0].mxu0
      %v3730 = vadd.f32 0.0, %v3729
      %v3731 = vpop.f32.mrb[0].mxu0
      %v3732 = vpop.f32.mrb[0].mxu0
      %v3733 = vadd.f32 0.0, %v3732
      %v3734 = vpop.f32.mrb[0].mxu0
      %3735 = vdwg.mxu0
      %v3736 = vadd.f32 %v3564, %v3706
      %v3737 = vadd.f32 %v3567, %v3709
      %v3738 = vadd.f32 %v3572, %v3714
      %v3739 = vadd.f32 %v3575, %v3717
      %v3740 = vadd.f32 %v3580, %v3722
      %v3741 = vadd.f32 %v3583, %v3725
      %v3742 = vadd.f32 %v3588, %v3730
      %v3743 = vadd.f32 %v3591, %v3733
      %v3744 = vld [vmem:[%s2851] sm:$0xff]
      %v3745 = vld [vmem:[%s2851 + $0x10] sm:$0xff]
      %v3746 = vld [vmem:[%s2851 + $0x20] sm:$0xff]
      %v3747 = vld [vmem:[%s2851 + $0x30] sm:$0xff]
      %v3748 = vld [vmem:[%s2851 + $0x40] sm:$0xff]
      %v3749 = vld [vmem:[%s2851 + $0x50] sm:$0xff]
      %v3750 = vld [vmem:[%s2851 + $0x60] sm:$0xff]
      %v3751 = vld [vmem:[%s2851 + $0x70] sm:$0xff]
      %v3752 = vpack.c.bf16 %v3745, %v3744
      %v3753 = vpack.c.bf16 %v3747, %v3746
      %v3754 = vpack.c.bf16 %v3749, %v3748
      %v3755 = vpack.c.bf16 %v3751, %v3750
      %s3756 = scalar_lea.vmem %s3, 192
      %v3757 = vld [vmem:[%s3756] sm:$0xf]
      %v3758 = vld [vmem:[%s3756 + $0x4] sm:$0xf]
      %v3759 = vld [vmem:[%s3756 + $0x8] sm:$0xf]
      %v3760 = vld [vmem:[%s3756 + $0xc] sm:$0xf]
      %v3761 = vld [vmem:[%s3756 + $0x10] sm:$0xf]
      %v3762 = vld [vmem:[%s3756 + $0x14] sm:$0xf]
      %v3763 = vld [vmem:[%s3756 + $0x18] sm:$0xf]
      %v3764 = vld [vmem:[%s3756 + $0x1c] sm:$0xf]
      %v3765 = vld [vmem:[%s3756 + $0x20] sm:$0xf]
      %v3766 = vld [vmem:[%s3756 + $0x24] sm:$0xf]
      %v3767 = vld [vmem:[%s3756 + $0x28] sm:$0xf]
      %v3768 = vld [vmem:[%s3756 + $0x2c] sm:$0xf]
      %v3769 = vld [vmem:[%s3756 + $0x30] sm:$0xf]
      %v3770 = vld [vmem:[%s3756 + $0x34] sm:$0xf]
      %v3771 = vld [vmem:[%s3756 + $0x38] sm:$0xf]
      %v3772 = vld [vmem:[%s3756 + $0x3c] sm:$0xf]
      %v3789 = vunpack.c.l.b16 %v3757
      %v3790 = vunpack.c.l.b16 %v3758
      %v3791 = vunpack.c.l.b16 %v3759
      %v3792 = vunpack.c.l.b16 %v3760
      %v3793 = vunpack.c.l.b16 %v3761
      %v3794 = vunpack.c.l.b16 %v3762
      %v3795 = vunpack.c.l.b16 %v3763
      %v3796 = vunpack.c.l.b16 %v3764
      %v3797 = vunpack.c.l.b16 %v3765
      %v3798 = vunpack.c.l.b16 %v3766
      %v3799 = vunpack.c.l.b16 %v3767
      %v3800 = vunpack.c.l.b16 %v3768
      %v3801 = vunpack.c.l.b16 %v3769
      %v3802 = vunpack.c.l.b16 %v3770
      %v3803 = vunpack.c.l.b16 %v3771
      %v3804 = vunpack.c.l.b16 %v3772
      %v3805 = vpack.c.b16 %v3790, %v3789
      %v3806 = vpack.c.b16 %v3792, %v3791
      %v3807 = vpack.c.b16 %v3794, %v3793
      %v3808 = vpack.c.b16 %v3796, %v3795
      %v3809 = vpack.c.b16 %v3798, %v3797
      %v3810 = vpack.c.b16 %v3800, %v3799
      %v3811 = vpack.c.b16 %v3802, %v3801
      %v3812 = vpack.c.b16 %v3804, %v3803
      %3821 = vmatprep.subr.bf16.mxu0 0
      %3822 = vmatpush1.bf16.msra.mxu0 %v3805
      %3823 = vmatprep.subr.bf16.mxu0 0
      %3824 = vmatpush1.bf16.msra.mxu0 %v3806
      %3825 = vmatprep.subr.bf16.mxu0 0
      %3826 = vmatpush1.bf16.msra.mxu0 %v3807
      %3827 = vmatprep.subr.bf16.mxu0 0
      %3828 = vmatpush1.bf16.msra.mxu0 %v3808
      %3829 = vmatprep.subr.bf16.mxu0 0
      %3830 = vmatpush1.bf16.msra.mxu0 %v3809
      %3831 = vmatprep.subr.bf16.mxu0 0
      %3832 = vmatpush1.bf16.msra.mxu0 %v3810
      %3833 = vmatprep.subr.bf16.mxu0 0
      %3834 = vmatpush1.bf16.msra.mxu0 %v3811
      %3835 = vmatprep.subr.bf16.mxu0 0
      %3836 = vmatpush1.bf16.msra.mxu0 %v3812
      %3837 = vmatprep.subr.bf16.mxu0 0
      %3838 = vmatpush1.bf16.msra.mxu0 0
      %3839 = vmatprep.subr.bf16.mxu0 0
      %3840 = vmatpush1.bf16.msra.mxu0 0
      %3841 = vmatprep.subr.bf16.mxu0 0
      %3842 = vmatpush1.bf16.msra.mxu0 0
      %3843 = vmatprep.subr.bf16.mxu0 0
      %3844 = vmatpush1.bf16.msra.mxu0 0
      %3845 = vmatprep.subr.bf16.mxu0 0
      %3846 = vmatpush1.bf16.msra.mxu0 0
      %3847 = vmatprep.subr.bf16.mxu0 0
      %3848 = vmatpush1.bf16.msra.mxu0 0
      %3849 = vmatprep.subr.bf16.mxu0 0
      %3850 = vmatpush1.bf16.msra.mxu0 0
      %3851 = vmatprep.subr.bf16.mxu0 0
      %3852 = vmatpush1.bf16.msra.mxu0 0
      %3853 = vmatprep.mubr.bf16.mxu0 0
      %3854 = vmatmul.mubr.bf16.gmra.mrb[0].mxu0 %v3752
      %v3855 = vpop.f32.mrb[0].mxu0
      %v3856 = vadd.f32 0.0, %v3855
      %v3857 = vpop.f32.mrb[0].mxu0
      %v3858 = vpop.f32.mrb[0].mxu0
      %v3859 = vadd.f32 0.0, %v3858
      %v3860 = vpop.f32.mrb[0].mxu0
      %3861 = vmatprep.mubr.bf16.mxu0 0
      %3862 = vmatmul.mubr.bf16.gmra.mrb[0].mxu0 %v3753
      %v3863 = vpop.f32.mrb[0].mxu0
      %v3864 = vadd.f32 0.0, %v3863
      %v3865 = vpop.f32.mrb[0].mxu0
      %v3866 = vpop.f32.mrb[0].mxu0
      %v3867 = vadd.f32 0.0, %v3866
      %v3868 = vpop.f32.mrb[0].mxu0
      %3869 = vmatprep.mubr.bf16.mxu0 0
      %3870 = vmatmul.mubr.bf16.gmra.mrb[0].mxu0 %v3754
      %v3871 = vpop.f32.mrb[0].mxu0
      %v3872 = vadd.f32 0.0, %v3871
      %v3873 = vpop.f32.mrb[0].mxu0
      %v3874 = vpop.f32.mrb[0].mxu0
      %v3875 = vadd.f32 0.0, %v3874
      %v3876 = vpop.f32.mrb[0].mxu0
      %3877 = vmatprep.mubr.bf16.mxu0 0
      %3878 = vmatmul.mubr.bf16.gmra.mrb[0].mxu0 %v3755
      %v3879 = vpop.f32.mrb[0].mxu0
      %v3880 = vadd.f32 0.0, %v3879
      %v3881 = vpop.f32.mrb[0].mxu0
      %v3882 = vpop.f32.mrb[0].mxu0
      %v3883 = vadd.f32 0.0, %v3882
      %v3884 = vpop.f32.mrb[0].mxu0
      %3885 = vdwg.mxu0
      %v3886 = vadd.f32 %v3736, %v3856
      %v3887 = vadd.f32 %v3737, %v3859
      %v3888 = vadd.f32 %v3738, %v3864
      %v3889 = vadd.f32 %v3739, %v3867
      %v3890 = vadd.f32 %v3740, %v3872
      %v3891 = vadd.f32 %v3741, %v3875
      %v3892 = vadd.f32 %v3742, %v3880
      %v3893 = vadd.f32 %v3743, %v3883
      %v3894 = vld [vmem:[%s2851 + $0x1] sm:$0xff]
      %v3895 = vld [vmem:[%s2851 + $0x11] sm:$0xff]
      %v3896 = vld [vmem:[%s2851 + $0x21] sm:$0xff]
      %v3897 = vld [vmem:[%s2851 + $0x31] sm:$0xff]
      %v3898 = vld [vmem:[%s2851 + $0x41] sm:$0xff]
      %v3899 = vld [vmem:[%s2851 + $0x51] sm:$0xff]
      %v3900 = vld [vmem:[%s2851 + $0x61] sm:$0xff]
      %v3901 = vld [vmem:[%s2851 + $0x71] sm:$0xff]
      %v3902 = vpack.c.bf16 %v3895, %v3894
      %v3903 = vpack.c.bf16 %v3897, %v3896
      %v3904 = vpack.c.bf16 %v3899, %v3898
      %v3905 = vpack.c.bf16 %v3901, %v3900
      %s3906 = scalar_lea.vmem %s3, 256
      %v3907 = vld [vmem:[%s3906] sm:$0xf]
      %v3908 = vld [vmem:[%s3906 + $0x4] sm:$0xf]
      %v3909 = vld [vmem:[%s3906 + $0x8] sm:$0xf]
      %v3910 = vld [vmem:[%s3906 + $0xc] sm:$0xf]
      %v3911 = vld [vmem:[%s3906 + $0x10] sm:$0xf]
      %v3912 = vld [vmem:[%s3906 + $0x14] sm:$0xf]
      %v3913 = vld [vmem:[%s3906 + $0x18] sm:$0xf]
      %v3914 = vld [vmem:[%s3906 + $0x1c] sm:$0xf]
      %v3915 = vld [vmem:[%s3906 + $0x20] sm:$0xf]
      %v3916 = vld [vmem:[%s3906 + $0x24] sm:$0xf]
      %v3917 = vld [vmem:[%s3906 + $0x28] sm:$0xf]
      %v3918 = vld [vmem:[%s3906 + $0x2c] sm:$0xf]
      %v3919 = vld [vmem:[%s3906 + $0x30] sm:$0xf]
      %v3920 = vld [vmem:[%s3906 + $0x34] sm:$0xf]
      %v3921 = vld [vmem:[%s3906 + $0x38] sm:$0xf]
      %v3922 = vld [vmem:[%s3906 + $0x3c] sm:$0xf]
      %v3939 = vunpack.c.l.b16 %v3907
      %v3940 = vunpack.c.l.b16 %v3908
      %v3941 = vunpack.c.l.b16 %v3909
      %v3942 = vunpack.c.l.b16 %v3910
      %v3943 = vunpack.c.l.b16 %v3911
      %v3944 = vunpack.c.l.b16 %v3912
      %v3945 = vunpack.c.l.b16 %v3913
      %v3946 = vunpack.c.l.b16 %v3914
      %v3947 = vunpack.c.l.b16 %v3915
      %v3948 = vunpack.c.l.b16 %v3916
      %v3949 = vunpack.c.l.b16 %v3917
      %v3950 = vunpack.c.l.b16 %v3918
      %v3951 = vunpack.c.l.b16 %v3919
      %v3952 = vunpack.c.l.b16 %v3920
      %v3953 = vunpack.c.l.b16 %v3921
      %v3954 = vunpack.c.l.b16 %v3922
      %v3955 = vpack.c.b16 %v3940, %v3939
      %v3956 = vpack.c.b16 %v3942, %v3941
      %v3957 = vpack.c.b16 %v3944, %v3943
      %v3958 = vpack.c.b16 %v3946, %v3945
      %v3959 = vpack.c.b16 %v3948, %v3947
      %v3960 = vpack.c.b16 %v3950, %v3949
      %v3961 = vpack.c.b16 %v3952, %v3951
      %v3962 = vpack.c.b16 %v3954, %v3953
      %3971 = vmatprep.subr.bf16.mxu0 0
      %3972 = vmatpush1.bf16.msra.mxu0 %v3955
      %3973 = vmatprep.subr.bf16.mxu0 0
      %3974 = vmatpush1.bf16.msra.mxu0 %v3956
      %3975 = vmatprep.subr.bf16.mxu0 0
      %3976 = vmatpush1.bf16.msra.mxu0 %v3957
      %3977 = vmatprep.subr.bf16.mxu0 0
      %3978 = vmatpush1.bf16.msra.mxu0 %v3958
      %3979 = vmatprep.subr.bf16.mxu0 0
      %3980 = vmatpush1.bf16.msra.mxu0 %v3959
      %3981 = vmatprep.subr.bf16.mxu0 0
      %3982 = vmatpush1.bf16.msra.mxu0 %v3960
      %3983 = vmatprep.subr.bf16.mxu0 0
      %3984 = vmatpush1.bf16.msra.mxu0 %v3961
      %3985 = vmatprep.subr.bf16.mxu0 0
      %3986 = vmatpush1.bf16.msra.mxu0 %v3962
      %3987 = vmatprep.subr.bf16.mxu0 0
      %3988 = vmatpush1.bf16.msra.mxu0 0
      %3989 = vmatprep.subr.bf16.mxu0 0
      %3990 = vmatpush1.bf16.msra.mxu0 0
      %3991 = vmatprep.subr.bf16.mxu0 0
      %3992 = vmatpush1.bf16.msra.mxu0 0
      %3993 = vmatprep.subr.bf16.mxu0 0
      %3994 = vmatpush1.bf16.msra.mxu0 0
      %3995 = vmatprep.subr.bf16.mxu0 0
      %3996 = vmatpush1.bf16.msra.mxu0 0
      %3997 = vmatprep.subr.bf16.mxu0 0
      %3998 = vmatpush1.bf16.msra.mxu0 0
      %3999 = vmatprep.subr.bf16.mxu0 0
      %4000 = vmatpush1.bf16.msra.mxu0 0
      %4001 = vmatprep.subr.bf16.mxu0 0
      %4002 = vmatpush1.bf16.msra.mxu0 0
      %4003 = vmatprep.mubr.bf16.mxu0 0
      %4004 = vmatmul.mubr.bf16.gmra.mrb[0].mxu0 %v3902
      %v4005 = vpop.f32.mrb[0].mxu0
      %v4006 = vadd.f32 0.0, %v4005
      %v4007 = vpop.f32.mrb[0].mxu0
      %v4008 = vpop.f32.mrb[0].mxu0
      %v4009 = vadd.f32 0.0, %v4008
      %v4010 = vpop.f32.mrb[0].mxu0
      %4011 = vmatprep.mubr.bf16.mxu0 0
      %4012 = vmatmul.mubr.bf16.gmra.mrb[0].mxu0 %v3903
      %v4013 = vpop.f32.mrb[0].mxu0
      %v4014 = vadd.f32 0.0, %v4013
      %v4015 = vpop.f32.mrb[0].mxu0
      %v4016 = vpop.f32.mrb[0].mxu0
      %v4017 = vadd.f32 0.0, %v4016
      %v4018 = vpop.f32.mrb[0].mxu0
      %4019 = vmatprep.mubr.bf16.mxu0 0
      %4020 = vmatmul.mubr.bf16.gmra.mrb[0].mxu0 %v3904
      %v4021 = vpop.f32.mrb[0].mxu0
      %v4022 = vadd.f32 0.0, %v4021
      %v4023 = vpop.f32.mrb[0].mxu0
      %v4024 = vpop.f32.mrb[0].mxu0
      %v4025 = vadd.f32 0.0, %v4024
      %v4026 = vpop.f32.mrb[0].mxu0
      %4027 = vmatprep.mubr.bf16.mxu0 0
      %4028 = vmatmul.mubr.bf16.gmra.mrb[0].mxu0 %v3905
      %v4029 = vpop.f32.mrb[0].mxu0
      %v4030 = vadd.f32 0.0, %v4029
      %v4031 = vpop.f32.mrb[0].mxu0
      %v4032 = vpop.f32.mrb[0].mxu0
      %v4033 = vadd.f32 0.0, %v4032
      %v4034 = vpop.f32.mrb[0].mxu0
      %4035 = vdwg.mxu0
      %v4036 = vadd.f32 %v3886, %v4006
      %v4037 = vadd.f32 %v3887, %v4009
      %v4038 = vadd.f32 %v3888, %v4014
      %v4039 = vadd.f32 %v3889, %v4017
      %v4040 = vadd.f32 %v3890, %v4022
      %v4041 = vadd.f32 %v3891, %v4025
      %v4042 = vadd.f32 %v3892, %v4030
      %v4043 = vadd.f32 %v3893, %v4033
      %v4044 = vld [vmem:[%s2851 + $0x2] sm:$0xff]
      %v4045 = vld [vmem:[%s2851 + $0x12] sm:$0xff]
      %v4046 = vld [vmem:[%s2851 + $0x22] sm:$0xff]
      %v4047 = vld [vmem:[%s2851 + $0x32] sm:$0xff]
      %v4048 = vld [vmem:[%s2851 + $0x42] sm:$0xff]
      %v4049 = vld [vmem:[%s2851 + $0x52] sm:$0xff]
      %v4050 = vld [vmem:[%s2851 + $0x62] sm:$0xff]
      %v4051 = vld [vmem:[%s2851 + $0x72] sm:$0xff]
      %v4052 = vpack.c.bf16 %v4045, %v4044
      %v4053 = vpack.c.bf16 %v4047, %v4046
      %v4054 = vpack.c.bf16 %v4049, %v4048
      %v4055 = vpack.c.bf16 %v4051, %v4050
      %s4056 = scalar_lea.vmem %s3, 320
      %v4057 = vld [vmem:[%s4056] sm:$0xf]
      %v4058 = vld [vmem:[%s4056 + $0x4] sm:$0xf]
      %v4059 = vld [vmem:[%s4056 + $0x8] sm:$0xf]
      %v4060 = vld [vmem:[%s4056 + $0xc] sm:$0xf]
      %v4061 = vld [vmem:[%s4056 + $0x10] sm:$0xf]
      %v4062 = vld [vmem:[%s4056 + $0x14] sm:$0xf]
      %v4063 = vld [vmem:[%s4056 + $0x18] sm:$0xf]
      %v4064 = vld [vmem:[%s4056 + $0x1c] sm:$0xf]
      %v4065 = vld [vmem:[%s4056 + $0x20] sm:$0xf]
      %v4066 = vld [vmem:[%s4056 + $0x24] sm:$0xf]
      %v4067 = vld [vmem:[%s4056 + $0x28] sm:$0xf]
      %v4068 = vld [vmem:[%s4056 + $0x2c] sm:$0xf]
      %v4069 = vld [vmem:[%s4056 + $0x30] sm:$0xf]
      %v4070 = vld [vmem:[%s4056 + $0x34] sm:$0xf]
      %v4071 = vld [vmem:[%s4056 + $0x38] sm:$0xf]
      %v4072 = vld [vmem:[%s4056 + $0x3c] sm:$0xf]
      %v4089 = vunpack.c.l.b16 %v4057
      %v4090 = vunpack.c.l.b16 %v4058
      %v4091 = vunpack.c.l.b16 %v4059
      %v4092 = vunpack.c.l.b16 %v4060
      %v4093 = vunpack.c.l.b16 %v4061
      %v4094 = vunpack.c.l.b16 %v4062
      %v4095 = vunpack.c.l.b16 %v4063
      %v4096 = vunpack.c.l.b16 %v4064
      %v4097 = vunpack.c.l.b16 %v4065
      %v4098 = vunpack.c.l.b16 %v4066
      %v4099 = vunpack.c.l.b16 %v4067
      %v4100 = vunpack.c.l.b16 %v4068
      %v4101 = vunpack.c.l.b16 %v4069
      %v4102 = vunpack.c.l.b16 %v4070
      %v4103 = vunpack.c.l.b16 %v4071
      %v4104 = vunpack.c.l.b16 %v4072
      %v4105 = vpack.c.b16 %v4090, %v4089
      %v4106 = vpack.c.b16 %v4092, %v4091
      %v4107 = vpack.c.b16 %v4094, %v4093
      %v4108 = vpack.c.b16 %v4096, %v4095
      %v4109 = vpack.c.b16 %v4098, %v4097
      %v4110 = vpack.c.b16 %v4100, %v4099
      %v4111 = vpack.c.b16 %v4102, %v4101
      %v4112 = vpack.c.b16 %v4104, %v4103
      %4121 = vmatprep.subr.bf16.mxu0 0
      %4122 = vmatpush1.bf16.msra.mxu0 %v4105
      %4123 = vmatprep.subr.bf16.mxu0 0
      %4124 = vmatpush1.bf16.msra.mxu0 %v4106
      %4125 = vmatprep.subr.bf16.mxu0 0
      %4126 = vmatpush1.bf16.msra.mxu0 %v4107
      %4127 = vmatprep.subr.bf16.mxu0 0
      %4128 = vmatpush1.bf16.msra.mxu0 %v4108
      %4129 = vmatprep.subr.bf16.mxu0 0
      %4130 = vmatpush1.bf16.msra.mxu0 %v4109
      %4131 = vmatprep.subr.bf16.mxu0 0
      %4132 = vmatpush1.bf16.msra.mxu0 %v4110
      %4133 = vmatprep.subr.bf16.mxu0 0
      %4134 = vmatpush1.bf16.msra.mxu0 %v4111
      %4135 = vmatprep.subr.bf16.mxu0 0
      %4136 = vmatpush1.bf16.msra.mxu0 %v4112
      %4137 = vmatprep.subr.bf16.mxu0 0
      %4138 = vmatpush1.bf16.msra.mxu0 0
      %4139 = vmatprep.subr.bf16.mxu0 0
      %4140 = vmatpush1.bf16.msra.mxu0 0
      %4141 = vmatprep.subr.bf16.mxu0 0
      %4142 = vmatpush1.bf16.msra.mxu0 0
      %4143 = vmatprep.subr.bf16.mxu0 0
      %4144 = vmatpush1.bf16.msra.mxu0 0
      %4145 = vmatprep.subr.bf16.mxu0 0
      %4146 = vmatpush1.bf16.msra.mxu0 0
      %4147 = vmatprep.subr.bf16.mxu0 0
      %4148 = vmatpush1.bf16.msra.mxu0 0
      %4149 = vmatprep.subr.bf16.mxu0 0
      %4150 = vmatpush1.bf16.msra.mxu0 0
      %4151 = vmatprep.subr.bf16.mxu0 0
      %4152 = vmatpush1.bf16.msra.mxu0 0
      %4153 = vmatprep.mubr.bf16.mxu0 0
      %4154 = vmatmul.mubr.bf16.gmra.mrb[0].mxu0 %v4052
      %v4155 = vpop.f32.mrb[0].mxu0
      %v4156 = vadd.f32 0.0, %v4155
      %v4157 = vpop.f32.mrb[0].mxu0
      %v4158 = vpop.f32.mrb[0].mxu0
      %v4159 = vadd.f32 0.0, %v4158
      %v4160 = vpop.f32.mrb[0].mxu0
      %4161 = vmatprep.mubr.bf16.mxu0 0
      %4162 = vmatmul.mubr.bf16.gmra.mrb[0].mxu0 %v4053
      %v4163 = vpop.f32.mrb[0].mxu0
      %v4164 = vadd.f32 0.0, %v4163
      %v4165 = vpop.f32.mrb[0].mxu0
      %v4166 = vpop.f32.mrb[0].mxu0
      %v4167 = vadd.f32 0.0, %v4166
      %v4168 = vpop.f32.mrb[0].mxu0
      %4169 = vmatprep.mubr.bf16.mxu0 0
      %4170 = vmatmul.mubr.bf16.gmra.mrb[0].mxu0 %v4054
      %v4171 = vpop.f32.mrb[0].mxu0
      %v4172 = vadd.f32 0.0, %v4171
      %v4173 = vpop.f32.mrb[0].mxu0
      %v4174 = vpop.f32.mrb[0].mxu0
      %v4175 = vadd.f32 0.0, %v4174
      %v4176 = vpop.f32.mrb[0].mxu0
      %4177 = vmatprep.mubr.bf16.mxu0 0
      %4178 = vmatmul.mubr.bf16.gmra.mrb[0].mxu0 %v4055
      %v4179 = vpop.f32.mrb[0].mxu0
      %v4180 = vadd.f32 0.0, %v4179
      %v4181 = vpop.f32.mrb[0].mxu0
      %v4182 = vpop.f32.mrb[0].mxu0
      %v4183 = vadd.f32 0.0, %v4182
      %v4184 = vpop.f32.mrb[0].mxu0
      %4185 = vdwg.mxu0
      %v4186 = vadd.f32 %v4036, %v4156
      %v4187 = vadd.f32 %v4037, %v4159
      %v4188 = vadd.f32 %v4038, %v4164
      %v4189 = vadd.f32 %v4039, %v4167
      %v4190 = vadd.f32 %v4040, %v4172
      %v4191 = vadd.f32 %v4041, %v4175
      %v4192 = vadd.f32 %v4042, %v4180
      %v4193 = vadd.f32 %v4043, %v4183
      %s4194 = scalar_lea.vmem [#allocation2], 32
      %v4195 = vld [vmem:[%s4194] sm:$0xff]
      %v4196 = vld [vmem:[%s4194 + $0x10] sm:$0xff]
      %v4197 = vld [vmem:[%s4194 + $0x20] sm:$0xff]
      %v4198 = vld [vmem:[%s4194 + $0x30] sm:$0xff]
      %v4199 = vld [vmem:[%s4194 + $0x40] sm:$0xff]
      %v4200 = vld [vmem:[%s4194 + $0x50] sm:$0xff]
      %v4201 = vld [vmem:[%s4194 + $0x60] sm:$0xff]
      %v4202 = vld [vmem:[%s4194 + $0x70] sm:$0xff]
      %v4203 = vpack.c.bf16 %v4196, %v4195
      %v4204 = vpack.c.bf16 %v4198, %v4197
      %v4205 = vpack.c.bf16 %v4200, %v4199
      %v4206 = vpack.c.bf16 %v4202, %v4201
      %s4207 = scalar_lea.vmem %s3, 384
      %v4208 = vld [vmem:[%s4207] sm:$0xf]
      %v4209 = vld [vmem:[%s4207 + $0x4] sm:$0xf]
      %v4210 = vld [vmem:[%s4207 + $0x8] sm:$0xf]
      %v4211 = vld [vmem:[%s4207 + $0xc] sm:$0xf]
      %v4212 = vld [vmem:[%s4207 + $0x10] sm:$0xf]
      %v4213 = vld [vmem:[%s4207 + $0x14] sm:$0xf]
      %v4214 = vld [vmem:[%s4207 + $0x18] sm:$0xf]
      %v4215 = vld [vmem:[%s4207 + $0x1c] sm:$0xf]
      %v4216 = vld [vmem:[%s4207 + $0x20] sm:$0xf]
      %v4217 = vld [vmem:[%s4207 + $0x24] sm:$0xf]
      %v4218 = vld [vmem:[%s4207 + $0x28] sm:$0xf]
      %v4219 = vld [vmem:[%s4207 + $0x2c] sm:$0xf]
      %v4220 = vld [vmem:[%s4207 + $0x30] sm:$0xf]
      %v4221 = vld [vmem:[%s4207 + $0x34] sm:$0xf]
      %v4222 = vld [vmem:[%s4207 + $0x38] sm:$0xf]
      %v4223 = vld [vmem:[%s4207 + $0x3c] sm:$0xf]
      %v4240 = vunpack.c.l.b16 %v4208
      %v4241 = vunpack.c.l.b16 %v4209
      %v4242 = vunpack.c.l.b16 %v4210
      %v4243 = vunpack.c.l.b16 %v4211
      %v4244 = vunpack.c.l.b16 %v4212
      %v4245 = vunpack.c.l.b16 %v4213
      %v4246 = vunpack.c.l.b16 %v4214
      %v4247 = vunpack.c.l.b16 %v4215
      %v4248 = vunpack.c.l.b16 %v4216
      %v4249 = vunpack.c.l.b16 %v4217
      %v4250 = vunpack.c.l.b16 %v4218
      %v4251 = vunpack.c.l.b16 %v4219
      %v4252 = vunpack.c.l.b16 %v4220
      %v4253 = vunpack.c.l.b16 %v4221
      %v4254 = vunpack.c.l.b16 %v4222
      %v4255 = vunpack.c.l.b16 %v4223
      %v4256 = vpack.c.b16 %v4241, %v4240
      %v4257 = vpack.c.b16 %v4243, %v4242
      %v4258 = vpack.c.b16 %v4245, %v4244
      %v4259 = vpack.c.b16 %v4247, %v4246
      %v4260 = vpack.c.b16 %v4249, %v4248
      %v4261 = vpack.c.b16 %v4251, %v4250
      %v4262 = vpack.c.b16 %v4253, %v4252
      %v4263 = vpack.c.b16 %v4255, %v4254
      %4272 = vmatprep.subr.bf16.mxu0 0
      %4273 = vmatpush1.bf16.msra.mxu0 %v4256
      %4274 = vmatprep.subr.bf16.mxu0 0
      %4275 = vmatpush1.bf16.msra.mxu0 %v4257
      %4276 = vmatprep.subr.bf16.mxu0 0
      %4277 = vmatpush1.bf16.msra.mxu0 %v4258
      %4278 = vmatprep.subr.bf16.mxu0 0
      %4279 = vmatpush1.bf16.msra.mxu0 %v4259
      %4280 = vmatprep.subr.bf16.mxu0 0
      %4281 = vmatpush1.bf16.msra.mxu0 %v4260
      %4282 = vmatprep.subr.bf16.mxu0 0
      %4283 = vmatpush1.bf16.msra.mxu0 %v4261
      %4284 = vmatprep.subr.bf16.mxu0 0
      %4285 = vmatpush1.bf16.msra.mxu0 %v4262
      %4286 = vmatprep.subr.bf16.mxu0 0
      %4287 = vmatpush1.bf16.msra.mxu0 %v4263
      %4288 = vmatprep.subr.bf16.mxu0 0
      %4289 = vmatpush1.bf16.msra.mxu0 0
      %4290 = vmatprep.subr.bf16.mxu0 0
      %4291 = vmatpush1.bf16.msra.mxu0 0
      %4292 = vmatprep.subr.bf16.mxu0 0
      %4293 = vmatpush1.bf16.msra.mxu0 0
      %4294 = vmatprep.subr.bf16.mxu0 0
      %4295 = vmatpush1.bf16.msra.mxu0 0
      %4296 = vmatprep.subr.bf16.mxu0 0
      %4297 = vmatpush1.bf16.msra.mxu0 0
      %4298 = vmatprep.subr.bf16.mxu0 0
      %4299 = vmatpush1.bf16.msra.mxu0 0
      %4300 = vmatprep.subr.bf16.mxu0 0
      %4301 = vmatpush1.bf16.msra.mxu0 0
      %4302 = vmatprep.subr.bf16.mxu0 0
      %4303 = vmatpush1.bf16.msra.mxu0 0
      %4304 = vmatprep.mubr.bf16.mxu0 0
      %4305 = vmatmul.mubr.bf16.gmra.mrb[0].mxu0 %v4203
      %v4306 = vpop.f32.mrb[0].mxu0
      %v4307 = vadd.f32 0.0, %v4306
      %v4308 = vpop.f32.mrb[0].mxu0
      %v4309 = vpop.f32.mrb[0].mxu0
      %v4310 = vadd.f32 0.0, %v4309
      %v4311 = vpop.f32.mrb[0].mxu0
      %4312 = vmatprep.mubr.bf16.mxu0 0
      %4313 = vmatmul.mubr.bf16.gmra.mrb[0].mxu0 %v4204
      %v4314 = vpop.f32.mrb[0].mxu0
      %v4315 = vadd.f32 0.0, %v4314
      %v4316 = vpop.f32.mrb[0].mxu0
      %v4317 = vpop.f32.mrb[0].mxu0
      %v4318 = vadd.f32 0.0, %v4317
      %v4319 = vpop.f32.mrb[0].mxu0
      %4320 = vmatprep.mubr.bf16.mxu0 0
      %4321 = vmatmul.mubr.bf16.gmra.mrb[0].mxu0 %v4205
      %v4322 = vpop.f32.mrb[0].mxu0
      %v4323 = vadd.f32 0.0, %v4322
      %v4324 = vpop.f32.mrb[0].mxu0
      %v4325 = vpop.f32.mrb[0].mxu0
      %v4326 = vadd.f32 0.0, %v4325
      %v4327 = vpop.f32.mrb[0].mxu0
      %4328 = vmatprep.mubr.bf16.mxu0 0
      %4329 = vmatmul.mubr.bf16.gmra.mrb[0].mxu0 %v4206
      %v4330 = vpop.f32.mrb[0].mxu0
      %v4331 = vadd.f32 0.0, %v4330
      %v4332 = vpop.f32.mrb[0].mxu0
      %v4333 = vpop.f32.mrb[0].mxu0
      %v4334 = vadd.f32 0.0, %v4333
      %v4335 = vpop.f32.mrb[0].mxu0
      %4336 = vdwg.mxu0
      %v4337 = vadd.f32 %v4186, %v4307
      %v4338 = vadd.f32 %v4187, %v4310
      %v4339 = vadd.f32 %v4188, %v4315
      %v4340 = vadd.f32 %v4189, %v4318
      %v4341 = vadd.f32 %v4190, %v4323
      %v4342 = vadd.f32 %v4191, %v4326
      %v4343 = vadd.f32 %v4192, %v4331
      %v4344 = vadd.f32 %v4193, %v4334
      %v4345 = vld [vmem:[%s4194 + $0x1] sm:$0xff]
      %v4346 = vld [vmem:[%s4194 + $0x11] sm:$0xff]
      %v4347 = vld [vmem:[%s4194 + $0x21] sm:$0xff]
      %v4348 = vld [vmem:[%s4194 + $0x31] sm:$0xff]
      %v4349 = vld [vmem:[%s4194 + $0x41] sm:$0xff]
      %v4350 = vld [vmem:[%s4194 + $0x51] sm:$0xff]
      %v4351 = vld [vmem:[%s4194 + $0x61] sm:$0xff]
      %v4352 = vld [vmem:[%s4194 + $0x71] sm:$0xff]
      %v4353 = vpack.c.bf16 %v4346, %v4345
      %v4354 = vpack.c.bf16 %v4348, %v4347
      %v4355 = vpack.c.bf16 %v4350, %v4349
      %v4356 = vpack.c.bf16 %v4352, %v4351
      %s4357 = scalar_lea.vmem %s3, 448
      %v4358 = vld [vmem:[%s4357] sm:$0xf]
      %v4359 = vld [vmem:[%s4357 + $0x4] sm:$0xf]
      %v4360 = vld [vmem:[%s4357 + $0x8] sm:$0xf]
      %v4361 = vld [vmem:[%s4357 + $0xc] sm:$0xf]
      %v4362 = vld [vmem:[%s4357 + $0x10] sm:$0xf]
      %v4363 = vld [vmem:[%s4357 + $0x14] sm:$0xf]
      %v4364 = vld [vmem:[%s4357 + $0x18] sm:$0xf]
      %v4365 = vld [vmem:[%s4357 + $0x1c] sm:$0xf]
      %v4366 = vld [vmem:[%s4357 + $0x20] sm:$0xf]
      %v4367 = vld [vmem:[%s4357 + $0x24] sm:$0xf]
      %v4368 = vld [vmem:[%s4357 + $0x28] sm:$0xf]
      %v4369 = vld [vmem:[%s4357 + $0x2c] sm:$0xf]
      %v4370 = vld [vmem:[%s4357 + $0x30] sm:$0xf]
      %v4371 = vld [vmem:[%s4357 + $0x34] sm:$0xf]
      %v4372 = vld [vmem:[%s4357 + $0x38] sm:$0xf]
      %v4373 = vld [vmem:[%s4357 + $0x3c] sm:$0xf]
      %v4390 = vunpack.c.l.b16 %v4358
      %v4391 = vunpack.c.l.b16 %v4359
      %v4392 = vunpack.c.l.b16 %v4360
      %v4393 = vunpack.c.l.b16 %v4361
      %v4394 = vunpack.c.l.b16 %v4362
      %v4395 = vunpack.c.l.b16 %v4363
      %v4396 = vunpack.c.l.b16 %v4364
      %v4397 = vunpack.c.l.b16 %v4365
      %v4398 = vunpack.c.l.b16 %v4366
      %v4399 = vunpack.c.l.b16 %v4367
      %v4400 = vunpack.c.l.b16 %v4368
      %v4401 = vunpack.c.l.b16 %v4369
      %v4402 = vunpack.c.l.b16 %v4370
      %v4403 = vunpack.c.l.b16 %v4371
      %v4404 = vunpack.c.l.b16 %v4372
      %v4405 = vunpack.c.l.b16 %v4373
      %v4406 = vpack.c.b16 %v4391, %v4390
      %v4407 = vpack.c.b16 %v4393, %v4392
      %v4408 = vpack.c.b16 %v4395, %v4394
      %v4409 = vpack.c.b16 %v4397, %v4396
      %v4410 = vpack.c.b16 %v4399, %v4398
      %v4411 = vpack.c.b16 %v4401, %v4400
      %v4412 = vpack.c.b16 %v4403, %v4402
      %v4413 = vpack.c.b16 %v4405, %v4404
      %4422 = vmatprep.subr.bf16.mxu0 0
      %4423 = vmatpush1.bf16.msra.mxu0 %v4406
      %4424 = vmatprep.subr.bf16.mxu0 0
      %4425 = vmatpush1.bf16.msra.mxu0 %v4407
      %4426 = vmatprep.subr.bf16.mxu0 0
      %4427 = vmatpush1.bf16.msra.mxu0 %v4408
      %4428 = vmatprep.subr.bf16.mxu0 0
      %4429 = vmatpush1.bf16.msra.mxu0 %v4409
      %4430 = vmatprep.subr.bf16.mxu0 0
      %4431 = vmatpush1.bf16.msra.mxu0 %v4410
      %4432 = vmatprep.subr.bf16.mxu0 0
      %4433 = vmatpush1.bf16.msra.mxu0 %v4411
      %4434 = vmatprep.subr.bf16.mxu0 0
      %4435 = vmatpush1.bf16.msra.mxu0 %v4412
      %4436 = vmatprep.subr.bf16.mxu0 0
      %4437 = vmatpush1.bf16.msra.mxu0 %v4413
      %4438 = vmatprep.subr.bf16.mxu0 0
      %4439 = vmatpush1.bf16.msra.mxu0 0
      %4440 = vmatprep.subr.bf16.mxu0 0
      %4441 = vmatpush1.bf16.msra.mxu0 0
      %4442 = vmatprep.subr.bf16.mxu0 0
      %4443 = vmatpush1.bf16.msra.mxu0 0
      %4444 = vmatprep.subr.bf16.mxu0 0
      %4445 = vmatpush1.bf16.msra.mxu0 0
      %4446 = vmatprep.subr.bf16.mxu0 0
      %4447 = vmatpush1.bf16.msra.mxu0 0
      %4448 = vmatprep.subr.bf16.mxu0 0
      %4449 = vmatpush1.bf16.msra.mxu0 0
      %4450 = vmatprep.subr.bf16.mxu0 0
      %4451 = vmatpush1.bf16.msra.mxu0 0
      %4452 = vmatprep.subr.bf16.mxu0 0
      %4453 = vmatpush1.bf16.msra.mxu0 0
      %4454 = vmatprep.mubr.bf16.mxu0 0
      %4455 = vmatmul.mubr.bf16.gmra.mrb[0].mxu0 %v4353
      %v4456 = vpop.f32.mrb[0].mxu0
      %v4457 = vadd.f32 0.0, %v4456
      %v4458 = vpop.f32.mrb[0].mxu0
      %v4459 = vpop.f32.mrb[0].mxu0
      %v4460 = vadd.f32 0.0, %v4459
      %v4461 = vpop.f32.mrb[0].mxu0
      %4462 = vmatprep.mubr.bf16.mxu0 0
      %4463 = vmatmul.mubr.bf16.gmra.mrb[0].mxu0 %v4354
      %v4464 = vpop.f32.mrb[0].mxu0
      %v4465 = vadd.f32 0.0, %v4464
      %v4466 = vpop.f32.mrb[0].mxu0
      %v4467 = vpop.f32.mrb[0].mxu0
      %v4468 = vadd.f32 0.0, %v4467
      %v4469 = vpop.f32.mrb[0].mxu0
      %4470 = vmatprep.mubr.bf16.mxu0 0
      %4471 = vmatmul.mubr.bf16.gmra.mrb[0].mxu0 %v4355
      %v4472 = vpop.f32.mrb[0].mxu0
      %v4473 = vadd.f32 0.0, %v4472
      %v4474 = vpop.f32.mrb[0].mxu0
      %v4475 = vpop.f32.mrb[0].mxu0
      %v4476 = vadd.f32 0.0, %v4475
      %v4477 = vpop.f32.mrb[0].mxu0
      %4478 = vmatprep.mubr.bf16.mxu0 0
      %4479 = vmatmul.mubr.bf16.gmra.mrb[0].mxu0 %v4356
      %v4480 = vpop.f32.mrb[0].mxu0
      %v4481 = vadd.f32 0.0, %v4480
      %v4482 = vpop.f32.mrb[0].mxu0
      %v4483 = vpop.f32.mrb[0].mxu0
      %v4484 = vadd.f32 0.0, %v4483
      %v4485 = vpop.f32.mrb[0].mxu0
      %4486 = vdwg.mxu0
      %v4487 = vadd.f32 %v4337, %v4457
      %v4488 = vadd.f32 %v4338, %v4460
      %v4489 = vadd.f32 %v4339, %v4465
      %v4490 = vadd.f32 %v4340, %v4468
      %v4491 = vadd.f32 %v4341, %v4473
      %v4492 = vadd.f32 %v4342, %v4476
      %v4493 = vadd.f32 %v4343, %v4481
      %v4494 = vadd.f32 %v4344, %v4484
      %v4495 = vld [vmem:[%s4194 + $0x2] sm:$0xff]
      %v4496 = vld [vmem:[%s4194 + $0x12] sm:$0xff]
      %v4497 = vld [vmem:[%s4194 + $0x22] sm:$0xff]
      %v4498 = vld [vmem:[%s4194 + $0x32] sm:$0xff]
      %v4499 = vld [vmem:[%s4194 + $0x42] sm:$0xff]
      %v4500 = vld [vmem:[%s4194 + $0x52] sm:$0xff]
      %v4501 = vld [vmem:[%s4194 + $0x62] sm:$0xff]
      %v4502 = vld [vmem:[%s4194 + $0x72] sm:$0xff]
      %v4503 = vpack.c.bf16 %v4496, %v4495
      %v4504 = vpack.c.bf16 %v4498, %v4497
      %v4505 = vpack.c.bf16 %v4500, %v4499
      %v4506 = vpack.c.bf16 %v4502, %v4501
      %s4507 = scalar_lea.vmem %s3, 512
      %v4508 = vld [vmem:[%s4507] sm:$0xf]
      %v4509 = vld [vmem:[%s4507 + $0x4] sm:$0xf]
      %v4510 = vld [vmem:[%s4507 + $0x8] sm:$0xf]
      %v4511 = vld [vmem:[%s4507 + $0xc] sm:$0xf]
      %v4512 = vld [vmem:[%s4507 + $0x10] sm:$0xf]
      %v4513 = vld [vmem:[%s4507 + $0x14] sm:$0xf]
      %v4514 = vld [vmem:[%s4507 + $0x18] sm:$0xf]
      %v4515 = vld [vmem:[%s4507 + $0x1c] sm:$0xf]
      %v4516 = vld [vmem:[%s4507 + $0x20] sm:$0xf]
      %v4517 = vld [vmem:[%s4507 + $0x24] sm:$0xf]
      %v4518 = vld [vmem:[%s4507 + $0x28] sm:$0xf]
      %v4519 = vld [vmem:[%s4507 + $0x2c] sm:$0xf]
      %v4520 = vld [vmem:[%s4507 + $0x30] sm:$0xf]
      %v4521 = vld [vmem:[%s4507 + $0x34] sm:$0xf]
      %v4522 = vld [vmem:[%s4507 + $0x38] sm:$0xf]
      %v4523 = vld [vmem:[%s4507 + $0x3c] sm:$0xf]
      %v4540 = vunpack.c.l.b16 %v4508
      %v4541 = vunpack.c.l.b16 %v4509
      %v4542 = vunpack.c.l.b16 %v4510
      %v4543 = vunpack.c.l.b16 %v4511
      %v4544 = vunpack.c.l.b16 %v4512
      %v4545 = vunpack.c.l.b16 %v4513
      %v4546 = vunpack.c.l.b16 %v4514
      %v4547 = vunpack.c.l.b16 %v4515
      %v4548 = vunpack.c.l.b16 %v4516
      %v4549 = vunpack.c.l.b16 %v4517
      %v4550 = vunpack.c.l.b16 %v4518
      %v4551 = vunpack.c.l.b16 %v4519
      %v4552 = vunpack.c.l.b16 %v4520
      %v4553 = vunpack.c.l.b16 %v4521
      %v4554 = vunpack.c.l.b16 %v4522
      %v4555 = vunpack.c.l.b16 %v4523
      %v4556 = vpack.c.b16 %v4541, %v4540
      %v4557 = vpack.c.b16 %v4543, %v4542
      %v4558 = vpack.c.b16 %v4545, %v4544
      %v4559 = vpack.c.b16 %v4547, %v4546
      %v4560 = vpack.c.b16 %v4549, %v4548
      %v4561 = vpack.c.b16 %v4551, %v4550
      %v4562 = vpack.c.b16 %v4553, %v4552
      %v4563 = vpack.c.b16 %v4555, %v4554
      %4572 = vmatprep.subr.bf16.mxu0 0
      %4573 = vmatpush1.bf16.msra.mxu0 %v4556
      %4574 = vmatprep.subr.bf16.mxu0 0
      %4575 = vmatpush1.bf16.msra.mxu0 %v4557
      %4576 = vmatprep.subr.bf16.mxu0 0
      %4577 = vmatpush1.bf16.msra.mxu0 %v4558
      %4578 = vmatprep.subr.bf16.mxu0 0
      %4579 = vmatpush1.bf16.msra.mxu0 %v4559
      %4580 = vmatprep.subr.bf16.mxu0 0
      %4581 = vmatpush1.bf16.msra.mxu0 %v4560
      %4582 = vmatprep.subr.bf16.mxu0 0
      %4583 = vmatpush1.bf16.msra.mxu0 %v4561
      %4584 = vmatprep.subr.bf16.mxu0 0
      %4585 = vmatpush1.bf16.msra.mxu0 %v4562
      %4586 = vmatprep.subr.bf16.mxu0 0
      %4587 = vmatpush1.bf16.msra.mxu0 %v4563
      %4588 = vmatprep.subr.bf16.mxu0 0
      %4589 = vmatpush1.bf16.msra.mxu0 0
      %4590 = vmatprep.subr.bf16.mxu0 0
      %4591 = vmatpush1.bf16.msra.mxu0 0
      %4592 = vmatprep.subr.bf16.mxu0 0
      %4593 = vmatpush1.bf16.msra.mxu0 0
      %4594 = vmatprep.subr.bf16.mxu0 0
      %4595 = vmatpush1.bf16.msra.mxu0 0
      %4596 = vmatprep.subr.bf16.mxu0 0
      %4597 = vmatpush1.bf16.msra.mxu0 0
      %4598 = vmatprep.subr.bf16.mxu0 0
      %4599 = vmatpush1.bf16.msra.mxu0 0
      %4600 = vmatprep.subr.bf16.mxu0 0
      %4601 = vmatpush1.bf16.msra.mxu0 0
      %4602 = vmatprep.subr.bf16.mxu0 0
      %4603 = vmatpush1.bf16.msra.mxu0 0
      %4604 = vmatprep.mubr.bf16.mxu0 0
      %4605 = vmatmul.mubr.bf16.gmra.mrb[0].mxu0 %v4503
      %v4606 = vpop.f32.mrb[0].mxu0
      %v4607 = vadd.f32 0.0, %v4606
      %v4608 = vpop.f32.mrb[0].mxu0
      %v4609 = vpop.f32.mrb[0].mxu0
      %v4610 = vadd.f32 0.0, %v4609
      %v4611 = vpop.f32.mrb[0].mxu0
      %4612 = vmatprep.mubr.bf16.mxu0 0
      %4613 = vmatmul.mubr.bf16.gmra.mrb[0].mxu0 %v4504
      %v4614 = vpop.f32.mrb[0].mxu0
      %v4615 = vadd.f32 0.0, %v4614
      %v4616 = vpop.f32.mrb[0].mxu0
      %v4617 = vpop.f32.mrb[0].mxu0
      %v4618 = vadd.f32 0.0, %v4617
      %v4619 = vpop.f32.mrb[0].mxu0
      %4620 = vmatprep.mubr.bf16.mxu0 0
      %4621 = vmatmul.mubr.bf16.gmra.mrb[0].mxu0 %v4505
      %v4622 = vpop.f32.mrb[0].mxu0
      %v4623 = vadd.f32 0.0, %v4622
      %v4624 = vpop.f32.mrb[0].mxu0
      %v4625 = vpop.f32.mrb[0].mxu0
      %v4626 = vadd.f32 0.0, %v4625
      %v4627 = vpop.f32.mrb[0].mxu0
      %4628 = vmatprep.mubr.bf16.mxu0 0
      %4629 = vmatmul.mubr.bf16.gmra.mrb[0].mxu0 %v4506
      %v4630 = vpop.f32.mrb[0].mxu0
      %v4631 = vadd.f32 0.0, %v4630
      %v4632 = vpop.f32.mrb[0].mxu0
      %v4633 = vpop.f32.mrb[0].mxu0
      %v4634 = vadd.f32 0.0, %v4633
      %v4635 = vpop.f32.mrb[0].mxu0
      %4636 = vdwg.mxu0
      %v4637 = vadd.f32 %v4487, %v4607
      %v4638 = vadd.f32 %v4488, %v4610
      %v4639 = vadd.f32 %v4489, %v4615
      %v4640 = vadd.f32 %v4490, %v4618
      %v4641 = vadd.f32 %v4491, %v4623
      %v4642 = vadd.f32 %v4492, %v4626
      %v4643 = vadd.f32 %v4493, %v4631
      %v4644 = vadd.f32 %v4494, %v4634
      %v4645 = vld [vmem:[%s4] sm:$0x1]
      %v4647 = vlaneseq
      %v4648 = vshrl.u32 %v4647, 7
      %v4649 = vsub.s32 0, %v4648
      %v4650 = vrot.slane %v4645, %v4649
      %v4652 = vadd.f32 %v4637, %v4650
      %v4653 = vadd.f32 %v4638, %v4650
      %v4654 = vadd.f32 %v4639, %v4650
      %v4655 = vadd.f32 %v4640, %v4650
      %v4656 = vadd.f32 %v4641, %v4650
      %v4657 = vadd.f32 %v4642, %v4650
      %v4658 = vadd.f32 %v4643, %v4650
      %v4659 = vadd.f32 %v4644, %v4650
      %v4660 = vmax.f32 %v4652, 0.0
      %v4661 = vmax.f32 %v4653, 0.0
      %v4662 = vmax.f32 %v4654, 0.0
      %v4663 = vmax.f32 %v4655, 0.0
      %v4664 = vmax.f32 %v4656, 0.0
      %v4665 = vmax.f32 %v4657, 0.0
      %v4666 = vmax.f32 %v4658, 0.0
      %v4667 = vmax.f32 %v4659, 0.0
      %v4668 = vmax.f32 %v4660, %v4661
      %v4669 = vmax.f32 %v4662, %v4663
      %v4670 = vmax.f32 %v4664, %v4665
      %v4671 = vmax.f32 %v4666, %v4667
      %4672 = vst [vmem:[#allocation3] sm:$0xff] 0.0
      %4673 = vst [vmem:[#allocation3 + $0x8] sm:$0x3] 0.0
      %4674 = vst [vmem:[#allocation3 + $0x10] sm:$0xff] 0.0
      %4675 = vst [vmem:[#allocation3 + $0x18] sm:$0x3] 0.0
      %4676 = vst [vmem:[#allocation3 + $0x20] sm:$0xff] 0.0
      %4677 = vst [vmem:[#allocation3 + $0x28] sm:$0x3] 0.0
      %4678 = vst [vmem:[#allocation3 + $0x30] sm:$0xff] 0.0
      %4679 = vst [vmem:[#allocation3 + $0x38] sm:$0x3] 0.0
      %4680 = vst [vmem:[#allocation3 + $0x40] sm:$0xff] 0.0
      %4681 = vst [vmem:[#allocation3 + $0x48] sm:$0x3] 0.0
      %4682 = vst [vmem:[#allocation3 + $0x50] sm:$0xff] 0.0
      %4683 = vst [vmem:[#allocation3 + $0x58] sm:$0x3] 0.0
      %4684 = vst [vmem:[#allocation3 + $0x60] sm:$0xff] 0.0
      %4685 = vst [vmem:[#allocation3 + $0x68] sm:$0x3] 0.0
      %4686 = vst [vmem:[#allocation3 + $0x70] sm:$0xff] 0.0
      %4687 = vst [vmem:[#allocation3 + $0x78] sm:$0x3] 0.0
      %4688 = vst [vmem:[#allocation3 + $0x80] sm:$0xff] 0.0
      %4689 = vst [vmem:[#allocation3 + $0x88] sm:$0x3] 0.0
      %4690 = vst [vmem:[#allocation3 + $0x90] sm:$0xff] 0.0
      %4691 = vst [vmem:[#allocation3 + $0x98] sm:$0x3] 0.0
      %v4692 = vsel %vm2794, %v4668, -inf
      %v4693 = vrot.slane %v4692, 4
      %v4694 = vmax.f32 %v4692, %v4693
      %v4695 = vrot.slane %v4694, 2
      %v4696 = vmax.f32 %v4694, %v4695
      %v4697 = vrot.slane %v4696, 1
      %v4698 = vmax.f32 %v4696, %v4697
      %v4699 = vsel %vm2794, %v4669, -inf
      %v4700 = vrot.slane %v4699, 4
      %v4701 = vmax.f32 %v4699, %v4700
      %v4702 = vrot.slane %v4701, 2
      %v4703 = vmax.f32 %v4701, %v4702
      %v4704 = vrot.slane %v4703, 1
      %v4705 = vmax.f32 %v4703, %v4704
      %v4706 = vsel %vm2794, %v4670, -inf
      %v4707 = vrot.slane %v4706, 4
      %v4708 = vmax.f32 %v4706, %v4707
      %v4709 = vrot.slane %v4708, 2
      %v4710 = vmax.f32 %v4708, %v4709
      %v4711 = vrot.slane %v4710, 1
      %v4712 = vmax.f32 %v4710, %v4711
      %v4713 = vsel %vm2794, %v4671, -inf
      %v4714 = vrot.slane %v4713, 4
      %v4715 = vmax.f32 %v4713, %v4714
      %v4716 = vrot.slane %v4715, 2
      %v4717 = vmax.f32 %v4715, %v4716
      %v4718 = vrot.slane %v4717, 1
      %v4719 = vmax.f32 %v4717, %v4718
      %s4720 = scalar_lea.vmem [#allocation3], 16
      %4721 = vst [vmem:[%s4720 + $0x1] sm:$0x1] %v4698
      %4722 = vst [vmem:[%s4720 + $0x11] sm:$0x1] %v4698
      %4723 = vst [vmem:[%s4720 + $0x21] sm:$0x1] %v4705
      %4724 = vst [vmem:[%s4720 + $0x31] sm:$0x1] %v4705
      %4725 = vst [vmem:[%s4720 + $0x41] sm:$0x1] %v4712
      %4726 = vst [vmem:[%s4720 + $0x51] sm:$0x1] %v4712
      %4727 = vst [vmem:[%s4720 + $0x61] sm:$0x1] %v4719
      %4728 = vst [vmem:[%s4720 + $0x71] sm:$0x1] %v4719
      %4729 = vst [vmem:[%s4720 + $0x2] sm:$0x1] %v4698
      %4730 = vst [vmem:[%s4720 + $0x12] sm:$0x1] %v4698
      %4731 = vst [vmem:[%s4720 + $0x22] sm:$0x1] %v4705
      %4732 = vst [vmem:[%s4720 + $0x32] sm:$0x1] %v4705
      %4733 = vst [vmem:[%s4720 + $0x42] sm:$0x1] %v4712
      %4734 = vst [vmem:[%s4720 + $0x52] sm:$0x1] %v4712
      %4735 = vst [vmem:[%s4720 + $0x62] sm:$0x1] %v4719
      %4736 = vst [vmem:[%s4720 + $0x72] sm:$0x1] %v4719
      %v4737 = vsel %vm2860, %v4668, -inf
      %v4738 = vrot.slane %v4737, 4
      %v4739 = vmax.f32 %v4737, %v4738
      %v4740 = vrot.slane %v4739, 2
      %v4741 = vmax.f32 %v4739, %v4740
      %v4742 = vrot.slane %v4741, 1
      %v4743 = vmax.f32 %v4741, %v4742
      %v4744 = vsel %vm2860, %v4669, -inf
      %v4745 = vrot.slane %v4744, 4
      %v4746 = vmax.f32 %v4744, %v4745
      %v4747 = vrot.slane %v4746, 2
      %v4748 = vmax.f32 %v4746, %v4747
      %v4749 = vrot.slane %v4748, 1
      %v4750 = vmax.f32 %v4748, %v4749
      %v4751 = vsel %vm2860, %v4670, -inf
      %v4752 = vrot.slane %v4751, 4
      %v4753 = vmax.f32 %v4751, %v4752
      %v4754 = vrot.slane %v4753, 2
      %v4755 = vmax.f32 %v4753, %v4754
      %v4756 = vrot.slane %v4755, 1
      %v4757 = vmax.f32 %v4755, %v4756
      %v4758 = vsel %vm2860, %v4671, -inf
      %v4759 = vrot.slane %v4758, 4
      %v4760 = vmax.f32 %v4758, %v4759
      %v4761 = vrot.slane %v4760, 2
      %v4762 = vmax.f32 %v4760, %v4761
      %v4763 = vrot.slane %v4762, 1
      %v4764 = vmax.f32 %v4762, %v4763
      %4765 = vst [vmem:[%s4720 + $0x3] sm:$0x1] %v4743
      %4766 = vst [vmem:[%s4720 + $0x13] sm:$0x1] %v4743
      %4767 = vst [vmem:[%s4720 + $0x23] sm:$0x1] %v4750
      %4768 = vst [vmem:[%s4720 + $0x33] sm:$0x1] %v4750
      %4769 = vst [vmem:[%s4720 + $0x43] sm:$0x1] %v4757
      %4770 = vst [vmem:[%s4720 + $0x53] sm:$0x1] %v4757
      %4771 = vst [vmem:[%s4720 + $0x63] sm:$0x1] %v4764
      %4772 = vst [vmem:[%s4720 + $0x73] sm:$0x1] %v4764
      %4773 = vst [vmem:[%s4720 + $0x4] sm:$0x1] %v4743
      %4774 = vst [vmem:[%s4720 + $0x14] sm:$0x1] %v4743
      %4775 = vst [vmem:[%s4720 + $0x24] sm:$0x1] %v4750
      %4776 = vst [vmem:[%s4720 + $0x34] sm:$0x1] %v4750
      %4777 = vst [vmem:[%s4720 + $0x44] sm:$0x1] %v4757
      %4778 = vst [vmem:[%s4720 + $0x54] sm:$0x1] %v4757
      %4779 = vst [vmem:[%s4720 + $0x64] sm:$0x1] %v4764
      %4780 = vst [vmem:[%s4720 + $0x74] sm:$0x1] %v4764
      %v4781 = vsel %vm2925, %v4668, -inf
      %v4782 = vrot.slane %v4781, 4
      %v4783 = vmax.f32 %v4781, %v4782
      %v4784 = vrot.slane %v4783, 2
      %v4785 = vmax.f32 %v4783, %v4784
      %v4786 = vrot.slane %v4785, 1
      %v4787 = vmax.f32 %v4785, %v4786
      %v4788 = vsel %vm2925, %v4669, -inf
      %v4789 = vrot.slane %v4788, 4
      %v4790 = vmax.f32 %v4788, %v4789
      %v4791 = vrot.slane %v4790, 2
      %v4792 = vmax.f32 %v4790, %v4791
      %v4793 = vrot.slane %v4792, 1
      %v4794 = vmax.f32 %v4792, %v4793
      %v4795 = vsel %vm2925, %v4670, -inf
      %v4796 = vrot.slane %v4795, 4
      %v4797 = vmax.f32 %v4795, %v4796
      %v4798 = vrot.slane %v4797, 2
      %v4799 = vmax.f32 %v4797, %v4798
      %v4800 = vrot.slane %v4799, 1
      %v4801 = vmax.f32 %v4799, %v4800
      %v4802 = vsel %vm2925, %v4671, -inf
      %v4803 = vrot.slane %v4802, 4
      %v4804 = vmax.f32 %v4802, %v4803
      %v4805 = vrot.slane %v4804, 2
      %v4806 = vmax.f32 %v4804, %v4805
      %v4807 = vrot.slane %v4806, 1
      %v4808 = vmax.f32 %v4806, %v4807
      %4809 = vst [vmem:[%s4720 + $0x5] sm:$0x1] %v4787
      %4810 = vst [vmem:[%s4720 + $0x15] sm:$0x1] %v4787
      %4811 = vst [vmem:[%s4720 + $0x25] sm:$0x1] %v4794
      %4812 = vst [vmem:[%s4720 + $0x35] sm:$0x1] %v4794
      %4813 = vst [vmem:[%s4720 + $0x45] sm:$0x1] %v4801
      %4814 = vst [vmem:[%s4720 + $0x55] sm:$0x1] %v4801
      %4815 = vst [vmem:[%s4720 + $0x65] sm:$0x1] %v4808
      %4816 = vst [vmem:[%s4720 + $0x75] sm:$0x1] %v4808
      %4817 = vst [vmem:[%s4720 + $0x6] sm:$0x1] %v4787
      %4818 = vst [vmem:[%s4720 + $0x16] sm:$0x1] %v4787
      %4819 = vst [vmem:[%s4720 + $0x26] sm:$0x1] %v4794
      %4820 = vst [vmem:[%s4720 + $0x36] sm:$0x1] %v4794
      %4821 = vst [vmem:[%s4720 + $0x46] sm:$0x1] %v4801
      %4822 = vst [vmem:[%s4720 + $0x56] sm:$0x1] %v4801
      %4823 = vst [vmem:[%s4720 + $0x66] sm:$0x1] %v4808
      %4824 = vst [vmem:[%s4720 + $0x76] sm:$0x1] %v4808
      %v4825 = vsel %vm2990, %v4668, -inf
      %v4826 = vrot.slane %v4825, 4
      %v4827 = vmax.f32 %v4825, %v4826
      %v4828 = vrot.slane %v4827, 2
      %v4829 = vmax.f32 %v4827, %v4828
      %v4830 = vrot.slane %v4829, 1
      %v4831 = vmax.f32 %v4829, %v4830
      %v4832 = vsel %vm2990, %v4669, -inf
      %v4833 = vrot.slane %v4832, 4
      %v4834 = vmax.f32 %v4832, %v4833
      %v4835 = vrot.slane %v4834, 2
      %v4836 = vmax.f32 %v4834, %v4835
      %v4837 = vrot.slane %v4836, 1
      %v4838 = vmax.f32 %v4836, %v4837
      %v4839 = vsel %vm2990, %v4670, -inf
      %v4840 = vrot.slane %v4839, 4
      %v4841 = vmax.f32 %v4839, %v4840
      %v4842 = vrot.slane %v4841, 2
      %v4843 = vmax.f32 %v4841, %v4842
      %v4844 = vrot.slane %v4843, 1
      %v4845 = vmax.f32 %v4843, %v4844
      %v4846 = vsel %vm2990, %v4671, -inf
      %v4847 = vrot.slane %v4846, 4
      %v4848 = vmax.f32 %v4846, %v4847
      %v4849 = vrot.slane %v4848, 2
      %v4850 = vmax.f32 %v4848, %v4849
      %v4851 = vrot.slane %v4850, 1
      %v4852 = vmax.f32 %v4850, %v4851
      %4853 = vst [vmem:[%s4720 + $0x7] sm:$0x1] %v4831
      %4854 = vst [vmem:[%s4720 + $0x17] sm:$0x1] %v4831
      %4855 = vst [vmem:[%s4720 + $0x27] sm:$0x1] %v4838
      %4856 = vst [vmem:[%s4720 + $0x37] sm:$0x1] %v4838
      %4857 = vst [vmem:[%s4720 + $0x47] sm:$0x1] %v4845
      %4858 = vst [vmem:[%s4720 + $0x57] sm:$0x1] %v4845
      %4859 = vst [vmem:[%s4720 + $0x67] sm:$0x1] %v4852
      %4860 = vst [vmem:[%s4720 + $0x77] sm:$0x1] %v4852
      %4861 = vst [vmem:[%s4720 + $0x8] sm:$0x1] %v4831
      %4862 = vst [vmem:[%s4720 + $0x18] sm:$0x1] %v4831
      %4863 = vst [vmem:[%s4720 + $0x28] sm:$0x1] %v4838
      %4864 = vst [vmem:[%s4720 + $0x38] sm:$0x1] %v4838
      %4865 = vst [vmem:[%s4720 + $0x48] sm:$0x1] %v4845
      %4866 = vst [vmem:[%s4720 + $0x58] sm:$0x1] %v4845
      %4867 = vst [vmem:[%s4720 + $0x68] sm:$0x1] %v4852
      %4868 = vst [vmem:[%s4720 + $0x78] sm:$0x1] %v4852
      %v4869 = vld [vmem:[#allocation3] sm:$0xff]
      %v4870 = vld [vmem:[#allocation3 + $0x10] sm:$0xff]
      %v4871 = vld [vmem:[#allocation3 + $0x20] sm:$0xff]
      %v4872 = vld [vmem:[#allocation3 + $0x30] sm:$0xff]
      %v4873 = vld [vmem:[#allocation3 + $0x40] sm:$0xff]
      %v4874 = vld [vmem:[#allocation3 + $0x50] sm:$0xff]
      %v4875 = vld [vmem:[#allocation3 + $0x60] sm:$0xff]
      %v4876 = vld [vmem:[#allocation3 + $0x70] sm:$0xff]
      %v4877 = vpack.c.bf16 %v4870, %v4869
      %v4878 = vpack.c.bf16 %v4872, %v4871
      %v4879 = vpack.c.bf16 %v4874, %v4873
      %v4880 = vpack.c.bf16 %v4876, %v4875
      %v4881 = vld [vmem:[%s5] sm:$0xf]
      %v4882 = vld [vmem:[%s5 + $0x4] sm:$0xf]
      %v4883 = vld [vmem:[%s5 + $0x8] sm:$0xf]
      %v4884 = vld [vmem:[%s5 + $0xc] sm:$0xf]
      %v4885 = vld [vmem:[%s5 + $0x10] sm:$0xf]
      %v4886 = vld [vmem:[%s5 + $0x14] sm:$0xf]
      %v4887 = vld [vmem:[%s5 + $0x18] sm:$0xf]
      %v4888 = vld [vmem:[%s5 + $0x1c] sm:$0xf]
      %v4889 = vld [vmem:[%s5 + $0x20] sm:$0xf]
      %v4890 = vld [vmem:[%s5 + $0x24] sm:$0xf]
      %v4891 = vld [vmem:[%s5 + $0x28] sm:$0xf]
      %v4892 = vld [vmem:[%s5 + $0x2c] sm:$0xf]
      %v4893 = vld [vmem:[%s5 + $0x30] sm:$0xf]
      %v4894 = vld [vmem:[%s5 + $0x34] sm:$0xf]
      %v4895 = vld [vmem:[%s5 + $0x38] sm:$0xf]
      %v4896 = vld [vmem:[%s5 + $0x3c] sm:$0xf]
      %v4897 = vld [vmem:[#allocation3 + $0x1] sm:$0xff]
      %v4898 = vld [vmem:[#allocation3 + $0x11] sm:$0xff]
      %v4899 = vld [vmem:[#allocation3 + $0x21] sm:$0xff]
      %v4900 = vld [vmem:[#allocation3 + $0x31] sm:$0xff]
      %v4901 = vld [vmem:[#allocation3 + $0x41] sm:$0xff]
      %v4902 = vld [vmem:[#allocation3 + $0x51] sm:$0xff]
      %v4903 = vld [vmem:[#allocation3 + $0x61] sm:$0xff]
      %v4904 = vld [vmem:[#allocation3 + $0x71] sm:$0xff]
      %v4905 = vpack.c.bf16 %v4898, %v4897
      %v4906 = vpack.c.bf16 %v4900, %v4899
      %v4907 = vpack.c.bf16 %v4902, %v4901
      %v4908 = vpack.c.bf16 %v4904, %v4903
      %s4909 = scalar_lea.vmem %s5, 64
      %v4910 = vld [vmem:[%s4909] sm:$0xf]
      %v4911 = vld [vmem:[%s4909 + $0x4] sm:$0xf]
      %v4912 = vld [vmem:[%s4909 + $0x8] sm:$0xf]
      %v4913 = vld [vmem:[%s4909 + $0xc] sm:$0xf]
      %v4914 = vld [vmem:[%s4909 + $0x10] sm:$0xf]
      %v4915 = vld [vmem:[%s4909 + $0x14] sm:$0xf]
      %v4916 = vld [vmem:[%s4909 + $0x18] sm:$0xf]
      %v4917 = vld [vmem:[%s4909 + $0x1c] sm:$0xf]
      %v4918 = vld [vmem:[%s4909 + $0x20] sm:$0xf]
      %v4919 = vld [vmem:[%s4909 + $0x24] sm:$0xf]
      %v4920 = vld [vmem:[%s4909 + $0x28] sm:$0xf]
      %v4921 = vld [vmem:[%s4909 + $0x2c] sm:$0xf]
      %v4922 = vld [vmem:[%s4909 + $0x30] sm:$0xf]
      %v4923 = vld [vmem:[%s4909 + $0x34] sm:$0xf]
      %v4924 = vld [vmem:[%s4909 + $0x38] sm:$0xf]
      %v4925 = vld [vmem:[%s4909 + $0x3c] sm:$0xf]
      %v4942 = vunpack.c.l.b16 %v4910
      %v4943 = vunpack.c.l.b16 %v4911
      %v4944 = vunpack.c.l.b16 %v4912
      %v4945 = vunpack.c.l.b16 %v4913
      %v4946 = vunpack.c.l.b16 %v4914
      %v4947 = vunpack.c.l.b16 %v4915
      %v4948 = vunpack.c.l.b16 %v4916
      %v4949 = vunpack.c.l.b16 %v4917
      %v4950 = vunpack.c.l.b16 %v4918
      %v4951 = vunpack.c.l.b16 %v4919
      %v4952 = vunpack.c.l.b16 %v4920
      %v4953 = vunpack.c.l.b16 %v4921
      %v4954 = vunpack.c.l.b16 %v4922
      %v4955 = vunpack.c.l.b16 %v4923
      %v4956 = vunpack.c.l.b16 %v4924
      %v4957 = vunpack.c.l.b16 %v4925
      %v4958 = vpack.c.b16 %v4943, %v4942
      %v4959 = vpack.c.b16 %v4945, %v4944
      %v4960 = vpack.c.b16 %v4947, %v4946
      %v4961 = vpack.c.b16 %v4949, %v4948
      %v4962 = vpack.c.b16 %v4951, %v4950
      %v4963 = vpack.c.b16 %v4953, %v4952
      %v4964 = vpack.c.b16 %v4955, %v4954
      %v4965 = vpack.c.b16 %v4957, %v4956
      %4974 = vmatprep.subr.bf16.mxu0 0
      %4975 = vmatpush1.bf16.msra.mxu0 %v4958
      %4976 = vmatprep.subr.bf16.mxu0 0
      %4977 = vmatpush1.bf16.msra.mxu0 %v4959
      %4978 = vmatprep.subr.bf16.mxu0 0
      %4979 = vmatpush1.bf16.msra.mxu0 %v4960
      %4980 = vmatprep.subr.bf16.mxu0 0
      %4981 = vmatpush1.bf16.msra.mxu0 %v4961
      %4982 = vmatprep.subr.bf16.mxu0 0
      %4983 = vmatpush1.bf16.msra.mxu0 %v4962
      %4984 = vmatprep.subr.bf16.mxu0 0
      %4985 = vmatpush1.bf16.msra.mxu0 %v4963
      %4986 = vmatprep.subr.bf16.mxu0 0
      %4987 = vmatpush1.bf16.msra.mxu0 %v4964
      %4988 = vmatprep.subr.bf16.mxu0 0
      %4989 = vmatpush1.bf16.msra.mxu0 %v4965
      %4990 = vmatprep.subr.bf16.mxu0 0
      %4991 = vmatpush1.bf16.msra.mxu0 0
      %4992 = vmatprep.subr.bf16.mxu0 0
      %4993 = vmatpush1.bf16.msra.mxu0 0
      %4994 = vmatprep.subr.bf16.mxu0 0
      %4995 = vmatpush1.bf16.msra.mxu0 0
      %4996 = vmatprep.subr.bf16.mxu0 0
      %4997 = vmatpush1.bf16.msra.mxu0 0
      %4998 = vmatprep.subr.bf16.mxu0 0
      %4999 = vmatpush1.bf16.msra.mxu0 0
      %5000 = vmatprep.subr.bf16.mxu0 0
      %5001 = vmatpush1.bf16.msra.mxu0 0
      %5002 = vmatprep.subr.bf16.mxu0 0
      %5003 = vmatpush1.bf16.msra.mxu0 0
      %5004 = vmatprep.subr.bf16.mxu0 0
      %5005 = vmatpush1.bf16.msra.mxu0 0
      %5006 = vmatprep.mubr.bf16.mxu0 0
      %5007 = vmatmul.mubr.bf16.gmra.mrb[0].mxu0 %v4905
      %v5008 = vpop.f32.mrb[0].mxu0
      %v5009 = vadd.f32 0.0, %v5008
      %v5010 = vpop.f32.mrb[0].mxu0
      %v5011 = vpop.f32.mrb[0].mxu0
      %v5012 = vadd.f32 0.0, %v5011
      %v5013 = vpop.f32.mrb[0].mxu0
      %5014 = vmatprep.mubr.bf16.mxu0 0
      %5015 = vmatmul.mubr.bf16.gmra.mrb[0].mxu0 %v4906
      %v5016 = vpop.f32.mrb[0].mxu0
      %v5017 = vadd.f32 0.0, %v5016
      %v5018 = vpop.f32.mrb[0].mxu0
      %v5019 = vpop.f32.mrb[0].mxu0
      %v5020 = vadd.f32 0.0, %v5019
      %v5021 = vpop.f32.mrb[0].mxu0
      %5022 = vmatprep.mubr.bf16.mxu0 0
      %5023 = vmatmul.mubr.bf16.gmra.mrb[0].mxu0 %v4907
      %v5024 = vpop.f32.mrb[0].mxu0
      %v5025 = vadd.f32 0.0, %v5024
      %v5026 = vpop.f32.mrb[0].mxu0
      %v5027 = vpop.f32.mrb[0].mxu0
      %v5028 = vadd.f32 0.0, %v5027
      %v5029 = vpop.f32.mrb[0].mxu0
      %5030 = vmatprep.mubr.bf16.mxu0 0
      %5031 = vmatmul.mubr.bf16.gmra.mrb[0].mxu0 %v4908
      %v5032 = vpop.f32.mrb[0].mxu0
      %v5033 = vadd.f32 0.0, %v5032
      %v5034 = vpop.f32.mrb[0].mxu0
      %v5035 = vpop.f32.mrb[0].mxu0
      %v5036 = vadd.f32 0.0, %v5035
      %v5037 = vpop.f32.mrb[0].mxu0
      %5038 = vdwg.mxu0
      %v5055 = vunpack.c.l.b16 %v4881
      %v5056 = vunpack.c.l.b16 %v4882
      %v5057 = vunpack.c.l.b16 %v4883
      %v5058 = vunpack.c.l.b16 %v4884
      %v5059 = vunpack.c.l.b16 %v4885
      %v5060 = vunpack.c.l.b16 %v4886
      %v5061 = vunpack.c.l.b16 %v4887
      %v5062 = vunpack.c.l.b16 %v4888
      %v5063 = vunpack.c.l.b16 %v4889
      %v5064 = vunpack.c.l.b16 %v4890
      %v5065 = vunpack.c.l.b16 %v4891
      %v5066 = vunpack.c.l.b16 %v4892
      %v5067 = vunpack.c.l.b16 %v4893
      %v5068 = vunpack.c.l.b16 %v4894
      %v5069 = vunpack.c.l.b16 %v4895
      %v5070 = vunpack.c.l.b16 %v4896
      %v5071 = vpack.c.b16 %v5056, %v5055
      %v5072 = vpack.c.b16 %v5058, %v5057
      %v5073 = vpack.c.b16 %v5060, %v5059
      %v5074 = vpack.c.b16 %v5062, %v5061
      %v5075 = vpack.c.b16 %v5064, %v5063
      %v5076 = vpack.c.b16 %v5066, %v5065
      %v5077 = vpack.c.b16 %v5068, %v5067
      %v5078 = vpack.c.b16 %v5070, %v5069
      %5087 = vmatprep.subr.bf16.mxu0 0
      %5088 = vmatpush1.bf16.msra.mxu0 %v5071
      %5089 = vmatprep.subr.bf16.mxu0 0
      %5090 = vmatpush1.bf16.msra.mxu0 %v5072
      %5091 = vmatprep.subr.bf16.mxu0 0
      %5092 = vmatpush1.bf16.msra.mxu0 %v5073
      %5093 = vmatprep.subr.bf16.mxu0 0
      %5094 = vmatpush1.bf16.msra.mxu0 %v5074
      %5095 = vmatprep.subr.bf16.mxu0 0
      %5096 = vmatpush1.bf16.msra.mxu0 %v5075
      %5097 = vmatprep.subr.bf16.mxu0 0
      %5098 = vmatpush1.bf16.msra.mxu0 %v5076
      %5099 = vmatprep.subr.bf16.mxu0 0
      %5100 = vmatpush1.bf16.msra.mxu0 %v5077
      %5101 = vmatprep.subr.bf16.mxu0 0
      %5102 = vmatpush1.bf16.msra.mxu0 %v5078
      %5103 = vmatprep.subr.bf16.mxu0 0
      %5104 = vmatpush1.bf16.msra.mxu0 0
      %5105 = vmatprep.subr.bf16.mxu0 0
      %5106 = vmatpush1.bf16.msra.mxu0 0
      %5107 = vmatprep.subr.bf16.mxu0 0
      %5108 = vmatpush1.bf16.msra.mxu0 0
      %5109 = vmatprep.subr.bf16.mxu0 0
      %5110 = vmatpush1.bf16.msra.mxu0 0
      %5111 = vmatprep.subr.bf16.mxu0 0
      %5112 = vmatpush1.bf16.msra.mxu0 0
      %5113 = vmatprep.subr.bf16.mxu0 0
      %5114 = vmatpush1.bf16.msra.mxu0 0
      %5115 = vmatprep.subr.bf16.mxu0 0
      %5116 = vmatpush1.bf16.msra.mxu0 0
      %5117 = vmatprep.subr.bf16.mxu0 0
      %5118 = vmatpush1.bf16.msra.mxu0 0
      %5119 = vmatprep.mubr.bf16.mxu0 0
      %5120 = vmatmul.mubr.bf16.gmra.mrb[0].mxu0 %v4877
      %v5121 = vpop.f32.mrb[0].mxu0
      %v5122 = vadd.f32 %v5009, %v5121
      %v5123 = vpop.f32.mrb[0].mxu0
      %v5124 = vpop.f32.mrb[0].mxu0
      %v5125 = vadd.f32 %v5012, %v5124
      %v5126 = vpop.f32.mrb[0].mxu0
      %5127 = vmatprep.mubr.bf16.mxu0 0
      %5128 = vmatmul.mubr.bf16.gmra.mrb[0].mxu0 %v4878
      %v5129 = vpop.f32.mrb[0].mxu0
      %v5130 = vadd.f32 %v5017, %v5129
      %v5131 = vpop.f32.mrb[0].mxu0
      %v5132 = vpop.f32.mrb[0].mxu0
      %v5133 = vadd.f32 %v5020, %v5132
      %v5134 = vpop.f32.mrb[0].mxu0
      %5135 = vmatprep.mubr.bf16.mxu0 0
      %5136 = vmatmul.mubr.bf16.gmra.mrb[0].mxu0 %v4879
      %v5137 = vpop.f32.mrb[0].mxu0
      %v5138 = vadd.f32 %v5025, %v5137
      %v5139 = vpop.f32.mrb[0].mxu0
      %v5140 = vpop.f32.mrb[0].mxu0
      %v5141 = vadd.f32 %v5028, %v5140
      %v5142 = vpop.f32.mrb[0].mxu0
      %5143 = vmatprep.mubr.bf16.mxu0 0
      %5144 = vmatmul.mubr.bf16.gmra.mrb[0].mxu0 %v4880
      %v5145 = vpop.f32.mrb[0].mxu0
      %v5146 = vadd.f32 %v5033, %v5145
      %v5147 = vpop.f32.mrb[0].mxu0
      %v5148 = vpop.f32.mrb[0].mxu0
      %v5149 = vadd.f32 %v5036, %v5148
      %v5150 = vpop.f32.mrb[0].mxu0
      %5151 = vdwg.mxu0
      %v5152 = vld [vmem:[#allocation3 + $0x2] sm:$0xff]
      %v5153 = vld [vmem:[#allocation3 + $0x12] sm:$0xff]
      %v5154 = vld [vmem:[#allocation3 + $0x22] sm:$0xff]
      %v5155 = vld [vmem:[#allocation3 + $0x32] sm:$0xff]
      %v5156 = vld [vmem:[#allocation3 + $0x42] sm:$0xff]
      %v5157 = vld [vmem:[#allocation3 + $0x52] sm:$0xff]
      %v5158 = vld [vmem:[#allocation3 + $0x62] sm:$0xff]
      %v5159 = vld [vmem:[#allocation3 + $0x72] sm:$0xff]
      %v5160 = vpack.c.bf16 %v5153, %v5152
      %v5161 = vpack.c.bf16 %v5155, %v5154
      %v5162 = vpack.c.bf16 %v5157, %v5156
      %v5163 = vpack.c.bf16 %v5159, %v5158
      %s5164 = scalar_lea.vmem %s5, 128
      %v5165 = vld [vmem:[%s5164] sm:$0xf]
      %v5166 = vld [vmem:[%s5164 + $0x4] sm:$0xf]
      %v5167 = vld [vmem:[%s5164 + $0x8] sm:$0xf]
      %v5168 = vld [vmem:[%s5164 + $0xc] sm:$0xf]
      %v5169 = vld [vmem:[%s5164 + $0x10] sm:$0xf]
      %v5170 = vld [vmem:[%s5164 + $0x14] sm:$0xf]
      %v5171 = vld [vmem:[%s5164 + $0x18] sm:$0xf]
      %v5172 = vld [vmem:[%s5164 + $0x1c] sm:$0xf]
      %v5173 = vld [vmem:[%s5164 + $0x20] sm:$0xf]
      %v5174 = vld [vmem:[%s5164 + $0x24] sm:$0xf]
      %v5175 = vld [vmem:[%s5164 + $0x28] sm:$0xf]
      %v5176 = vld [vmem:[%s5164 + $0x2c] sm:$0xf]
      %v5177 = vld [vmem:[%s5164 + $0x30] sm:$0xf]
      %v5178 = vld [vmem:[%s5164 + $0x34] sm:$0xf]
      %v5179 = vld [vmem:[%s5164 + $0x38] sm:$0xf]
      %v5180 = vld [vmem:[%s5164 + $0x3c] sm:$0xf]
      %v5197 = vunpack.c.l.b16 %v5165
      %v5198 = vunpack.c.l.b16 %v5166
      %v5199 = vunpack.c.l.b16 %v5167
      %v5200 = vunpack.c.l.b16 %v5168
      %v5201 = vunpack.c.l.b16 %v5169
      %v5202 = vunpack.c.l.b16 %v5170
      %v5203 = vunpack.c.l.b16 %v5171
      %v5204 = vunpack.c.l.b16 %v5172
      %v5205 = vunpack.c.l.b16 %v5173
      %v5206 = vunpack.c.l.b16 %v5174
      %v5207 = vunpack.c.l.b16 %v5175
      %v5208 = vunpack.c.l.b16 %v5176
      %v5209 = vunpack.c.l.b16 %v5177
      %v5210 = vunpack.c.l.b16 %v5178
      %v5211 = vunpack.c.l.b16 %v5179
      %v5212 = vunpack.c.l.b16 %v5180
      %v5213 = vpack.c.b16 %v5198, %v5197
      %v5214 = vpack.c.b16 %v5200, %v5199
      %v5215 = vpack.c.b16 %v5202, %v5201
      %v5216 = vpack.c.b16 %v5204, %v5203
      %v5217 = vpack.c.b16 %v5206, %v5205
      %v5218 = vpack.c.b16 %v5208, %v5207
      %v5219 = vpack.c.b16 %v5210, %v5209
      %v5220 = vpack.c.b16 %v5212, %v5211
      %5229 = vmatprep.subr.bf16.mxu0 0
      %5230 = vmatpush1.bf16.msra.mxu0 %v5213
      %5231 = vmatprep.subr.bf16.mxu0 0
      %5232 = vmatpush1.bf16.msra.mxu0 %v5214
      %5233 = vmatprep.subr.bf16.mxu0 0
      %5234 = vmatpush1.bf16.msra.mxu0 %v5215
      %5235 = vmatprep.subr.bf16.mxu0 0
      %5236 = vmatpush1.bf16.msra.mxu0 %v5216
      %5237 = vmatprep.subr.bf16.mxu0 0
      %5238 = vmatpush1.bf16.msra.mxu0 %v5217
      %5239 = vmatprep.subr.bf16.mxu0 0
      %5240 = vmatpush1.bf16.msra.mxu0 %v5218
      %5241 = vmatprep.subr.bf16.mxu0 0
      %5242 = vmatpush1.bf16.msra.mxu0 %v5219
      %5243 = vmatprep.subr.bf16.mxu0 0
      %5244 = vmatpush1.bf16.msra.mxu0 %v5220
      %5245 = vmatprep.subr.bf16.mxu0 0
      %5246 = vmatpush1.bf16.msra.mxu0 0
      %5247 = vmatprep.subr.bf16.mxu0 0
      %5248 = vmatpush1.bf16.msra.mxu0 0
      %5249 = vmatprep.subr.bf16.mxu0 0
      %5250 = vmatpush1.bf16.msra.mxu0 0
      %5251 = vmatprep.subr.bf16.mxu0 0
      %5252 = vmatpush1.bf16.msra.mxu0 0
      %5253 = vmatprep.subr.bf16.mxu0 0
      %5254 = vmatpush1.bf16.msra.mxu0 0
      %5255 = vmatprep.subr.bf16.mxu0 0
      %5256 = vmatpush1.bf16.msra.mxu0 0
      %5257 = vmatprep.subr.bf16.mxu0 0
      %5258 = vmatpush1.bf16.msra.mxu0 0
      %5259 = vmatprep.subr.bf16.mxu0 0
      %5260 = vmatpush1.bf16.msra.mxu0 0
      %5261 = vmatprep.mubr.bf16.mxu0 0
      %5262 = vmatmul.mubr.bf16.gmra.mrb[0].mxu0 %v5160
      %v5263 = vpop.f32.mrb[0].mxu0
      %v5264 = vadd.f32 0.0, %v5263
      %v5265 = vpop.f32.mrb[0].mxu0
      %v5266 = vpop.f32.mrb[0].mxu0
      %v5267 = vadd.f32 0.0, %v5266
      %v5268 = vpop.f32.mrb[0].mxu0
      %5269 = vmatprep.mubr.bf16.mxu0 0
      %5270 = vmatmul.mubr.bf16.gmra.mrb[0].mxu0 %v5161
      %v5271 = vpop.f32.mrb[0].mxu0
      %v5272 = vadd.f32 0.0, %v5271
      %v5273 = vpop.f32.mrb[0].mxu0
      %v5274 = vpop.f32.mrb[0].mxu0
      %v5275 = vadd.f32 0.0, %v5274
      %v5276 = vpop.f32.mrb[0].mxu0
      %5277 = vmatprep.mubr.bf16.mxu0 0
      %5278 = vmatmul.mubr.bf16.gmra.mrb[0].mxu0 %v5162
      %v5279 = vpop.f32.mrb[0].mxu0
      %v5280 = vadd.f32 0.0, %v5279
      %v5281 = vpop.f32.mrb[0].mxu0
      %v5282 = vpop.f32.mrb[0].mxu0
      %v5283 = vadd.f32 0.0, %v5282
      %v5284 = vpop.f32.mrb[0].mxu0
      %5285 = vmatprep.mubr.bf16.mxu0 0
      %5286 = vmatmul.mubr.bf16.gmra.mrb[0].mxu0 %v5163
      %v5287 = vpop.f32.mrb[0].mxu0
      %v5288 = vadd.f32 0.0, %v5287
      %v5289 = vpop.f32.mrb[0].mxu0
      %v5290 = vpop.f32.mrb[0].mxu0
      %v5291 = vadd.f32 0.0, %v5290
      %v5292 = vpop.f32.mrb[0].mxu0
      %5293 = vdwg.mxu0
      %v5294 = vadd.f32 %v5122, %v5264
      %v5295 = vadd.f32 %v5125, %v5267
      %v5296 = vadd.f32 %v5130, %v5272
      %v5297 = vadd.f32 %v5133, %v5275
      %v5298 = vadd.f32 %v5138, %v5280
      %v5299 = vadd.f32 %v5141, %v5283
      %v5300 = vadd.f32 %v5146, %v5288
      %v5301 = vadd.f32 %v5149, %v5291
      %v5302 = vld [vmem:[%s4720] sm:$0xff]
      %v5303 = vld [vmem:[%s4720 + $0x10] sm:$0xff]
      %v5304 = vld [vmem:[%s4720 + $0x20] sm:$0xff]
      %v5305 = vld [vmem:[%s4720 + $0x30] sm:$0xff]
      %v5306 = vld [vmem:[%s4720 + $0x40] sm:$0xff]
      %v5307 = vld [vmem:[%s4720 + $0x50] sm:$0xff]
      %v5308 = vld [vmem:[%s4720 + $0x60] sm:$0xff]
      %v5309 = vld [vmem:[%s4720 + $0x70] sm:$0xff]
      %v5310 = vpack.c.bf16 %v5303, %v5302
      %v5311 = vpack.c.bf16 %v5305, %v5304
      %v5312 = vpack.c.bf16 %v5307, %v5306
      %v5313 = vpack.c.bf16 %v5309, %v5308
      %s5314 = scalar_lea.vmem %s5, 192
      %v5315 = vld [vmem:[%s5314] sm:$0xf]
      %v5316 = vld [vmem:[%s5314 + $0x4] sm:$0xf]
      %v5317 = vld [vmem:[%s5314 + $0x8] sm:$0xf]
      %v5318 = vld [vmem:[%s5314 + $0xc] sm:$0xf]
      %v5319 = vld [vmem:[%s5314 + $0x10] sm:$0xf]
      %v5320 = vld [vmem:[%s5314 + $0x14] sm:$0xf]
      %v5321 = vld [vmem:[%s5314 + $0x18] sm:$0xf]
      %v5322 = vld [vmem:[%s5314 + $0x1c] sm:$0xf]
      %v5323 = vld [vmem:[%s5314 + $0x20] sm:$0xf]
      %v5324 = vld [vmem:[%s5314 + $0x24] sm:$0xf]
      %v5325 = vld [vmem:[%s5314 + $0x28] sm:$0xf]
      %v5326 = vld [vmem:[%s5314 + $0x2c] sm:$0xf]
      %v5327 = vld [vmem:[%s5314 + $0x30] sm:$0xf]
      %v5328 = vld [vmem:[%s5314 + $0x34] sm:$0xf]
      %v5329 = vld [vmem:[%s5314 + $0x38] sm:$0xf]
      %v5330 = vld [vmem:[%s5314 + $0x3c] sm:$0xf]
      %v5347 = vunpack.c.l.b16 %v5315
      %v5348 = vunpack.c.l.b16 %v5316
      %v5349 = vunpack.c.l.b16 %v5317
      %v5350 = vunpack.c.l.b16 %v5318
      %v5351 = vunpack.c.l.b16 %v5319
      %v5352 = vunpack.c.l.b16 %v5320
      %v5353 = vunpack.c.l.b16 %v5321
      %v5354 = vunpack.c.l.b16 %v5322
      %v5355 = vunpack.c.l.b16 %v5323
      %v5356 = vunpack.c.l.b16 %v5324
      %v5357 = vunpack.c.l.b16 %v5325
      %v5358 = vunpack.c.l.b16 %v5326
      %v5359 = vunpack.c.l.b16 %v5327
      %v5360 = vunpack.c.l.b16 %v5328
      %v5361 = vunpack.c.l.b16 %v5329
      %v5362 = vunpack.c.l.b16 %v5330
      %v5363 = vpack.c.b16 %v5348, %v5347
      %v5364 = vpack.c.b16 %v5350, %v5349
      %v5365 = vpack.c.b16 %v5352, %v5351
      %v5366 = vpack.c.b16 %v5354, %v5353
      %v5367 = vpack.c.b16 %v5356, %v5355
      %v5368 = vpack.c.b16 %v5358, %v5357
      %v5369 = vpack.c.b16 %v5360, %v5359
      %v5370 = vpack.c.b16 %v5362, %v5361
      %5379 = vmatprep.subr.bf16.mxu0 0
      %5380 = vmatpush1.bf16.msra.mxu0 %v5363
      %5381 = vmatprep.subr.bf16.mxu0 0
      %5382 = vmatpush1.bf16.msra.mxu0 %v5364
      %5383 = vmatprep.subr.bf16.mxu0 0
      %5384 = vmatpush1.bf16.msra.mxu0 %v5365
      %5385 = vmatprep.subr.bf16.mxu0 0
      %5386 = vmatpush1.bf16.msra.mxu0 %v5366
      %5387 = vmatprep.subr.bf16.mxu0 0
      %5388 = vmatpush1.bf16.msra.mxu0 %v5367
      %5389 = vmatprep.subr.bf16.mxu0 0
      %5390 = vmatpush1.bf16.msra.mxu0 %v5368
      %5391 = vmatprep.subr.bf16.mxu0 0
      %5392 = vmatpush1.bf16.msra.mxu0 %v5369
      %5393 = vmatprep.subr.bf16.mxu0 0
      %5394 = vmatpush1.bf16.msra.mxu0 %v5370
      %5395 = vmatprep.subr.bf16.mxu0 0
      %5396 = vmatpush1.bf16.msra.mxu0 0
      %5397 = vmatprep.subr.bf16.mxu0 0
      %5398 = vmatpush1.bf16.msra.mxu0 0
      %5399 = vmatprep.subr.bf16.mxu0 0
      %5400 = vmatpush1.bf16.msra.mxu0 0
      %5401 = vmatprep.subr.bf16.mxu0 0
      %5402 = vmatpush1.bf16.msra.mxu0 0
      %5403 = vmatprep.subr.bf16.mxu0 0
      %5404 = vmatpush1.bf16.msra.mxu0 0
      %5405 = vmatprep.subr.bf16.mxu0 0
      %5406 = vmatpush1.bf16.msra.mxu0 0
      %5407 = vmatprep.subr.bf16.mxu0 0
      %5408 = vmatpush1.bf16.msra.mxu0 0
      %5409 = vmatprep.subr.bf16.mxu0 0
      %5410 = vmatpush1.bf16.msra.mxu0 0
      %5411 = vmatprep.mubr.bf16.mxu0 0
      %5412 = vmatmul.mubr.bf16.gmra.mrb[0].mxu0 %v5310
      %v5413 = vpop.f32.mrb[0].mxu0
      %v5414 = vadd.f32 0.0, %v5413
      %v5415 = vpop.f32.mrb[0].mxu0
      %v5416 = vpop.f32.mrb[0].mxu0
      %v5417 = vadd.f32 0.0, %v5416
      %v5418 = vpop.f32.mrb[0].mxu0
      %5419 = vmatprep.mubr.bf16.mxu0 0
      %5420 = vmatmul.mubr.bf16.gmra.mrb[0].mxu0 %v5311
      %v5421 = vpop.f32.mrb[0].mxu0
      %v5422 = vadd.f32 0.0, %v5421
      %v5423 = vpop.f32.mrb[0].mxu0
      %v5424 = vpop.f32.mrb[0].mxu0
      %v5425 = vadd.f32 0.0, %v5424
      %v5426 = vpop.f32.mrb[0].mxu0
      %5427 = vmatprep.mubr.bf16.mxu0 0
      %5428 = vmatmul.mubr.bf16.gmra.mrb[0].mxu0 %v5312
      %v5429 = vpop.f32.mrb[0].mxu0
      %v5430 = vadd.f32 0.0, %v5429
      %v5431 = vpop.f32.mrb[0].mxu0
      %v5432 = vpop.f32.mrb[0].mxu0
      %v5433 = vadd.f32 0.0, %v5432
      %v5434 = vpop.f32.mrb[0].mxu0
      %5435 = vmatprep.mubr.bf16.mxu0 0
      %5436 = vmatmul.mubr.bf16.gmra.mrb[0].mxu0 %v5313
      %v5437 = vpop.f32.mrb[0].mxu0
      %v5438 = vadd.f32 0.0, %v5437
      %v5439 = vpop.f32.mrb[0].mxu0
      %v5440 = vpop.f32.mrb[0].mxu0
      %v5441 = vadd.f32 0.0, %v5440
      %v5442 = vpop.f32.mrb[0].mxu0
      %5443 = vdwg.mxu0
      %v5444 = vadd.f32 %v5294, %v5414
      %v5445 = vadd.f32 %v5295, %v5417
      %v5446 = vadd.f32 %v5296, %v5422
      %v5447 = vadd.f32 %v5297, %v5425
      %v5448 = vadd.f32 %v5298, %v5430
      %v5449 = vadd.f32 %v5299, %v5433
      %v5450 = vadd.f32 %v5300, %v5438
      %v5451 = vadd.f32 %v5301, %v5441
      %v5452 = vld [vmem:[%s4720 + $0x1] sm:$0xff]
      %v5453 = vld [vmem:[%s4720 + $0x11] sm:$0xff]
      %v5454 = vld [vmem:[%s4720 + $0x21] sm:$0xff]
      %v5455 = vld [vmem:[%s4720 + $0x31] sm:$0xff]
      %v5456 = vld [vmem:[%s4720 + $0x41] sm:$0xff]
      %v5457 = vld [vmem:[%s4720 + $0x51] sm:$0xff]
      %v5458 = vld [vmem:[%s4720 + $0x61] sm:$0xff]
      %v5459 = vld [vmem:[%s4720 + $0x71] sm:$0xff]
      %v5460 = vpack.c.bf16 %v5453, %v5452
      %v5461 = vpack.c.bf16 %v5455, %v5454
      %v5462 = vpack.c.bf16 %v5457, %v5456
      %v5463 = vpack.c.bf16 %v5459, %v5458
      %s5464 = scalar_lea.vmem %s5, 256
      %v5465 = vld [vmem:[%s5464] sm:$0xf]
      %v5466 = vld [vmem:[%s5464 + $0x4] sm:$0xf]
      %v5467 = vld [vmem:[%s5464 + $0x8] sm:$0xf]
      %v5468 = vld [vmem:[%s5464 + $0xc] sm:$0xf]
      %v5469 = vld [vmem:[%s5464 + $0x10] sm:$0xf]
      %v5470 = vld [vmem:[%s5464 + $0x14] sm:$0xf]
      %v5471 = vld [vmem:[%s5464 + $0x18] sm:$0xf]
      %v5472 = vld [vmem:[%s5464 + $0x1c] sm:$0xf]
      %v5473 = vld [vmem:[%s5464 + $0x20] sm:$0xf]
      %v5474 = vld [vmem:[%s5464 + $0x24] sm:$0xf]
      %v5475 = vld [vmem:[%s5464 + $0x28] sm:$0xf]
      %v5476 = vld [vmem:[%s5464 + $0x2c] sm:$0xf]
      %v5477 = vld [vmem:[%s5464 + $0x30] sm:$0xf]
      %v5478 = vld [vmem:[%s5464 + $0x34] sm:$0xf]
      %v5479 = vld [vmem:[%s5464 + $0x38] sm:$0xf]
      %v5480 = vld [vmem:[%s5464 + $0x3c] sm:$0xf]
      %v5497 = vunpack.c.l.b16 %v5465
      %v5498 = vunpack.c.l.b16 %v5466
      %v5499 = vunpack.c.l.b16 %v5467
      %v5500 = vunpack.c.l.b16 %v5468
      %v5501 = vunpack.c.l.b16 %v5469
      %v5502 = vunpack.c.l.b16 %v5470
      %v5503 = vunpack.c.l.b16 %v5471
      %v5504 = vunpack.c.l.b16 %v5472
      %v5505 = vunpack.c.l.b16 %v5473
      %v5506 = vunpack.c.l.b16 %v5474
      %v5507 = vunpack.c.l.b16 %v5475
      %v5508 = vunpack.c.l.b16 %v5476
      %v5509 = vunpack.c.l.b16 %v5477
      %v5510 = vunpack.c.l.b16 %v5478
      %v5511 = vunpack.c.l.b16 %v5479
      %v5512 = vunpack.c.l.b16 %v5480
      %v5513 = vpack.c.b16 %v5498, %v5497
      %v5514 = vpack.c.b16 %v5500, %v5499
      %v5515 = vpack.c.b16 %v5502, %v5501
      %v5516 = vpack.c.b16 %v5504, %v5503
      %v5517 = vpack.c.b16 %v5506, %v5505
      %v5518 = vpack.c.b16 %v5508, %v5507
      %v5519 = vpack.c.b16 %v5510, %v5509
      %v5520 = vpack.c.b16 %v5512, %v5511
      %5529 = vmatprep.subr.bf16.mxu0 0
      %5530 = vmatpush1.bf16.msra.mxu0 %v5513
      %5531 = vmatprep.subr.bf16.mxu0 0
      %5532 = vmatpush1.bf16.msra.mxu0 %v5514
      %5533 = vmatprep.subr.bf16.mxu0 0
      %5534 = vmatpush1.bf16.msra.mxu0 %v5515
      %5535 = vmatprep.subr.bf16.mxu0 0
      %5536 = vmatpush1.bf16.msra.mxu0 %v5516
      %5537 = vmatprep.subr.bf16.mxu0 0
      %5538 = vmatpush1.bf16.msra.mxu0 %v5517
      %5539 = vmatprep.subr.bf16.mxu0 0
      %5540 = vmatpush1.bf16.msra.mxu0 %v5518
      %5541 = vmatprep.subr.bf16.mxu0 0
      %5542 = vmatpush1.bf16.msra.mxu0 %v5519
      %5543 = vmatprep.subr.bf16.mxu0 0
      %5544 = vmatpush1.bf16.msra.mxu0 %v5520
      %5545 = vmatprep.subr.bf16.mxu0 0
      %5546 = vmatpush1.bf16.msra.mxu0 0
      %5547 = vmatprep.subr.bf16.mxu0 0
      %5548 = vmatpush1.bf16.msra.mxu0 0
      %5549 = vmatprep.subr.bf16.mxu0 0
      %5550 = vmatpush1.bf16.msra.mxu0 0
      %5551 = vmatprep.subr.bf16.mxu0 0
      %5552 = vmatpush1.bf16.msra.mxu0 0
      %5553 = vmatprep.subr.bf16.mxu0 0
      %5554 = vmatpush1.bf16.msra.mxu0 0
      %5555 = vmatprep.subr.bf16.mxu0 0
      %5556 = vmatpush1.bf16.msra.mxu0 0
      %5557 = vmatprep.subr.bf16.mxu0 0
      %5558 = vmatpush1.bf16.msra.mxu0 0
      %5559 = vmatprep.subr.bf16.mxu0 0
      %5560 = vmatpush1.bf16.msra.mxu0 0
      %5561 = vmatprep.mubr.bf16.mxu0 0
      %5562 = vmatmul.mubr.bf16.gmra.mrb[0].mxu0 %v5460
      %v5563 = vpop.f32.mrb[0].mxu0
      %v5564 = vadd.f32 0.0, %v5563
      %v5565 = vpop.f32.mrb[0].mxu0
      %v5566 = vpop.f32.mrb[0].mxu0
      %v5567 = vadd.f32 0.0, %v5566
      %v5568 = vpop.f32.mrb[0].mxu0
      %5569 = vmatprep.mubr.bf16.mxu0 0
      %5570 = vmatmul.mubr.bf16.gmra.mrb[0].mxu0 %v5461
      %v5571 = vpop.f32.mrb[0].mxu0
      %v5572 = vadd.f32 0.0, %v5571
      %v5573 = vpop.f32.mrb[0].mxu0
      %v5574 = vpop.f32.mrb[0].mxu0
      %v5575 = vadd.f32 0.0, %v5574
      %v5576 = vpop.f32.mrb[0].mxu0
      %5577 = vmatprep.mubr.bf16.mxu0 0
      %5578 = vmatmul.mubr.bf16.gmra.mrb[0].mxu0 %v5462
      %v5579 = vpop.f32.mrb[0].mxu0
      %v5580 = vadd.f32 0.0, %v5579
      %v5581 = vpop.f32.mrb[0].mxu0
      %v5582 = vpop.f32.mrb[0].mxu0
      %v5583 = vadd.f32 0.0, %v5582
      %v5584 = vpop.f32.mrb[0].mxu0
      %5585 = vmatprep.mubr.bf16.mxu0 0
      %5586 = vmatmul.mubr.bf16.gmra.mrb[0].mxu0 %v5463
      %v5587 = vpop.f32.mrb[0].mxu0
      %v5588 = vadd.f32 0.0, %v5587
      %v5589 = vpop.f32.mrb[0].mxu0
      %v5590 = vpop.f32.mrb[0].mxu0
      %v5591 = vadd.f32 0.0, %v5590
      %v5592 = vpop.f32.mrb[0].mxu0
      %5593 = vdwg.mxu0
      %v5594 = vadd.f32 %v5444, %v5564
      %v5595 = vadd.f32 %v5445, %v5567
      %v5596 = vadd.f32 %v5446, %v5572
      %v5597 = vadd.f32 %v5447, %v5575
      %v5598 = vadd.f32 %v5448, %v5580
      %v5599 = vadd.f32 %v5449, %v5583
      %v5600 = vadd.f32 %v5450, %v5588
      %v5601 = vadd.f32 %v5451, %v5591
      %v5602 = vld [vmem:[%s4720 + $0x2] sm:$0xff]
      %v5603 = vld [vmem:[%s4720 + $0x12] sm:$0xff]
      %v5604 = vld [vmem:[%s4720 + $0x22] sm:$0xff]
      %v5605 = vld [vmem:[%s4720 + $0x32] sm:$0xff]
      %v5606 = vld [vmem:[%s4720 + $0x42] sm:$0xff]
      %v5607 = vld [vmem:[%s4720 + $0x52] sm:$0xff]
      %v5608 = vld [vmem:[%s4720 + $0x62] sm:$0xff]
      %v5609 = vld [vmem:[%s4720 + $0x72] sm:$0xff]
      %v5610 = vpack.c.bf16 %v5603, %v5602
      %v5611 = vpack.c.bf16 %v5605, %v5604
      %v5612 = vpack.c.bf16 %v5607, %v5606
      %v5613 = vpack.c.bf16 %v5609, %v5608
      %s5614 = scalar_lea.vmem %s5, 320
      %v5615 = vld [vmem:[%s5614] sm:$0xf]
      %v5616 = vld [vmem:[%s5614 + $0x4] sm:$0xf]
      %v5617 = vld [vmem:[%s5614 + $0x8] sm:$0xf]
      %v5618 = vld [vmem:[%s5614 + $0xc] sm:$0xf]
      %v5619 = vld [vmem:[%s5614 + $0x10] sm:$0xf]
      %v5620 = vld [vmem:[%s5614 + $0x14] sm:$0xf]
      %v5621 = vld [vmem:[%s5614 + $0x18] sm:$0xf]
      %v5622 = vld [vmem:[%s5614 + $0x1c] sm:$0xf]
      %v5623 = vld [vmem:[%s5614 + $0x20] sm:$0xf]
      %v5624 = vld [vmem:[%s5614 + $0x24] sm:$0xf]
      %v5625 = vld [vmem:[%s5614 + $0x28] sm:$0xf]
      %v5626 = vld [vmem:[%s5614 + $0x2c] sm:$0xf]
      %v5627 = vld [vmem:[%s5614 + $0x30] sm:$0xf]
      %v5628 = vld [vmem:[%s5614 + $0x34] sm:$0xf]
      %v5629 = vld [vmem:[%s5614 + $0x38] sm:$0xf]
      %v5630 = vld [vmem:[%s5614 + $0x3c] sm:$0xf]
      %v5647 = vunpack.c.l.b16 %v5615
      %v5648 = vunpack.c.l.b16 %v5616
      %v5649 = vunpack.c.l.b16 %v5617
      %v5650 = vunpack.c.l.b16 %v5618
      %v5651 = vunpack.c.l.b16 %v5619
      %v5652 = vunpack.c.l.b16 %v5620
      %v5653 = vunpack.c.l.b16 %v5621
      %v5654 = vunpack.c.l.b16 %v5622
      %v5655 = vunpack.c.l.b16 %v5623
      %v5656 = vunpack.c.l.b16 %v5624
      %v5657 = vunpack.c.l.b16 %v5625
      %v5658 = vunpack.c.l.b16 %v5626
      %v5659 = vunpack.c.l.b16 %v5627
      %v5660 = vunpack.c.l.b16 %v5628
      %v5661 = vunpack.c.l.b16 %v5629
      %v5662 = vunpack.c.l.b16 %v5630
      %v5663 = vpack.c.b16 %v5648, %v5647
      %v5664 = vpack.c.b16 %v5650, %v5649
      %v5665 = vpack.c.b16 %v5652, %v5651
      %v5666 = vpack.c.b16 %v5654, %v5653
      %v5667 = vpack.c.b16 %v5656, %v5655
      %v5668 = vpack.c.b16 %v5658, %v5657
      %v5669 = vpack.c.b16 %v5660, %v5659
      %v5670 = vpack.c.b16 %v5662, %v5661
      %5679 = vmatprep.subr.bf16.mxu0 0
      %5680 = vmatpush1.bf16.msra.mxu0 %v5663
      %5681 = vmatprep.subr.bf16.mxu0 0
      %5682 = vmatpush1.bf16.msra.mxu0 %v5664
      %5683 = vmatprep.subr.bf16.mxu0 0
      %5684 = vmatpush1.bf16.msra.mxu0 %v5665
      %5685 = vmatprep.subr.bf16.mxu0 0
      %5686 = vmatpush1.bf16.msra.mxu0 %v5666
      %5687 = vmatprep.subr.bf16.mxu0 0
      %5688 = vmatpush1.bf16.msra.mxu0 %v5667
      %5689 = vmatprep.subr.bf16.mxu0 0
      %5690 = vmatpush1.bf16.msra.mxu0 %v5668
      %5691 = vmatprep.subr.bf16.mxu0 0
      %5692 = vmatpush1.bf16.msra.mxu0 %v5669
      %5693 = vmatprep.subr.bf16.mxu0 0
      %5694 = vmatpush1.bf16.msra.mxu0 %v5670
      %5695 = vmatprep.subr.bf16.mxu0 0
      %5696 = vmatpush1.bf16.msra.mxu0 0
      %5697 = vmatprep.subr.bf16.mxu0 0
      %5698 = vmatpush1.bf16.msra.mxu0 0
      %5699 = vmatprep.subr.bf16.mxu0 0
      %5700 = vmatpush1.bf16.msra.mxu0 0
      %5701 = vmatprep.subr.bf16.mxu0 0
      %5702 = vmatpush1.bf16.msra.mxu0 0
      %5703 = vmatprep.subr.bf16.mxu0 0
      %5704 = vmatpush1.bf16.msra.mxu0 0
      %5705 = vmatprep.subr.bf16.mxu0 0
      %5706 = vmatpush1.bf16.msra.mxu0 0
      %5707 = vmatprep.subr.bf16.mxu0 0
      %5708 = vmatpush1.bf16.msra.mxu0 0
      %5709 = vmatprep.subr.bf16.mxu0 0
      %5710 = vmatpush1.bf16.msra.mxu0 0
      %5711 = vmatprep.mubr.bf16.mxu0 0
      %5712 = vmatmul.mubr.bf16.gmra.mrb[0].mxu0 %v5610
      %v5713 = vpop.f32.mrb[0].mxu0
      %v5714 = vadd.f32 0.0, %v5713
      %v5715 = vpop.f32.mrb[0].mxu0
      %v5716 = vpop.f32.mrb[0].mxu0
      %v5717 = vadd.f32 0.0, %v5716
      %v5718 = vpop.f32.mrb[0].mxu0
      %5719 = vmatprep.mubr.bf16.mxu0 0
      %5720 = vmatmul.mubr.bf16.gmra.mrb[0].mxu0 %v5611
      %v5721 = vpop.f32.mrb[0].mxu0
      %v5722 = vadd.f32 0.0, %v5721
      %v5723 = vpop.f32.mrb[0].mxu0
      %v5724 = vpop.f32.mrb[0].mxu0
      %v5725 = vadd.f32 0.0, %v5724
      %v5726 = vpop.f32.mrb[0].mxu0
      %5727 = vmatprep.mubr.bf16.mxu0 0
      %5728 = vmatmul.mubr.bf16.gmra.mrb[0].mxu0 %v5612
      %v5729 = vpop.f32.mrb[0].mxu0
      %v5730 = vadd.f32 0.0, %v5729
      %v5731 = vpop.f32.mrb[0].mxu0
      %v5732 = vpop.f32.mrb[0].mxu0
      %v5733 = vadd.f32 0.0, %v5732
      %v5734 = vpop.f32.mrb[0].mxu0
      %5735 = vmatprep.mubr.bf16.mxu0 0
      %5736 = vmatmul.mubr.bf16.gmra.mrb[0].mxu0 %v5613
      %v5737 = vpop.f32.mrb[0].mxu0
      %v5738 = vadd.f32 0.0, %v5737
      %v5739 = vpop.f32.mrb[0].mxu0
      %v5740 = vpop.f32.mrb[0].mxu0
      %v5741 = vadd.f32 0.0, %v5740
      %v5742 = vpop.f32.mrb[0].mxu0
      %5743 = vdwg.mxu0
      %v5744 = vadd.f32 %v5594, %v5714
      %v5745 = vadd.f32 %v5595, %v5717
      %v5746 = vadd.f32 %v5596, %v5722
      %v5747 = vadd.f32 %v5597, %v5725
      %v5748 = vadd.f32 %v5598, %v5730
      %v5749 = vadd.f32 %v5599, %v5733
      %v5750 = vadd.f32 %v5600, %v5738
      %v5751 = vadd.f32 %v5601, %v5741
      %s5752 = scalar_lea.vmem [#allocation3], 32
      %v5753 = vld [vmem:[%s5752] sm:$0xff]
      %v5754 = vld [vmem:[%s5752 + $0x10] sm:$0xff]
      %v5755 = vld [vmem:[%s5752 + $0x20] sm:$0xff]
      %v5756 = vld [vmem:[%s5752 + $0x30] sm:$0xff]
      %v5757 = vld [vmem:[%s5752 + $0x40] sm:$0xff]
      %v5758 = vld [vmem:[%s5752 + $0x50] sm:$0xff]
      %v5759 = vld [vmem:[%s5752 + $0x60] sm:$0xff]
      %v5760 = vld [vmem:[%s5752 + $0x70] sm:$0xff]
      %v5761 = vpack.c.bf16 %v5754, %v5753
      %v5762 = vpack.c.bf16 %v5756, %v5755
      %v5763 = vpack.c.bf16 %v5758, %v5757
      %v5764 = vpack.c.bf16 %v5760, %v5759
      %s5765 = scalar_lea.vmem %s5, 384
      %v5766 = vld [vmem:[%s5765] sm:$0xf]
      %v5767 = vld [vmem:[%s5765 + $0x4] sm:$0xf]
      %v5768 = vld [vmem:[%s5765 + $0x8] sm:$0xf]
      %v5769 = vld [vmem:[%s5765 + $0xc] sm:$0xf]
      %v5770 = vld [vmem:[%s5765 + $0x10] sm:$0xf]
      %v5771 = vld [vmem:[%s5765 + $0x14] sm:$0xf]
      %v5772 = vld [vmem:[%s5765 + $0x18] sm:$0xf]
      %v5773 = vld [vmem:[%s5765 + $0x1c] sm:$0xf]
      %v5774 = vld [vmem:[%s5765 + $0x20] sm:$0xf]
      %v5775 = vld [vmem:[%s5765 + $0x24] sm:$0xf]
      %v5776 = vld [vmem:[%s5765 + $0x28] sm:$0xf]
      %v5777 = vld [vmem:[%s5765 + $0x2c] sm:$0xf]
      %v5778 = vld [vmem:[%s5765 + $0x30] sm:$0xf]
      %v5779 = vld [vmem:[%s5765 + $0x34] sm:$0xf]
      %v5780 = vld [vmem:[%s5765 + $0x38] sm:$0xf]
      %v5781 = vld [vmem:[%s5765 + $0x3c] sm:$0xf]
      %v5798 = vunpack.c.l.b16 %v5766
      %v5799 = vunpack.c.l.b16 %v5767
      %v5800 = vunpack.c.l.b16 %v5768
      %v5801 = vunpack.c.l.b16 %v5769
      %v5802 = vunpack.c.l.b16 %v5770
      %v5803 = vunpack.c.l.b16 %v5771
      %v5804 = vunpack.c.l.b16 %v5772
      %v5805 = vunpack.c.l.b16 %v5773
      %v5806 = vunpack.c.l.b16 %v5774
      %v5807 = vunpack.c.l.b16 %v5775
      %v5808 = vunpack.c.l.b16 %v5776
      %v5809 = vunpack.c.l.b16 %v5777
      %v5810 = vunpack.c.l.b16 %v5778
      %v5811 = vunpack.c.l.b16 %v5779
      %v5812 = vunpack.c.l.b16 %v5780
      %v5813 = vunpack.c.l.b16 %v5781
      %v5814 = vpack.c.b16 %v5799, %v5798
      %v5815 = vpack.c.b16 %v5801, %v5800
      %v5816 = vpack.c.b16 %v5803, %v5802
      %v5817 = vpack.c.b16 %v5805, %v5804
      %v5818 = vpack.c.b16 %v5807, %v5806
      %v5819 = vpack.c.b16 %v5809, %v5808
      %v5820 = vpack.c.b16 %v5811, %v5810
      %v5821 = vpack.c.b16 %v5813, %v5812
      %5830 = vmatprep.subr.bf16.mxu0 0
      %5831 = vmatpush1.bf16.msra.mxu0 %v5814
      %5832 = vmatprep.subr.bf16.mxu0 0
      %5833 = vmatpush1.bf16.msra.mxu0 %v5815
      %5834 = vmatprep.subr.bf16.mxu0 0
      %5835 = vmatpush1.bf16.msra.mxu0 %v5816
      %5836 = vmatprep.subr.bf16.mxu0 0
      %5837 = vmatpush1.bf16.msra.mxu0 %v5817
      %5838 = vmatprep.subr.bf16.mxu0 0
      %5839 = vmatpush1.bf16.msra.mxu0 %v5818
      %5840 = vmatprep.subr.bf16.mxu0 0
      %5841 = vmatpush1.bf16.msra.mxu0 %v5819
      %5842 = vmatprep.subr.bf16.mxu0 0
      %5843 = vmatpush1.bf16.msra.mxu0 %v5820
      %5844 = vmatprep.subr.bf16.mxu0 0
      %5845 = vmatpush1.bf16.msra.mxu0 %v5821
      %5846 = vmatprep.subr.bf16.mxu0 0
      %5847 = vmatpush1.bf16.msra.mxu0 0
      %5848 = vmatprep.subr.bf16.mxu0 0
      %5849 = vmatpush1.bf16.msra.mxu0 0
      %5850 = vmatprep.subr.bf16.mxu0 0
      %5851 = vmatpush1.bf16.msra.mxu0 0
      %5852 = vmatprep.subr.bf16.mxu0 0
      %5853 = vmatpush1.bf16.msra.mxu0 0
      %5854 = vmatprep.subr.bf16.mxu0 0
      %5855 = vmatpush1.bf16.msra.mxu0 0
      %5856 = vmatprep.subr.bf16.mxu0 0
      %5857 = vmatpush1.bf16.msra.mxu0 0
      %5858 = vmatprep.subr.bf16.mxu0 0
      %5859 = vmatpush1.bf16.msra.mxu0 0
      %5860 = vmatprep.subr.bf16.mxu0 0
      %5861 = vmatpush1.bf16.msra.mxu0 0
      %5862 = vmatprep.mubr.bf16.mxu0 0
      %5863 = vmatmul.mubr.bf16.gmra.mrb[0].mxu0 %v5761
      %v5864 = vpop.f32.mrb[0].mxu0
      %v5865 = vadd.f32 0.0, %v5864
      %v5866 = vpop.f32.mrb[0].mxu0
      %v5867 = vpop.f32.mrb[0].mxu0
      %v5868 = vadd.f32 0.0, %v5867
      %v5869 = vpop.f32.mrb[0].mxu0
      %5870 = vmatprep.mubr.bf16.mxu0 0
      %5871 = vmatmul.mubr.bf16.gmra.mrb[0].mxu0 %v5762
      %v5872 = vpop.f32.mrb[0].mxu0
      %v5873 = vadd.f32 0.0, %v5872
      %v5874 = vpop.f32.mrb[0].mxu0
      %v5875 = vpop.f32.mrb[0].mxu0
      %v5876 = vadd.f32 0.0, %v5875
      %v5877 = vpop.f32.mrb[0].mxu0
      %5878 = vmatprep.mubr.bf16.mxu0 0
      %5879 = vmatmul.mubr.bf16.gmra.mrb[0].mxu0 %v5763
      %v5880 = vpop.f32.mrb[0].mxu0
      %v5881 = vadd.f32 0.0, %v5880
      %v5882 = vpop.f32.mrb[0].mxu0
      %v5883 = vpop.f32.mrb[0].mxu0
      %v5884 = vadd.f32 0.0, %v5883
      %v5885 = vpop.f32.mrb[0].mxu0
      %5886 = vmatprep.mubr.bf16.mxu0 0
      %5887 = vmatmul.mubr.bf16.gmra.mrb[0].mxu0 %v5764
      %v5888 = vpop.f32.mrb[0].mxu0
      %v5889 = vadd.f32 0.0, %v5888
      %v5890 = vpop.f32.mrb[0].mxu0
      %v5891 = vpop.f32.mrb[0].mxu0
      %v5892 = vadd.f32 0.0, %v5891
      %v5893 = vpop.f32.mrb[0].mxu0
      %5894 = vdwg.mxu0
      %v5895 = vadd.f32 %v5744, %v5865
      %v5896 = vadd.f32 %v5745, %v5868
      %v5897 = vadd.f32 %v5746, %v5873
      %v5898 = vadd.f32 %v5747, %v5876
      %v5899 = vadd.f32 %v5748, %v5881
      %v5900 = vadd.f32 %v5749, %v5884
      %v5901 = vadd.f32 %v5750, %v5889
      %v5902 = vadd.f32 %v5751, %v5892
      %v5903 = vld [vmem:[%s5752 + $0x1] sm:$0xff]
      %v5904 = vld [vmem:[%s5752 + $0x11] sm:$0xff]
      %v5905 = vld [vmem:[%s5752 + $0x21] sm:$0xff]
      %v5906 = vld [vmem:[%s5752 + $0x31] sm:$0xff]
      %v5907 = vld [vmem:[%s5752 + $0x41] sm:$0xff]
      %v5908 = vld [vmem:[%s5752 + $0x51] sm:$0xff]
      %v5909 = vld [vmem:[%s5752 + $0x61] sm:$0xff]
      %v5910 = vld [vmem:[%s5752 + $0x71] sm:$0xff]
      %v5911 = vpack.c.bf16 %v5904, %v5903
      %v5912 = vpack.c.bf16 %v5906, %v5905
      %v5913 = vpack.c.bf16 %v5908, %v5907
      %v5914 = vpack.c.bf16 %v5910, %v5909
      %s5915 = scalar_lea.vmem %s5, 448
      %v5916 = vld [vmem:[%s5915] sm:$0xf]
      %v5917 = vld [vmem:[%s5915 + $0x4] sm:$0xf]
      %v5918 = vld [vmem:[%s5915 + $0x8] sm:$0xf]
      %v5919 = vld [vmem:[%s5915 + $0xc] sm:$0xf]
      %v5920 = vld [vmem:[%s5915 + $0x10] sm:$0xf]
      %v5921 = vld [vmem:[%s5915 + $0x14] sm:$0xf]
      %v5922 = vld [vmem:[%s5915 + $0x18] sm:$0xf]
      %v5923 = vld [vmem:[%s5915 + $0x1c] sm:$0xf]
      %v5924 = vld [vmem:[%s5915 + $0x20] sm:$0xf]
      %v5925 = vld [vmem:[%s5915 + $0x24] sm:$0xf]
      %v5926 = vld [vmem:[%s5915 + $0x28] sm:$0xf]
      %v5927 = vld [vmem:[%s5915 + $0x2c] sm:$0xf]
      %v5928 = vld [vmem:[%s5915 + $0x30] sm:$0xf]
      %v5929 = vld [vmem:[%s5915 + $0x34] sm:$0xf]
      %v5930 = vld [vmem:[%s5915 + $0x38] sm:$0xf]
      %v5931 = vld [vmem:[%s5915 + $0x3c] sm:$0xf]
      %v5948 = vunpack.c.l.b16 %v5916
      %v5949 = vunpack.c.l.b16 %v5917
      %v5950 = vunpack.c.l.b16 %v5918
      %v5951 = vunpack.c.l.b16 %v5919
      %v5952 = vunpack.c.l.b16 %v5920
      %v5953 = vunpack.c.l.b16 %v5921
      %v5954 = vunpack.c.l.b16 %v5922
      %v5955 = vunpack.c.l.b16 %v5923
      %v5956 = vunpack.c.l.b16 %v5924
      %v5957 = vunpack.c.l.b16 %v5925
      %v5958 = vunpack.c.l.b16 %v5926
      %v5959 = vunpack.c.l.b16 %v5927
      %v5960 = vunpack.c.l.b16 %v5928
      %v5961 = vunpack.c.l.b16 %v5929
      %v5962 = vunpack.c.l.b16 %v5930
      %v5963 = vunpack.c.l.b16 %v5931
      %v5964 = vpack.c.b16 %v5949, %v5948
      %v5965 = vpack.c.b16 %v5951, %v5950
      %v5966 = vpack.c.b16 %v5953, %v5952
      %v5967 = vpack.c.b16 %v5955, %v5954
      %v5968 = vpack.c.b16 %v5957, %v5956
      %v5969 = vpack.c.b16 %v5959, %v5958
      %v5970 = vpack.c.b16 %v5961, %v5960
      %v5971 = vpack.c.b16 %v5963, %v5962
      %5980 = vmatprep.subr.bf16.mxu0 0
      %5981 = vmatpush1.bf16.msra.mxu0 %v5964
      %5982 = vmatprep.subr.bf16.mxu0 0
      %5983 = vmatpush1.bf16.msra.mxu0 %v5965
      %5984 = vmatprep.subr.bf16.mxu0 0
      %5985 = vmatpush1.bf16.msra.mxu0 %v5966
      %5986 = vmatprep.subr.bf16.mxu0 0
      %5987 = vmatpush1.bf16.msra.mxu0 %v5967
      %5988 = vmatprep.subr.bf16.mxu0 0
      %5989 = vmatpush1.bf16.msra.mxu0 %v5968
      %5990 = vmatprep.subr.bf16.mxu0 0
      %5991 = vmatpush1.bf16.msra.mxu0 %v5969
      %5992 = vmatprep.subr.bf16.mxu0 0
      %5993 = vmatpush1.bf16.msra.mxu0 %v5970
      %5994 = vmatprep.subr.bf16.mxu0 0
      %5995 = vmatpush1.bf16.msra.mxu0 %v5971
      %5996 = vmatprep.subr.bf16.mxu0 0
      %5997 = vmatpush1.bf16.msra.mxu0 0
      %5998 = vmatprep.subr.bf16.mxu0 0
      %5999 = vmatpush1.bf16.msra.mxu0 0
      %6000 = vmatprep.subr.bf16.mxu0 0
      %6001 = vmatpush1.bf16.msra.mxu0 0
      %6002 = vmatprep.subr.bf16.mxu0 0
      %6003 = vmatpush1.bf16.msra.mxu0 0
      %6004 = vmatprep.subr.bf16.mxu0 0
      %6005 = vmatpush1.bf16.msra.mxu0 0
      %6006 = vmatprep.subr.bf16.mxu0 0
      %6007 = vmatpush1.bf16.msra.mxu0 0
      %6008 = vmatprep.subr.bf16.mxu0 0
      %6009 = vmatpush1.bf16.msra.mxu0 0
      %6010 = vmatprep.subr.bf16.mxu0 0
      %6011 = vmatpush1.bf16.msra.mxu0 0
      %6012 = vmatprep.mubr.bf16.mxu0 0
      %6013 = vmatmul.mubr.bf16.gmra.mrb[0].mxu0 %v5911
      %v6014 = vpop.f32.mrb[0].mxu0
      %v6015 = vadd.f32 0.0, %v6014
      %v6016 = vpop.f32.mrb[0].mxu0
      %v6017 = vpop.f32.mrb[0].mxu0
      %v6018 = vadd.f32 0.0, %v6017
      %v6019 = vpop.f32.mrb[0].mxu0
      %6020 = vmatprep.mubr.bf16.mxu0 0
      %6021 = vmatmul.mubr.bf16.gmra.mrb[0].mxu0 %v5912
      %v6022 = vpop.f32.mrb[0].mxu0
      %v6023 = vadd.f32 0.0, %v6022
      %v6024 = vpop.f32.mrb[0].mxu0
      %v6025 = vpop.f32.mrb[0].mxu0
      %v6026 = vadd.f32 0.0, %v6025
      %v6027 = vpop.f32.mrb[0].mxu0
      %6028 = vmatprep.mubr.bf16.mxu0 0
      %6029 = vmatmul.mubr.bf16.gmra.mrb[0].mxu0 %v5913
      %v6030 = vpop.f32.mrb[0].mxu0
      %v6031 = vadd.f32 0.0, %v6030
      %v6032 = vpop.f32.mrb[0].mxu0
      %v6033 = vpop.f32.mrb[0].mxu0
      %v6034 = vadd.f32 0.0, %v6033
      %v6035 = vpop.f32.mrb[0].mxu0
      %6036 = vmatprep.mubr.bf16.mxu0 0
      %6037 = vmatmul.mubr.bf16.gmra.mrb[0].mxu0 %v5914
      %v6038 = vpop.f32.mrb[0].mxu0
      %v6039 = vadd.f32 0.0, %v6038
      %v6040 = vpop.f32.mrb[0].mxu0
      %v6041 = vpop.f32.mrb[0].mxu0
      %v6042 = vadd.f32 0.0, %v6041
      %v6043 = vpop.f32.mrb[0].mxu0
      %6044 = vdwg.mxu0
      %v6045 = vadd.f32 %v5895, %v6015
      %v6046 = vadd.f32 %v5896, %v6018
      %v6047 = vadd.f32 %v5897, %v6023
      %v6048 = vadd.f32 %v5898, %v6026
      %v6049 = vadd.f32 %v5899, %v6031
      %v6050 = vadd.f32 %v5900, %v6034
      %v6051 = vadd.f32 %v5901, %v6039
      %v6052 = vadd.f32 %v5902, %v6042
      %v6053 = vld [vmem:[%s5752 + $0x2] sm:$0xff]
      %v6054 = vld [vmem:[%s5752 + $0x12] sm:$0xff]
      %v6055 = vld [vmem:[%s5752 + $0x22] sm:$0xff]
      %v6056 = vld [vmem:[%s5752 + $0x32] sm:$0xff]
      %v6057 = vld [vmem:[%s5752 + $0x42] sm:$0xff]
      %v6058 = vld [vmem:[%s5752 + $0x52] sm:$0xff]
      %v6059 = vld [vmem:[%s5752 + $0x62] sm:$0xff]
      %v6060 = vld [vmem:[%s5752 + $0x72] sm:$0xff]
      %v6061 = vpack.c.bf16 %v6054, %v6053
      %v6062 = vpack.c.bf16 %v6056, %v6055
      %v6063 = vpack.c.bf16 %v6058, %v6057
      %v6064 = vpack.c.bf16 %v6060, %v6059
      %s6065 = scalar_lea.vmem %s5, 512
      %v6066 = vld [vmem:[%s6065] sm:$0xf]
      %v6067 = vld [vmem:[%s6065 + $0x4] sm:$0xf]
      %v6068 = vld [vmem:[%s6065 + $0x8] sm:$0xf]
      %v6069 = vld [vmem:[%s6065 + $0xc] sm:$0xf]
      %v6070 = vld [vmem:[%s6065 + $0x10] sm:$0xf]
      %v6071 = vld [vmem:[%s6065 + $0x14] sm:$0xf]
      %v6072 = vld [vmem:[%s6065 + $0x18] sm:$0xf]
      %v6073 = vld [vmem:[%s6065 + $0x1c] sm:$0xf]
      %v6074 = vld [vmem:[%s6065 + $0x20] sm:$0xf]
      %v6075 = vld [vmem:[%s6065 + $0x24] sm:$0xf]
      %v6076 = vld [vmem:[%s6065 + $0x28] sm:$0xf]
      %v6077 = vld [vmem:[%s6065 + $0x2c] sm:$0xf]
      %v6078 = vld [vmem:[%s6065 + $0x30] sm:$0xf]
      %v6079 = vld [vmem:[%s6065 + $0x34] sm:$0xf]
      %v6080 = vld [vmem:[%s6065 + $0x38] sm:$0xf]
      %v6081 = vld [vmem:[%s6065 + $0x3c] sm:$0xf]
      %v6098 = vunpack.c.l.b16 %v6066
      %v6099 = vunpack.c.l.b16 %v6067
      %v6100 = vunpack.c.l.b16 %v6068
      %v6101 = vunpack.c.l.b16 %v6069
      %v6102 = vunpack.c.l.b16 %v6070
      %v6103 = vunpack.c.l.b16 %v6071
      %v6104 = vunpack.c.l.b16 %v6072
      %v6105 = vunpack.c.l.b16 %v6073
      %v6106 = vunpack.c.l.b16 %v6074
      %v6107 = vunpack.c.l.b16 %v6075
      %v6108 = vunpack.c.l.b16 %v6076
      %v6109 = vunpack.c.l.b16 %v6077
      %v6110 = vunpack.c.l.b16 %v6078
      %v6111 = vunpack.c.l.b16 %v6079
      %v6112 = vunpack.c.l.b16 %v6080
      %v6113 = vunpack.c.l.b16 %v6081
      %v6114 = vpack.c.b16 %v6099, %v6098
      %v6115 = vpack.c.b16 %v6101, %v6100
      %v6116 = vpack.c.b16 %v6103, %v6102
      %v6117 = vpack.c.b16 %v6105, %v6104
      %v6118 = vpack.c.b16 %v6107, %v6106
      %v6119 = vpack.c.b16 %v6109, %v6108
      %v6120 = vpack.c.b16 %v6111, %v6110
      %v6121 = vpack.c.b16 %v6113, %v6112
      %6130 = vmatprep.subr.bf16.mxu0 0
      %6131 = vmatpush1.bf16.msra.mxu0 %v6114
      %6132 = vmatprep.subr.bf16.mxu0 0
      %6133 = vmatpush1.bf16.msra.mxu0 %v6115
      %6134 = vmatprep.subr.bf16.mxu0 0
      %6135 = vmatpush1.bf16.msra.mxu0 %v6116
      %6136 = vmatprep.subr.bf16.mxu0 0
      %6137 = vmatpush1.bf16.msra.mxu0 %v6117
      %6138 = vmatprep.subr.bf16.mxu0 0
      %6139 = vmatpush1.bf16.msra.mxu0 %v6118
      %6140 = vmatprep.subr.bf16.mxu0 0
      %6141 = vmatpush1.bf16.msra.mxu0 %v6119
      %6142 = vmatprep.subr.bf16.mxu0 0
      %6143 = vmatpush1.bf16.msra.mxu0 %v6120
      %6144 = vmatprep.subr.bf16.mxu0 0
      %6145 = vmatpush1.bf16.msra.mxu0 %v6121
      %6146 = vmatprep.subr.bf16.mxu0 0
      %6147 = vmatpush1.bf16.msra.mxu0 0
      %6148 = vmatprep.subr.bf16.mxu0 0
      %6149 = vmatpush1.bf16.msra.mxu0 0
      %6150 = vmatprep.subr.bf16.mxu0 0
      %6151 = vmatpush1.bf16.msra.mxu0 0
      %6152 = vmatprep.subr.bf16.mxu0 0
      %6153 = vmatpush1.bf16.msra.mxu0 0
      %6154 = vmatprep.subr.bf16.mxu0 0
      %6155 = vmatpush1.bf16.msra.mxu0 0
      %6156 = vmatprep.subr.bf16.mxu0 0
      %6157 = vmatpush1.bf16.msra.mxu0 0
      %6158 = vmatprep.subr.bf16.mxu0 0
      %6159 = vmatpush1.bf16.msra.mxu0 0
      %6160 = vmatprep.subr.bf16.mxu0 0
      %6161 = vmatpush1.bf16.msra.mxu0 0
      %6162 = vmatprep.mubr.bf16.mxu0 0
      %6163 = vmatmul.mubr.bf16.gmra.mrb[0].mxu0 %v6061
      %v6164 = vpop.f32.mrb[0].mxu0
      %v6165 = vadd.f32 0.0, %v6164
      %v6166 = vpop.f32.mrb[0].mxu0
      %v6167 = vpop.f32.mrb[0].mxu0
      %v6168 = vadd.f32 0.0, %v6167
      %v6169 = vpop.f32.mrb[0].mxu0
      %6170 = vmatprep.mubr.bf16.mxu0 0
      %6171 = vmatmul.mubr.bf16.gmra.mrb[0].mxu0 %v6062
      %v6172 = vpop.f32.mrb[0].mxu0
      %v6173 = vadd.f32 0.0, %v6172
      %v6174 = vpop.f32.mrb[0].mxu0
      %v6175 = vpop.f32.mrb[0].mxu0
      %v6176 = vadd.f32 0.0, %v6175
      %v6177 = vpop.f32.mrb[0].mxu0
      %6178 = vmatprep.mubr.bf16.mxu0 0
      %6179 = vmatmul.mubr.bf16.gmra.mrb[0].mxu0 %v6063
      %v6180 = vpop.f32.mrb[0].mxu0
      %v6181 = vadd.f32 0.0, %v6180
      %v6182 = vpop.f32.mrb[0].mxu0
      %v6183 = vpop.f32.mrb[0].mxu0
      %v6184 = vadd.f32 0.0, %v6183
      %v6185 = vpop.f32.mrb[0].mxu0
      %6186 = vmatprep.mubr.bf16.mxu0 0
      %6187 = vmatmul.mubr.bf16.gmra.mrb[0].mxu0 %v6064
      %v6188 = vpop.f32.mrb[0].mxu0
      %v6189 = vadd.f32 0.0, %v6188
      %v6190 = vpop.f32.mrb[0].mxu0
      %v6191 = vpop.f32.mrb[0].mxu0
      %v6192 = vadd.f32 0.0, %v6191
      %v6193 = vpop.f32.mrb[0].mxu0
      %6194 = vdwg.mxu0
      %v6195 = vadd.f32 %v6045, %v6165
      %v6196 = vadd.f32 %v6046, %v6168
      %v6197 = vadd.f32 %v6047, %v6173
      %v6198 = vadd.f32 %v6048, %v6176
      %v6199 = vadd.f32 %v6049, %v6181
      %v6200 = vadd.f32 %v6050, %v6184
      %v6201 = vadd.f32 %v6051, %v6189
      %v6202 = vadd.f32 %v6052, %v6192
      %v6203 = vld [vmem:[%s6] sm:$0x1]
      %v6205 = vlaneseq
      %v6206 = vshrl.u32 %v6205, 7
      %v6207 = vsub.s32 0, %v6206
      %v6208 = vrot.slane %v6203, %v6207
      %v6210 = vadd.f32 %v6195, %v6208
      %v6211 = vadd.f32 %v6196, %v6208
      %v6212 = vadd.f32 %v6197, %v6208
      %v6213 = vadd.f32 %v6198, %v6208
      %v6214 = vadd.f32 %v6199, %v6208
      %v6215 = vadd.f32 %v6200, %v6208
      %v6216 = vadd.f32 %v6201, %v6208
      %v6217 = vadd.f32 %v6202, %v6208
      %v6218 = vmax.f32 %v6210, 0.0
      %v6219 = vmax.f32 %v6211, 0.0
      %v6220 = vmax.f32 %v6212, 0.0
      %v6221 = vmax.f32 %v6213, 0.0
      %v6222 = vmax.f32 %v6214, 0.0
      %v6223 = vmax.f32 %v6215, 0.0
      %v6224 = vmax.f32 %v6216, 0.0
      %v6225 = vmax.f32 %v6217, 0.0
      %6226 = vst [vmem:[#allocation4] sm:$0xff] 0.0
      %6227 = vst [vmem:[#allocation4 + $0x8] sm:$0xff] 0.0
      %6228 = vst [vmem:[#allocation4 + $0x10] sm:$0x3] 0.0
      %6229 = vst [vmem:[#allocation4 + $0x18] sm:$0xff] 0.0
      %6230 = vst [vmem:[#allocation4 + $0x20] sm:$0xff] 0.0
      %6231 = vst [vmem:[#allocation4 + $0x28] sm:$0x3] 0.0
      %6232 = vst [vmem:[#allocation4 + $0x30] sm:$0xff] 0.0
      %6233 = vst [vmem:[#allocation4 + $0x38] sm:$0xff] 0.0
      %6234 = vst [vmem:[#allocation4 + $0x40] sm:$0x3] 0.0
      %6235 = vst [vmem:[#allocation4 + $0x48] sm:$0xff] 0.0
      %6236 = vst [vmem:[#allocation4 + $0x50] sm:$0xff] 0.0
      %6237 = vst [vmem:[#allocation4 + $0x58] sm:$0x3] 0.0
      %6238 = vst [vmem:[#allocation4 + $0x60] sm:$0xff] 0.0
      %6239 = vst [vmem:[#allocation4 + $0x68] sm:$0xff] 0.0
      %6240 = vst [vmem:[#allocation4 + $0x70] sm:$0x3] 0.0
      %6241 = vst [vmem:[#allocation4 + $0x78] sm:$0xff] 0.0
      %6242 = vst [vmem:[#allocation4 + $0x80] sm:$0xff] 0.0
      %6243 = vst [vmem:[#allocation4 + $0x88] sm:$0x3] 0.0
      %6244 = vst [vmem:[#allocation4 + $0x90] sm:$0xff] 0.0
      %6245 = vst [vmem:[#allocation4 + $0x98] sm:$0xff] 0.0
      %6246 = vst [vmem:[#allocation4 + $0xa0] sm:$0x3] 0.0
      %6247 = vst [vmem:[#allocation4 + $0xa8] sm:$0xff] 0.0
      %6248 = vst [vmem:[#allocation4 + $0xb0] sm:$0xff] 0.0
      %6249 = vst [vmem:[#allocation4 + $0xb8] sm:$0x3] 0.0
      %6250 = vst [vmem:[#allocation4 + $0xc0] sm:$0xff] 0.0
      %6251 = vst [vmem:[#allocation4 + $0xc8] sm:$0xff] 0.0
      %6252 = vst [vmem:[#allocation4 + $0xd0] sm:$0x3] 0.0
      %6253 = vst [vmem:[#allocation4 + $0xd8] sm:$0xff] 0.0
      %6254 = vst [vmem:[#allocation4 + $0xe0] sm:$0xff] 0.0
      %6255 = vst [vmem:[#allocation4 + $0xe8] sm:$0x3] 0.0
      %6256 = vst [vmem:[#allocation4 + $0xf0] sm:$0xff] 0.0
      %6257 = vst [vmem:[#allocation4 + $0xf8] sm:$0xff] 0.0
      %6258 = vst [vmem:[#allocation4 + $0x100] sm:$0x3] 0.0
      %6259 = vst [vmem:[#allocation4 + $0x108] sm:$0xff] 0.0
      %6260 = vst [vmem:[#allocation4 + $0x110] sm:$0xff] 0.0
      %6261 = vst [vmem:[#allocation4 + $0x118] sm:$0x3] 0.0
      %6262 = vst [vmem:[#allocation4 + $0x120] sm:$0xff] 0.0
      %6263 = vst [vmem:[#allocation4 + $0x128] sm:$0xff] 0.0
      %6264 = vst [vmem:[#allocation4 + $0x130] sm:$0x3] 0.0
      %6265 = vst [vmem:[#allocation4 + $0x138] sm:$0xff] 0.0
      %6266 = vst [vmem:[#allocation4 + $0x140] sm:$0xff] 0.0
      %6267 = vst [vmem:[#allocation4 + $0x148] sm:$0x3] 0.0
      %6268 = vst [vmem:[#allocation4 + $0x150] sm:$0xff] 0.0
      %6269 = vst [vmem:[#allocation4 + $0x158] sm:$0xff] 0.0
      %6270 = vst [vmem:[#allocation4 + $0x160] sm:$0x3] 0.0
      %6271 = vst [vmem:[#allocation4 + $0x168] sm:$0xff] 0.0
      %6272 = vst [vmem:[#allocation4 + $0x170] sm:$0xff] 0.0
      %6273 = vst [vmem:[#allocation4 + $0x178] sm:$0x3] 0.0
      %6274 = vst [vmem:[#allocation4 + $0x180] sm:$0xff] 0.0
      %6275 = vst [vmem:[#allocation4 + $0x188] sm:$0xff] 0.0
      %6276 = vst [vmem:[#allocation4 + $0x190] sm:$0x3] 0.0
      %6277 = vst [vmem:[#allocation4 + $0x198] sm:$0xff] 0.0
      %6278 = vst [vmem:[#allocation4 + $0x1a0] sm:$0xff] 0.0
      %6279 = vst [vmem:[#allocation4 + $0x1a8] sm:$0x3] 0.0
      %s6280 = scalar_lea.vmem [#allocation4], 24
      %6281 = vst [vmem:[%s6280 + $0x1] sm:$0x1] %v6218
      %6282 = vst [vmem:[%s6280 + $0x19] sm:$0x1] %v6218
      %6283 = vst [vmem:[%s6280 + $0x31] sm:$0x1] %v6219
      %6284 = vst [vmem:[%s6280 + $0x49] sm:$0x1] %v6219
      %6285 = vst [vmem:[%s6280 + $0x61] sm:$0x1] %v6220
      %6286 = vst [vmem:[%s6280 + $0x79] sm:$0x1] %v6220
      %6287 = vst [vmem:[%s6280 + $0x91] sm:$0x1] %v6221
      %6288 = vst [vmem:[%s6280 + $0xa9] sm:$0x1] %v6221
      %6289 = vst [vmem:[%s6280 + $0xc1] sm:$0x1] %v6222
      %6290 = vst [vmem:[%s6280 + $0xd9] sm:$0x1] %v6222
      %6291 = vst [vmem:[%s6280 + $0xf1] sm:$0x1] %v6223
      %6292 = vst [vmem:[%s6280 + $0x109] sm:$0x1] %v6223
      %6293 = vst [vmem:[%s6280 + $0x121] sm:$0x1] %v6224
      %6294 = vst [vmem:[%s6280 + $0x139] sm:$0x1] %v6224
      %6295 = vst [vmem:[%s6280 + $0x151] sm:$0x1] %v6225
      %6296 = vst [vmem:[%s6280 + $0x169] sm:$0x1] %v6225
      %6297 = vst [vmem:[%s6280 + $0x2] sm:$0x1] %v6218
      %6298 = vst [vmem:[%s6280 + $0x1a] sm:$0x1] %v6218
      %6299 = vst [vmem:[%s6280 + $0x32] sm:$0x1] %v6219
      %6300 = vst [vmem:[%s6280 + $0x4a] sm:$0x1] %v6219
      %6301 = vst [vmem:[%s6280 + $0x62] sm:$0x1] %v6220
      %6302 = vst [vmem:[%s6280 + $0x7a] sm:$0x1] %v6220
      %6303 = vst [vmem:[%s6280 + $0x92] sm:$0x1] %v6221
      %6304 = vst [vmem:[%s6280 + $0xaa] sm:$0x1] %v6221
      %6305 = vst [vmem:[%s6280 + $0xc2] sm:$0x1] %v6222
      %6306 = vst [vmem:[%s6280 + $0xda] sm:$0x1] %v6222
      %6307 = vst [vmem:[%s6280 + $0xf2] sm:$0x1] %v6223
      %6308 = vst [vmem:[%s6280 + $0x10a] sm:$0x1] %v6223
      %6309 = vst [vmem:[%s6280 + $0x122] sm:$0x1] %v6224
      %6310 = vst [vmem:[%s6280 + $0x13a] sm:$0x1] %v6224
      %6311 = vst [vmem:[%s6280 + $0x152] sm:$0x1] %v6225
      %6312 = vst [vmem:[%s6280 + $0x16a] sm:$0x1] %v6225
      %6313 = vst [vmem:[%s6280 + $0x2] sm:$0x2] %v6218
      %6314 = vst [vmem:[%s6280 + $0x1a] sm:$0x2] %v6218
      %6315 = vst [vmem:[%s6280 + $0x32] sm:$0x2] %v6219
      %6316 = vst [vmem:[%s6280 + $0x4a] sm:$0x2] %v6219
      %6317 = vst [vmem:[%s6280 + $0x62] sm:$0x2] %v6220
      %6318 = vst [vmem:[%s6280 + $0x7a] sm:$0x2] %v6220
      %6319 = vst [vmem:[%s6280 + $0x92] sm:$0x2] %v6221
      %6320 = vst [vmem:[%s6280 + $0xaa] sm:$0x2] %v6221
      %6321 = vst [vmem:[%s6280 + $0xc2] sm:$0x2] %v6222
      %6322 = vst [vmem:[%s6280 + $0xda] sm:$0x2] %v6222
      %6323 = vst [vmem:[%s6280 + $0xf2] sm:$0x2] %v6223
      %6324 = vst [vmem:[%s6280 + $0x10a] sm:$0x2] %v6223
      %6325 = vst [vmem:[%s6280 + $0x122] sm:$0x2] %v6224
      %6326 = vst [vmem:[%s6280 + $0x13a] sm:$0x2] %v6224
      %6327 = vst [vmem:[%s6280 + $0x152] sm:$0x2] %v6225
      %6328 = vst [vmem:[%s6280 + $0x16a] sm:$0x2] %v6225
      %6329 = vst [vmem:[%s6280 + $0x3] sm:$0x2] %v6218
      %6330 = vst [vmem:[%s6280 + $0x1b] sm:$0x2] %v6218
      %6331 = vst [vmem:[%s6280 + $0x33] sm:$0x2] %v6219
      %6332 = vst [vmem:[%s6280 + $0x4b] sm:$0x2] %v6219
      %6333 = vst [vmem:[%s6280 + $0x63] sm:$0x2] %v6220
      %6334 = vst [vmem:[%s6280 + $0x7b] sm:$0x2] %v6220
      %6335 = vst [vmem:[%s6280 + $0x93] sm:$0x2] %v6221
      %6336 = vst [vmem:[%s6280 + $0xab] sm:$0x2] %v6221
      %6337 = vst [vmem:[%s6280 + $0xc3] sm:$0x2] %v6222
      %6338 = vst [vmem:[%s6280 + $0xdb] sm:$0x2] %v6222
      %6339 = vst [vmem:[%s6280 + $0xf3] sm:$0x2] %v6223
      %6340 = vst [vmem:[%s6280 + $0x10b] sm:$0x2] %v6223
      %6341 = vst [vmem:[%s6280 + $0x123] sm:$0x2] %v6224
      %6342 = vst [vmem:[%s6280 + $0x13b] sm:$0x2] %v6224
      %6343 = vst [vmem:[%s6280 + $0x153] sm:$0x2] %v6225
      %6344 = vst [vmem:[%s6280 + $0x16b] sm:$0x2] %v6225
      %6345 = vst [vmem:[%s6280 + $0x3] sm:$0x4] %v6218
      %6346 = vst [vmem:[%s6280 + $0x1b] sm:$0x4] %v6218
      %6347 = vst [vmem:[%s6280 + $0x33] sm:$0x4] %v6219
      %6348 = vst [vmem:[%s6280 + $0x4b] sm:$0x4] %v6219
      %6349 = vst [vmem:[%s6280 + $0x63] sm:$0x4] %v6220
      %6350 = vst [vmem:[%s6280 + $0x7b] sm:$0x4] %v6220
      %6351 = vst [vmem:[%s6280 + $0x93] sm:$0x4] %v6221
      %6352 = vst [vmem:[%s6280 + $0xab] sm:$0x4] %v6221
      %6353 = vst [vmem:[%s6280 + $0xc3] sm:$0x4] %v6222
      %6354 = vst [vmem:[%s6280 + $0xdb] sm:$0x4] %v6222
      %6355 = vst [vmem:[%s6280 + $0xf3] sm:$0x4] %v6223
      %6356 = vst [vmem:[%s6280 + $0x10b] sm:$0x4] %v6223
      %6357 = vst [vmem:[%s6280 + $0x123] sm:$0x4] %v6224
      %6358 = vst [vmem:[%s6280 + $0x13b] sm:$0x4] %v6224
      %6359 = vst [vmem:[%s6280 + $0x153] sm:$0x4] %v6225
      %6360 = vst [vmem:[%s6280 + $0x16b] sm:$0x4] %v6225
      %6361 = vst [vmem:[%s6280 + $0x4] sm:$0x4] %v6218
      %6362 = vst [vmem:[%s6280 + $0x1c] sm:$0x4] %v6218
      %6363 = vst [vmem:[%s6280 + $0x34] sm:$0x4] %v6219
      %6364 = vst [vmem:[%s6280 + $0x4c] sm:$0x4] %v6219
      %6365 = vst [vmem:[%s6280 + $0x64] sm:$0x4] %v6220
      %6366 = vst [vmem:[%s6280 + $0x7c] sm:$0x4] %v6220
      %6367 = vst [vmem:[%s6280 + $0x94] sm:$0x4] %v6221
      %6368 = vst [vmem:[%s6280 + $0xac] sm:$0x4] %v6221
      %6369 = vst [vmem:[%s6280 + $0xc4] sm:$0x4] %v6222
      %6370 = vst [vmem:[%s6280 + $0xdc] sm:$0x4] %v6222
      %6371 = vst [vmem:[%s6280 + $0xf4] sm:$0x4] %v6223
      %6372 = vst [vmem:[%s6280 + $0x10c] sm:$0x4] %v6223
      %6373 = vst [vmem:[%s6280 + $0x124] sm:$0x4] %v6224
      %6374 = vst [vmem:[%s6280 + $0x13c] sm:$0x4] %v6224
      %6375 = vst [vmem:[%s6280 + $0x154] sm:$0x4] %v6225
      %6376 = vst [vmem:[%s6280 + $0x16c] sm:$0x4] %v6225
      %6377 = vst [vmem:[%s6280 + $0x4] sm:$0x8] %v6218
      %6378 = vst [vmem:[%s6280 + $0x1c] sm:$0x8] %v6218
      %6379 = vst [vmem:[%s6280 + $0x34] sm:$0x8] %v6219
      %6380 = vst [vmem:[%s6280 + $0x4c] sm:$0x8] %v6219
      %6381 = vst [vmem:[%s6280 + $0x64] sm:$0x8] %v6220
      %6382 = vst [vmem:[%s6280 + $0x7c] sm:$0x8] %v6220
      %6383 = vst [vmem:[%s6280 + $0x94] sm:$0x8] %v6221
      %6384 = vst [vmem:[%s6280 + $0xac] sm:$0x8] %v6221
      %6385 = vst [vmem:[%s6280 + $0xc4] sm:$0x8] %v6222
      %6386 = vst [vmem:[%s6280 + $0xdc] sm:$0x8] %v6222
      %6387 = vst [vmem:[%s6280 + $0xf4] sm:$0x8] %v6223
      %6388 = vst [vmem:[%s6280 + $0x10c] sm:$0x8] %v6223
      %6389 = vst [vmem:[%s6280 + $0x124] sm:$0x8] %v6224
      %6390 = vst [vmem:[%s6280 + $0x13c] sm:$0x8] %v6224
      %6391 = vst [vmem:[%s6280 + $0x154] sm:$0x8] %v6225
      %6392 = vst [vmem:[%s6280 + $0x16c] sm:$0x8] %v6225
      %6393 = vst [vmem:[%s6280 + $0x5] sm:$0x8] %v6218
      %6394 = vst [vmem:[%s6280 + $0x1d] sm:$0x8] %v6218
      %6395 = vst [vmem:[%s6280 + $0x35] sm:$0x8] %v6219
      %6396 = vst [vmem:[%s6280 + $0x4d] sm:$0x8] %v6219
      %6397 = vst [vmem:[%s6280 + $0x65] sm:$0x8] %v6220
      %6398 = vst [vmem:[%s6280 + $0x7d] sm:$0x8] %v6220
      %6399 = vst [vmem:[%s6280 + $0x95] sm:$0x8] %v6221
      %6400 = vst [vmem:[%s6280 + $0xad] sm:$0x8] %v6221
      %6401 = vst [vmem:[%s6280 + $0xc5] sm:$0x8] %v6222
      %6402 = vst [vmem:[%s6280 + $0xdd] sm:$0x8] %v6222
      %6403 = vst [vmem:[%s6280 + $0xf5] sm:$0x8] %v6223
      %6404 = vst [vmem:[%s6280 + $0x10d] sm:$0x8] %v6223
      %6405 = vst [vmem:[%s6280 + $0x125] sm:$0x8] %v6224
      %6406 = vst [vmem:[%s6280 + $0x13d] sm:$0x8] %v6224
      %6407 = vst [vmem:[%s6280 + $0x155] sm:$0x8] %v6225
      %6408 = vst [vmem:[%s6280 + $0x16d] sm:$0x8] %v6225
      %6409 = vst [vmem:[%s6280 + $0x5] sm:$0x10] %v6218
      %6410 = vst [vmem:[%s6280 + $0x1d] sm:$0x10] %v6218
      %6411 = vst [vmem:[%s6280 + $0x35] sm:$0x10] %v6219
      %6412 = vst [vmem:[%s6280 + $0x4d] sm:$0x10] %v6219
      %6413 = vst [vmem:[%s6280 + $0x65] sm:$0x10] %v6220
      %6414 = vst [vmem:[%s6280 + $0x7d] sm:$0x10] %v6220
      %6415 = vst [vmem:[%s6280 + $0x95] sm:$0x10] %v6221
      %6416 = vst [vmem:[%s6280 + $0xad] sm:$0x10] %v6221
      %6417 = vst [vmem:[%s6280 + $0xc5] sm:$0x10] %v6222
      %6418 = vst [vmem:[%s6280 + $0xdd] sm:$0x10] %v6222
      %6419 = vst [vmem:[%s6280 + $0xf5] sm:$0x10] %v6223
      %6420 = vst [vmem:[%s6280 + $0x10d] sm:$0x10] %v6223
      %6421 = vst [vmem:[%s6280 + $0x125] sm:$0x10] %v6224
      %6422 = vst [vmem:[%s6280 + $0x13d] sm:$0x10] %v6224
      %6423 = vst [vmem:[%s6280 + $0x155] sm:$0x10] %v6225
      %6424 = vst [vmem:[%s6280 + $0x16d] sm:$0x10] %v6225
      %6425 = vst [vmem:[%s6280 + $0x6] sm:$0x10] %v6218
      %6426 = vst [vmem:[%s6280 + $0x1e] sm:$0x10] %v6218
      %6427 = vst [vmem:[%s6280 + $0x36] sm:$0x10] %v6219
      %6428 = vst [vmem:[%s6280 + $0x4e] sm:$0x10] %v6219
      %6429 = vst [vmem:[%s6280 + $0x66] sm:$0x10] %v6220
      %6430 = vst [vmem:[%s6280 + $0x7e] sm:$0x10] %v6220
      %6431 = vst [vmem:[%s6280 + $0x96] sm:$0x10] %v6221
      %6432 = vst [vmem:[%s6280 + $0xae] sm:$0x10] %v6221
      %6433 = vst [vmem:[%s6280 + $0xc6] sm:$0x10] %v6222
      %6434 = vst [vmem:[%s6280 + $0xde] sm:$0x10] %v6222
      %6435 = vst [vmem:[%s6280 + $0xf6] sm:$0x10] %v6223
      %6436 = vst [vmem:[%s6280 + $0x10e] sm:$0x10] %v6223
      %6437 = vst [vmem:[%s6280 + $0x126] sm:$0x10] %v6224
      %6438 = vst [vmem:[%s6280 + $0x13e] sm:$0x10] %v6224
      %6439 = vst [vmem:[%s6280 + $0x156] sm:$0x10] %v6225
      %6440 = vst [vmem:[%s6280 + $0x16e] sm:$0x10] %v6225
      %6441 = vst [vmem:[%s6280 + $0x6] sm:$0x20] %v6218
      %6442 = vst [vmem:[%s6280 + $0x1e] sm:$0x20] %v6218
      %6443 = vst [vmem:[%s6280 + $0x36] sm:$0x20] %v6219
      %6444 = vst [vmem:[%s6280 + $0x4e] sm:$0x20] %v6219
      %6445 = vst [vmem:[%s6280 + $0x66] sm:$0x20] %v6220
      %6446 = vst [vmem:[%s6280 + $0x7e] sm:$0x20] %v6220
      %6447 = vst [vmem:[%s6280 + $0x96] sm:$0x20] %v6221
      %6448 = vst [vmem:[%s6280 + $0xae] sm:$0x20] %v6221
      %6449 = vst [vmem:[%s6280 + $0xc6] sm:$0x20] %v6222
      %6450 = vst [vmem:[%s6280 + $0xde] sm:$0x20] %v6222
      %6451 = vst [vmem:[%s6280 + $0xf6] sm:$0x20] %v6223
      %6452 = vst [vmem:[%s6280 + $0x10e] sm:$0x20] %v6223
      %6453 = vst [vmem:[%s6280 + $0x126] sm:$0x20] %v6224
      %6454 = vst [vmem:[%s6280 + $0x13e] sm:$0x20] %v6224
      %6455 = vst [vmem:[%s6280 + $0x156] sm:$0x20] %v6225
      %6456 = vst [vmem:[%s6280 + $0x16e] sm:$0x20] %v6225
      %6457 = vst [vmem:[%s6280 + $0x7] sm:$0x20] %v6218
      %6458 = vst [vmem:[%s6280 + $0x1f] sm:$0x20] %v6218
      %6459 = vst [vmem:[%s6280 + $0x37] sm:$0x20] %v6219
      %6460 = vst [vmem:[%s6280 + $0x4f] sm:$0x20] %v6219
      %6461 = vst [vmem:[%s6280 + $0x67] sm:$0x20] %v6220
      %6462 = vst [vmem:[%s6280 + $0x7f] sm:$0x20] %v6220
      %6463 = vst [vmem:[%s6280 + $0x97] sm:$0x20] %v6221
      %6464 = vst [vmem:[%s6280 + $0xaf] sm:$0x20] %v6221
      %6465 = vst [vmem:[%s6280 + $0xc7] sm:$0x20] %v6222
      %6466 = vst [vmem:[%s6280 + $0xdf] sm:$0x20] %v6222
      %6467 = vst [vmem:[%s6280 + $0xf7] sm:$0x20] %v6223
      %6468 = vst [vmem:[%s6280 + $0x10f] sm:$0x20] %v6223
      %6469 = vst [vmem:[%s6280 + $0x127] sm:$0x20] %v6224
      %6470 = vst [vmem:[%s6280 + $0x13f] sm:$0x20] %v6224
      %6471 = vst [vmem:[%s6280 + $0x157] sm:$0x20] %v6225
      %6472 = vst [vmem:[%s6280 + $0x16f] sm:$0x20] %v6225
      %6473 = vst [vmem:[%s6280 + $0x7] sm:$0x40] %v6218
      %6474 = vst [vmem:[%s6280 + $0x1f] sm:$0x40] %v6218
      %6475 = vst [vmem:[%s6280 + $0x37] sm:$0x40] %v6219
      %6476 = vst [vmem:[%s6280 + $0x4f] sm:$0x40] %v6219
      %6477 = vst [vmem:[%s6280 + $0x67] sm:$0x40] %v6220
      %6478 = vst [vmem:[%s6280 + $0x7f] sm:$0x40] %v6220
      %6479 = vst [vmem:[%s6280 + $0x97] sm:$0x40] %v6221
      %6480 = vst [vmem:[%s6280 + $0xaf] sm:$0x40] %v6221
      %6481 = vst [vmem:[%s6280 + $0xc7] sm:$0x40] %v6222
      %6482 = vst [vmem:[%s6280 + $0xdf] sm:$0x40] %v6222
      %6483 = vst [vmem:[%s6280 + $0xf7] sm:$0x40] %v6223
      %6484 = vst [vmem:[%s6280 + $0x10f] sm:$0x40] %v6223
      %6485 = vst [vmem:[%s6280 + $0x127] sm:$0x40] %v6224
      %6486 = vst [vmem:[%s6280 + $0x13f] sm:$0x40] %v6224
      %6487 = vst [vmem:[%s6280 + $0x157] sm:$0x40] %v6225
      %6488 = vst [vmem:[%s6280 + $0x16f] sm:$0x40] %v6225
      %6489 = vst [vmem:[%s6280 + $0x8] sm:$0x40] %v6218
      %6490 = vst [vmem:[%s6280 + $0x20] sm:$0x40] %v6218
      %6491 = vst [vmem:[%s6280 + $0x38] sm:$0x40] %v6219
      %6492 = vst [vmem:[%s6280 + $0x50] sm:$0x40] %v6219
      %6493 = vst [vmem:[%s6280 + $0x68] sm:$0x40] %v6220
      %6494 = vst [vmem:[%s6280 + $0x80] sm:$0x40] %v6220
      %6495 = vst [vmem:[%s6280 + $0x98] sm:$0x40] %v6221
      %6496 = vst [vmem:[%s6280 + $0xb0] sm:$0x40] %v6221
      %6497 = vst [vmem:[%s6280 + $0xc8] sm:$0x40] %v6222
      %6498 = vst [vmem:[%s6280 + $0xe0] sm:$0x40] %v6222
      %6499 = vst [vmem:[%s6280 + $0xf8] sm:$0x40] %v6223
      %6500 = vst [vmem:[%s6280 + $0x110] sm:$0x40] %v6223
      %6501 = vst [vmem:[%s6280 + $0x128] sm:$0x40] %v6224
      %6502 = vst [vmem:[%s6280 + $0x140] sm:$0x40] %v6224
      %6503 = vst [vmem:[%s6280 + $0x158] sm:$0x40] %v6225
      %6504 = vst [vmem:[%s6280 + $0x170] sm:$0x40] %v6225
      %6505 = vst [vmem:[%s6280 + $0x8] sm:$0x80] %v6218
      %6506 = vst [vmem:[%s6280 + $0x20] sm:$0x80] %v6218
      %6507 = vst [vmem:[%s6280 + $0x38] sm:$0x80] %v6219
      %6508 = vst [vmem:[%s6280 + $0x50] sm:$0x80] %v6219
      %6509 = vst [vmem:[%s6280 + $0x68] sm:$0x80] %v6220
      %6510 = vst [vmem:[%s6280 + $0x80] sm:$0x80] %v6220
      %6511 = vst [vmem:[%s6280 + $0x98] sm:$0x80] %v6221
      %6512 = vst [vmem:[%s6280 + $0xb0] sm:$0x80] %v6221
      %6513 = vst [vmem:[%s6280 + $0xc8] sm:$0x80] %v6222
      %6514 = vst [vmem:[%s6280 + $0xe0] sm:$0x80] %v6222
      %6515 = vst [vmem:[%s6280 + $0xf8] sm:$0x80] %v6223
      %6516 = vst [vmem:[%s6280 + $0x110] sm:$0x80] %v6223
      %6517 = vst [vmem:[%s6280 + $0x128] sm:$0x80] %v6224
      %6518 = vst [vmem:[%s6280 + $0x140] sm:$0x80] %v6224
      %6519 = vst [vmem:[%s6280 + $0x158] sm:$0x80] %v6225
      %6520 = vst [vmem:[%s6280 + $0x170] sm:$0x80] %v6225
      %6521 = vst [vmem:[%s6280 + $0x9] sm:$0x80] %v6218
      %6522 = vst [vmem:[%s6280 + $0x21] sm:$0x80] %v6218
      %6523 = vst [vmem:[%s6280 + $0x39] sm:$0x80] %v6219
      %6524 = vst [vmem:[%s6280 + $0x51] sm:$0x80] %v6219
      %6525 = vst [vmem:[%s6280 + $0x69] sm:$0x80] %v6220
      %6526 = vst [vmem:[%s6280 + $0x81] sm:$0x80] %v6220
      %6527 = vst [vmem:[%s6280 + $0x99] sm:$0x80] %v6221
      %6528 = vst [vmem:[%s6280 + $0xb1] sm:$0x80] %v6221
      %6529 = vst [vmem:[%s6280 + $0xc9] sm:$0x80] %v6222
      %6530 = vst [vmem:[%s6280 + $0xe1] sm:$0x80] %v6222
      %6531 = vst [vmem:[%s6280 + $0xf9] sm:$0x80] %v6223
      %6532 = vst [vmem:[%s6280 + $0x111] sm:$0x80] %v6223
      %6533 = vst [vmem:[%s6280 + $0x129] sm:$0x80] %v6224
      %6534 = vst [vmem:[%s6280 + $0x141] sm:$0x80] %v6224
      %6535 = vst [vmem:[%s6280 + $0x159] sm:$0x80] %v6225
      %6536 = vst [vmem:[%s6280 + $0x171] sm:$0x80] %v6225
      %v6537 = vld [vmem:[#allocation4] sm:$0xff]
      %v6538 = vld [vmem:[#allocation4 + $0x8] sm:$0xff]
      %v6539 = vld [vmem:[#allocation4 + $0x18] sm:$0xff]
      %v6540 = vld [vmem:[#allocation4 + $0x20] sm:$0xff]
      %v6541 = vld [vmem:[#allocation4 + $0x30] sm:$0xff]
      %v6542 = vld [vmem:[#allocation4 + $0x38] sm:$0xff]
      %v6543 = vld [vmem:[#allocation4 + $0x48] sm:$0xff]
      %v6544 = vld [vmem:[#allocation4 + $0x50] sm:$0xff]
      %v6545 = vld [vmem:[#allocation4 + $0x60] sm:$0xff]
      %v6546 = vld [vmem:[#allocation4 + $0x68] sm:$0xff]
      %v6547 = vld [vmem:[#allocation4 + $0x78] sm:$0xff]
      %v6548 = vld [vmem:[#allocation4 + $0x80] sm:$0xff]
      %v6549 = vld [vmem:[#allocation4 + $0x90] sm:$0xff]
      %v6550 = vld [vmem:[#allocation4 + $0x98] sm:$0xff]
      %v6551 = vld [vmem:[#allocation4 + $0xa8] sm:$0xff]
      %v6552 = vld [vmem:[#allocation4 + $0xb0] sm:$0xff]
      %v6553 = vld [vmem:[#allocation4 + $0xc0] sm:$0xff]
      %v6554 = vld [vmem:[#allocation4 + $0xc8] sm:$0xff]
      %v6555 = vld [vmem:[#allocation4 + $0xd8] sm:$0xff]
      %v6556 = vld [vmem:[#allocation4 + $0xe0] sm:$0xff]
      %v6557 = vld [vmem:[#allocation4 + $0xf0] sm:$0xff]
      %v6558 = vld [vmem:[#allocation4 + $0xf8] sm:$0xff]
      %v6559 = vld [vmem:[#allocation4 + $0x108] sm:$0xff]
      %v6560 = vld [vmem:[#allocation4 + $0x110] sm:$0xff]
      %v6561 = vld [vmem:[#allocation4 + $0x120] sm:$0xff]
      %v6562 = vld [vmem:[#allocation4 + $0x128] sm:$0xff]
      %v6563 = vld [vmem:[#allocation4 + $0x138] sm:$0xff]
      %v6564 = vld [vmem:[#allocation4 + $0x140] sm:$0xff]
      %v6565 = vld [vmem:[#allocation4 + $0x150] sm:$0xff]
      %v6566 = vld [vmem:[#allocation4 + $0x158] sm:$0xff]
      %v6567 = vld [vmem:[#allocation4 + $0x168] sm:$0xff]
      %v6568 = vld [vmem:[#allocation4 + $0x170] sm:$0xff]
      %v6569 = vld [vmem:[%s7] sm:$0x1]
      %v6570 = vlaneseq
      %v6571 = vshrl.u32 %v6570, 7
      %v6572 = vsub.s32 0, %v6571
      %v6573 = vrot.slane %v6569, %v6572
      %v6574 = vmul.f32 %v6537, %v6573
      %v6575 = vmul.f32 %v6538, %v6573
      %v6576 = vmul.f32 %v6539, %v6573
      %v6577 = vmul.f32 %v6540, %v6573
      %v6578 = vmul.f32 %v6541, %v6573
      %v6579 = vmul.f32 %v6542, %v6573
      %v6580 = vmul.f32 %v6543, %v6573
      %v6581 = vmul.f32 %v6544, %v6573
      %v6582 = vmul.f32 %v6545, %v6573
      %v6583 = vmul.f32 %v6546, %v6573
      %v6584 = vmul.f32 %v6547, %v6573
      %v6585 = vmul.f32 %v6548, %v6573
      %v6586 = vmul.f32 %v6549, %v6573
      %v6587 = vmul.f32 %v6550, %v6573
      %v6588 = vmul.f32 %v6551, %v6573
      %v6589 = vmul.f32 %v6552, %v6573
      %v6590 = vmul.f32 %v6553, %v6573
      %v6591 = vmul.f32 %v6554, %v6573
      %v6592 = vmul.f32 %v6555, %v6573
      %v6593 = vmul.f32 %v6556, %v6573
      %v6594 = vmul.f32 %v6557, %v6573
      %v6595 = vmul.f32 %v6558, %v6573
      %v6596 = vmul.f32 %v6559, %v6573
      %v6597 = vmul.f32 %v6560, %v6573
      %v6598 = vmul.f32 %v6561, %v6573
      %v6599 = vmul.f32 %v6562, %v6573
      %v6600 = vmul.f32 %v6563, %v6573
      %v6601 = vmul.f32 %v6564, %v6573
      %v6602 = vmul.f32 %v6565, %v6573
      %v6603 = vmul.f32 %v6566, %v6573
      %v6604 = vmul.f32 %v6567, %v6573
      %v6605 = vmul.f32 %v6568, %v6573
      %v6606 = vadd.f32 %v6574, 0.0
      %v6607 = vadd.f32 %v6575, 0.0
      %v6608 = vadd.f32 %v6576, 0.0
      %v6609 = vadd.f32 %v6577, 0.0
      %v6610 = vadd.f32 %v6578, 0.0
      %v6611 = vadd.f32 %v6579, 0.0
      %v6612 = vadd.f32 %v6580, 0.0
      %v6613 = vadd.f32 %v6581, 0.0
      %v6614 = vadd.f32 %v6582, 0.0
      %v6615 = vadd.f32 %v6583, 0.0
      %v6616 = vadd.f32 %v6584, 0.0
      %v6617 = vadd.f32 %v6585, 0.0
      %v6618 = vadd.f32 %v6586, 0.0
      %v6619 = vadd.f32 %v6587, 0.0
      %v6620 = vadd.f32 %v6588, 0.0
      %v6621 = vadd.f32 %v6589, 0.0
      %v6622 = vadd.f32 %v6590, 0.0
      %v6623 = vadd.f32 %v6591, 0.0
      %v6624 = vadd.f32 %v6592, 0.0
      %v6625 = vadd.f32 %v6593, 0.0
      %v6626 = vadd.f32 %v6594, 0.0
      %v6627 = vadd.f32 %v6595, 0.0
      %v6628 = vadd.f32 %v6596, 0.0
      %v6629 = vadd.f32 %v6597, 0.0
      %v6630 = vadd.f32 %v6598, 0.0
      %v6631 = vadd.f32 %v6599, 0.0
      %v6632 = vadd.f32 %v6600, 0.0
      %v6633 = vadd.f32 %v6601, 0.0
      %v6634 = vadd.f32 %v6602, 0.0
      %v6635 = vadd.f32 %v6603, 0.0
      %v6636 = vadd.f32 %v6604, 0.0
      %v6637 = vadd.f32 %v6605, 0.0
      %v6638 = vld [vmem:[#allocation4 + $0x1] sm:$0xff]
      %v6639 = vld [vmem:[#allocation4 + $0x9] sm:$0xff]
      %v6640 = vld [vmem:[#allocation4 + $0x19] sm:$0xff]
      %v6641 = vld [vmem:[#allocation4 + $0x21] sm:$0xff]
      %v6642 = vld [vmem:[#allocation4 + $0x31] sm:$0xff]
      %v6643 = vld [vmem:[#allocation4 + $0x39] sm:$0xff]
      %v6644 = vld [vmem:[#allocation4 + $0x49] sm:$0xff]
      %v6645 = vld [vmem:[#allocation4 + $0x51] sm:$0xff]
      %v6646 = vld [vmem:[#allocation4 + $0x61] sm:$0xff]
      %v6647 = vld [vmem:[#allocation4 + $0x69] sm:$0xff]
      %v6648 = vld [vmem:[#allocation4 + $0x79] sm:$0xff]
      %v6649 = vld [vmem:[#allocation4 + $0x81] sm:$0xff]
      %v6650 = vld [vmem:[#allocation4 + $0x91] sm:$0xff]
      %v6651 = vld [vmem:[#allocation4 + $0x99] sm:$0xff]
      %v6652 = vld [vmem:[#allocation4 + $0xa9] sm:$0xff]
      %v6653 = vld [vmem:[#allocation4 + $0xb1] sm:$0xff]
      %v6654 = vld [vmem:[#allocation4 + $0xc1] sm:$0xff]
      %v6655 = vld [vmem:[#allocation4 + $0xc9] sm:$0xff]
      %v6656 = vld [vmem:[#allocation4 + $0xd9] sm:$0xff]
      %v6657 = vld [vmem:[#allocation4 + $0xe1] sm:$0xff]
      %v6658 = vld [vmem:[#allocation4 + $0xf1] sm:$0xff]
      %v6659 = vld [vmem:[#allocation4 + $0xf9] sm:$0xff]
      %v6660 = vld [vmem:[#allocation4 + $0x109] sm:$0xff]
      %v6661 = vld [vmem:[#allocation4 + $0x111] sm:$0xff]
      %v6662 = vld [vmem:[#allocation4 + $0x121] sm:$0xff]
      %v6663 = vld [vmem:[#allocation4 + $0x129] sm:$0xff]
      %v6664 = vld [vmem:[#allocation4 + $0x139] sm:$0xff]
      %v6665 = vld [vmem:[#allocation4 + $0x141] sm:$0xff]
      %v6666 = vld [vmem:[#allocation4 + $0x151] sm:$0xff]
      %v6667 = vld [vmem:[#allocation4 + $0x159] sm:$0xff]
      %v6668 = vld [vmem:[#allocation4 + $0x169] sm:$0xff]
      %v6669 = vld [vmem:[#allocation4 + $0x171] sm:$0xff]
      %v6670 = vld [vmem:[%s7 + $0x1] sm:$0x1]
      %v6671 = vlaneseq
      %v6672 = vshrl.u32 %v6671, 7
      %v6673 = vsub.s32 0, %v6672
      %v6674 = vrot.slane %v6670, %v6673
      %v6675 = vmul.f32 %v6638, %v6674
      %v6676 = vmul.f32 %v6639, %v6674
      %v6677 = vmul.f32 %v6640, %v6674
      %v6678 = vmul.f32 %v6641, %v6674
      %v6679 = vmul.f32 %v6642, %v6674
      %v6680 = vmul.f32 %v6643, %v6674
      %v6681 = vmul.f32 %v6644, %v6674
      %v6682 = vmul.f32 %v6645, %v6674
      %v6683 = vmul.f32 %v6646, %v6674
      %v6684 = vmul.f32 %v6647, %v6674
      %v6685 = vmul.f32 %v6648, %v6674
      %v6686 = vmul.f32 %v6649, %v6674
      %v6687 = vmul.f32 %v6650, %v6674
      %v6688 = vmul.f32 %v6651, %v6674
      %v6689 = vmul.f32 %v6652, %v6674
      %v6690 = vmul.f32 %v6653, %v6674
      %v6691 = vmul.f32 %v6654, %v6674
      %v6692 = vmul.f32 %v6655, %v6674
      %v6693 = vmul.f32 %v6656, %v6674
      %v6694 = vmul.f32 %v6657, %v6674
      %v6695 = vmul.f32 %v6658, %v6674
      %v6696 = vmul.f32 %v6659, %v6674
      %v6697 = vmul.f32 %v6660, %v6674
      %v6698 = vmul.f32 %v6661, %v6674
      %v6699 = vmul.f32 %v6662, %v6674
      %v6700 = vmul.f32 %v6663, %v6674
      %v6701 = vmul.f32 %v6664, %v6674
      %v6702 = vmul.f32 %v6665, %v6674
      %v6703 = vmul.f32 %v6666, %v6674
      %v6704 = vmul.f32 %v6667, %v6674
      %v6705 = vmul.f32 %v6668, %v6674
      %v6706 = vmul.f32 %v6669, %v6674
      %v6707 = vadd.f32 %v6606, %v6675
      %v6708 = vadd.f32 %v6607, %v6676
      %v6709 = vadd.f32 %v6608, %v6677
      %v6710 = vadd.f32 %v6609, %v6678
      %v6711 = vadd.f32 %v6610, %v6679
      %v6712 = vadd.f32 %v6611, %v6680
      %v6713 = vadd.f32 %v6612, %v6681
      %v6714 = vadd.f32 %v6613, %v6682
      %v6715 = vadd.f32 %v6614, %v6683
      %v6716 = vadd.f32 %v6615, %v6684
      %v6717 = vadd.f32 %v6616, %v6685
      %v6718 = vadd.f32 %v6617, %v6686
      %v6719 = vadd.f32 %v6618, %v6687
      %v6720 = vadd.f32 %v6619, %v6688
      %v6721 = vadd.f32 %v6620, %v6689
      %v6722 = vadd.f32 %v6621, %v6690
      %v6723 = vadd.f32 %v6622, %v6691
      %v6724 = vadd.f32 %v6623, %v6692
      %v6725 = vadd.f32 %v6624, %v6693
      %v6726 = vadd.f32 %v6625, %v6694
      %v6727 = vadd.f32 %v6626, %v6695
      %v6728 = vadd.f32 %v6627, %v6696
      %v6729 = vadd.f32 %v6628, %v6697
      %v6730 = vadd.f32 %v6629, %v6698
      %v6731 = vadd.f32 %v6630, %v6699
      %v6732 = vadd.f32 %v6631, %v6700
      %v6733 = vadd.f32 %v6632, %v6701
      %v6734 = vadd.f32 %v6633, %v6702
      %v6735 = vadd.f32 %v6634, %v6703
      %v6736 = vadd.f32 %v6635, %v6704
      %v6737 = vadd.f32 %v6636, %v6705
      %v6738 = vadd.f32 %v6637, %v6706
      %v6739 = vld [vmem:[#allocation4 + $0x2] sm:$0xff]
      %v6740 = vld [vmem:[#allocation4 + $0xa] sm:$0xff]
      %v6741 = vld [vmem:[#allocation4 + $0x1a] sm:$0xff]
      %v6742 = vld [vmem:[#allocation4 + $0x22] sm:$0xff]
      %v6743 = vld [vmem:[#allocation4 + $0x32] sm:$0xff]
      %v6744 = vld [vmem:[#allocation4 + $0x3a] sm:$0xff]
      %v6745 = vld [vmem:[#allocation4 + $0x4a] sm:$0xff]
      %v6746 = vld [vmem:[#allocation4 + $0x52] sm:$0xff]
      %v6747 = vld [vmem:[#allocation4 + $0x62] sm:$0xff]
      %v6748 = vld [vmem:[#allocation4 + $0x6a] sm:$0xff]
      %v6749 = vld [vmem:[#allocation4 + $0x7a] sm:$0xff]
      %v6750 = vld [vmem:[#allocation4 + $0x82] sm:$0xff]
      %v6751 = vld [vmem:[#allocation4 + $0x92] sm:$0xff]
      %v6752 = vld [vmem:[#allocation4 + $0x9a] sm:$0xff]
      %v6753 = vld [vmem:[#allocation4 + $0xaa] sm:$0xff]
      %v6754 = vld [vmem:[#allocation4 + $0xb2] sm:$0xff]
      %v6755 = vld [vmem:[#allocation4 + $0xc2] sm:$0xff]
      %v6756 = vld [vmem:[#allocation4 + $0xca] sm:$0xff]
      %v6757 = vld [vmem:[#allocation4 + $0xda] sm:$0xff]
      %v6758 = vld [vmem:[#allocation4 + $0xe2] sm:$0xff]
      %v6759 = vld [vmem:[#allocation4 + $0xf2] sm:$0xff]
      %v6760 = vld [vmem:[#allocation4 + $0xfa] sm:$0xff]
      %v6761 = vld [vmem:[#allocation4 + $0x10a] sm:$0xff]
      %v6762 = vld [vmem:[#allocation4 + $0x112] sm:$0xff]
      %v6763 = vld [vmem:[#allocation4 + $0x122] sm:$0xff]
      %v6764 = vld [vmem:[#allocation4 + $0x12a] sm:$0xff]
      %v6765 = vld [vmem:[#allocation4 + $0x13a] sm:$0xff]
      %v6766 = vld [vmem:[#allocation4 + $0x142] sm:$0xff]
      %v6767 = vld [vmem:[#allocation4 + $0x152] sm:$0xff]
      %v6768 = vld [vmem:[#allocation4 + $0x15a] sm:$0xff]
      %v6769 = vld [vmem:[#allocation4 + $0x16a] sm:$0xff]
      %v6770 = vld [vmem:[#allocation4 + $0x172] sm:$0xff]
      %v6771 = vld [vmem:[%s7 + $0x2] sm:$0x1]
      %v6772 = vlaneseq
      %v6773 = vshrl.u32 %v6772, 7
      %v6774 = vsub.s32 0, %v6773
      %v6775 = vrot.slane %v6771, %v6774
      %v6776 = vmul.f32 %v6739, %v6775
      %v6777 = vmul.f32 %v6740, %v6775
      %v6778 = vmul.f32 %v6741, %v6775
      %v6779 = vmul.f32 %v6742, %v6775
      %v6780 = vmul.f32 %v6743, %v6775
      %v6781 = vmul.f32 %v6744, %v6775
      %v6782 = vmul.f32 %v6745, %v6775
      %v6783 = vmul.f32 %v6746, %v6775
      %v6784 = vmul.f32 %v6747, %v6775
      %v6785 = vmul.f32 %v6748, %v6775
      %v6786 = vmul.f32 %v6749, %v6775
      %v6787 = vmul.f32 %v6750, %v6775
      %v6788 = vmul.f32 %v6751, %v6775
      %v6789 = vmul.f32 %v6752, %v6775
      %v6790 = vmul.f32 %v6753, %v6775
      %v6791 = vmul.f32 %v6754, %v6775
      %v6792 = vmul.f32 %v6755, %v6775
      %v6793 = vmul.f32 %v6756, %v6775
      %v6794 = vmul.f32 %v6757, %v6775
      %v6795 = vmul.f32 %v6758, %v6775
      %v6796 = vmul.f32 %v6759, %v6775
      %v6797 = vmul.f32 %v6760, %v6775
      %v6798 = vmul.f32 %v6761, %v6775
      %v6799 = vmul.f32 %v6762, %v6775
      %v6800 = vmul.f32 %v6763, %v6775
      %v6801 = vmul.f32 %v6764, %v6775
      %v6802 = vmul.f32 %v6765, %v6775
      %v6803 = vmul.f32 %v6766, %v6775
      %v6804 = vmul.f32 %v6767, %v6775
      %v6805 = vmul.f32 %v6768, %v6775
      %v6806 = vmul.f32 %v6769, %v6775
      %v6807 = vmul.f32 %v6770, %v6775
      %v6808 = vadd.f32 %v6707, %v6776
      %v6809 = vadd.f32 %v6708, %v6777
      %v6810 = vadd.f32 %v6709, %v6778
      %v6811 = vadd.f32 %v6710, %v6779
      %v6812 = vadd.f32 %v6711, %v6780
      %v6813 = vadd.f32 %v6712, %v6781
      %v6814 = vadd.f32 %v6713, %v6782
      %v6815 = vadd.f32 %v6714, %v6783
      %v6816 = vadd.f32 %v6715, %v6784
      %v6817 = vadd.f32 %v6716, %v6785
      %v6818 = vadd.f32 %v6717, %v6786
      %v6819 = vadd.f32 %v6718, %v6787
      %v6820 = vadd.f32 %v6719, %v6788
      %v6821 = vadd.f32 %v6720, %v6789
      %v6822 = vadd.f32 %v6721, %v6790
      %v6823 = vadd.f32 %v6722, %v6791
      %v6824 = vadd.f32 %v6723, %v6792
      %v6825 = vadd.f32 %v6724, %v6793
      %v6826 = vadd.f32 %v6725, %v6794
      %v6827 = vadd.f32 %v6726, %v6795
      %v6828 = vadd.f32 %v6727, %v6796
      %v6829 = vadd.f32 %v6728, %v6797
      %v6830 = vadd.f32 %v6729, %v6798
      %v6831 = vadd.f32 %v6730, %v6799
      %v6832 = vadd.f32 %v6731, %v6800
      %v6833 = vadd.f32 %v6732, %v6801
      %v6834 = vadd.f32 %v6733, %v6802
      %v6835 = vadd.f32 %v6734, %v6803
      %v6836 = vadd.f32 %v6735, %v6804
      %v6837 = vadd.f32 %v6736, %v6805
      %v6838 = vadd.f32 %v6737, %v6806
      %v6839 = vadd.f32 %v6738, %v6807
      %v6840 = vld [vmem:[%s6280] sm:$0xff]
      %v6841 = vld [vmem:[%s6280 + $0x8] sm:$0xff]
      %v6842 = vld [vmem:[%s6280 + $0x18] sm:$0xff]
      %v6843 = vld [vmem:[%s6280 + $0x20] sm:$0xff]
      %v6844 = vld [vmem:[%s6280 + $0x30] sm:$0xff]
      %v6845 = vld [vmem:[%s6280 + $0x38] sm:$0xff]
      %v6846 = vld [vmem:[%s6280 + $0x48] sm:$0xff]
      %v6847 = vld [vmem:[%s6280 + $0x50] sm:$0xff]
      %v6848 = vld [vmem:[%s6280 + $0x60] sm:$0xff]
      %v6849 = vld [vmem:[%s6280 + $0x68] sm:$0xff]
      %v6850 = vld [vmem:[%s6280 + $0x78] sm:$0xff]
      %v6851 = vld [vmem:[%s6280 + $0x80] sm:$0xff]
      %v6852 = vld [vmem:[%s6280 + $0x90] sm:$0xff]
      %v6853 = vld [vmem:[%s6280 + $0x98] sm:$0xff]
      %v6854 = vld [vmem:[%s6280 + $0xa8] sm:$0xff]
      %v6855 = vld [vmem:[%s6280 + $0xb0] sm:$0xff]
      %v6856 = vld [vmem:[%s6280 + $0xc0] sm:$0xff]
      %v6857 = vld [vmem:[%s6280 + $0xc8] sm:$0xff]
      %v6858 = vld [vmem:[%s6280 + $0xd8] sm:$0xff]
      %v6859 = vld [vmem:[%s6280 + $0xe0] sm:$0xff]
      %v6860 = vld [vmem:[%s6280 + $0xf0] sm:$0xff]
      %v6861 = vld [vmem:[%s6280 + $0xf8] sm:$0xff]
      %v6862 = vld [vmem:[%s6280 + $0x108] sm:$0xff]
      %v6863 = vld [vmem:[%s6280 + $0x110] sm:$0xff]
      %v6864 = vld [vmem:[%s6280 + $0x120] sm:$0xff]
      %v6865 = vld [vmem:[%s6280 + $0x128] sm:$0xff]
      %v6866 = vld [vmem:[%s6280 + $0x138] sm:$0xff]
      %v6867 = vld [vmem:[%s6280 + $0x140] sm:$0xff]
      %v6868 = vld [vmem:[%s6280 + $0x150] sm:$0xff]
      %v6869 = vld [vmem:[%s6280 + $0x158] sm:$0xff]
      %v6870 = vld [vmem:[%s6280 + $0x168] sm:$0xff]
      %v6871 = vld [vmem:[%s6280 + $0x170] sm:$0xff]
      %v6872 = vld [vmem:[%s7 + $0x3] sm:$0x1]
      %v6873 = vlaneseq
      %v6874 = vshrl.u32 %v6873, 7
      %v6875 = vsub.s32 0, %v6874
      %v6876 = vrot.slane %v6872, %v6875
      %v6877 = vmul.f32 %v6840, %v6876
      %v6878 = vmul.f32 %v6841, %v6876
      %v6879 = vmul.f32 %v6842, %v6876
      %v6880 = vmul.f32 %v6843, %v6876
      %v6881 = vmul.f32 %v6844, %v6876
      %v6882 = vmul.f32 %v6845, %v6876
      %v6883 = vmul.f32 %v6846, %v6876
      %v6884 = vmul.f32 %v6847, %v6876
      %v6885 = vmul.f32 %v6848, %v6876
      %v6886 = vmul.f32 %v6849, %v6876
      %v6887 = vmul.f32 %v6850, %v6876
      %v6888 = vmul.f32 %v6851, %v6876
      %v6889 = vmul.f32 %v6852, %v6876
      %v6890 = vmul.f32 %v6853, %v6876
      %v6891 = vmul.f32 %v6854, %v6876
      %v6892 = vmul.f32 %v6855, %v6876
      %v6893 = vmul.f32 %v6856, %v6876
      %v6894 = vmul.f32 %v6857, %v6876
      %v6895 = vmul.f32 %v6858, %v6876
      %v6896 = vmul.f32 %v6859, %v6876
      %v6897 = vmul.f32 %v6860, %v6876
      %v6898 = vmul.f32 %v6861, %v6876
      %v6899 = vmul.f32 %v6862, %v6876
      %v6900 = vmul.f32 %v6863, %v6876
      %v6901 = vmul.f32 %v6864, %v6876
      %v6902 = vmul.f32 %v6865, %v6876
      %v6903 = vmul.f32 %v6866, %v6876
      %v6904 = vmul.f32 %v6867, %v6876
      %v6905 = vmul.f32 %v6868, %v6876
      %v6906 = vmul.f32 %v6869, %v6876
      %v6907 = vmul.f32 %v6870, %v6876
      %v6908 = vmul.f32 %v6871, %v6876
      %v6909 = vadd.f32 %v6808, %v6877
      %v6910 = vadd.f32 %v6809, %v6878
      %v6911 = vadd.f32 %v6810, %v6879
      %v6912 = vadd.f32 %v6811, %v6880
      %v6913 = vadd.f32 %v6812, %v6881
      %v6914 = vadd.f32 %v6813, %v6882
      %v6915 = vadd.f32 %v6814, %v6883
      %v6916 = vadd.f32 %v6815, %v6884
      %v6917 = vadd.f32 %v6816, %v6885
      %v6918 = vadd.f32 %v6817, %v6886
      %v6919 = vadd.f32 %v6818, %v6887
      %v6920 = vadd.f32 %v6819, %v6888
      %v6921 = vadd.f32 %v6820, %v6889
      %v6922 = vadd.f32 %v6821, %v6890
      %v6923 = vadd.f32 %v6822, %v6891
      %v6924 = vadd.f32 %v6823, %v6892
      %v6925 = vadd.f32 %v6824, %v6893
      %v6926 = vadd.f32 %v6825, %v6894
      %v6927 = vadd.f32 %v6826, %v6895
      %v6928 = vadd.f32 %v6827, %v6896
      %v6929 = vadd.f32 %v6828, %v6897
      %v6930 = vadd.f32 %v6829, %v6898
      %v6931 = vadd.f32 %v6830, %v6899
      %v6932 = vadd.f32 %v6831, %v6900
      %v6933 = vadd.f32 %v6832, %v6901
      %v6934 = vadd.f32 %v6833, %v6902
      %v6935 = vadd.f32 %v6834, %v6903
      %v6936 = vadd.f32 %v6835, %v6904
      %v6937 = vadd.f32 %v6836, %v6905
      %v6938 = vadd.f32 %v6837, %v6906
      %v6939 = vadd.f32 %v6838, %v6907
      %v6940 = vadd.f32 %v6839, %v6908
      %v6941 = vld [vmem:[%s6280 + $0x1] sm:$0xff]
      %v6942 = vld [vmem:[%s6280 + $0x9] sm:$0xff]
      %v6943 = vld [vmem:[%s6280 + $0x19] sm:$0xff]
      %v6944 = vld [vmem:[%s6280 + $0x21] sm:$0xff]
      %v6945 = vld [vmem:[%s6280 + $0x31] sm:$0xff]
      %v6946 = vld [vmem:[%s6280 + $0x39] sm:$0xff]
      %v6947 = vld [vmem:[%s6280 + $0x49] sm:$0xff]
      %v6948 = vld [vmem:[%s6280 + $0x51] sm:$0xff]
      %v6949 = vld [vmem:[%s6280 + $0x61] sm:$0xff]
      %v6950 = vld [vmem:[%s6280 + $0x69] sm:$0xff]
      %v6951 = vld [vmem:[%s6280 + $0x79] sm:$0xff]
      %v6952 = vld [vmem:[%s6280 + $0x81] sm:$0xff]
      %v6953 = vld [vmem:[%s6280 + $0x91] sm:$0xff]
      %v6954 = vld [vmem:[%s6280 + $0x99] sm:$0xff]
      %v6955 = vld [vmem:[%s6280 + $0xa9] sm:$0xff]
      %v6956 = vld [vmem:[%s6280 + $0xb1] sm:$0xff]
      %v6957 = vld [vmem:[%s6280 + $0xc1] sm:$0xff]
      %v6958 = vld [vmem:[%s6280 + $0xc9] sm:$0xff]
      %v6959 = vld [vmem:[%s6280 + $0xd9] sm:$0xff]
      %v6960 = vld [vmem:[%s6280 + $0xe1] sm:$0xff]
      %v6961 = vld [vmem:[%s6280 + $0xf1] sm:$0xff]
      %v6962 = vld [vmem:[%s6280 + $0xf9] sm:$0xff]
      %v6963 = vld [vmem:[%s6280 + $0x109] sm:$0xff]
      %v6964 = vld [vmem:[%s6280 + $0x111] sm:$0xff]
      %v6965 = vld [vmem:[%s6280 + $0x121] sm:$0xff]
      %v6966 = vld [vmem:[%s6280 + $0x129] sm:$0xff]
      %v6967 = vld [vmem:[%s6280 + $0x139] sm:$0xff]
      %v6968 = vld [vmem:[%s6280 + $0x141] sm:$0xff]
      %v6969 = vld [vmem:[%s6280 + $0x151] sm:$0xff]
      %v6970 = vld [vmem:[%s6280 + $0x159] sm:$0xff]
      %v6971 = vld [vmem:[%s6280 + $0x169] sm:$0xff]
      %v6972 = vld [vmem:[%s6280 + $0x171] sm:$0xff]
      %v6973 = vld [vmem:[%s7 + $0x4] sm:$0x1]
      %v6974 = vlaneseq
      %v6975 = vshrl.u32 %v6974, 7
      %v6976 = vsub.s32 0, %v6975
      %v6977 = vrot.slane %v6973, %v6976
      %v6978 = vmul.f32 %v6941, %v6977
      %v6979 = vmul.f32 %v6942, %v6977
      %v6980 = vmul.f32 %v6943, %v6977
      %v6981 = vmul.f32 %v6944, %v6977
      %v6982 = vmul.f32 %v6945, %v6977
      %v6983 = vmul.f32 %v6946, %v6977
      %v6984 = vmul.f32 %v6947, %v6977
      %v6985 = vmul.f32 %v6948, %v6977
      %v6986 = vmul.f32 %v6949, %v6977
      %v6987 = vmul.f32 %v6950, %v6977
      %v6988 = vmul.f32 %v6951, %v6977
      %v6989 = vmul.f32 %v6952, %v6977
      %v6990 = vmul.f32 %v6953, %v6977
      %v6991 = vmul.f32 %v6954, %v6977
      %v6992 = vmul.f32 %v6955, %v6977
      %v6993 = vmul.f32 %v6956, %v6977
      %v6994 = vmul.f32 %v6957, %v6977
      %v6995 = vmul.f32 %v6958, %v6977
      %v6996 = vmul.f32 %v6959, %v6977
      %v6997 = vmul.f32 %v6960, %v6977
      %v6998 = vmul.f32 %v6961, %v6977
      %v6999 = vmul.f32 %v6962, %v6977
      %v7000 = vmul.f32 %v6963, %v6977
      %v7001 = vmul.f32 %v6964, %v6977
      %v7002 = vmul.f32 %v6965, %v6977
      %v7003 = vmul.f32 %v6966, %v6977
      %v7004 = vmul.f32 %v6967, %v6977
      %v7005 = vmul.f32 %v6968, %v6977
      %v7006 = vmul.f32 %v6969, %v6977
      %v7007 = vmul.f32 %v6970, %v6977
      %v7008 = vmul.f32 %v6971, %v6977
      %v7009 = vmul.f32 %v6972, %v6977
      %v7010 = vadd.f32 %v6909, %v6978
      %v7011 = vadd.f32 %v6910, %v6979
      %v7012 = vadd.f32 %v6911, %v6980
      %v7013 = vadd.f32 %v6912, %v6981
      %v7014 = vadd.f32 %v6913, %v6982
      %v7015 = vadd.f32 %v6914, %v6983
      %v7016 = vadd.f32 %v6915, %v6984
      %v7017 = vadd.f32 %v6916, %v6985
      %v7018 = vadd.f32 %v6917, %v6986
      %v7019 = vadd.f32 %v6918, %v6987
      %v7020 = vadd.f32 %v6919, %v6988
      %v7021 = vadd.f32 %v6920, %v6989
      %v7022 = vadd.f32 %v6921, %v6990
      %v7023 = vadd.f32 %v6922, %v6991
      %v7024 = vadd.f32 %v6923, %v6992
      %v7025 = vadd.f32 %v6924, %v6993
      %v7026 = vadd.f32 %v6925, %v6994
      %v7027 = vadd.f32 %v6926, %v6995
      %v7028 = vadd.f32 %v6927, %v6996
      %v7029 = vadd.f32 %v6928, %v6997
      %v7030 = vadd.f32 %v6929, %v6998
      %v7031 = vadd.f32 %v6930, %v6999
      %v7032 = vadd.f32 %v6931, %v7000
      %v7033 = vadd.f32 %v6932, %v7001
      %v7034 = vadd.f32 %v6933, %v7002
      %v7035 = vadd.f32 %v6934, %v7003
      %v7036 = vadd.f32 %v6935, %v7004
      %v7037 = vadd.f32 %v6936, %v7005
      %v7038 = vadd.f32 %v6937, %v7006
      %v7039 = vadd.f32 %v6938, %v7007
      %v7040 = vadd.f32 %v6939, %v7008
      %v7041 = vadd.f32 %v6940, %v7009
      %v7042 = vld [vmem:[%s6280 + $0x2] sm:$0xff]
      %v7043 = vld [vmem:[%s6280 + $0xa] sm:$0xff]
      %v7044 = vld [vmem:[%s6280 + $0x1a] sm:$0xff]
      %v7045 = vld [vmem:[%s6280 + $0x22] sm:$0xff]
      %v7046 = vld [vmem:[%s6280 + $0x32] sm:$0xff]
      %v7047 = vld [vmem:[%s6280 + $0x3a] sm:$0xff]
      %v7048 = vld [vmem:[%s6280 + $0x4a] sm:$0xff]
      %v7049 = vld [vmem:[%s6280 + $0x52] sm:$0xff]
      %v7050 = vld [vmem:[%s6280 + $0x62] sm:$0xff]
      %v7051 = vld [vmem:[%s6280 + $0x6a] sm:$0xff]
      %v7052 = vld [vmem:[%s6280 + $0x7a] sm:$0xff]
      %v7053 = vld [vmem:[%s6280 + $0x82] sm:$0xff]
      %v7054 = vld [vmem:[%s6280 + $0x92] sm:$0xff]
      %v7055 = vld [vmem:[%s6280 + $0x9a] sm:$0xff]
      %v7056 = vld [vmem:[%s6280 + $0xaa] sm:$0xff]
      %v7057 = vld [vmem:[%s6280 + $0xb2] sm:$0xff]
      %v7058 = vld [vmem:[%s6280 + $0xc2] sm:$0xff]
      %v7059 = vld [vmem:[%s6280 + $0xca] sm:$0xff]
      %v7060 = vld [vmem:[%s6280 + $0xda] sm:$0xff]
      %v7061 = vld [vmem:[%s6280 + $0xe2] sm:$0xff]
      %v7062 = vld [vmem:[%s6280 + $0xf2] sm:$0xff]
      %v7063 = vld [vmem:[%s6280 + $0xfa] sm:$0xff]
      %v7064 = vld [vmem:[%s6280 + $0x10a] sm:$0xff]
      %v7065 = vld [vmem:[%s6280 + $0x112] sm:$0xff]
      %v7066 = vld [vmem:[%s6280 + $0x122] sm:$0xff]
      %v7067 = vld [vmem:[%s6280 + $0x12a] sm:$0xff]
      %v7068 = vld [vmem:[%s6280 + $0x13a] sm:$0xff]
      %v7069 = vld [vmem:[%s6280 + $0x142] sm:$0xff]
      %v7070 = vld [vmem:[%s6280 + $0x152] sm:$0xff]
      %v7071 = vld [vmem:[%s6280 + $0x15a] sm:$0xff]
      %v7072 = vld [vmem:[%s6280 + $0x16a] sm:$0xff]
      %v7073 = vld [vmem:[%s6280 + $0x172] sm:$0xff]
      %v7074 = vld [vmem:[%s7 + $0x5] sm:$0x1]
      %v7075 = vlaneseq
      %v7076 = vshrl.u32 %v7075, 7
      %v7077 = vsub.s32 0, %v7076
      %v7078 = vrot.slane %v7074, %v7077
      %v7079 = vmul.f32 %v7042, %v7078
      %v7080 = vmul.f32 %v7043, %v7078
      %v7081 = vmul.f32 %v7044, %v7078
      %v7082 = vmul.f32 %v7045, %v7078
      %v7083 = vmul.f32 %v7046, %v7078
      %v7084 = vmul.f32 %v7047, %v7078
      %v7085 = vmul.f32 %v7048, %v7078
      %v7086 = vmul.f32 %v7049, %v7078
      %v7087 = vmul.f32 %v7050, %v7078
      %v7088 = vmul.f32 %v7051, %v7078
      %v7089 = vmul.f32 %v7052, %v7078
      %v7090 = vmul.f32 %v7053, %v7078
      %v7091 = vmul.f32 %v7054, %v7078
      %v7092 = vmul.f32 %v7055, %v7078
      %v7093 = vmul.f32 %v7056, %v7078
      %v7094 = vmul.f32 %v7057, %v7078
      %v7095 = vmul.f32 %v7058, %v7078
      %v7096 = vmul.f32 %v7059, %v7078
      %v7097 = vmul.f32 %v7060, %v7078
      %v7098 = vmul.f32 %v7061, %v7078
      %v7099 = vmul.f32 %v7062, %v7078
      %v7100 = vmul.f32 %v7063, %v7078
      %v7101 = vmul.f32 %v7064, %v7078
      %v7102 = vmul.f32 %v7065, %v7078
      %v7103 = vmul.f32 %v7066, %v7078
      %v7104 = vmul.f32 %v7067, %v7078
      %v7105 = vmul.f32 %v7068, %v7078
      %v7106 = vmul.f32 %v7069, %v7078
      %v7107 = vmul.f32 %v7070, %v7078
      %v7108 = vmul.f32 %v7071, %v7078
      %v7109 = vmul.f32 %v7072, %v7078
      %v7110 = vmul.f32 %v7073, %v7078
      %v7111 = vadd.f32 %v7010, %v7079
      %v7112 = vadd.f32 %v7011, %v7080
      %v7113 = vadd.f32 %v7012, %v7081
      %v7114 = vadd.f32 %v7013, %v7082
      %v7115 = vadd.f32 %v7014, %v7083
      %v7116 = vadd.f32 %v7015, %v7084
      %v7117 = vadd.f32 %v7016, %v7085
      %v7118 = vadd.f32 %v7017, %v7086
      %v7119 = vadd.f32 %v7018, %v7087
      %v7120 = vadd.f32 %v7019, %v7088
      %v7121 = vadd.f32 %v7020, %v7089
      %v7122 = vadd.f32 %v7021, %v7090
      %v7123 = vadd.f32 %v7022, %v7091
      %v7124 = vadd.f32 %v7023, %v7092
      %v7125 = vadd.f32 %v7024, %v7093
      %v7126 = vadd.f32 %v7025, %v7094
      %v7127 = vadd.f32 %v7026, %v7095
      %v7128 = vadd.f32 %v7027, %v7096
      %v7129 = vadd.f32 %v7028, %v7097
      %v7130 = vadd.f32 %v7029, %v7098
      %v7131 = vadd.f32 %v7030, %v7099
      %v7132 = vadd.f32 %v7031, %v7100
      %v7133 = vadd.f32 %v7032, %v7101
      %v7134 = vadd.f32 %v7033, %v7102
      %v7135 = vadd.f32 %v7034, %v7103
      %v7136 = vadd.f32 %v7035, %v7104
      %v7137 = vadd.f32 %v7036, %v7105
      %v7138 = vadd.f32 %v7037, %v7106
      %v7139 = vadd.f32 %v7038, %v7107
      %v7140 = vadd.f32 %v7039, %v7108
      %v7141 = vadd.f32 %v7040, %v7109
      %v7142 = vadd.f32 %v7041, %v7110
      %s7143 = scalar_lea.vmem [#allocation4], 48
      %v7144 = vld [vmem:[%s7143] sm:$0xff]
      %v7145 = vld [vmem:[%s7143 + $0x8] sm:$0xff]
      %v7146 = vld [vmem:[%s7143 + $0x18] sm:$0xff]
      %v7147 = vld [vmem:[%s7143 + $0x20] sm:$0xff]
      %v7148 = vld [vmem:[%s7143 + $0x30] sm:$0xff]
      %v7149 = vld [vmem:[%s7143 + $0x38] sm:$0xff]
      %v7150 = vld [vmem:[%s7143 + $0x48] sm:$0xff]
      %v7151 = vld [vmem:[%s7143 + $0x50] sm:$0xff]
      %v7152 = vld [vmem:[%s7143 + $0x60] sm:$0xff]
      %v7153 = vld [vmem:[%s7143 + $0x68] sm:$0xff]
      %v7154 = vld [vmem:[%s7143 + $0x78] sm:$0xff]
      %v7155 = vld [vmem:[%s7143 + $0x80] sm:$0xff]
      %v7156 = vld [vmem:[%s7143 + $0x90] sm:$0xff]
      %v7157 = vld [vmem:[%s7143 + $0x98] sm:$0xff]
      %v7158 = vld [vmem:[%s7143 + $0xa8] sm:$0xff]
      %v7159 = vld [vmem:[%s7143 + $0xb0] sm:$0xff]
      %v7160 = vld [vmem:[%s7143 + $0xc0] sm:$0xff]
      %v7161 = vld [vmem:[%s7143 + $0xc8] sm:$0xff]
      %v7162 = vld [vmem:[%s7143 + $0xd8] sm:$0xff]
      %v7163 = vld [vmem:[%s7143 + $0xe0] sm:$0xff]
      %v7164 = vld [vmem:[%s7143 + $0xf0] sm:$0xff]
      %v7165 = vld [vmem:[%s7143 + $0xf8] sm:$0xff]
      %v7166 = vld [vmem:[%s7143 + $0x108] sm:$0xff]
      %v7167 = vld [vmem:[%s7143 + $0x110] sm:$0xff]
      %v7168 = vld [vmem:[%s7143 + $0x120] sm:$0xff]
      %v7169 = vld [vmem:[%s7143 + $0x128] sm:$0xff]
      %v7170 = vld [vmem:[%s7143 + $0x138] sm:$0xff]
      %v7171 = vld [vmem:[%s7143 + $0x140] sm:$0xff]
      %v7172 = vld [vmem:[%s7143 + $0x150] sm:$0xff]
      %v7173 = vld [vmem:[%s7143 + $0x158] sm:$0xff]
      %v7174 = vld [vmem:[%s7143 + $0x168] sm:$0xff]
      %v7175 = vld [vmem:[%s7143 + $0x170] sm:$0xff]
      %v7176 = vld [vmem:[%s7 + $0x6] sm:$0x1]
      %v7177 = vlaneseq
      %v7178 = vshrl.u32 %v7177, 7
      %v7179 = vsub.s32 0, %v7178
      %v7180 = vrot.slane %v7176, %v7179
      %v7181 = vmul.f32 %v7144, %v7180
      %v7182 = vmul.f32 %v7145, %v7180
      %v7183 = vmul.f32 %v7146, %v7180
      %v7184 = vmul.f32 %v7147, %v7180
      %v7185 = vmul.f32 %v7148, %v7180
      %v7186 = vmul.f32 %v7149, %v7180
      %v7187 = vmul.f32 %v7150, %v7180
      %v7188 = vmul.f32 %v7151, %v7180
      %v7189 = vmul.f32 %v7152, %v7180
      %v7190 = vmul.f32 %v7153, %v7180
      %v7191 = vmul.f32 %v7154, %v7180
      %v7192 = vmul.f32 %v7155, %v7180
      %v7193 = vmul.f32 %v7156, %v7180
      %v7194 = vmul.f32 %v7157, %v7180
      %v7195 = vmul.f32 %v7158, %v7180
      %v7196 = vmul.f32 %v7159, %v7180
      %v7197 = vmul.f32 %v7160, %v7180
      %v7198 = vmul.f32 %v7161, %v7180
      %v7199 = vmul.f32 %v7162, %v7180
      %v7200 = vmul.f32 %v7163, %v7180
      %v7201 = vmul.f32 %v7164, %v7180
      %v7202 = vmul.f32 %v7165, %v7180
      %v7203 = vmul.f32 %v7166, %v7180
      %v7204 = vmul.f32 %v7167, %v7180
      %v7205 = vmul.f32 %v7168, %v7180
      %v7206 = vmul.f32 %v7169, %v7180
      %v7207 = vmul.f32 %v7170, %v7180
      %v7208 = vmul.f32 %v7171, %v7180
      %v7209 = vmul.f32 %v7172, %v7180
      %v7210 = vmul.f32 %v7173, %v7180
      %v7211 = vmul.f32 %v7174, %v7180
      %v7212 = vmul.f32 %v7175, %v7180
      %v7213 = vadd.f32 %v7111, %v7181
      %v7214 = vadd.f32 %v7112, %v7182
      %v7215 = vadd.f32 %v7113, %v7183
      %v7216 = vadd.f32 %v7114, %v7184
      %v7217 = vadd.f32 %v7115, %v7185
      %v7218 = vadd.f32 %v7116, %v7186
      %v7219 = vadd.f32 %v7117, %v7187
      %v7220 = vadd.f32 %v7118, %v7188
      %v7221 = vadd.f32 %v7119, %v7189
      %v7222 = vadd.f32 %v7120, %v7190
      %v7223 = vadd.f32 %v7121, %v7191
      %v7224 = vadd.f32 %v7122, %v7192
      %v7225 = vadd.f32 %v7123, %v7193
      %v7226 = vadd.f32 %v7124, %v7194
      %v7227 = vadd.f32 %v7125, %v7195
      %v7228 = vadd.f32 %v7126, %v7196
      %v7229 = vadd.f32 %v7127, %v7197
      %v7230 = vadd.f32 %v7128, %v7198
      %v7231 = vadd.f32 %v7129, %v7199
      %v7232 = vadd.f32 %v7130, %v7200
      %v7233 = vadd.f32 %v7131, %v7201
      %v7234 = vadd.f32 %v7132, %v7202
      %v7235 = vadd.f32 %v7133, %v7203
      %v7236 = vadd.f32 %v7134, %v7204
      %v7237 = vadd.f32 %v7135, %v7205
      %v7238 = vadd.f32 %v7136, %v7206
      %v7239 = vadd.f32 %v7137, %v7207
      %v7240 = vadd.f32 %v7138, %v7208
      %v7241 = vadd.f32 %v7139, %v7209
      %v7242 = vadd.f32 %v7140, %v7210
      %v7243 = vadd.f32 %v7141, %v7211
      %v7244 = vadd.f32 %v7142, %v7212
      %v7245 = vld [vmem:[%s7143 + $0x1] sm:$0xff]
      %v7246 = vld [vmem:[%s7143 + $0x9] sm:$0xff]
      %v7247 = vld [vmem:[%s7143 + $0x19] sm:$0xff]
      %v7248 = vld [vmem:[%s7143 + $0x21] sm:$0xff]
      %v7249 = vld [vmem:[%s7143 + $0x31] sm:$0xff]
      %v7250 = vld [vmem:[%s7143 + $0x39] sm:$0xff]
      %v7251 = vld [vmem:[%s7143 + $0x49] sm:$0xff]
      %v7252 = vld [vmem:[%s7143 + $0x51] sm:$0xff]
      %v7253 = vld [vmem:[%s7143 + $0x61] sm:$0xff]
      %v7254 = vld [vmem:[%s7143 + $0x69] sm:$0xff]
      %v7255 = vld [vmem:[%s7143 + $0x79] sm:$0xff]
      %v7256 = vld [vmem:[%s7143 + $0x81] sm:$0xff]
      %v7257 = vld [vmem:[%s7143 + $0x91] sm:$0xff]
      %v7258 = vld [vmem:[%s7143 + $0x99] sm:$0xff]
      %v7259 = vld [vmem:[%s7143 + $0xa9] sm:$0xff]
      %v7260 = vld [vmem:[%s7143 + $0xb1] sm:$0xff]
      %v7261 = vld [vmem:[%s7143 + $0xc1] sm:$0xff]
      %v7262 = vld [vmem:[%s7143 + $0xc9] sm:$0xff]
      %v7263 = vld [vmem:[%s7143 + $0xd9] sm:$0xff]
      %v7264 = vld [vmem:[%s7143 + $0xe1] sm:$0xff]
      %v7265 = vld [vmem:[%s7143 + $0xf1] sm:$0xff]
      %v7266 = vld [vmem:[%s7143 + $0xf9] sm:$0xff]
      %v7267 = vld [vmem:[%s7143 + $0x109] sm:$0xff]
      %v7268 = vld [vmem:[%s7143 + $0x111] sm:$0xff]
      %v7269 = vld [vmem:[%s7143 + $0x121] sm:$0xff]
      %v7270 = vld [vmem:[%s7143 + $0x129] sm:$0xff]
      %v7271 = vld [vmem:[%s7143 + $0x139] sm:$0xff]
      %v7272 = vld [vmem:[%s7143 + $0x141] sm:$0xff]
      %v7273 = vld [vmem:[%s7143 + $0x151] sm:$0xff]
      %v7274 = vld [vmem:[%s7143 + $0x159] sm:$0xff]
      %v7275 = vld [vmem:[%s7143 + $0x169] sm:$0xff]
      %v7276 = vld [vmem:[%s7143 + $0x171] sm:$0xff]
      %v7277 = vld [vmem:[%s7 + $0x7] sm:$0x1]
      %v7278 = vlaneseq
      %v7279 = vshrl.u32 %v7278, 7
      %v7280 = vsub.s32 0, %v7279
      %v7281 = vrot.slane %v7277, %v7280
      %v7282 = vmul.f32 %v7245, %v7281
      %v7283 = vmul.f32 %v7246, %v7281
      %v7284 = vmul.f32 %v7247, %v7281
      %v7285 = vmul.f32 %v7248, %v7281
      %v7286 = vmul.f32 %v7249, %v7281
      %v7287 = vmul.f32 %v7250, %v7281
      %v7288 = vmul.f32 %v7251, %v7281
      %v7289 = vmul.f32 %v7252, %v7281
      %v7290 = vmul.f32 %v7253, %v7281
      %v7291 = vmul.f32 %v7254, %v7281
      %v7292 = vmul.f32 %v7255, %v7281
      %v7293 = vmul.f32 %v7256, %v7281
      %v7294 = vmul.f32 %v7257, %v7281
      %v7295 = vmul.f32 %v7258, %v7281
      %v7296 = vmul.f32 %v7259, %v7281
      %v7297 = vmul.f32 %v7260, %v7281
      %v7298 = vmul.f32 %v7261, %v7281
      %v7299 = vmul.f32 %v7262, %v7281
      %v7300 = vmul.f32 %v7263, %v7281
      %v7301 = vmul.f32 %v7264, %v7281
      %v7302 = vmul.f32 %v7265, %v7281
      %v7303 = vmul.f32 %v7266, %v7281
      %v7304 = vmul.f32 %v7267, %v7281
      %v7305 = vmul.f32 %v7268, %v7281
      %v7306 = vmul.f32 %v7269, %v7281
      %v7307 = vmul.f32 %v7270, %v7281
      %v7308 = vmul.f32 %v7271, %v7281
      %v7309 = vmul.f32 %v7272, %v7281
      %v7310 = vmul.f32 %v7273, %v7281
      %v7311 = vmul.f32 %v7274, %v7281
      %v7312 = vmul.f32 %v7275, %v7281
      %v7313 = vmul.f32 %v7276, %v7281
      %v7314 = vadd.f32 %v7213, %v7282
      %v7315 = vadd.f32 %v7214, %v7283
      %v7316 = vadd.f32 %v7215, %v7284
      %v7317 = vadd.f32 %v7216, %v7285
      %v7318 = vadd.f32 %v7217, %v7286
      %v7319 = vadd.f32 %v7218, %v7287
      %v7320 = vadd.f32 %v7219, %v7288
      %v7321 = vadd.f32 %v7220, %v7289
      %v7322 = vadd.f32 %v7221, %v7290
      %v7323 = vadd.f32 %v7222, %v7291
      %v7324 = vadd.f32 %v7223, %v7292
      %v7325 = vadd.f32 %v7224, %v7293
      %v7326 = vadd.f32 %v7225, %v7294
      %v7327 = vadd.f32 %v7226, %v7295
      %v7328 = vadd.f32 %v7227, %v7296
      %v7329 = vadd.f32 %v7228, %v7297
      %v7330 = vadd.f32 %v7229, %v7298
      %v7331 = vadd.f32 %v7230, %v7299
      %v7332 = vadd.f32 %v7231, %v7300
      %v7333 = vadd.f32 %v7232, %v7301
      %v7334 = vadd.f32 %v7233, %v7302
      %v7335 = vadd.f32 %v7234, %v7303
      %v7336 = vadd.f32 %v7235, %v7304
      %v7337 = vadd.f32 %v7236, %v7305
      %v7338 = vadd.f32 %v7237, %v7306
      %v7339 = vadd.f32 %v7238, %v7307
      %v7340 = vadd.f32 %v7239, %v7308
      %v7341 = vadd.f32 %v7240, %v7309
      %v7342 = vadd.f32 %v7241, %v7310
      %v7343 = vadd.f32 %v7242, %v7311
      %v7344 = vadd.f32 %v7243, %v7312
      %v7345 = vadd.f32 %v7244, %v7313
      %v7346 = vld [vmem:[%s7143 + $0x2] sm:$0xff]
      %v7347 = vld [vmem:[%s7143 + $0xa] sm:$0xff]
      %v7348 = vld [vmem:[%s7143 + $0x1a] sm:$0xff]
      %v7349 = vld [vmem:[%s7143 + $0x22] sm:$0xff]
      %v7350 = vld [vmem:[%s7143 + $0x32] sm:$0xff]
      %v7351 = vld [vmem:[%s7143 + $0x3a] sm:$0xff]
      %v7352 = vld [vmem:[%s7143 + $0x4a] sm:$0xff]
      %v7353 = vld [vmem:[%s7143 + $0x52] sm:$0xff]
      %v7354 = vld [vmem:[%s7143 + $0x62] sm:$0xff]
      %v7355 = vld [vmem:[%s7143 + $0x6a] sm:$0xff]
      %v7356 = vld [vmem:[%s7143 + $0x7a] sm:$0xff]
      %v7357 = vld [vmem:[%s7143 + $0x82] sm:$0xff]
      %v7358 = vld [vmem:[%s7143 + $0x92] sm:$0xff]
      %v7359 = vld [vmem:[%s7143 + $0x9a] sm:$0xff]
      %v7360 = vld [vmem:[%s7143 + $0xaa] sm:$0xff]
      %v7361 = vld [vmem:[%s7143 + $0xb2] sm:$0xff]
      %v7362 = vld [vmem:[%s7143 + $0xc2] sm:$0xff]
      %v7363 = vld [vmem:[%s7143 + $0xca] sm:$0xff]
      %v7364 = vld [vmem:[%s7143 + $0xda] sm:$0xff]
      %v7365 = vld [vmem:[%s7143 + $0xe2] sm:$0xff]
      %v7366 = vld [vmem:[%s7143 + $0xf2] sm:$0xff]
      %v7367 = vld [vmem:[%s7143 + $0xfa] sm:$0xff]
      %v7368 = vld [vmem:[%s7143 + $0x10a] sm:$0xff]
      %v7369 = vld [vmem:[%s7143 + $0x112] sm:$0xff]
      %v7370 = vld [vmem:[%s7143 + $0x122] sm:$0xff]
      %v7371 = vld [vmem:[%s7143 + $0x12a] sm:$0xff]
      %v7372 = vld [vmem:[%s7143 + $0x13a] sm:$0xff]
      %v7373 = vld [vmem:[%s7143 + $0x142] sm:$0xff]
      %v7374 = vld [vmem:[%s7143 + $0x152] sm:$0xff]
      %v7375 = vld [vmem:[%s7143 + $0x15a] sm:$0xff]
      %v7376 = vld [vmem:[%s7143 + $0x16a] sm:$0xff]
      %v7377 = vld [vmem:[%s7143 + $0x172] sm:$0xff]
      %v7378 = vld [vmem:[%s7 + $0x8] sm:$0x1]
      %v7379 = vlaneseq
      %v7380 = vshrl.u32 %v7379, 7
      %v7381 = vsub.s32 0, %v7380
      %v7382 = vrot.slane %v7378, %v7381
      %v7383 = vmul.f32 %v7346, %v7382
      %v7384 = vmul.f32 %v7347, %v7382
      %v7385 = vmul.f32 %v7348, %v7382
      %v7386 = vmul.f32 %v7349, %v7382
      %v7387 = vmul.f32 %v7350, %v7382
      %v7388 = vmul.f32 %v7351, %v7382
      %v7389 = vmul.f32 %v7352, %v7382
      %v7390 = vmul.f32 %v7353, %v7382
      %v7391 = vmul.f32 %v7354, %v7382
      %v7392 = vmul.f32 %v7355, %v7382
      %v7393 = vmul.f32 %v7356, %v7382
      %v7394 = vmul.f32 %v7357, %v7382
      %v7395 = vmul.f32 %v7358, %v7382
      %v7396 = vmul.f32 %v7359, %v7382
      %v7397 = vmul.f32 %v7360, %v7382
      %v7398 = vmul.f32 %v7361, %v7382
      %v7399 = vmul.f32 %v7362, %v7382
      %v7400 = vmul.f32 %v7363, %v7382
      %v7401 = vmul.f32 %v7364, %v7382
      %v7402 = vmul.f32 %v7365, %v7382
      %v7403 = vmul.f32 %v7366, %v7382
      %v7404 = vmul.f32 %v7367, %v7382
      %v7405 = vmul.f32 %v7368, %v7382
      %v7406 = vmul.f32 %v7369, %v7382
      %v7407 = vmul.f32 %v7370, %v7382
      %v7408 = vmul.f32 %v7371, %v7382
      %v7409 = vmul.f32 %v7372, %v7382
      %v7410 = vmul.f32 %v7373, %v7382
      %v7411 = vmul.f32 %v7374, %v7382
      %v7412 = vmul.f32 %v7375, %v7382
      %v7413 = vmul.f32 %v7376, %v7382
      %v7414 = vmul.f32 %v7377, %v7382
      %v7415 = vadd.f32 %v7314, %v7383
      %v7416 = vadd.f32 %v7315, %v7384
      %v7417 = vadd.f32 %v7316, %v7385
      %v7418 = vadd.f32 %v7317, %v7386
      %v7419 = vadd.f32 %v7318, %v7387
      %v7420 = vadd.f32 %v7319, %v7388
      %v7421 = vadd.f32 %v7320, %v7389
      %v7422 = vadd.f32 %v7321, %v7390
      %v7423 = vadd.f32 %v7322, %v7391
      %v7424 = vadd.f32 %v7323, %v7392
      %v7425 = vadd.f32 %v7324, %v7393
      %v7426 = vadd.f32 %v7325, %v7394
      %v7427 = vadd.f32 %v7326, %v7395
      %v7428 = vadd.f32 %v7327, %v7396
      %v7429 = vadd.f32 %v7328, %v7397
      %v7430 = vadd.f32 %v7329, %v7398
      %v7431 = vadd.f32 %v7330, %v7399
      %v7432 = vadd.f32 %v7331, %v7400
      %v7433 = vadd.f32 %v7332, %v7401
      %v7434 = vadd.f32 %v7333, %v7402
      %v7435 = vadd.f32 %v7334, %v7403
      %v7436 = vadd.f32 %v7335, %v7404
      %v7437 = vadd.f32 %v7336, %v7405
      %v7438 = vadd.f32 %v7337, %v7406
      %v7439 = vadd.f32 %v7338, %v7407
      %v7440 = vadd.f32 %v7339, %v7408
      %v7441 = vadd.f32 %v7340, %v7409
      %v7442 = vadd.f32 %v7341, %v7410
      %v7443 = vadd.f32 %v7342, %v7411
      %v7444 = vadd.f32 %v7343, %v7412
      %v7445 = vadd.f32 %v7344, %v7413
      %v7446 = vadd.f32 %v7345, %v7414
      %7447 = vadd.xlane.f32.xlu0 %v7415
      %v7448 = vpop.xlane.xlu0 %7447
      %7449 = vadd.xlane.f32.xlu0 %v7416
      %v7450 = vpop.xlane.xlu0 %7449
      %7451 = vadd.xlane.f32.xlu0 %v7417
      %v7452 = vpop.xlane.xlu0 %7451
      %7453 = vadd.xlane.f32.xlu0 %v7418
      %v7454 = vpop.xlane.xlu0 %7453
      %7455 = vadd.xlane.f32.xlu0 %v7419
      %v7456 = vpop.xlane.xlu0 %7455
      %7457 = vadd.xlane.f32.xlu0 %v7420
      %v7458 = vpop.xlane.xlu0 %7457
      %7459 = vadd.xlane.f32.xlu0 %v7421
      %v7460 = vpop.xlane.xlu0 %7459
      %7461 = vadd.xlane.f32.xlu0 %v7422
      %v7462 = vpop.xlane.xlu0 %7461
      %7463 = vadd.xlane.f32.xlu0 %v7423
      %v7464 = vpop.xlane.xlu0 %7463
      %7465 = vadd.xlane.f32.xlu0 %v7424
      %v7466 = vpop.xlane.xlu0 %7465
      %7467 = vadd.xlane.f32.xlu0 %v7425
      %v7468 = vpop.xlane.xlu0 %7467
      %7469 = vadd.xlane.f32.xlu0 %v7426
      %v7470 = vpop.xlane.xlu0 %7469
      %7471 = vadd.xlane.f32.xlu0 %v7427
      %v7472 = vpop.xlane.xlu0 %7471
      %7473 = vadd.xlane.f32.xlu0 %v7428
      %v7474 = vpop.xlane.xlu0 %7473
      %7475 = vadd.xlane.f32.xlu0 %v7429
      %v7476 = vpop.xlane.xlu0 %7475
      %7477 = vadd.xlane.f32.xlu0 %v7430
      %v7478 = vpop.xlane.xlu0 %7477
      %7479 = vadd.xlane.f32.xlu0 %v7431
      %v7480 = vpop.xlane.xlu0 %7479
      %7481 = vadd.xlane.f32.xlu0 %v7432
      %v7482 = vpop.xlane.xlu0 %7481
      %7483 = vadd.xlane.f32.xlu0 %v7433
      %v7484 = vpop.xlane.xlu0 %7483
      %7485 = vadd.xlane.f32.xlu0 %v7434
      %v7486 = vpop.xlane.xlu0 %7485
      %7487 = vadd.xlane.f32.xlu0 %v7435
      %v7488 = vpop.xlane.xlu0 %7487
      %7489 = vadd.xlane.f32.xlu0 %v7436
      %v7490 = vpop.xlane.xlu0 %7489
      %7491 = vadd.xlane.f32.xlu0 %v7437
      %v7492 = vpop.xlane.xlu0 %7491
      %7493 = vadd.xlane.f32.xlu0 %v7438
      %v7494 = vpop.xlane.xlu0 %7493
      %7495 = vadd.xlane.f32.xlu0 %v7439
      %v7496 = vpop.xlane.xlu0 %7495
      %7497 = vadd.xlane.f32.xlu0 %v7440
      %v7498 = vpop.xlane.xlu0 %7497
      %7499 = vadd.xlane.f32.xlu0 %v7441
      %v7500 = vpop.xlane.xlu0 %7499
      %7501 = vadd.xlane.f32.xlu0 %v7442
      %v7502 = vpop.xlane.xlu0 %7501
      %7503 = vadd.xlane.f32.xlu0 %v7443
      %v7504 = vpop.xlane.xlu0 %7503
      %7505 = vadd.xlane.f32.xlu0 %v7444
      %v7506 = vpop.xlane.xlu0 %7505
      %7507 = vadd.xlane.f32.xlu0 %v7445
      %v7508 = vpop.xlane.xlu0 %7507
      %7509 = vadd.xlane.f32.xlu0 %v7446
      %v7510 = vpop.xlane.xlu0 %7509
      %v7511 = vld [vmem:[#allocation5] sm:$0x1]
      %v7513 = vlaneseq
      %v7514 = vshrl.u32 %v7513, 7
      %v7515 = vsub.s32 0, %v7514
      %v7516 = vrot.slane %v7511, %v7515
      %v7518 = vadd.f32 %v7448, %v7516
      %v7519 = vadd.f32 %v7450, %v7516
      %v7520 = vadd.f32 %v7452, %v7516
      %v7521 = vadd.f32 %v7454, %v7516
      %v7522 = vadd.f32 %v7456, %v7516
      %v7523 = vadd.f32 %v7458, %v7516
      %v7524 = vadd.f32 %v7460, %v7516
      %v7525 = vadd.f32 %v7462, %v7516
      %v7526 = vadd.f32 %v7464, %v7516
      %v7527 = vadd.f32 %v7466, %v7516
      %v7528 = vadd.f32 %v7468, %v7516
      %v7529 = vadd.f32 %v7470, %v7516
      %v7530 = vadd.f32 %v7472, %v7516
      %v7531 = vadd.f32 %v7474, %v7516
      %v7532 = vadd.f32 %v7476, %v7516
      %v7533 = vadd.f32 %v7478, %v7516
      %v7534 = vadd.f32 %v7480, %v7516
      %v7535 = vadd.f32 %v7482, %v7516
      %v7536 = vadd.f32 %v7484, %v7516
      %v7537 = vadd.f32 %v7486, %v7516
      %v7538 = vadd.f32 %v7488, %v7516
      %v7539 = vadd.f32 %v7490, %v7516
      %v7540 = vadd.f32 %v7492, %v7516
      %v7541 = vadd.f32 %v7494, %v7516
      %v7542 = vadd.f32 %v7496, %v7516
      %v7543 = vadd.f32 %v7498, %v7516
      %v7544 = vadd.f32 %v7500, %v7516
      %v7545 = vadd.f32 %v7502, %v7516
      %v7546 = vadd.f32 %v7504, %v7516
      %v7547 = vadd.f32 %v7506, %v7516
      %v7548 = vadd.f32 %v7508, %v7516
      %v7549 = vadd.f32 %v7510, %v7516
      %v7550 = vsub.f32 0.0, %v7518
      %v7551 = vsub.f32 0.0, %v7519
      %v7552 = vsub.f32 0.0, %v7520
      %v7553 = vsub.f32 0.0, %v7521
      %v7554 = vsub.f32 0.0, %v7522
      %v7555 = vsub.f32 0.0, %v7523
      %v7556 = vsub.f32 0.0, %v7524
      %v7557 = vsub.f32 0.0, %v7525
      %v7558 = vsub.f32 0.0, %v7526
      %v7559 = vsub.f32 0.0, %v7527
      %v7560 = vsub.f32 0.0, %v7528
      %v7561 = vsub.f32 0.0, %v7529
      %v7562 = vsub.f32 0.0, %v7530
      %v7563 = vsub.f32 0.0, %v7531
      %v7564 = vsub.f32 0.0, %v7532
      %v7565 = vsub.f32 0.0, %v7533
      %v7566 = vsub.f32 0.0, %v7534
      %v7567 = vsub.f32 0.0, %v7535
      %v7568 = vsub.f32 0.0, %v7536
      %v7569 = vsub.f32 0.0, %v7537
      %v7570 = vsub.f32 0.0, %v7538
      %v7571 = vsub.f32 0.0, %v7539
      %v7572 = vsub.f32 0.0, %v7540
      %v7573 = vsub.f32 0.0, %v7541
      %v7574 = vsub.f32 0.0, %v7542
      %v7575 = vsub.f32 0.0, %v7543
      %v7576 = vsub.f32 0.0, %v7544
      %v7577 = vsub.f32 0.0, %v7545
      %v7578 = vsub.f32 0.0, %v7546
      %v7579 = vsub.f32 0.0, %v7547
      %v7580 = vsub.f32 0.0, %v7548
      %v7581 = vsub.f32 0.0, %v7549
      %v7582 = vmul.f32 %v7550, 1.442695
      %v7583 = vpow.pop %v7582
      %v7584 = vmul.f32 %v7551, 1.442695
      %v7585 = vpow.pop %v7584
      %v7586 = vmul.f32 %v7552, 1.442695
      %v7587 = vpow.pop %v7586
      %v7588 = vmul.f32 %v7553, 1.442695
      %v7589 = vpow.pop %v7588
      %v7590 = vmul.f32 %v7554, 1.442695
      %v7591 = vpow.pop %v7590
      %v7592 = vmul.f32 %v7555, 1.442695
      %v7593 = vpow.pop %v7592
      %v7594 = vmul.f32 %v7556, 1.442695
      %v7595 = vpow.pop %v7594
      %v7596 = vmul.f32 %v7557, 1.442695
      %v7597 = vpow.pop %v7596
      %v7598 = vmul.f32 %v7558, 1.442695
      %v7599 = vpow.pop %v7598
      %v7600 = vmul.f32 %v7559, 1.442695
      %v7601 = vpow.pop %v7600
      %v7602 = vmul.f32 %v7560, 1.442695
      %v7603 = vpow.pop %v7602
      %v7604 = vmul.f32 %v7561, 1.442695
      %v7605 = vpow.pop %v7604
      %v7606 = vmul.f32 %v7562, 1.442695
      %v7607 = vpow.pop %v7606
      %v7608 = vmul.f32 %v7563, 1.442695
      %v7609 = vpow.pop %v7608
      %v7610 = vmul.f32 %v7564, 1.442695
      %v7611 = vpow.pop %v7610
      %v7612 = vmul.f32 %v7565, 1.442695
      %v7613 = vpow.pop %v7612
      %v7614 = vmul.f32 %v7566, 1.442695
      %v7615 = vpow.pop %v7614
      %v7616 = vmul.f32 %v7567, 1.442695
      %v7617 = vpow.pop %v7616
      %v7618 = vmul.f32 %v7568, 1.442695
      %v7619 = vpow.pop %v7618
      %v7620 = vmul.f32 %v7569, 1.442695
      %v7621 = vpow.pop %v7620
      %v7622 = vmul.f32 %v7570, 1.442695
      %v7623 = vpow.pop %v7622
      %v7624 = vmul.f32 %v7571, 1.442695
      %v7625 = vpow.pop %v7624
      %v7626 = vmul.f32 %v7572, 1.442695
      %v7627 = vpow.pop %v7626
      %v7628 = vmul.f32 %v7573, 1.442695
      %v7629 = vpow.pop %v7628
      %v7630 = vmul.f32 %v7574, 1.442695
      %v7631 = vpow.pop %v7630
      %v7632 = vmul.f32 %v7575, 1.442695
      %v7633 = vpow.pop %v7632
      %v7634 = vmul.f32 %v7576, 1.442695
      %v7635 = vpow.pop %v7634
      %v7636 = vmul.f32 %v7577, 1.442695
      %v7637 = vpow.pop %v7636
      %v7638 = vmul.f32 %v7578, 1.442695
      %v7639 = vpow.pop %v7638
      %v7640 = vmul.f32 %v7579, 1.442695
      %v7641 = vpow.pop %v7640
      %v7642 = vmul.f32 %v7580, 1.442695
      %v7643 = vpow.pop %v7642
      %v7644 = vmul.f32 %v7581, 1.442695
      %v7645 = vpow.pop %v7644
      %v7646 = vadd.f32 %v7583, 1.0
      %v7647 = vadd.f32 %v7585, 1.0
      %v7648 = vadd.f32 %v7587, 1.0
      %v7649 = vadd.f32 %v7589, 1.0
      %v7650 = vadd.f32 %v7591, 1.0
      %v7651 = vadd.f32 %v7593, 1.0
      %v7652 = vadd.f32 %v7595, 1.0
      %v7653 = vadd.f32 %v7597, 1.0
      %v7654 = vadd.f32 %v7599, 1.0
      %v7655 = vadd.f32 %v7601, 1.0
      %v7656 = vadd.f32 %v7603, 1.0
      %v7657 = vadd.f32 %v7605, 1.0
      %v7658 = vadd.f32 %v7607, 1.0
      %v7659 = vadd.f32 %v7609, 1.0
      %v7660 = vadd.f32 %v7611, 1.0
      %v7661 = vadd.f32 %v7613, 1.0
      %v7662 = vadd.f32 %v7615, 1.0
      %v7663 = vadd.f32 %v7617, 1.0
      %v7664 = vadd.f32 %v7619, 1.0
      %v7665 = vadd.f32 %v7621, 1.0
      %v7666 = vadd.f32 %v7623, 1.0
      %v7667 = vadd.f32 %v7625, 1.0
      %v7668 = vadd.f32 %v7627, 1.0
      %v7669 = vadd.f32 %v7629, 1.0
      %v7670 = vadd.f32 %v7631, 1.0
      %v7671 = vadd.f32 %v7633, 1.0
      %v7672 = vadd.f32 %v7635, 1.0
      %v7673 = vadd.f32 %v7637, 1.0
      %v7674 = vadd.f32 %v7639, 1.0
      %v7675 = vadd.f32 %v7641, 1.0
      %v7676 = vadd.f32 %v7643, 1.0
      %v7677 = vadd.f32 %v7645, 1.0
      %v7678 = vrcp.pop %v7646
      %v7679 = vrcp.pop %v7647
      %v7680 = vrcp.pop %v7648
      %v7681 = vrcp.pop %v7649
      %v7682 = vrcp.pop %v7650
      %v7683 = vrcp.pop %v7651
      %v7684 = vrcp.pop %v7652
      %v7685 = vrcp.pop %v7653
      %v7686 = vrcp.pop %v7654
      %v7687 = vrcp.pop %v7655
      %v7688 = vrcp.pop %v7656
      %v7689 = vrcp.pop %v7657
      %v7690 = vrcp.pop %v7658
      %v7691 = vrcp.pop %v7659
      %v7692 = vrcp.pop %v7660
      %v7693 = vrcp.pop %v7661
      %v7694 = vrcp.pop %v7662
      %v7695 = vrcp.pop %v7663
      %v7696 = vrcp.pop %v7664
      %v7697 = vrcp.pop %v7665
      %v7698 = vrcp.pop %v7666
      %v7699 = vrcp.pop %v7667
      %v7700 = vrcp.pop %v7668
      %v7701 = vrcp.pop %v7669
      %v7702 = vrcp.pop %v7670
      %v7703 = vrcp.pop %v7671
      %v7704 = vrcp.pop %v7672
      %v7705 = vrcp.pop %v7673
      %v7706 = vrcp.pop %v7674
      %v7707 = vrcp.pop %v7675
      %v7708 = vrcp.pop %v7676
      %v7709 = vrcp.pop %v7677
      %v7710 = vmax.f32 %v7678, 0.0
      %v7711 = vmax.f32 %v7679, 0.0
      %v7712 = vmax.f32 %v7680, 0.0
      %v7713 = vmax.f32 %v7681, 0.0
      %v7714 = vmax.f32 %v7682, 0.0
      %v7715 = vmax.f32 %v7683, 0.0
      %v7716 = vmax.f32 %v7684, 0.0
      %v7717 = vmax.f32 %v7685, 0.0
      %v7718 = vmax.f32 %v7686, 0.0
      %v7719 = vmax.f32 %v7687, 0.0
      %v7720 = vmax.f32 %v7688, 0.0
      %v7721 = vmax.f32 %v7689, 0.0
      %v7722 = vmax.f32 %v7690, 0.0
      %v7723 = vmax.f32 %v7691, 0.0
      %v7724 = vmax.f32 %v7692, 0.0
      %v7725 = vmax.f32 %v7693, 0.0
      %v7726 = vmax.f32 %v7694, 0.0
      %v7727 = vmax.f32 %v7695, 0.0
      %v7728 = vmax.f32 %v7696, 0.0
      %v7729 = vmax.f32 %v7697, 0.0
      %v7730 = vmax.f32 %v7698, 0.0
      %v7731 = vmax.f32 %v7699, 0.0
      %v7732 = vmax.f32 %v7700, 0.0
      %v7733 = vmax.f32 %v7701, 0.0
      %v7734 = vmax.f32 %v7702, 0.0
      %v7735 = vmax.f32 %v7703, 0.0
      %v7736 = vmax.f32 %v7704, 0.0
      %v7737 = vmax.f32 %v7705, 0.0
      %v7738 = vmax.f32 %v7706, 0.0
      %v7739 = vmax.f32 %v7707, 0.0
      %v7740 = vmax.f32 %v7708, 0.0
      %v7741 = vmax.f32 %v7709, 0.0
      %v7742 = vmin.f32 %v7710, 1.0
      %v7743 = vmin.f32 %v7711, 1.0
      %v7744 = vmin.f32 %v7712, 1.0
      %v7745 = vmin.f32 %v7713, 1.0
      %v7746 = vmin.f32 %v7714, 1.0
      %v7747 = vmin.f32 %v7715, 1.0
      %v7748 = vmin.f32 %v7716, 1.0
      %v7749 = vmin.f32 %v7717, 1.0
      %v7750 = vmin.f32 %v7718, 1.0
      %v7751 = vmin.f32 %v7719, 1.0
      %v7752 = vmin.f32 %v7720, 1.0
      %v7753 = vmin.f32 %v7721, 1.0
      %v7754 = vmin.f32 %v7722, 1.0
      %v7755 = vmin.f32 %v7723, 1.0
      %v7756 = vmin.f32 %v7724, 1.0
      %v7757 = vmin.f32 %v7725, 1.0
      %v7758 = vmin.f32 %v7726, 1.0
      %v7759 = vmin.f32 %v7727, 1.0
      %v7760 = vmin.f32 %v7728, 1.0
      %v7761 = vmin.f32 %v7729, 1.0
      %v7762 = vmin.f32 %v7730, 1.0
      %v7763 = vmin.f32 %v7731, 1.0
      %v7764 = vmin.f32 %v7732, 1.0
      %v7765 = vmin.f32 %v7733, 1.0
      %v7766 = vmin.f32 %v7734, 1.0
      %v7767 = vmin.f32 %v7735, 1.0
      %v7768 = vmin.f32 %v7736, 1.0
      %v7769 = vmin.f32 %v7737, 1.0
      %v7770 = vmin.f32 %v7738, 1.0
      %v7771 = vmin.f32 %v7739, 1.0
      %v7772 = vmin.f32 %v7740, 1.0
      %v7773 = vmin.f32 %v7741, 1.0
      %vm7774 = vcmask 7168
      %7775 = vst.msk [vmem:[%s334] sm:$0xff] %vm7774, %v7742
      %7776 = vst.msk [vmem:[%s334 + $0x8] sm:$0xff] %vm7774, %v7743
      %7777 = vst.msk [vmem:[%s334 + $0x10] sm:$0xff] %vm7774, %v7744
      %7778 = vst.msk [vmem:[%s334 + $0x18] sm:$0xff] %vm7774, %v7745
      %7779 = vst.msk [vmem:[%s334 + $0x20] sm:$0xff] %vm7774, %v7746
      %7780 = vst.msk [vmem:[%s334 + $0x28] sm:$0xff] %vm7774, %v7747
      %7781 = vst.msk [vmem:[%s334 + $0x30] sm:$0xff] %vm7774, %v7748
      %7782 = vst.msk [vmem:[%s334 + $0x38] sm:$0xff] %vm7774, %v7749
      %7783 = vst.msk [vmem:[%s334 + $0x40] sm:$0xff] %vm7774, %v7750
      %7784 = vst.msk [vmem:[%s334 + $0x48] sm:$0xff] %vm7774, %v7751
      %7785 = vst.msk [vmem:[%s334 + $0x50] sm:$0xff] %vm7774, %v7752
      %7786 = vst.msk [vmem:[%s334 + $0x58] sm:$0xff] %vm7774, %v7753
      %7787 = vst.msk [vmem:[%s334 + $0x60] sm:$0xff] %vm7774, %v7754
      %7788 = vst.msk [vmem:[%s334 + $0x68] sm:$0xff] %vm7774, %v7755
      %7789 = vst.msk [vmem:[%s334 + $0x70] sm:$0xff] %vm7774, %v7756
      %7790 = vst.msk [vmem:[%s334 + $0x78] sm:$0xff] %vm7774, %v7757
      %7791 = vst.msk [vmem:[%s334 + $0x80] sm:$0xff] %vm7774, %v7758
      %7792 = vst.msk [vmem:[%s334 + $0x88] sm:$0xff] %vm7774, %v7759
      %7793 = vst.msk [vmem:[%s334 + $0x90] sm:$0xff] %vm7774, %v7760
      %7794 = vst.msk [vmem:[%s334 + $0x98] sm:$0xff] %vm7774, %v7761
      %7795 = vst.msk [vmem:[%s334 + $0xa0] sm:$0xff] %vm7774, %v7762
      %7796 = vst.msk [vmem:[%s334 + $0xa8] sm:$0xff] %vm7774, %v7763
      %7797 = vst.msk [vmem:[%s334 + $0xb0] sm:$0xff] %vm7774, %v7764
      %7798 = vst.msk [vmem:[%s334 + $0xb8] sm:$0xff] %vm7774, %v7765
      %7799 = vst.msk [vmem:[%s334 + $0xc0] sm:$0xff] %vm7774, %v7766
      %7800 = vst.msk [vmem:[%s334 + $0xc8] sm:$0xff] %vm7774, %v7767
      %7801 = vst.msk [vmem:[%s334 + $0xd0] sm:$0xff] %vm7774, %v7768
      %7802 = vst.msk [vmem:[%s334 + $0xd8] sm:$0xff] %vm7774, %v7769
      %7803 = vst.msk [vmem:[%s334 + $0xe0] sm:$0xff] %vm7774, %v7770
      %7804 = vst.msk [vmem:[%s334 + $0xe8] sm:$0xff] %vm7774, %v7771
      %7805 = vst.msk [vmem:[%s334 + $0xf0] sm:$0xff] %vm7774, %v7772
      %7806 = vst.msk [vmem:[%s334 + $0xf8] sm:$0xff] %vm7774, %v7773
      %p7807 = scmp.lt.s32.totalorder %s22, 1
      %s7808 = scalar_select %p7807, %s22, 1
      %s7809 = smul.addr %s7808, 32
      %s7810 = smul.addr %s7809, 8
      %s7811 = scalar_lea.vmem %s9, %s7810
      // Predicated region
      $region57: #{conv_autoencoder_forward.1} parent=55 // pred_check
        %p7812 = pneg %p234
      $region58: #{conv_autoencoder_forward.1} parent=55 // pred_check_branch
        %7814 = sbr.rel (%p7812) target = $region60
      $region59: #{conv_autoencoder_forward.1} parent=55 // pred_region
        _
      $region60: #{conv_autoencoder_forward.1} parent=55 // pred_fallthru
        _
    $region56: #{conv_autoencoder_forward.1} parent=5 // pred_fallthru
      _
    %p7815 = scmp.le.s32.totalorder 2, %s17
    // Predicated region
    $region61: #{conv_autoencoder_forward.1} parent=5 // pred_check
      %p7816 = pneg %p7815
    $region62: #{conv_autoencoder_forward.1} parent=5 // pred_check_branch
      %7818 = sbr.rel (%p7816) target = $region64
    $region63: #{conv_autoencoder_forward.1} parent=5 // pred_region
      %s7819 = ssub.s32 %s17, 2
      // Predicated region
      $region65: #{conv_autoencoder_forward.1} parent=63 // pred_check
        %p7820 = pneg %p240
      $region66: #{conv_autoencoder_forward.1} parent=63 // pred_check_branch
        %7822 = sbr.rel (%p7820) target = $region68
      $region67: #{conv_autoencoder_forward.1} parent=63 // pred_region
        %p7823 = scmp.lt.s32.totalorder %s23, 1
        %s7824 = scalar_select %p7823, %s23, 1
        %s7825 = smul.addr %s7824, 32
        %s7826 = smul.addr %s7825, 8
        %s7827 = scalar_lea.vmem %s9, %s7826
      $region68: #{conv_autoencoder_forward.1} parent=63 // pred_fallthru
        _
    $region64: #{conv_autoencoder_forward.1} parent=5 // pred_fallthru
      _
  $region6: #{conv_autoencoder_forward.1} parent=0 // loop_footer
    %s21 = sadd.s32 1, %s17
  $region7: #{conv_autoencoder_forward.1} parent=0 // loop_footer_branch
    %16 = sbr.rel target = $region3
  $region8: #{conv_autoencoder_forward.1} parent=0 // loop_exit
    _

</llo_original>
